<compile_context>
chip_gen: v7x
topology: tpu7x:2x2x1
jax: 0.10.0
libtpu: 0.0.40
codegen_flags: <defaults>
</compile_context>

<pallas_src>
import math

import jax
import jax.numpy as jnp
from jax import lax
from jax.experimental import pallas as pl
from jax.experimental.pallas import tpu as pltpu

# --------------------------------------------------------------------------
# model hyper-parameters (small shapes consistent with the torch module)
# --------------------------------------------------------------------------
EMBED_DIM = 32
HID = 32                         # hidden width of the init-embed MLPs (Linear(x, 32))
N_ENCODE_LAYERS = 2
N_HEADS = 1                      # embedding_dim % n_heads == 0
TANH_CLIPPING = 10.0
TEMP = 1.0
INTERNAL_NODE_HOLDER = 8
INTERNAL_NODE_LENGTH = 6
LEAF_NODE_HOLDER = 8
NEXT_HOLDER = 1
GRAPH_SIZE = INTERNAL_NODE_HOLDER + LEAF_NODE_HOLDER + NEXT_HOLDER   # 17
GRAPH_PAD = 24                   # graph dim padded to a multiple of 8 (sublane-aligned reshapes)
FEAT = 9                         # 8 feature columns + validity flag
# TODO(synk): GraphAttentionEncoder internals (ff hidden width, normalisation
# flavour) are not given in the prompt; a standard masked MHA + LayerNorm + FF
# encoder layer is used here.
FF_HIDDEN = 64

# Samples per grid step: 64*24 = 1536 MXU rows per fused matmul, ~12-15 MiB of
# live f32 intermediates -> fits comfortably on every generation (v7x has only
# 64 MiB physical VMEM per TensorCore).  v5e/v6e could push this to 128-256
# with the raised vmem limit below; 64 is the portable default.
BATCH_TILE_MAX = 64
VMEM_LIMIT_BYTES = 48 * 1024 * 1024

MATMUL_DTYPE = jnp.bfloat16      # MXU operands only; LN / softmax math stays f32


# --------------------------------------------------------------------------
# THE fused kernel: embed MLPs -> encoder layers -> pointer decode
# --------------------------------------------------------------------------
def _fused_forward_kernel(obs_ref, vlane_ref,
                          w1_ref, b1_ref, tmask_ref, w2_ref, b2r_ref,
                          wqkv_ref, wo_ref, ln1g_ref, ln1b_ref,
                          wf1_ref, bf1_ref, wf2_ref, bf2_ref, ln2g_ref, ln2b_ref,
                          wfix_ref, wk_ref,
                          ctx_out_ref, probs_out_ref):
    x = obs_ref[...]                      # (BT, GP, 9)  features + validity flag (pad rows = 0)
    vlane = vlane_ref[...]                # (BT, 1, GP)  1.0 == valid node (lane-major)
    bt, g, _ = x.shape
    e = EMBED_DIM
    h3 = 3 * HID
    inv_sqrt_e = 1.0 / math.sqrt(e)
    ih, lh = INTERNAL_NODE_HOLDER, LEAF_NODE_HOLDER
    mm = MATMUL_DTYPE

    # ---- fused init-node-embed MLPs (internal / leaf / next in one pass) ----
    # norm_factor is folded into w1 in the wrapper; the validity column
    # (feature 8) has a zero weight row, so obs feeds the matmul directly.
    pre = jnp.dot(x.reshape(bt * g, FEAT).astype(mm), w1_ref[...],
                  preferred_element_type=jnp.float32)                   # (BT*GP, 3H)
    pre = pre.reshape(bt, g, h3) + b1_ref[...]
    act = jnp.where(pre > 0, pre, 0.01 * pre)                           # LeakyReLU
    act = act * tmask_ref[...][None, :, :]                              # node-type select (pad rows -> 0)
    h = jnp.dot(act.reshape(bt * g, h3).astype(mm), w2_ref[...],
                preferred_element_type=jnp.float32).reshape(bt, g, e)
    h = h + b2r_ref[...][None, :, :]                                    # (BT, GP, E)

    # key mask for self-attention: large negative bias on invalid / pad keys
    key_neg = (1.0 - vlane) * 1e9                                       # (BT, 1, GP)

    # ---- graph attention encoder layers (statically unrolled) ----
    for l in range(N_ENCODE_LAYERS):
        qkv = jnp.dot(h.reshape(bt * g, e).astype(mm), wqkv_ref[l],
                      preferred_element_type=jnp.float32).reshape(bt, g, 3 * e)
        q = qkv[:, :, :e]
        k = qkv[:, :, e:2 * e]
        v = qkv[:, :, 2 * e:]

        # batched q @ k^T without materialising a transpose
        scores = lax.dot_general(q, k, (((2,), (2,)), ((0,), (0,))),
                                 preferred_element_type=jnp.float32) * inv_sqrt_e
        scores = scores - key_neg                                       # mask invalid keys
        scores = scores - jnp.max(scores, axis=-1, keepdims=True)
        p = jnp.exp(scores)
        attn = p * pl.reciprocal(jnp.sum(p, axis=-1, keepdims=True), approx=True)

        ctxv = lax.dot_general(attn, v, (((2,), (1,)), ((0,), (0,))),
                               preferred_element_type=jnp.float32)      # (BT, GP, E)
        mha = jnp.dot(ctxv.reshape(bt * g, e).astype(mm), wo_ref[l],
                      preferred_element_type=jnp.float32).reshape(bt, g, e)

        h1 = h + mha
        mu = jnp.mean(h1, axis=-1, keepdims=True)
        var = jnp.mean(jnp.square(h1 - mu), axis=-1, keepdims=True)
        h1 = (h1 - mu) * lax.rsqrt(var + 1e-5) * ln1g_ref[l] + ln1b_ref[l]

        ff = jnp.dot(h1.reshape(bt * g, e).astype(mm), wf1_ref[l],
                     preferred_element_type=jnp.float32) + bf1_ref[l]
        ff = jnp.maximum(ff, 0.0)
        ff = jnp.dot(ff.astype(mm), wf2_ref[l],
                     preferred_element_type=jnp.float32) + bf2_ref[l]

        h2 = h1 + ff.reshape(bt, g, e)
        mu2 = jnp.mean(h2, axis=-1, keepdims=True)
        var2 = jnp.mean(jnp.square(h2 - mu2), axis=-1, keepdims=True)
        h = (h2 - mu2) * lax.rsqrt(var2 + 1e-5) * ln2g_ref[l] + ln2b_ref[l]

    # ---- pointer decode (_precompute + _get_log_p + _one_to_many_logits) ----
    fv_col = x[:, :, 8:9]                                               # (BT, GP, 1)
    emb_m = h * fv_col                                                  # transEmbedding[full_mask] = 0
    # valid_length; matches torch (no divide-by-zero guard, as in reference)
    vlen = jnp.sum(vlane[:, 0, :], axis=-1, keepdims=True)              # (BT, 1)
    graph_embed = jnp.sum(emb_m, axis=1) / vlen                         # exact division (BT, E)
    ctx = jnp.dot(graph_embed.astype(mm), wfix_ref[...],
                  preferred_element_type=jnp.float32)                   # (BT, E)

    k_dec = jnp.dot(emb_m.reshape(bt * g, e).astype(mm), wk_ref[...],
                    preferred_element_type=jnp.float32).reshape(bt, g, e)
    compat = lax.dot_general(ctx[:, None, :], k_dec, (((2,), (2,)), ((0,), (0,))),
                             preferred_element_type=jnp.float32) * inv_sqrt_e   # (BT, 1, GP)
    logits = jnp.tanh(compat) * TANH_CLIPPING
    leaf_logits = logits[:, :, ih:ih + lh] * (1.0 / TEMP)               # (BT, 1, LH)

    # exp(log_softmax(.)) == softmax(.)   (exact division on the final softmax)
    m = jnp.max(leaf_logits, axis=-1, keepdims=True)
    ex = jnp.exp(leaf_logits - m)
    probs = ex / jnp.sum(ex, axis=-1, keepdims=True)

    leaf_valid = vlane[:, :, ih:ih + lh]                                # (BT, 1, LH)
    masked = probs * leaf_valid            # log_p.exp() * (1 - leaf_node_mask)

    ctx_out_ref[...] = ctx                                              # (BT, E)
    probs_out_ref[...] = masked.reshape(bt, lh)                         # (BT, LH)


def _fused_forward(obs_p, valid_lane, fp, norm_factor, bt):
    Bp, GP, F = obs_p.shape
    E, LH, L, FF, H3 = EMBED_DIM, LEAF_NODE_HOLDER, N_ENCODE_LAYERS, FF_HIDDEN, 3 * HID

    # fold norm_factor into the first-layer embed weight: (nf*x) @ W == x @ (nf*W)
    w1_eff = (fp["w1_all"] * jnp.float32(norm_factor)).astype(MATMUL_DTYPE)

    b3 = lambda b: (b, 0, 0)
    w2 = lambda b: (0, 0)
    w3 = lambda b: (0, 0, 0)

    # advisory cost hint so XLA schedules the surrounding glue correctly
    flops_s = (2 * GP * (F * H3 + H3 * E)
               + L * 2 * GP * (E * 3 * E + 2 * GP * E + E * E + E * FF + FF * E)
               + 2 * E * E + 2 * GP * E * E + 2 * GP * E)
    trans_s = L * GP * GP + GP + LH
    weight_bytes = sum(int(v.size) * v.dtype.itemsize for v in fp.values())
    cost = pl.CostEstimate(
        flops=int(Bp * flops_s),
        transcendentals=int(Bp * trans_s),
        bytes_accessed=int(Bp * (GP * F * 4 + GP * 4 + (E + LH) * 4) + weight_bytes))

    return pl.pallas_call(
        _fused_forward_kernel,
        out_shape=(jax.ShapeDtypeStruct((Bp, E), jnp.float32),
                   jax.ShapeDtypeStruct((Bp, LH), jnp.float32)),
        grid=(Bp // bt,),
        in_specs=[
            pl.BlockSpec((bt, GP, F), b3),         # obs block (graph-padded)
            pl.BlockSpec((bt, 1, GP), b3),         # lane-major validity
            pl.BlockSpec((F, H3), w2),             # fused embed W1 (norm_factor folded)
            pl.BlockSpec((1, H3), w2),             # fused embed b1
            pl.BlockSpec((GP, H3), w2),            # node-type column mask
            pl.BlockSpec((H3, E), w2),             # fused embed W2
            pl.BlockSpec((GP, E), w2),             # per-row embed b2
            pl.BlockSpec((L, E, 3 * E), w3),       # fused QKV per layer
            pl.BlockSpec((L, E, E), w3),           # Wo
            pl.BlockSpec((L, 1, E), w3),           # ln1 gamma
            pl.BlockSpec((L, 1, E), w3),           # ln1 beta
            pl.BlockSpec((L, E, FF), w3),          # ff W1
            pl.BlockSpec((L, 1, FF), w3),          # ff b1
            pl.BlockSpec((L, FF, E), w3),          # ff W2
            pl.BlockSpec((L, 1, E), w3),           # ff b2
            pl.BlockSpec((L, 1, E), w3),           # ln2 gamma
            pl.BlockSpec((L, 1, E), w3),           # ln2 beta
            pl.BlockSpec((E, E), w2),              # project_fixed_context
            pl.BlockSpec((E, E), w2),              # glimpse-key chunk of project_node_embeddings
        ],
        out_specs=(pl.BlockSpec((bt, E), lambda b: (b, 0)),
                   pl.BlockSpec((bt, LH), lambda b: (b, 0))),
        compiler_params=pltpu.CompilerParams(
            dimension_semantics=("parallel",),
            vmem_limit_bytes=VMEM_LIMIT_BYTES),
        cost_estimate=cost,
    )(obs_p, valid_lane,
      w1_eff, fp["b1_all"], fp["tmask"], fp["w2_big"], fp["b2_rows"],
      fp["wqkv"], fp["wo"], fp["ln1g"], fp["ln1b"],
      fp["wf1"], fp["bf1"], fp["wf2"], fp["bf2"], fp["ln2g"], fp["ln2b"],
      fp["w_fixed"], fp["w_k"])


# --------------------------------------------------------------------------
# parameter init (deterministic, synthetic; torch used orthogonal init)
# --------------------------------------------------------------------------
def _linear(key, fan_in, fan_out):
    # weights stored in (in, out) layout (y = x @ W), not torch's (out, in)
    return (1.0 / math.sqrt(fan_in)) * jax.random.normal(
        key, (fan_in, fan_out), dtype=jnp.float32)


def init_params(key):
    keys = jax.random.split(key, 32)
    ki = iter(keys)
    E, H = EMBED_DIM, HID

    def mlp(fin):
        return {
            "w1": _linear(next(ki), fin, H), "b1": jnp.zeros((1, H), jnp.float32),
            "w2": _linear(next(ki), H, E),   "b2": jnp.zeros((1, E), jnp.float32),
        }

    params = {
        "init_internal": mlp(INTERNAL_NODE_LENGTH),
        "init_leaf": mlp(8),
        "init_next": mlp(6),
        "encoder_layers": [],
        "w_fixed": _linear(next(ki), E, E),          # project_fixed_context (no bias)
        "w_node": _linear(next(ki), E, 3 * E),       # project_node_embeddings (no bias)
    }
    for _ in range(N_ENCODE_LAYERS):
        params["encoder_layers"].append({
            "wq": _linear(next(ki), E, E), "wk": _linear(next(ki), E, E),
            "wv": _linear(next(ki), E, E), "wo": _linear(next(ki), E, E),
            "ln1_g": jnp.ones((1, E), jnp.float32), "ln1_b": jnp.zeros((1, E), jnp.float32),
            "wf1": _linear(next(ki), E, FF_HIDDEN), "bf1": jnp.zeros((1, FF_HIDDEN), jnp.float32),
            "wf2": _linear(next(ki), FF_HIDDEN, E), "bf2": jnp.zeros((1, E), jnp.float32),
            "ln2_g": jnp.ones((1, E), jnp.float32), "ln2_b": jnp.zeros((1, E), jnp.float32),
        })
    return params


def fuse_params(params):
    """Pack the torch-like parameter tree into the fused/stacked layout the kernel uses."""
    E, H = EMBED_DIM, HID
    IH, LH, NH = INTERNAL_NODE_HOLDER, LEAF_NODE_HOLDER, NEXT_HOLDER
    GP = GRAPH_PAD
    pad_rows = GP - GRAPH_SIZE
    mm = MATMUL_DTYPE
    pi, plf, pn = params["init_internal"], params["init_leaf"], params["init_next"]

    # pad first-layer weights to the 9-column obs layout (row 8 = validity flag -> zero weight)
    w1_int = jnp.zeros((FEAT, H), jnp.float32).at[:INTERNAL_NODE_LENGTH, :].set(pi["w1"])
    w1_leaf = jnp.zeros((FEAT, H), jnp.float32).at[:8, :].set(plf["w1"])
    w1_next = jnp.zeros((FEAT, H), jnp.float32).at[:6, :].set(pn["w1"])
    w1_all = jnp.concatenate([w1_int, w1_leaf, w1_next], axis=1)         # (9, 3H) f32 (scaled/cast per call)
    b1_all = jnp.concatenate([pi["b1"], plf["b1"], pn["b1"]], axis=1)    # (1, 3H)
    w2_big = jnp.concatenate([pi["w2"], plf["w2"], pn["w2"]], axis=0).astype(mm)   # (3H, E)
    b2_rows = jnp.concatenate([
        jnp.broadcast_to(pi["b2"], (IH, E)),
        jnp.broadcast_to(plf["b2"], (LH, E)),
        jnp.broadcast_to(pn["b2"], (NH, E)),
        jnp.zeros((pad_rows, E), jnp.float32)], axis=0)                  # (GP, E)

    type_id = jnp.concatenate([jnp.zeros((IH,), jnp.int32),
                               jnp.ones((LH,), jnp.int32),
                               jnp.full((NH,), 2, jnp.int32),
                               jnp.full((pad_rows,), 3, jnp.int32)])     # pad rows select nothing
    tmask = (type_id[:, None] == jnp.arange(3)[None, :]).astype(jnp.float32)  # (GP, 3)
    tmask = jnp.repeat(tmask, H, axis=1)                                       # (GP, 3H)

    enc = params["encoder_layers"]
    stack = lambda name: jnp.stack([l[name] for l in enc], axis=0)
    stack_mm = lambda name: stack(name).astype(mm)
    wqkv = jnp.stack([jnp.concatenate([l["wq"], l["wk"], l["wv"]], axis=1) for l in enc],
                     axis=0).astype(mm)                                        # (L, E, 3E)
    return {
        "w1_all": w1_all, "b1_all": b1_all, "tmask": tmask,
        "w2_big": w2_big, "b2_rows": b2_rows,
        "wqkv": wqkv, "wo": stack_mm("wo"),
        "ln1g": stack("ln1_g"), "ln1b": stack("ln1_b"),
        "wf1": stack_mm("wf1"), "bf1": stack("bf1"),
        "wf2": stack_mm("wf2"), "bf2": stack("bf2"),
        "ln2g": stack("ln2_g"), "ln2b": stack("ln2_b"),
        "w_fixed": params["w_fixed"].astype(mm),
        "w_k": params["w_node"][:, :EMBED_DIM].astype(mm),   # glimpse-key chunk
    }


# --------------------------------------------------------------------------
# full forward pass
# --------------------------------------------------------------------------
def _round_up(x, m):
    return ((x + m - 1) // m) * m


def attention_model_forward(fused_params, obs, deterministic=True, evaluate_action=False,
                            norm_factor=1.0, rng=None):
    """obs: (B, GRAPH_SIZE, 9). Feature 8 is the validity flag (1.0 = valid node).

    Returns (action_log_prob, pointers, dist_entropy, hidden, dist_probs),
    matching the torch module's return tuple.
    """
    B, G, F = obs.shape
    assert G == GRAPH_SIZE and F == FEAT
    LH = LEAF_NODE_HOLDER
    GP = GRAPH_PAD

    # pad the graph dim to a multiple of 8 with zero-validity rows (ignored by
    # every masked reduction in-kernel); keeps all in-kernel reshapes
    # sublane-aligned so they cost nothing.
    obs_g = jnp.pad(obs, ((0, 0), (0, GP - G), (0, 0)))

    # batch-tile selection: big enough to amortize per-grid-step overhead,
    # split so the grid has >= 2 steps when possible (both v7x TensorCores).
    bt = min(BATCH_TILE_MAX, _round_up(B, 8))
    if bt > 8 and _round_up(B, bt) // bt < 2:
        bt = _round_up(bt // 2, 8)
    Bp = _round_up(B, bt)

    # pad the batch by replicating the last real row so padded rows stay
    # numerically benign; results are sliced off afterwards.
    if Bp != B:
        pad = jnp.broadcast_to(obs_g[-1:], (Bp - B, GP, F))
        obs_p = jnp.concatenate([obs_g, pad], axis=0)
    else:
        obs_p = obs_g
    valid_lane = obs_p[:, :, 8][:, None, :]                 # (Bp, 1, GP) lane-major validity

    ctx_p, masked_p = _fused_forward(obs_p, valid_lane, fused_params, norm_factor, bt)
    hidden = ctx_p[:B]                                      # fixed.context_node_projected
    masked = masked_p[:B]                                   # log_p.exp() * (1 - leaf_node_mask)

    # --- FixedCategorical glue (tiny, (B, LH)) ---
    if deterministic:
        # matches torch: the zero-check sums over the WHOLE tensor, not per row
        total = jnp.sum(masked)
        masked = jnp.where(total == 0, masked + 1e-20, masked)
    else:
        masked = masked + 1e-20
    probs = masked / jnp.sum(masked, axis=1, keepdims=True)

    min_real = jnp.finfo(probs.dtype).min
    log_probs_c = jnp.maximum(jnp.log(probs), min_real)
    dist_entropy = -jnp.sum(probs * log_probs_c, axis=-1)             # (B,)

    if deterministic:
        selected = jnp.argmax(probs, axis=-1)[:, None]                # dist.mode()
    else:
        # TODO(synk): torch.multinomial sampling replaced by jax.random.categorical
        selected = jax.random.categorical(rng, log_probs_c, axis=-1)[:, None]

    if not evaluate_action:
        action_log_probs = jnp.take_along_axis(log_probs_c, selected, axis=-1)  # (B, 1)
    else:
        action_log_probs = None

    return action_log_probs, selected, dist_entropy, hidden, probs


# --------------------------------------------------------------------------
if __name__ == "__main__":
    key = jax.random.PRNGKey(0)
    pkey, okey = jax.random.split(key)

    params = init_params(pkey)
    fused = fuse_params(params)

    B = 2
    feat = jax.random.uniform(okey, (B, GRAPH_SIZE, FEAT), dtype=jnp.float32)
    # validity flags: a few invalid nodes, but every batch keeps valid leaves
    valid = jnp.ones((B, GRAPH_SIZE), dtype=jnp.float32)
    valid = valid.at[:, 1::4].set(0.0)
    valid = valid.at[:, INTERNAL_NODE_HOLDER].set(1.0)
    obs = feat.at[:, :, 8].set(valid)

    out = attention_model_forward(fused, obs, deterministic=True)
    out = jax.block_until_ready(out)

    action_log_prob, pointers, dist_entropy, hidden, dist = out
    assert action_log_prob.shape == (B, 1)
    assert pointers.shape == (B, 1)
    assert dist_entropy.shape == (B,)
    assert hidden.shape == (B, EMBED_DIM)
    assert dist.shape == (B, LEAF_NODE_HOLDER)
    assert bool(jnp.all(jnp.isfinite(dist))) and bool(jnp.all(jnp.isfinite(hidden)))
    assert bool(jnp.all(jnp.abs(jnp.sum(dist, axis=-1) - 1.0) < 1e-3))

    print("KERNEL_OK")
</pallas_src>

<mosaic_0001>
module attributes {stable_mosaic.version = 11 : i64} {
  func.func @_fused_forward_kernel(%arg0: i32, %arg1: memref<8x24x9xf32, #tpu.memory_space<vmem>>, %arg2: memref<8x1x24xf32, #tpu.memory_space<vmem>>, %arg3: memref<9x96xbf16, #tpu.memory_space<vmem>>, %arg4: memref<1x96xf32, #tpu.memory_space<vmem>>, %arg5: memref<24x96xf32, #tpu.memory_space<vmem>>, %arg6: memref<96x32xbf16, #tpu.memory_space<vmem>>, %arg7: memref<24x32xf32, #tpu.memory_space<vmem>>, %arg8: memref<2x32x96xbf16, #tpu.memory_space<vmem>>, %arg9: memref<2x32x32xbf16, #tpu.memory_space<vmem>>, %arg10: memref<2x1x32xf32, #tpu.memory_space<vmem>>, %arg11: memref<2x1x32xf32, #tpu.memory_space<vmem>>, %arg12: memref<2x32x64xbf16, #tpu.memory_space<vmem>>, %arg13: memref<2x1x64xf32, #tpu.memory_space<vmem>>, %arg14: memref<2x64x32xbf16, #tpu.memory_space<vmem>>, %arg15: memref<2x1x32xf32, #tpu.memory_space<vmem>>, %arg16: memref<2x1x32xf32, #tpu.memory_space<vmem>>, %arg17: memref<2x1x32xf32, #tpu.memory_space<vmem>>, %arg18: memref<32x32xbf16, #tpu.memory_space<vmem>>, %arg19: memref<32x32xbf16, #tpu.memory_space<vmem>>, %arg20: memref<8x32xf32, #tpu.memory_space<vmem>>, %arg21: memref<8x8xf32, #tpu.memory_space<vmem>>) attributes {dimension_semantics = [#tpu.dimension_semantics<parallel>], iteration_bounds = array<i64: 1>, scalar_prefetch = 0 : i64, scratch_operands = 0 : i64, tpu.core_type = #tpu.core_type<tc>, window_params = [{transform_indices = @transform_0, window_bounds = array<i64: 8, 24, 9>}, {transform_indices = @transform_1, window_bounds = array<i64: 8, 1, 24>}, {pipeline_mode = #tpu.pipeline_mode<synchronous>, transform_indices = @transform_2, window_bounds = array<i64: 9, 96>}, {pipeline_mode = #tpu.pipeline_mode<synchronous>, transform_indices = @transform_3, window_bounds = array<i64: 1, 96>}, {pipeline_mode = #tpu.pipeline_mode<synchronous>, transform_indices = @transform_4, window_bounds = array<i64: 24, 96>}, {pipeline_mode = #tpu.pipeline_mode<synchronous>, transform_indices = @transform_5, window_bounds = array<i64: 96, 32>}, {pipeline_mode = #tpu.pipeline_mode<synchronous>, transform_indices = @transform_6, window_bounds = array<i64: 24, 32>}, {pipeline_mode = #tpu.pipeline_mode<synchronous>, transform_indices = @transform_7, window_bounds = array<i64: 2, 32, 96>}, {pipeline_mode = #tpu.pipeline_mode<synchronous>, transform_indices = @transform_8, window_bounds = array<i64: 2, 32, 32>}, {pipeline_mode = #tpu.pipeline_mode<synchronous>, transform_indices = @transform_9, window_bounds = array<i64: 2, 1, 32>}, {pipeline_mode = #tpu.pipeline_mode<synchronous>, transform_indices = @transform_10, window_bounds = array<i64: 2, 1, 32>}, {pipeline_mode = #tpu.pipeline_mode<synchronous>, transform_indices = @transform_11, window_bounds = array<i64: 2, 32, 64>}, {pipeline_mode = #tpu.pipeline_mode<synchronous>, transform_indices = @transform_12, window_bounds = array<i64: 2, 1, 64>}, {pipeline_mode = #tpu.pipeline_mode<synchronous>, transform_indices = @transform_13, window_bounds = array<i64: 2, 64, 32>}, {pipeline_mode = #tpu.pipeline_mode<synchronous>, transform_indices = @transform_14, window_bounds = array<i64: 2, 1, 32>}, {pipeline_mode = #tpu.pipeline_mode<synchronous>, transform_indices = @transform_15, window_bounds = array<i64: 2, 1, 32>}, {pipeline_mode = #tpu.pipeline_mode<synchronous>, transform_indices = @transform_16, window_bounds = array<i64: 2, 1, 32>}, {pipeline_mode = #tpu.pipeline_mode<synchronous>, transform_indices = @transform_17, window_bounds = array<i64: 32, 32>}, {pipeline_mode = #tpu.pipeline_mode<synchronous>, transform_indices = @transform_18, window_bounds = array<i64: 32, 32>}, {transform_indices = @transform_19, window_bounds = array<i64: 8, 32>}, {transform_indices = @transform_20, window_bounds = array<i64: 8, 8>}]} {
    %c0 = arith.constant 0 : index
    %c0_0 = arith.constant 0 : index
    %c0_1 = arith.constant 0 : index
    %0 = vector.load %arg1[%c0, %c0_0, %c0_1] : memref<8x24x9xf32, #tpu.memory_space<vmem>>, vector<8x24x9xf32>
    %c0_2 = arith.constant 0 : index
    %c0_3 = arith.constant 0 : index
    %c0_4 = arith.constant 0 : index
    %1 = vector.load %arg2[%c0_2, %c0_3, %c0_4] : memref<8x1x24xf32, #tpu.memory_space<vmem>>, vector<8x1x24xf32>
    %2 = vector.shape_cast %0 : vector<8x24x9xf32> to vector<192x9xf32>
    %3 = arith.truncf %2 : vector<192x9xf32> to vector<192x9xbf16>
    %c0_5 = arith.constant 0 : index
    %c0_6 = arith.constant 0 : index
    %4 = vector.load %arg3[%c0_5, %c0_6] : memref<9x96xbf16, #tpu.memory_space<vmem>>, vector<9x96xbf16>
    %cst = arith.constant dense<0.000000e+00> : vector<192x96xf32>
    %5 = tpu.matmul %3, %4, %cst {dimension_numbers = #tpu.dot_dimension_numbers<[1], [0], [0], [1], [0, 0, 1, 1], [], []>} : vector<192x9xbf16>, vector<9x96xbf16>, vector<192x96xf32> -> vector<192x96xf32>
    %6 = vector.shape_cast %5 : vector<192x96xf32> to vector<8x24x96xf32>
    %c0_7 = arith.constant 0 : index
    %c0_8 = arith.constant 0 : index
    %7 = vector.load %arg4[%c0_7, %c0_8] : memref<1x96xf32, #tpu.memory_space<vmem>>, vector<1x96xf32>
    %8 = vector.shape_cast %7 : vector<1x96xf32> to vector<1x1x96xf32>
    %9 = vector.broadcast %8 : vector<1x1x96xf32> to vector<8x24x96xf32>
    %10 = arith.addf %6, %9 : vector<8x24x96xf32>
    %cst_9 = arith.constant 0.000000e+00 : f32
    %11 = vector.broadcast %cst_9 : f32 to vector<8x24x96xf32>
    %12 = arith.cmpf ogt, %10, %11 : vector<8x24x96xf32>
    %cst_10 = arith.constant 0.00999999977 : f32
    %13 = vector.broadcast %cst_10 : f32 to vector<8x24x96xf32>
    %14 = arith.mulf %13, %10 : vector<8x24x96xf32>
    %15 = arith.select %12, %10, %14 : vector<8x24x96xi1>, vector<8x24x96xf32>
    %c0_11 = arith.constant 0 : index
    %c0_12 = arith.constant 0 : index
    %16 = vector.load %arg5[%c0_11, %c0_12] : memref<24x96xf32, #tpu.memory_space<vmem>>, vector<24x96xf32>
    %17 = vector.shape_cast %16 : vector<24x96xf32> to vector<1x24x96xf32>
    %18 = vector.broadcast %17 : vector<1x24x96xf32> to vector<8x24x96xf32>
    %19 = arith.mulf %15, %18 : vector<8x24x96xf32>
    %20 = vector.shape_cast %19 : vector<8x24x96xf32> to vector<192x96xf32>
    %21 = arith.truncf %20 : vector<192x96xf32> to vector<192x96xbf16>
    %c0_13 = arith.constant 0 : index
    %c0_14 = arith.constant 0 : index
    %22 = vector.load %arg6[%c0_13, %c0_14] : memref<96x32xbf16, #tpu.memory_space<vmem>>, vector<96x32xbf16>
    %cst_15 = arith.constant dense<0.000000e+00> : vector<192x32xf32>
    %23 = tpu.matmul %21, %22, %cst_15 {dimension_numbers = #tpu.dot_dimension_numbers<[1], [0], [0], [1], [0, 0, 1, 1], [], []>} : vector<192x96xbf16>, vector<96x32xbf16>, vector<192x32xf32> -> vector<192x32xf32>
    %24 = vector.shape_cast %23 : vector<192x32xf32> to vector<8x24x32xf32>
    %c0_16 = arith.constant 0 : index
    %c0_17 = arith.constant 0 : index
    %25 = vector.load %arg7[%c0_16, %c0_17] : memref<24x32xf32, #tpu.memory_space<vmem>>, vector<24x32xf32>
    %26 = vector.shape_cast %25 : vector<24x32xf32> to vector<1x24x32xf32>
    %27 = vector.broadcast %26 : vector<1x24x32xf32> to vector<8x24x32xf32>
    %28 = arith.addf %24, %27 : vector<8x24x32xf32>
    %cst_18 = arith.constant 1.000000e+00 : f32
    %29 = vector.broadcast %cst_18 : f32 to vector<8x1x24xf32>
    %30 = arith.subf %29, %1 : vector<8x1x24xf32>
    %cst_19 = arith.constant 1.000000e+09 : f32
    %31 = vector.broadcast %cst_19 : f32 to vector<8x1x24xf32>
    %32 = arith.mulf %30, %31 : vector<8x1x24xf32>
    %33 = vector.shape_cast %28 : vector<8x24x32xf32> to vector<192x32xf32>
    %34 = arith.truncf %33 : vector<192x32xf32> to vector<192x32xbf16>
    %c0_20 = arith.constant 0 : index
    %c0_21 = arith.constant 0 : index
    %c0_22 = arith.constant 0 : index
    %35 = vector.load %arg8[%c0_20, %c0_21, %c0_22] : memref<2x32x96xbf16, #tpu.memory_space<vmem>>, vector<1x32x96xbf16>
    %36 = vector.shape_cast %35 : vector<1x32x96xbf16> to vector<32x96xbf16>
    %cst_23 = arith.constant dense<0.000000e+00> : vector<192x96xf32>
    %37 = tpu.matmul %34, %36, %cst_23 {dimension_numbers = #tpu.dot_dimension_numbers<[1], [0], [0], [1], [0, 0, 1, 1], [], []>} : vector<192x32xbf16>, vector<32x96xbf16>, vector<192x96xf32> -> vector<192x96xf32>
    %38 = vector.shape_cast %37 : vector<192x96xf32> to vector<8x24x96xf32>
    %39 = vector.extract_strided_slice %38 {offsets = [0, 0, 0], sizes = [8, 24, 32], strides = [1, 1, 1]} : vector<8x24x96xf32> to vector<8x24x32xf32>
    %40 = vector.extract_strided_slice %38 {offsets = [0, 0, 32], sizes = [8, 24, 32], strides = [1, 1, 1]} : vector<8x24x96xf32> to vector<8x24x32xf32>
    %41 = vector.extract_strided_slice %38 {offsets = [0, 0, 64], sizes = [8, 24, 32], strides = [1, 1, 1]} : vector<8x24x96xf32> to vector<8x24x32xf32>
    %cst_24 = arith.constant dense<0.000000e+00> : vector<8x24x24xf32>
    %42 = tpu.matmul %39, %40, %cst_24 {dimension_numbers = #tpu.dot_dimension_numbers<[2], [2], [1], [1], [0, 0, 0, 1, 1, 1], [0], [0]>} : vector<8x24x32xf32>, vector<8x24x32xf32>, vector<8x24x24xf32> -> vector<8x24x24xf32>
    %cst_25 = arith.constant 0.176776692 : f32
    %43 = vector.broadcast %cst_25 : f32 to vector<8x24x24xf32>
    %44 = arith.mulf %42, %43 : vector<8x24x24xf32>
    %45 = vector.broadcast %32 : vector<8x1x24xf32> to vector<8x24x24xf32>
    %46 = arith.subf %44, %45 : vector<8x24x24xf32>
    %cst_26 = arith.constant dense<0xFF800000> : vector<8x24xf32>
    %47 = vector.multi_reduction <maximumf>, %46, %cst_26 [2] : vector<8x24x24xf32> to vector<8x24xf32>
    %48 = vector.shape_cast %47 : vector<8x24xf32> to vector<8x24x1xf32>
    %49 = vector.broadcast %48 : vector<8x24x1xf32> to vector<8x24x24xf32>
    %50 = arith.subf %46, %49 : vector<8x24x24xf32>
    %51 = math.exp %50 : vector<8x24x24xf32>
    %cst_27 = arith.constant dense<0.000000e+00> : vector<8x24xf32>
    %52 = vector.multi_reduction <add>, %51, %cst_27 [2] : vector<8x24x24xf32> to vector<8x24xf32>
    %53 = vector.shape_cast %52 : vector<8x24xf32> to vector<8x24x1xf32>
    %54 = tpu.reciprocal %53 {approx = true} : vector<8x24x1xf32> -> vector<8x24x1xf32>
    %55 = vector.broadcast %54 : vector<8x24x1xf32> to vector<8x24x24xf32>
    %56 = arith.mulf %51, %55 : vector<8x24x24xf32>
    %cst_28 = arith.constant dense<0.000000e+00> : vector<8x24x32xf32>
    %57 = tpu.matmul %56, %41, %cst_28 {dimension_numbers = #tpu.dot_dimension_numbers<[2], [1], [1], [2], [0, 0, 0, 1, 1, 2], [0], [0]>} : vector<8x24x24xf32>, vector<8x24x32xf32>, vector<8x24x32xf32> -> vector<8x24x32xf32>
    %58 = vector.shape_cast %57 : vector<8x24x32xf32> to vector<192x32xf32>
    %59 = arith.truncf %58 : vector<192x32xf32> to vector<192x32xbf16>
    %c0_29 = arith.constant 0 : index
    %c0_30 = arith.constant 0 : index
    %c0_31 = arith.constant 0 : index
    %60 = vector.load %arg9[%c0_29, %c0_30, %c0_31] : memref<2x32x32xbf16, #tpu.memory_space<vmem>>, vector<1x32x32xbf16>
    %61 = vector.shape_cast %60 : vector<1x32x32xbf16> to vector<32x32xbf16>
    %cst_32 = arith.constant dense<0.000000e+00> : vector<192x32xf32>
    %62 = tpu.matmul %59, %61, %cst_32 {dimension_numbers = #tpu.dot_dimension_numbers<[1], [0], [0], [1], [0, 0, 1, 1], [], []>} : vector<192x32xbf16>, vector<32x32xbf16>, vector<192x32xf32> -> vector<192x32xf32>
    %63 = vector.shape_cast %62 : vector<192x32xf32> to vector<8x24x32xf32>
    %64 = arith.addf %28, %63 : vector<8x24x32xf32>
    %cst_33 = arith.constant dense<0.000000e+00> : vector<8x24xf32>
    %65 = vector.multi_reduction <add>, %64, %cst_33 [2] : vector<8x24x32xf32> to vector<8x24xf32>
    %66 = vector.shape_cast %65 : vector<8x24xf32> to vector<8x24x1xf32>
    %cst_34 = arith.constant 3.200000e+01 : f32
    %67 = vector.broadcast %cst_34 : f32 to vector<8x24x1xf32>
    %68 = arith.divf %66, %67 : vector<8x24x1xf32>
    %69 = vector.broadcast %68 : vector<8x24x1xf32> to vector<8x24x32xf32>
    %70 = arith.subf %64, %69 : vector<8x24x32xf32>
    %71 = arith.mulf %70, %70 : vector<8x24x32xf32>
    %cst_35 = arith.constant dense<0.000000e+00> : vector<8x24xf32>
    %72 = vector.multi_reduction <add>, %71, %cst_35 [2] : vector<8x24x32xf32> to vector<8x24xf32>
    %73 = vector.shape_cast %72 : vector<8x24xf32> to vector<8x24x1xf32>
    %cst_36 = arith.constant 3.200000e+01 : f32
    %74 = vector.broadcast %cst_36 : f32 to vector<8x24x1xf32>
    %75 = arith.divf %73, %74 : vector<8x24x1xf32>
    %76 = vector.broadcast %68 : vector<8x24x1xf32> to vector<8x24x32xf32>
    %77 = arith.subf %64, %76 : vector<8x24x32xf32>
    %cst_37 = arith.constant 9.99999974E-6 : f32
    %78 = vector.broadcast %cst_37 : f32 to vector<8x24x1xf32>
    %79 = arith.addf %75, %78 : vector<8x24x1xf32>
    %80 = math.rsqrt %79 : vector<8x24x1xf32>
    %81 = vector.broadcast %80 : vector<8x24x1xf32> to vector<8x24x32xf32>
    %82 = arith.mulf %77, %81 : vector<8x24x32xf32>
    %c0_38 = arith.constant 0 : index
    %c0_39 = arith.constant 0 : index
    %c0_40 = arith.constant 0 : index
    %83 = vector.load %arg10[%c0_38, %c0_39, %c0_40] : memref<2x1x32xf32, #tpu.memory_space<vmem>>, vector<1x1x32xf32>
    %84 = vector.shape_cast %83 : vector<1x1x32xf32> to vector<1x32xf32>
    %85 = vector.shape_cast %84 : vector<1x32xf32> to vector<1x1x32xf32>
    %86 = vector.broadcast %85 : vector<1x1x32xf32> to vector<8x24x32xf32>
    %87 = arith.mulf %82, %86 : vector<8x24x32xf32>
    %c0_41 = arith.constant 0 : index
    %c0_42 = arith.constant 0 : index
    %c0_43 = arith.constant 0 : index
    %88 = vector.load %arg11[%c0_41, %c0_42, %c0_43] : memref<2x1x32xf32, #tpu.memory_space<vmem>>, vector<1x1x32xf32>
    %89 = vector.shape_cast %88 : vector<1x1x32xf32> to vector<1x32xf32>
    %90 = vector.shape_cast %89 : vector<1x32xf32> to vector<1x1x32xf32>
    %91 = vector.broadcast %90 : vector<1x1x32xf32> to vector<8x24x32xf32>
    %92 = arith.addf %87, %91 : vector<8x24x32xf32>
    %93 = vector.shape_cast %92 : vector<8x24x32xf32> to vector<192x32xf32>
    %94 = arith.truncf %93 : vector<192x32xf32> to vector<192x32xbf16>
    %c0_44 = arith.constant 0 : index
    %c0_45 = arith.constant 0 : index
    %c0_46 = arith.constant 0 : index
    %95 = vector.load %arg12[%c0_44, %c0_45, %c0_46] : memref<2x32x64xbf16, #tpu.memory_space<vmem>>, vector<1x32x64xbf16>
    %96 = vector.shape_cast %95 : vector<1x32x64xbf16> to vector<32x64xbf16>
    %cst_47 = arith.constant dense<0.000000e+00> : vector<192x64xf32>
    %97 = tpu.matmul %94, %96, %cst_47 {dimension_numbers = #tpu.dot_dimension_numbers<[1], [0], [0], [1], [0, 0, 1, 1], [], []>} : vector<192x32xbf16>, vector<32x64xbf16>, vector<192x64xf32> -> vector<192x64xf32>
    %c0_48 = arith.constant 0 : index
    %c0_49 = arith.constant 0 : index
    %c0_50 = arith.constant 0 : index
    %98 = vector.load %arg13[%c0_48, %c0_49, %c0_50] : memref<2x1x64xf32, #tpu.memory_space<vmem>>, vector<1x1x64xf32>
    %99 = vector.shape_cast %98 : vector<1x1x64xf32> to vector<1x64xf32>
    %100 = vector.broadcast %99 : vector<1x64xf32> to vector<192x64xf32>
    %101 = arith.addf %97, %100 : vector<192x64xf32>
    %cst_51 = arith.constant 0.000000e+00 : f32
    %102 = vector.broadcast %cst_51 : f32 to vector<192x64xf32>
    %103 = arith.maximumf %101, %102 : vector<192x64xf32>
    %104 = arith.truncf %103 : vector<192x64xf32> to vector<192x64xbf16>
    %c0_52 = arith.constant 0 : index
    %c0_53 = arith.constant 0 : index
    %c0_54 = arith.constant 0 : index
    %105 = vector.load %arg14[%c0_52, %c0_53, %c0_54] : memref<2x64x32xbf16, #tpu.memory_space<vmem>>, vector<1x64x32xbf16>
    %106 = vector.shape_cast %105 : vector<1x64x32xbf16> to vector<64x32xbf16>
    %cst_55 = arith.constant dense<0.000000e+00> : vector<192x32xf32>
    %107 = tpu.matmul %104, %106, %cst_55 {dimension_numbers = #tpu.dot_dimension_numbers<[1], [0], [0], [1], [0, 0, 1, 1], [], []>} : vector<192x64xbf16>, vector<64x32xbf16>, vector<192x32xf32> -> vector<192x32xf32>
    %c0_56 = arith.constant 0 : index
    %c0_57 = arith.constant 0 : index
    %c0_58 = arith.constant 0 : index
    %108 = vector.load %arg15[%c0_56, %c0_57, %c0_58] : memref<2x1x32xf32, #tpu.memory_space<vmem>>, vector<1x1x32xf32>
    %109 = vector.shape_cast %108 : vector<1x1x32xf32> to vector<1x32xf32>
    %110 = vector.broadcast %109 : vector<1x32xf32> to vector<192x32xf32>
    %111 = arith.addf %107, %110 : vector<192x32xf32>
    %112 = vector.shape_cast %111 : vector<192x32xf32> to vector<8x24x32xf32>
    %113 = arith.addf %92, %112 : vector<8x24x32xf32>
    %cst_59 = arith.constant dense<0.000000e+00> : vector<8x24xf32>
    %114 = vector.multi_reduction <add>, %113, %cst_59 [2] : vector<8x24x32xf32> to vector<8x24xf32>
    %115 = vector.shape_cast %114 : vector<8x24xf32> to vector<8x24x1xf32>
    %cst_60 = arith.constant 3.200000e+01 : f32
    %116 = vector.broadcast %cst_60 : f32 to vector<8x24x1xf32>
    %117 = arith.divf %115, %116 : vector<8x24x1xf32>
    %118 = vector.broadcast %117 : vector<8x24x1xf32> to vector<8x24x32xf32>
    %119 = arith.subf %113, %118 : vector<8x24x32xf32>
    %120 = arith.mulf %119, %119 : vector<8x24x32xf32>
    %cst_61 = arith.constant dense<0.000000e+00> : vector<8x24xf32>
    %121 = vector.multi_reduction <add>, %120, %cst_61 [2] : vector<8x24x32xf32> to vector<8x24xf32>
    %122 = vector.shape_cast %121 : vector<8x24xf32> to vector<8x24x1xf32>
    %cst_62 = arith.constant 3.200000e+01 : f32
    %123 = vector.broadcast %cst_62 : f32 to vector<8x24x1xf32>
    %124 = arith.divf %122, %123 : vector<8x24x1xf32>
    %125 = vector.broadcast %117 : vector<8x24x1xf32> to vector<8x24x32xf32>
    %126 = arith.subf %113, %125 : vector<8x24x32xf32>
    %cst_63 = arith.constant 9.99999974E-6 : f32
    %127 = vector.broadcast %cst_63 : f32 to vector<8x24x1xf32>
    %128 = arith.addf %124, %127 : vector<8x24x1xf32>
    %129 = math.rsqrt %128 : vector<8x24x1xf32>
    %130 = vector.broadcast %129 : vector<8x24x1xf32> to vector<8x24x32xf32>
    %131 = arith.mulf %126, %130 : vector<8x24x32xf32>
    %c0_64 = arith.constant 0 : index
    %c0_65 = arith.constant 0 : index
    %c0_66 = arith.constant 0 : index
    %132 = vector.load %arg16[%c0_64, %c0_65, %c0_66] : memref<2x1x32xf32, #tpu.memory_space<vmem>>, vector<1x1x32xf32>
    %133 = vector.shape_cast %132 : vector<1x1x32xf32> to vector<1x32xf32>
    %134 = vector.shape_cast %133 : vector<1x32xf32> to vector<1x1x32xf32>
    %135 = vector.broadcast %134 : vector<1x1x32xf32> to vector<8x24x32xf32>
    %136 = arith.mulf %131, %135 : vector<8x24x32xf32>
    %c0_67 = arith.constant 0 : index
    %c0_68 = arith.constant 0 : index
    %c0_69 = arith.constant 0 : index
    %137 = vector.load %arg17[%c0_67, %c0_68, %c0_69] : memref<2x1x32xf32, #tpu.memory_space<vmem>>, vector<1x1x32xf32>
    %138 = vector.shape_cast %137 : vector<1x1x32xf32> to vector<1x32xf32>
    %139 = vector.shape_cast %138 : vector<1x32xf32> to vector<1x1x32xf32>
    %140 = vector.broadcast %139 : vector<1x1x32xf32> to vector<8x24x32xf32>
    %141 = arith.addf %136, %140 : vector<8x24x32xf32>
    %142 = vector.shape_cast %141 : vector<8x24x32xf32> to vector<192x32xf32>
    %143 = arith.truncf %142 : vector<192x32xf32> to vector<192x32xbf16>
    %c1 = arith.constant 1 : index
    %c0_70 = arith.constant 0 : index
    %c0_71 = arith.constant 0 : index
    %144 = vector.load %arg8[%c1, %c0_70, %c0_71] : memref<2x32x96xbf16, #tpu.memory_space<vmem>>, vector<1x32x96xbf16>
    %145 = vector.shape_cast %144 : vector<1x32x96xbf16> to vector<32x96xbf16>
    %cst_72 = arith.constant dense<0.000000e+00> : vector<192x96xf32>
    %146 = tpu.matmul %143, %145, %cst_72 {dimension_numbers = #tpu.dot_dimension_numbers<[1], [0], [0], [1], [0, 0, 1, 1], [], []>} : vector<192x32xbf16>, vector<32x96xbf16>, vector<192x96xf32> -> vector<192x96xf32>
    %147 = vector.shape_cast %146 : vector<192x96xf32> to vector<8x24x96xf32>
    %148 = vector.extract_strided_slice %147 {offsets = [0, 0, 0], sizes = [8, 24, 32], strides = [1, 1, 1]} : vector<8x24x96xf32> to vector<8x24x32xf32>
    %149 = vector.extract_strided_slice %147 {offsets = [0, 0, 32], sizes = [8, 24, 32], strides = [1, 1, 1]} : vector<8x24x96xf32> to vector<8x24x32xf32>
    %150 = vector.extract_strided_slice %147 {offsets = [0, 0, 64], sizes = [8, 24, 32], strides = [1, 1, 1]} : vector<8x24x96xf32> to vector<8x24x32xf32>
    %cst_73 = arith.constant dense<0.000000e+00> : vector<8x24x24xf32>
    %151 = tpu.matmul %148, %149, %cst_73 {dimension_numbers = #tpu.dot_dimension_numbers<[2], [2], [1], [1], [0, 0, 0, 1, 1, 1], [0], [0]>} : vector<8x24x32xf32>, vector<8x24x32xf32>, vector<8x24x24xf32> -> vector<8x24x24xf32>
    %cst_74 = arith.constant 0.176776692 : f32
    %152 = vector.broadcast %cst_74 : f32 to vector<8x24x24xf32>
    %153 = arith.mulf %151, %152 : vector<8x24x24xf32>
    %154 = vector.broadcast %32 : vector<8x1x24xf32> to vector<8x24x24xf32>
    %155 = arith.subf %153, %154 : vector<8x24x24xf32>
    %cst_75 = arith.constant dense<0xFF800000> : vector<8x24xf32>
    %156 = vector.multi_reduction <maximumf>, %155, %cst_75 [2] : vector<8x24x24xf32> to vector<8x24xf32>
    %157 = vector.shape_cast %156 : vector<8x24xf32> to vector<8x24x1xf32>
    %158 = vector.broadcast %157 : vector<8x24x1xf32> to vector<8x24x24xf32>
    %159 = arith.subf %155, %158 : vector<8x24x24xf32>
    %160 = math.exp %159 : vector<8x24x24xf32>
    %cst_76 = arith.constant dense<0.000000e+00> : vector<8x24xf32>
    %161 = vector.multi_reduction <add>, %160, %cst_76 [2] : vector<8x24x24xf32> to vector<8x24xf32>
    %162 = vector.shape_cast %161 : vector<8x24xf32> to vector<8x24x1xf32>
    %163 = tpu.reciprocal %162 {approx = true} : vector<8x24x1xf32> -> vector<8x24x1xf32>
    %164 = vector.broadcast %163 : vector<8x24x1xf32> to vector<8x24x24xf32>
    %165 = arith.mulf %160, %164 : vector<8x24x24xf32>
    %cst_77 = arith.constant dense<0.000000e+00> : vector<8x24x32xf32>
    %166 = tpu.matmul %165, %150, %cst_77 {dimension_numbers = #tpu.dot_dimension_numbers<[2], [1], [1], [2], [0, 0, 0, 1, 1, 2], [0], [0]>} : vector<8x24x24xf32>, vector<8x24x32xf32>, vector<8x24x32xf32> -> vector<8x24x32xf32>
    %167 = vector.shape_cast %166 : vector<8x24x32xf32> to vector<192x32xf32>
    %168 = arith.truncf %167 : vector<192x32xf32> to vector<192x32xbf16>
    %c1_78 = arith.constant 1 : index
    %c0_79 = arith.constant 0 : index
    %c0_80 = arith.constant 0 : index
    %169 = vector.load %arg9[%c1_78, %c0_79, %c0_80] : memref<2x32x32xbf16, #tpu.memory_space<vmem>>, vector<1x32x32xbf16>
    %170 = vector.shape_cast %169 : vector<1x32x32xbf16> to vector<32x32xbf16>
    %cst_81 = arith.constant dense<0.000000e+00> : vector<192x32xf32>
    %171 = tpu.matmul %168, %170, %cst_81 {dimension_numbers = #tpu.dot_dimension_numbers<[1], [0], [0], [1], [0, 0, 1, 1], [], []>} : vector<192x32xbf16>, vector<32x32xbf16>, vector<192x32xf32> -> vector<192x32xf32>
    %172 = vector.shape_cast %171 : vector<192x32xf32> to vector<8x24x32xf32>
    %173 = arith.addf %141, %172 : vector<8x24x32xf32>
    %cst_82 = arith.constant dense<0.000000e+00> : vector<8x24xf32>
    %174 = vector.multi_reduction <add>, %173, %cst_82 [2] : vector<8x24x32xf32> to vector<8x24xf32>
    %175 = vector.shape_cast %174 : vector<8x24xf32> to vector<8x24x1xf32>
    %cst_83 = arith.constant 3.200000e+01 : f32
    %176 = vector.broadcast %cst_83 : f32 to vector<8x24x1xf32>
    %177 = arith.divf %175, %176 : vector<8x24x1xf32>
    %178 = vector.broadcast %177 : vector<8x24x1xf32> to vector<8x24x32xf32>
    %179 = arith.subf %173, %178 : vector<8x24x32xf32>
    %180 = arith.mulf %179, %179 : vector<8x24x32xf32>
    %cst_84 = arith.constant dense<0.000000e+00> : vector<8x24xf32>
    %181 = vector.multi_reduction <add>, %180, %cst_84 [2] : vector<8x24x32xf32> to vector<8x24xf32>
    %182 = vector.shape_cast %181 : vector<8x24xf32> to vector<8x24x1xf32>
    %cst_85 = arith.constant 3.200000e+01 : f32
    %183 = vector.broadcast %cst_85 : f32 to vector<8x24x1xf32>
    %184 = arith.divf %182, %183 : vector<8x24x1xf32>
    %185 = vector.broadcast %177 : vector<8x24x1xf32> to vector<8x24x32xf32>
    %186 = arith.subf %173, %185 : vector<8x24x32xf32>
    %cst_86 = arith.constant 9.99999974E-6 : f32
    %187 = vector.broadcast %cst_86 : f32 to vector<8x24x1xf32>
    %188 = arith.addf %184, %187 : vector<8x24x1xf32>
    %189 = math.rsqrt %188 : vector<8x24x1xf32>
    %190 = vector.broadcast %189 : vector<8x24x1xf32> to vector<8x24x32xf32>
    %191 = arith.mulf %186, %190 : vector<8x24x32xf32>
    %c1_87 = arith.constant 1 : index
    %c0_88 = arith.constant 0 : index
    %c0_89 = arith.constant 0 : index
    %192 = vector.load %arg10[%c1_87, %c0_88, %c0_89] : memref<2x1x32xf32, #tpu.memory_space<vmem>>, vector<1x1x32xf32>
    %193 = vector.shape_cast %192 : vector<1x1x32xf32> to vector<1x32xf32>
    %194 = vector.shape_cast %193 : vector<1x32xf32> to vector<1x1x32xf32>
    %195 = vector.broadcast %194 : vector<1x1x32xf32> to vector<8x24x32xf32>
    %196 = arith.mulf %191, %195 : vector<8x24x32xf32>
    %c1_90 = arith.constant 1 : index
    %c0_91 = arith.constant 0 : index
    %c0_92 = arith.constant 0 : index
    %197 = vector.load %arg11[%c1_90, %c0_91, %c0_92] : memref<2x1x32xf32, #tpu.memory_space<vmem>>, vector<1x1x32xf32>
    %198 = vector.shape_cast %197 : vector<1x1x32xf32> to vector<1x32xf32>
    %199 = vector.shape_cast %198 : vector<1x32xf32> to vector<1x1x32xf32>
    %200 = vector.broadcast %199 : vector<1x1x32xf32> to vector<8x24x32xf32>
    %201 = arith.addf %196, %200 : vector<8x24x32xf32>
    %202 = vector.shape_cast %201 : vector<8x24x32xf32> to vector<192x32xf32>
    %203 = arith.truncf %202 : vector<192x32xf32> to vector<192x32xbf16>
    %c1_93 = arith.constant 1 : index
    %c0_94 = arith.constant 0 : index
    %c0_95 = arith.constant 0 : index
    %204 = vector.load %arg12[%c1_93, %c0_94, %c0_95] : memref<2x32x64xbf16, #tpu.memory_space<vmem>>, vector<1x32x64xbf16>
    %205 = vector.shape_cast %204 : vector<1x32x64xbf16> to vector<32x64xbf16>
    %cst_96 = arith.constant dense<0.000000e+00> : vector<192x64xf32>
    %206 = tpu.matmul %203, %205, %cst_96 {dimension_numbers = #tpu.dot_dimension_numbers<[1], [0], [0], [1], [0, 0, 1, 1], [], []>} : vector<192x32xbf16>, vector<32x64xbf16>, vector<192x64xf32> -> vector<192x64xf32>
    %c1_97 = arith.constant 1 : index
    %c0_98 = arith.constant 0 : index
    %c0_99 = arith.constant 0 : index
    %207 = vector.load %arg13[%c1_97, %c0_98, %c0_99] : memref<2x1x64xf32, #tpu.memory_space<vmem>>, vector<1x1x64xf32>
    %208 = vector.shape_cast %207 : vector<1x1x64xf32> to vector<1x64xf32>
    %209 = vector.broadcast %208 : vector<1x64xf32> to vector<192x64xf32>
    %210 = arith.addf %206, %209 : vector<192x64xf32>
    %cst_100 = arith.constant 0.000000e+00 : f32
    %211 = vector.broadcast %cst_100 : f32 to vector<192x64xf32>
    %212 = arith.maximumf %210, %211 : vector<192x64xf32>
    %213 = arith.truncf %212 : vector<192x64xf32> to vector<192x64xbf16>
    %c1_101 = arith.constant 1 : index
    %c0_102 = arith.constant 0 : index
    %c0_103 = arith.constant 0 : index
    %214 = vector.load %arg14[%c1_101, %c0_102, %c0_103] : memref<2x64x32xbf16, #tpu.memory_space<vmem>>, vector<1x64x32xbf16>
    %215 = vector.shape_cast %214 : vector<1x64x32xbf16> to vector<64x32xbf16>
    %cst_104 = arith.constant dense<0.000000e+00> : vector<192x32xf32>
    %216 = tpu.matmul %213, %215, %cst_104 {dimension_numbers = #tpu.dot_dimension_numbers<[1], [0], [0], [1], [0, 0, 1, 1], [], []>} : vector<192x64xbf16>, vector<64x32xbf16>, vector<192x32xf32> -> vector<192x32xf32>
    %c1_105 = arith.constant 1 : index
    %c0_106 = arith.constant 0 : index
    %c0_107 = arith.constant 0 : index
    %217 = vector.load %arg15[%c1_105, %c0_106, %c0_107] : memref<2x1x32xf32, #tpu.memory_space<vmem>>, vector<1x1x32xf32>
    %218 = vector.shape_cast %217 : vector<1x1x32xf32> to vector<1x32xf32>
    %219 = vector.broadcast %218 : vector<1x32xf32> to vector<192x32xf32>
    %220 = arith.addf %216, %219 : vector<192x32xf32>
    %221 = vector.shape_cast %220 : vector<192x32xf32> to vector<8x24x32xf32>
    %222 = arith.addf %201, %221 : vector<8x24x32xf32>
    %cst_108 = arith.constant dense<0.000000e+00> : vector<8x24xf32>
    %223 = vector.multi_reduction <add>, %222, %cst_108 [2] : vector<8x24x32xf32> to vector<8x24xf32>
    %224 = vector.shape_cast %223 : vector<8x24xf32> to vector<8x24x1xf32>
    %cst_109 = arith.constant 3.200000e+01 : f32
    %225 = vector.broadcast %cst_109 : f32 to vector<8x24x1xf32>
    %226 = arith.divf %224, %225 : vector<8x24x1xf32>
    %227 = vector.broadcast %226 : vector<8x24x1xf32> to vector<8x24x32xf32>
    %228 = arith.subf %222, %227 : vector<8x24x32xf32>
    %229 = arith.mulf %228, %228 : vector<8x24x32xf32>
    %cst_110 = arith.constant dense<0.000000e+00> : vector<8x24xf32>
    %230 = vector.multi_reduction <add>, %229, %cst_110 [2] : vector<8x24x32xf32> to vector<8x24xf32>
    %231 = vector.shape_cast %230 : vector<8x24xf32> to vector<8x24x1xf32>
    %cst_111 = arith.constant 3.200000e+01 : f32
    %232 = vector.broadcast %cst_111 : f32 to vector<8x24x1xf32>
    %233 = arith.divf %231, %232 : vector<8x24x1xf32>
    %234 = vector.broadcast %226 : vector<8x24x1xf32> to vector<8x24x32xf32>
    %235 = arith.subf %222, %234 : vector<8x24x32xf32>
    %cst_112 = arith.constant 9.99999974E-6 : f32
    %236 = vector.broadcast %cst_112 : f32 to vector<8x24x1xf32>
    %237 = arith.addf %233, %236 : vector<8x24x1xf32>
    %238 = math.rsqrt %237 : vector<8x24x1xf32>
    %239 = vector.broadcast %238 : vector<8x24x1xf32> to vector<8x24x32xf32>
    %240 = arith.mulf %235, %239 : vector<8x24x32xf32>
    %c1_113 = arith.constant 1 : index
    %c0_114 = arith.constant 0 : index
    %c0_115 = arith.constant 0 : index
    %241 = vector.load %arg16[%c1_113, %c0_114, %c0_115] : memref<2x1x32xf32, #tpu.memory_space<vmem>>, vector<1x1x32xf32>
    %242 = vector.shape_cast %241 : vector<1x1x32xf32> to vector<1x32xf32>
    %243 = vector.shape_cast %242 : vector<1x32xf32> to vector<1x1x32xf32>
    %244 = vector.broadcast %243 : vector<1x1x32xf32> to vector<8x24x32xf32>
    %245 = arith.mulf %240, %244 : vector<8x24x32xf32>
    %c1_116 = arith.constant 1 : index
    %c0_117 = arith.constant 0 : index
    %c0_118 = arith.constant 0 : index
    %246 = vector.load %arg17[%c1_116, %c0_117, %c0_118] : memref<2x1x32xf32, #tpu.memory_space<vmem>>, vector<1x1x32xf32>
    %247 = vector.shape_cast %246 : vector<1x1x32xf32> to vector<1x32xf32>
    %248 = vector.shape_cast %247 : vector<1x32xf32> to vector<1x1x32xf32>
    %249 = vector.broadcast %248 : vector<1x1x32xf32> to vector<8x24x32xf32>
    %250 = arith.addf %245, %249 : vector<8x24x32xf32>
    %251 = vector.extract_strided_slice %0 {offsets = [0, 0, 8], sizes = [8, 24, 1], strides = [1, 1, 1]} : vector<8x24x9xf32> to vector<8x24x1xf32>
    %252 = vector.broadcast %251 : vector<8x24x1xf32> to vector<8x24x32xf32>
    %253 = arith.mulf %250, %252 : vector<8x24x32xf32>
    %254 = vector.shape_cast %1 : vector<8x1x24xf32> to vector<8x24xf32>
    %cst_119 = arith.constant dense<0.000000e+00> : vector<8xf32>
    %255 = vector.multi_reduction <add>, %254, %cst_119 [1] : vector<8x24xf32> to vector<8xf32>
    %256 = vector.shape_cast %255 : vector<8xf32> to vector<8x1xf32>
    %cst_120 = arith.constant dense<0.000000e+00> : vector<8x32xf32>
    %257 = vector.multi_reduction <add>, %253, %cst_120 [1] : vector<8x24x32xf32> to vector<8x32xf32>
    %258 = vector.broadcast %256 : vector<8x1xf32> to vector<8x32xf32>
    %259 = arith.divf %257, %258 : vector<8x32xf32>
    %260 = arith.truncf %259 : vector<8x32xf32> to vector<8x32xbf16>
    %c0_121 = arith.constant 0 : index
    %c0_122 = arith.constant 0 : index
    %261 = vector.load %arg18[%c0_121, %c0_122] : memref<32x32xbf16, #tpu.memory_space<vmem>>, vector<32x32xbf16>
    %cst_123 = arith.constant dense<0.000000e+00> : vector<8x32xf32>
    %262 = tpu.matmul %260, %261, %cst_123 {dimension_numbers = #tpu.dot_dimension_numbers<[1], [0], [0], [1], [0, 0, 1, 1], [], []>} : vector<8x32xbf16>, vector<32x32xbf16>, vector<8x32xf32> -> vector<8x32xf32>
    %263 = vector.shape_cast %253 : vector<8x24x32xf32> to vector<192x32xf32>
    %264 = arith.truncf %263 : vector<192x32xf32> to vector<192x32xbf16>
    %c0_124 = arith.constant 0 : index
    %c0_125 = arith.constant 0 : index
    %265 = vector.load %arg19[%c0_124, %c0_125] : memref<32x32xbf16, #tpu.memory_space<vmem>>, vector<32x32xbf16>
    %cst_126 = arith.constant dense<0.000000e+00> : vector<192x32xf32>
    %266 = tpu.matmul %264, %265, %cst_126 {dimension_numbers = #tpu.dot_dimension_numbers<[1], [0], [0], [1], [0, 0, 1, 1], [], []>} : vector<192x32xbf16>, vector<32x32xbf16>, vector<192x32xf32> -> vector<192x32xf32>
    %267 = vector.shape_cast %266 : vector<192x32xf32> to vector<8x24x32xf32>
    %268 = vector.shape_cast %262 : vector<8x32xf32> to vector<8x1x32xf32>
    %cst_127 = arith.constant dense<0.000000e+00> : vector<8x1x24xf32>
    %269 = tpu.matmul %268, %267, %cst_127 {dimension_numbers = #tpu.dot_dimension_numbers<[2], [2], [1], [1], [0, 0, 0, 1, 1, 1], [0], [0]>} : vector<8x1x32xf32>, vector<8x24x32xf32>, vector<8x1x24xf32> -> vector<8x1x24xf32>
    %cst_128 = arith.constant 0.176776692 : f32
    %270 = vector.broadcast %cst_128 : f32 to vector<8x1x24xf32>
    %271 = arith.mulf %269, %270 : vector<8x1x24xf32>
    %272 = math.tanh %271 : vector<8x1x24xf32>
    %cst_129 = arith.constant 1.000000e+01 : f32
    %273 = vector.broadcast %cst_129 : f32 to vector<8x1x24xf32>
    %274 = arith.mulf %272, %273 : vector<8x1x24xf32>
    %275 = vector.extract_strided_slice %274 {offsets = [0, 0, 8], sizes = [8, 1, 8], strides = [1, 1, 1]} : vector<8x1x24xf32> to vector<8x1x8xf32>
    %cst_130 = arith.constant 1.000000e+00 : f32
    %276 = vector.broadcast %cst_130 : f32 to vector<8x1x8xf32>
    %277 = arith.mulf %275, %276 : vector<8x1x8xf32>
    %cst_131 = arith.constant dense<0xFF800000> : vector<8x1xf32>
    %278 = vector.multi_reduction <maximumf>, %277, %cst_131 [2] : vector<8x1x8xf32> to vector<8x1xf32>
    %279 = vector.shape_cast %278 : vector<8x1xf32> to vector<8x1x1xf32>
    %280 = vector.broadcast %279 : vector<8x1x1xf32> to vector<8x1x8xf32>
    %281 = arith.subf %277, %280 : vector<8x1x8xf32>
    %282 = math.exp %281 : vector<8x1x8xf32>
    %cst_132 = arith.constant dense<0.000000e+00> : vector<8x1xf32>
    %283 = vector.multi_reduction <add>, %282, %cst_132 [2] : vector<8x1x8xf32> to vector<8x1xf32>
    %284 = vector.shape_cast %283 : vector<8x1xf32> to vector<8x1x1xf32>
    %285 = vector.broadcast %284 : vector<8x1x1xf32> to vector<8x1x8xf32>
    %286 = arith.divf %282, %285 : vector<8x1x8xf32>
    %287 = vector.extract_strided_slice %1 {offsets = [0, 0, 8], sizes = [8, 1, 8], strides = [1, 1, 1]} : vector<8x1x24xf32> to vector<8x1x8xf32>
    %288 = arith.mulf %286, %287 : vector<8x1x8xf32>
    %c0_133 = arith.constant 0 : index
    %c0_134 = arith.constant 0 : index
    %289 = vector.load %arg20[%c0_133, %c0_134] : memref<8x32xf32, #tpu.memory_space<vmem>>, vector<8x32xf32>
    tpu.vector_store %arg20[%c0_133, %c0_134], %262 {strides = array<i32>} : memref<8x32xf32, #tpu.memory_space<vmem>>, vector<8x32xf32>,
    %290 = vector.shape_cast %288 : vector<8x1x8xf32> to vector<8x8xf32>
    %c0_135 = arith.constant 0 : index
    %c0_136 = arith.constant 0 : index
    %291 = vector.load %arg21[%c0_135, %c0_136] : memref<8x8xf32, #tpu.memory_space<vmem>>, vector<8x8xf32>
    tpu.vector_store %arg21[%c0_135, %c0_136], %290 {strides = array<i32>} : memref<8x8xf32, #tpu.memory_space<vmem>>, vector<8x8xf32>,
    return
  }
  func.func @transform_0(%arg0: i32) -> (i32, i32, i32) {
    %c0_i32 = arith.constant 0 : i32
    %c0_i32_0 = arith.constant 0 : i32
    %c0_i32_1 = arith.constant 0 : i32
    return %arg0, %c0_i32, %c0_i32_0 : i32, i32, i32
  }
  func.func @transform_1(%arg0: i32) -> (i32, i32, i32) {
    %c0_i32 = arith.constant 0 : i32
    %c0_i32_0 = arith.constant 0 : i32
    %c0_i32_1 = arith.constant 0 : i32
    return %arg0, %c0_i32, %c0_i32_0 : i32, i32, i32
  }
  func.func @transform_2(%arg0: i32) -> (i32, i32) {
    %c0_i32 = arith.constant 0 : i32
    %c0_i32_0 = arith.constant 0 : i32
    %c0_i32_1 = arith.constant 0 : i32
    return %c0_i32, %c0_i32_0 : i32, i32
  }
  func.func @transform_3(%arg0: i32) -> (i32, i32) {
    %c0_i32 = arith.constant 0 : i32
    %c0_i32_0 = arith.constant 0 : i32
    %c0_i32_1 = arith.constant 0 : i32
    return %c0_i32, %c0_i32_0 : i32, i32
  }
  func.func @transform_4(%arg0: i32) -> (i32, i32) {
    %c0_i32 = arith.constant 0 : i32
    %c0_i32_0 = arith.constant 0 : i32
    %c0_i32_1 = arith.constant 0 : i32
    return %c0_i32, %c0_i32_0 : i32, i32
  }
  func.func @transform_5(%arg0: i32) -> (i32, i32) {
    %c0_i32 = arith.constant 0 : i32
    %c0_i32_0 = arith.constant 0 : i32
    %c0_i32_1 = arith.constant 0 : i32
    return %c0_i32, %c0_i32_0 : i32, i32
  }
  func.func @transform_6(%arg0: i32) -> (i32, i32) {
    %c0_i32 = arith.constant 0 : i32
    %c0_i32_0 = arith.constant 0 : i32
    %c0_i32_1 = arith.constant 0 : i32
    return %c0_i32, %c0_i32_0 : i32, i32
  }
  func.func @transform_7(%arg0: i32) -> (i32, i32, i32) {
    %c0_i32 = arith.constant 0 : i32
    %c0_i32_0 = arith.constant 0 : i32
    %c0_i32_1 = arith.constant 0 : i32
    %c0_i32_2 = arith.constant 0 : i32
    return %c0_i32, %c0_i32_0, %c0_i32_1 : i32, i32, i32
  }
  func.func @transform_8(%arg0: i32) -> (i32, i32, i32) {
    %c0_i32 = arith.constant 0 : i32
    %c0_i32_0 = arith.constant 0 : i32
    %c0_i32_1 = arith.constant 0 : i32
    %c0_i32_2 = arith.constant 0 : i32
    return %c0_i32, %c0_i32_0, %c0_i32_1 : i32, i32, i32
  }
  func.func @transform_9(%arg0: i32) -> (i32, i32, i32) {
    %c0_i32 = arith.constant 0 : i32
    %c0_i32_0 = arith.constant 0 : i32
    %c0_i32_1 = arith.constant 0 : i32
    %c0_i32_2 = arith.constant 0 : i32
    return %c0_i32, %c0_i32_0, %c0_i32_1 : i32, i32, i32
  }
  func.func @transform_10(%arg0: i32) -> (i32, i32, i32) {
    %c0_i32 = arith.constant 0 : i32
    %c0_i32_0 = arith.constant 0 : i32
    %c0_i32_1 = arith.constant 0 : i32
    %c0_i32_2 = arith.constant 0 : i32
    return %c0_i32, %c0_i32_0, %c0_i32_1 : i32, i32, i32
  }
  func.func @transform_11(%arg0: i32) -> (i32, i32, i32) {
    %c0_i32 = arith.constant 0 : i32
    %c0_i32_0 = arith.constant 0 : i32
    %c0_i32_1 = arith.constant 0 : i32
    %c0_i32_2 = arith.constant 0 : i32
    return %c0_i32, %c0_i32_0, %c0_i32_1 : i32, i32, i32
  }
  func.func @transform_12(%arg0: i32) -> (i32, i32, i32) {
    %c0_i32 = arith.constant 0 : i32
    %c0_i32_0 = arith.constant 0 : i32
    %c0_i32_1 = arith.constant 0 : i32
    %c0_i32_2 = arith.constant 0 : i32
    return %c0_i32, %c0_i32_0, %c0_i32_1 : i32, i32, i32
  }
  func.func @transform_13(%arg0: i32) -> (i32, i32, i32) {
    %c0_i32 = arith.constant 0 : i32
    %c0_i32_0 = arith.constant 0 : i32
    %c0_i32_1 = arith.constant 0 : i32
    %c0_i32_2 = arith.constant 0 : i32
    return %c0_i32, %c0_i32_0, %c0_i32_1 : i32, i32, i32
  }
  func.func @transform_14(%arg0: i32) -> (i32, i32, i32) {
    %c0_i32 = arith.constant 0 : i32
    %c0_i32_0 = arith.constant 0 : i32
    %c0_i32_1 = arith.constant 0 : i32
    %c0_i32_2 = arith.constant 0 : i32
    return %c0_i32, %c0_i32_0, %c0_i32_1 : i32, i32, i32
  }
  func.func @transform_15(%arg0: i32) -> (i32, i32, i32) {
    %c0_i32 = arith.constant 0 : i32
    %c0_i32_0 = arith.constant 0 : i32
    %c0_i32_1 = arith.constant 0 : i32
    %c0_i32_2 = arith.constant 0 : i32
    return %c0_i32, %c0_i32_0, %c0_i32_1 : i32, i32, i32
  }
  func.func @transform_16(%arg0: i32) -> (i32, i32, i32) {
    %c0_i32 = arith.constant 0 : i32
    %c0_i32_0 = arith.constant 0 : i32
    %c0_i32_1 = arith.constant 0 : i32
    %c0_i32_2 = arith.constant 0 : i32
    return %c0_i32, %c0_i32_0, %c0_i32_1 : i32, i32, i32
  }
  func.func @transform_17(%arg0: i32) -> (i32, i32) {
    %c0_i32 = arith.constant 0 : i32
    %c0_i32_0 = arith.constant 0 : i32
    %c0_i32_1 = arith.constant 0 : i32
    return %c0_i32, %c0_i32_0 : i32, i32
  }
  func.func @transform_18(%arg0: i32) -> (i32, i32) {
    %c0_i32 = arith.constant 0 : i32
    %c0_i32_0 = arith.constant 0 : i32
    %c0_i32_1 = arith.constant 0 : i32
    return %c0_i32, %c0_i32_0 : i32, i32
  }
  func.func @transform_19(%arg0: i32) -> (i32, i32) {
    %c0_i32 = arith.constant 0 : i32
    %c0_i32_0 = arith.constant 0 : i32
    return %arg0, %c0_i32 : i32, i32
  }
  func.func @transform_20(%arg0: i32) -> (i32, i32) {
    %c0_i32 = arith.constant 0 : i32
    %c0_i32_0 = arith.constant 0 : i32
    return %arg0, %c0_i32 : i32, i32
  }
}

</mosaic_0001>

<llo_original>
// kernel: tpu_custom_call.1
$region0: #{tpu_custom_call.1}
  #allocation0 [shape = 'u32[]', space=smem, size = 0x4, offset = 0x4, fixed_abs, tag = 'smem constant byte address 0x4 - core index']
  #allocation1 [shape = 'u32[144,128]{1,0:T(1,128)}', space=vmem, size = 0x12000, scoped, tag = 'internal scratch']
  %s0 = inlined_call_operand.vmem [shape: f32[8,24,9], index: 0, kind: input, shape index: {}]
  %s1 = inlined_call_operand.vmem [shape: f32[8,1,24], index: 1, kind: input, shape index: {}]
  %s2 = inlined_call_operand.vmem [shape: bf16[9,96], index: 2, kind: input, shape index: {}]
  %s3 = inlined_call_operand.vmem [shape: f32[1,96], index: 3, kind: input, shape index: {}]
  %s4 = inlined_call_operand.vmem [shape: f32[24,96], index: 4, kind: input, shape index: {}]
  %s5 = inlined_call_operand.vmem [shape: bf16[96,32], index: 5, kind: input, shape index: {}]
  %s6 = inlined_call_operand.vmem [shape: f32[24,32], index: 6, kind: input, shape index: {}]
  %s7 = inlined_call_operand.vmem [shape: bf16[2,32,96], index: 7, kind: input, shape index: {}]
  %s8 = inlined_call_operand.vmem [shape: bf16[2,32,32], index: 8, kind: input, shape index: {}]
  %s9 = inlined_call_operand.vmem [shape: f32[2,1,32], index: 9, kind: input, shape index: {}]
  %s10 = inlined_call_operand.vmem [shape: f32[2,1,32], index: 10, kind: input, shape index: {}]
  %s11 = inlined_call_operand.vmem [shape: bf16[2,32,64], index: 11, kind: input, shape index: {}]
  %s12 = inlined_call_operand.vmem [shape: f32[2,1,64], index: 12, kind: input, shape index: {}]
  %s13 = inlined_call_operand.vmem [shape: bf16[2,64,32], index: 13, kind: input, shape index: {}]
  %s14 = inlined_call_operand.vmem [shape: f32[2,1,32], index: 14, kind: input, shape index: {}]
  %s15 = inlined_call_operand.vmem [shape: f32[2,1,32], index: 15, kind: input, shape index: {}]
  %s16 = inlined_call_operand.vmem [shape: f32[2,1,32], index: 16, kind: input, shape index: {}]
  %s17 = inlined_call_operand.vmem [shape: bf16[32,32], index: 17, kind: input, shape index: {}]
  %s18 = inlined_call_operand.vmem [shape: bf16[32,32], index: 18, kind: input, shape index: {}]
  %s19 = inlined_call_operand.hbm [shape: f32[8,32], index: 19, kind: output, shape index: {0}]
  %s20 = inlined_call_operand.hbm [shape: f32[8,8], index: 20, kind: output, shape index: {1}]
  %21 = xla_tuple %s19, %s20
  %s22 = sld [smem:[#allocation0]]
  $region94: #{tpu_custom_call.1} parent=0
    _
  %s24 = ssub.s32 1, %s22
  %s25 = scalar_select 0, %s24, %s22
  $region1: #{tpu_custom_call.1} parent=0
    #allocation2 [shape = 'u8[4096]{0}', space=vmem, size = 0x1000, scoped, tag = 'output window, operand 0, single buffered']
    #allocation3 [shape = 's32[1]{0}', space=sflag, size = 0x4, scoped, tag = 'scoped memory for tpu_custom_call.1']
    #allocation4 [shape = 'u8[4096]{0}', space=vmem, size = 0x1000, scoped, tag = 'output window, operand 1, single buffered']
    #allocation5 [shape = 's32[1]{0}', space=sflag, size = 0x4, scoped, tag = 'scoped memory for tpu_custom_call.1']
    %26 = vsyncpa [#allocation3], 0
    %27 = vsyncpa [#allocation5], 0
    // Predicated region
    $region2: #{tpu_custom_call.1} parent=1 // pred_check
      _
    $region3: #{tpu_custom_call.1} parent=1 // pred_check_branch
      %29 = sbr.rel (0) target = $region5
    $region4: #{tpu_custom_call.1} parent=1 // pred_region
      _
    $region5: #{tpu_custom_call.1} parent=1 // pred_fallthru
      _
    // Predicated region
    $region6: #{tpu_custom_call.1} parent=1 // pred_check
      _
    $region7: #{tpu_custom_call.1} parent=1 // pred_check_branch
      %31 = sbr.rel (0) target = $region9
    $region8: #{tpu_custom_call.1} parent=1 // pred_region
      _
    $region9: #{tpu_custom_call.1} parent=1 // pred_fallthru
      _
    // Predicated region
    $region10: #{tpu_custom_call.1} parent=1 // pred_check
      _
    $region11: #{tpu_custom_call.1} parent=1 // pred_check_branch
      %33 = sbr.rel (0) target = $region13
    $region12: #{tpu_custom_call.1} parent=1 // pred_region
      _
    $region13: #{tpu_custom_call.1} parent=1 // pred_fallthru
      _
    // Predicated region
    $region14: #{tpu_custom_call.1} parent=1 // pred_check
      _
    $region15: #{tpu_custom_call.1} parent=1 // pred_check_branch
      %35 = sbr.rel (0) target = $region17
    $region16: #{tpu_custom_call.1} parent=1 // pred_region
      _
    $region17: #{tpu_custom_call.1} parent=1 // pred_fallthru
      _
    // Predicated region
    $region18: #{tpu_custom_call.1} parent=1 // pred_check
      _
    $region19: #{tpu_custom_call.1} parent=1 // pred_check_branch
      %37 = sbr.rel (0) target = $region21
    $region20: #{tpu_custom_call.1} parent=1 // pred_region
      _
    $region21: #{tpu_custom_call.1} parent=1 // pred_fallthru
      _
    // Predicated region
    $region22: #{tpu_custom_call.1} parent=1 // pred_check
      _
    $region23: #{tpu_custom_call.1} parent=1 // pred_check_branch
      %39 = sbr.rel (0) target = $region25
    $region24: #{tpu_custom_call.1} parent=1 // pred_region
      _
    $region25: #{tpu_custom_call.1} parent=1 // pred_fallthru
      _
    // Predicated region
    $region26: #{tpu_custom_call.1} parent=1 // pred_check
      _
    $region27: #{tpu_custom_call.1} parent=1 // pred_check_branch
      %41 = sbr.rel (0) target = $region29
    $region28: #{tpu_custom_call.1} parent=1 // pred_region
      _
    $region29: #{tpu_custom_call.1} parent=1 // pred_fallthru
      _
    // Predicated region
    $region30: #{tpu_custom_call.1} parent=1 // pred_check
      _
    $region31: #{tpu_custom_call.1} parent=1 // pred_check_branch
      %43 = sbr.rel (0) target = $region33
    $region32: #{tpu_custom_call.1} parent=1 // pred_region
      _
    $region33: #{tpu_custom_call.1} parent=1 // pred_fallthru
      _
    // Predicated region
    $region34: #{tpu_custom_call.1} parent=1 // pred_check
      _
    $region35: #{tpu_custom_call.1} parent=1 // pred_check_branch
      %45 = sbr.rel (0) target = $region37
    $region36: #{tpu_custom_call.1} parent=1 // pred_region
      _
    $region37: #{tpu_custom_call.1} parent=1 // pred_fallthru
      _
    // Predicated region
    $region38: #{tpu_custom_call.1} parent=1 // pred_check
      _
    $region39: #{tpu_custom_call.1} parent=1 // pred_check_branch
      %47 = sbr.rel (0) target = $region41
    $region40: #{tpu_custom_call.1} parent=1 // pred_region
      _
    $region41: #{tpu_custom_call.1} parent=1 // pred_fallthru
      _
    // Predicated region
    $region42: #{tpu_custom_call.1} parent=1 // pred_check
      _
    $region43: #{tpu_custom_call.1} parent=1 // pred_check_branch
      %49 = sbr.rel (0) target = $region45
    $region44: #{tpu_custom_call.1} parent=1 // pred_region
      _
    $region45: #{tpu_custom_call.1} parent=1 // pred_fallthru
      _
    // Predicated region
    $region46: #{tpu_custom_call.1} parent=1 // pred_check
      _
    $region47: #{tpu_custom_call.1} parent=1 // pred_check_branch
      %51 = sbr.rel (0) target = $region49
    $region48: #{tpu_custom_call.1} parent=1 // pred_region
      _
    $region49: #{tpu_custom_call.1} parent=1 // pred_fallthru
      _
    // Predicated region
    $region50: #{tpu_custom_call.1} parent=1 // pred_check
      _
    $region51: #{tpu_custom_call.1} parent=1 // pred_check_branch
      %53 = sbr.rel (0) target = $region53
    $region52: #{tpu_custom_call.1} parent=1 // pred_region
      _
    $region53: #{tpu_custom_call.1} parent=1 // pred_fallthru
      _
    // Predicated region
    $region54: #{tpu_custom_call.1} parent=1 // pred_check
      _
    $region55: #{tpu_custom_call.1} parent=1 // pred_check_branch
      %55 = sbr.rel (0) target = $region57
    $region56: #{tpu_custom_call.1} parent=1 // pred_region
      _
    $region57: #{tpu_custom_call.1} parent=1 // pred_fallthru
      _
    // Predicated region
    $region58: #{tpu_custom_call.1} parent=1 // pred_check
      _
    $region59: #{tpu_custom_call.1} parent=1 // pred_check_branch
      %57 = sbr.rel (0) target = $region61
    $region60: #{tpu_custom_call.1} parent=1 // pred_region
      _
    $region61: #{tpu_custom_call.1} parent=1 // pred_fallthru
      _
    // Predicated region
    $region62: #{tpu_custom_call.1} parent=1 // pred_check
      _
    $region63: #{tpu_custom_call.1} parent=1 // pred_check_branch
      %59 = sbr.rel (0) target = $region65
    $region64: #{tpu_custom_call.1} parent=1 // pred_region
      _
    $region65: #{tpu_custom_call.1} parent=1 // pred_fallthru
      _
    // Predicated region
    $region66: #{tpu_custom_call.1} parent=1 // pred_check
      _
    $region67: #{tpu_custom_call.1} parent=1 // pred_check_branch
      %61 = sbr.rel (0) target = $region69
    $region68: #{tpu_custom_call.1} parent=1 // pred_region
      _
    $region69: #{tpu_custom_call.1} parent=1 // pred_fallthru
      _
    // Predicated region
    $region70: #{tpu_custom_call.1} parent=1 // pred_check
      _
    $region71: #{tpu_custom_call.1} parent=1 // pred_check_branch
      %63 = sbr.rel (0) target = $region73
    $region72: #{tpu_custom_call.1} parent=1 // pred_region
      _
    $region73: #{tpu_custom_call.1} parent=1 // pred_fallthru
      _
    // Predicated region
    $region74: #{tpu_custom_call.1} parent=1 // pred_check
      _
    $region75: #{tpu_custom_call.1} parent=1 // pred_check_branch
      %65 = sbr.rel (0) target = $region77
    $region76: #{tpu_custom_call.1} parent=1 // pred_region
      _
    $region77: #{tpu_custom_call.1} parent=1 // pred_fallthru
      _
    %v67 = vld [vmem:[%s0] sm:$0xff]
    %v68 = vld [vmem:[%s0 + $0x8] sm:$0xff]
    %v69 = vld [vmem:[%s0 + $0x10] sm:$0xff]
    %v70 = vld [vmem:[%s0 + $0x18] sm:$0xff]
    %v71 = vld [vmem:[%s0 + $0x20] sm:$0xff]
    %v72 = vld [vmem:[%s0 + $0x28] sm:$0xff]
    %v73 = vld [vmem:[%s0 + $0x30] sm:$0xff]
    %v74 = vld [vmem:[%s0 + $0x38] sm:$0xff]
    %v75 = vld [vmem:[%s0 + $0x40] sm:$0xff]
    %v76 = vld [vmem:[%s0 + $0x48] sm:$0xff]
    %v77 = vld [vmem:[%s0 + $0x50] sm:$0xff]
    %v78 = vld [vmem:[%s0 + $0x58] sm:$0xff]
    %v79 = vld [vmem:[%s0 + $0x60] sm:$0xff]
    %v80 = vld [vmem:[%s0 + $0x68] sm:$0xff]
    %v81 = vld [vmem:[%s0 + $0x70] sm:$0xff]
    %v82 = vld [vmem:[%s0 + $0x78] sm:$0xff]
    %v83 = vld [vmem:[%s0 + $0x80] sm:$0xff]
    %v84 = vld [vmem:[%s0 + $0x88] sm:$0xff]
    %v85 = vld [vmem:[%s0 + $0x90] sm:$0xff]
    %v86 = vld [vmem:[%s0 + $0x98] sm:$0xff]
    %v87 = vld [vmem:[%s0 + $0xa0] sm:$0xff]
    %v88 = vld [vmem:[%s0 + $0xa8] sm:$0xff]
    %v89 = vld [vmem:[%s0 + $0xb0] sm:$0xff]
    %v90 = vld [vmem:[%s0 + $0xb8] sm:$0xff]
    %v91 = vld [vmem:[%s1] sm:$0x1]
    %v92 = vld [vmem:[%s1 + $0x1] sm:$0x1]
    %v93 = vld [vmem:[%s1 + $0x2] sm:$0x1]
    %v94 = vld [vmem:[%s1 + $0x3] sm:$0x1]
    %v95 = vld [vmem:[%s1 + $0x4] sm:$0x1]
    %v96 = vld [vmem:[%s1 + $0x5] sm:$0x1]
    %v97 = vld [vmem:[%s1 + $0x6] sm:$0x1]
    %v98 = vld [vmem:[%s1 + $0x7] sm:$0x1]
    %v99 = vpack.c.bf16 %v68, %v67
    %v100 = vpack.c.bf16 %v70, %v69
    %v101 = vpack.c.bf16 %v72, %v71
    %v102 = vpack.c.bf16 %v74, %v73
    %v103 = vpack.c.bf16 %v76, %v75
    %v104 = vpack.c.bf16 %v78, %v77
    %v105 = vpack.c.bf16 %v80, %v79
    %v106 = vpack.c.bf16 %v82, %v81
    %v107 = vpack.c.bf16 %v84, %v83
    %v108 = vpack.c.bf16 %v86, %v85
    %v109 = vpack.c.bf16 %v88, %v87
    %v110 = vpack.c.bf16 %v90, %v89
    %v111 = vld [vmem:[%s2] sm:$0xf]
    %v112 = vld [vmem:[%s2 + $0x4] sm:$0x1]
    %v115 = vunpack.c.l.b16 %v111
    %v116 = vunpack.c.l.b16 %v112
    %v117 = vpack.c.b16 %v116, %v115
    %vm118 = vcmask 72704
    %v120 = vsel %vm118, %v99, 0
    %v123 = vsel %vm118, %v100, 0
    %v126 = vsel %vm118, %v101, 0
    %v129 = vsel %vm118, %v102, 0
    %v132 = vsel %vm118, %v103, 0
    %v135 = vsel %vm118, %v104, 0
    %v138 = vsel %vm118, %v105, 0
    %v141 = vsel %vm118, %v106, 0
    %v144 = vsel %vm118, %v107, 0
    %v147 = vsel %vm118, %v108, 0
    %v150 = vsel %vm118, %v109, 0
    %v153 = vsel %vm118, %v110, 0
    %vm155 = vcmask 1043456
    %vm156 = vcmask 1044480
    %v157 = vsel %vm155, 4294967295, 65535
    %v158 = vsel %vm156, %v157, 0
    %v160 = vand.u32 %v117, %v158
    %162 = vmatprep.subr.bf16.mxu0 0
    %163 = vmatpush1.bf16.msra.mxu0 %v160
    %164 = vmatprep.subr.bf16.mxu0 0
    %165 = vmatpush1.bf16.msra.mxu0 0
    %166 = vmatprep.subr.bf16.mxu0 0
    %167 = vmatpush1.bf16.msra.mxu0 0
    %168 = vmatprep.subr.bf16.mxu0 0
    %169 = vmatpush1.bf16.msra.mxu0 0
    %170 = vmatprep.subr.bf16.mxu0 0
    %171 = vmatpush1.bf16.msra.mxu0 0
    %172 = vmatprep.subr.bf16.mxu0 0
    %173 = vmatpush1.bf16.msra.mxu0 0
    %174 = vmatprep.subr.bf16.mxu0 0
    %175 = vmatpush1.bf16.msra.mxu0 0
    %176 = vmatprep.subr.bf16.mxu0 0
    %177 = vmatpush1.bf16.msra.mxu0 0
    %178 = vmatprep.subr.bf16.mxu0 0
    %179 = vmatpush1.bf16.msra.mxu0 0
    %180 = vmatprep.subr.bf16.mxu0 0
    %181 = vmatpush1.bf16.msra.mxu0 0
    %182 = vmatprep.subr.bf16.mxu0 0
    %183 = vmatpush1.bf16.msra.mxu0 0
    %184 = vmatprep.subr.bf16.mxu0 0
    %185 = vmatpush1.bf16.msra.mxu0 0
    %186 = vmatprep.subr.bf16.mxu0 0
    %187 = vmatpush1.bf16.msra.mxu0 0
    %188 = vmatprep.subr.bf16.mxu0 0
    %189 = vmatpush1.bf16.msra.mxu0 0
    %190 = vmatprep.subr.bf16.mxu0 0
    %191 = vmatpush1.bf16.msra.mxu0 0
    %192 = vmatprep.subr.bf16.mxu0 0
    %193 = vmatpush1.bf16.msra.mxu0 0
    %194 = vmatprep.mubr.bf16.mxu0 0
    %195 = vmatmul.mubr.bf16.gmra.mrb[0].mxu0 %v120
    %v196 = vpop.f32.mrb[0].mxu0
    %v197 = vadd.f32 0.0, %v196
    %v198 = vpop.f32.mrb[0].mxu0
    %v199 = vpop.f32.mrb[0].mxu0
    %v200 = vadd.f32 0.0, %v199
    %v201 = vpop.f32.mrb[0].mxu0
    %202 = vmatprep.mubr.bf16.mxu0 0
    %203 = vmatmul.mubr.bf16.gmra.mrb[0].mxu0 %v123
    %v204 = vpop.f32.mrb[0].mxu0
    %v205 = vadd.f32 0.0, %v204
    %v206 = vpop.f32.mrb[0].mxu0
    %v207 = vpop.f32.mrb[0].mxu0
    %v208 = vadd.f32 0.0, %v207
    %v209 = vpop.f32.mrb[0].mxu0
    %210 = vmatprep.mubr.bf16.mxu0 0
    %211 = vmatmul.mubr.bf16.gmra.mrb[0].mxu0 %v126
    %v212 = vpop.f32.mrb[0].mxu0
    %v213 = vadd.f32 0.0, %v212
    %v214 = vpop.f32.mrb[0].mxu0
    %v215 = vpop.f32.mrb[0].mxu0
    %v216 = vadd.f32 0.0, %v215
    %v217 = vpop.f32.mrb[0].mxu0
    %218 = vmatprep.mubr.bf16.mxu0 0
    %219 = vmatmul.mubr.bf16.gmra.mrb[0].mxu0 %v129
    %v220 = vpop.f32.mrb[0].mxu0
    %v221 = vadd.f32 0.0, %v220
    %v222 = vpop.f32.mrb[0].mxu0
    %v223 = vpop.f32.mrb[0].mxu0
    %v224 = vadd.f32 0.0, %v223
    %v225 = vpop.f32.mrb[0].mxu0
    %226 = vmatprep.mubr.bf16.mxu0 0
    %227 = vmatmul.mubr.bf16.gmra.mrb[0].mxu0 %v132
    %v228 = vpop.f32.mrb[0].mxu0
    %v229 = vadd.f32 0.0, %v228
    %v230 = vpop.f32.mrb[0].mxu0
    %v231 = vpop.f32.mrb[0].mxu0
    %v232 = vadd.f32 0.0, %v231
    %v233 = vpop.f32.mrb[0].mxu0
    %234 = vmatprep.mubr.bf16.mxu0 0
    %235 = vmatmul.mubr.bf16.gmra.mrb[0].mxu0 %v135
    %v236 = vpop.f32.mrb[0].mxu0
    %v237 = vadd.f32 0.0, %v236
    %v238 = vpop.f32.mrb[0].mxu0
    %v239 = vpop.f32.mrb[0].mxu0
    %v240 = vadd.f32 0.0, %v239
    %v241 = vpop.f32.mrb[0].mxu0
    %242 = vmatprep.mubr.bf16.mxu0 0
    %243 = vmatmul.mubr.bf16.gmra.mrb[0].mxu0 %v138
    %v244 = vpop.f32.mrb[0].mxu0
    %v245 = vadd.f32 0.0, %v244
    %v246 = vpop.f32.mrb[0].mxu0
    %v247 = vpop.f32.mrb[0].mxu0
    %v248 = vadd.f32 0.0, %v247
    %v249 = vpop.f32.mrb[0].mxu0
    %250 = vmatprep.mubr.bf16.mxu0 0
    %251 = vmatmul.mubr.bf16.gmra.mrb[0].mxu0 %v141
    %v252 = vpop.f32.mrb[0].mxu0
    %v253 = vadd.f32 0.0, %v252
    %v254 = vpop.f32.mrb[0].mxu0
    %v255 = vpop.f32.mrb[0].mxu0
    %v256 = vadd.f32 0.0, %v255
    %v257 = vpop.f32.mrb[0].mxu0
    %258 = vmatprep.mubr.bf16.mxu0 0
    %259 = vmatmul.mubr.bf16.gmra.mrb[0].mxu0 %v144
    %v260 = vpop.f32.mrb[0].mxu0
    %v261 = vadd.f32 0.0, %v260
    %v262 = vpop.f32.mrb[0].mxu0
    %v263 = vpop.f32.mrb[0].mxu0
    %v264 = vadd.f32 0.0, %v263
    %v265 = vpop.f32.mrb[0].mxu0
    %266 = vmatprep.mubr.bf16.mxu0 0
    %267 = vmatmul.mubr.bf16.gmra.mrb[0].mxu0 %v147
    %v268 = vpop.f32.mrb[0].mxu0
    %v269 = vadd.f32 0.0, %v268
    %v270 = vpop.f32.mrb[0].mxu0
    %v271 = vpop.f32.mrb[0].mxu0
    %v272 = vadd.f32 0.0, %v271
    %v273 = vpop.f32.mrb[0].mxu0
    %274 = vmatprep.mubr.bf16.mxu0 0
    %275 = vmatmul.mubr.bf16.gmra.mrb[0].mxu0 %v150
    %v276 = vpop.f32.mrb[0].mxu0
    %v277 = vadd.f32 0.0, %v276
    %v278 = vpop.f32.mrb[0].mxu0
    %v279 = vpop.f32.mrb[0].mxu0
    %v280 = vadd.f32 0.0, %v279
    %v281 = vpop.f32.mrb[0].mxu0
    %282 = vmatprep.mubr.bf16.mxu0 0
    %283 = vmatmul.mubr.bf16.gmra.mrb[0].mxu0 %v153
    %v284 = vpop.f32.mrb[0].mxu0
    %v285 = vadd.f32 0.0, %v284
    %v286 = vpop.f32.mrb[0].mxu0
    %v287 = vpop.f32.mrb[0].mxu0
    %v288 = vadd.f32 0.0, %v287
    %v289 = vpop.f32.mrb[0].mxu0
    %290 = vdwg.mxu0
    %v291 = vld [vmem:[%s3] sm:$0x1]
    %v293 = vlaneseq
    %v294 = vshrl.u32 %v293, 7
    %v295 = vsub.s32 0, %v294
    %v296 = vrot.slane %v291, %v295
    %v298 = vadd.f32 %v197, %v296
    %v299 = vadd.f32 %v200, %v296
    %v300 = vadd.f32 %v205, %v296
    %v301 = vadd.f32 %v208, %v296
    %v302 = vadd.f32 %v213, %v296
    %v303 = vadd.f32 %v216, %v296
    %v304 = vadd.f32 %v221, %v296
    %v305 = vadd.f32 %v224, %v296
    %v306 = vadd.f32 %v229, %v296
    %v307 = vadd.f32 %v232, %v296
    %v308 = vadd.f32 %v237, %v296
    %v309 = vadd.f32 %v240, %v296
    %v310 = vadd.f32 %v245, %v296
    %v311 = vadd.f32 %v248, %v296
    %v312 = vadd.f32 %v253, %v296
    %v313 = vadd.f32 %v256, %v296
    %v314 = vadd.f32 %v261, %v296
    %v315 = vadd.f32 %v264, %v296
    %v316 = vadd.f32 %v269, %v296
    %v317 = vadd.f32 %v272, %v296
    %v318 = vadd.f32 %v277, %v296
    %v319 = vadd.f32 %v280, %v296
    %v320 = vadd.f32 %v285, %v296
    %v321 = vadd.f32 %v288, %v296
    %vm322 = vcmp.gt.f32.partialorder %v298, 0.0
    %vm323 = vcmp.gt.f32.partialorder %v299, 0.0
    %vm324 = vcmp.gt.f32.partialorder %v300, 0.0
    %vm325 = vcmp.gt.f32.partialorder %v301, 0.0
    %vm326 = vcmp.gt.f32.partialorder %v302, 0.0
    %vm327 = vcmp.gt.f32.partialorder %v303, 0.0
    %vm328 = vcmp.gt.f32.partialorder %v304, 0.0
    %vm329 = vcmp.gt.f32.partialorder %v305, 0.0
    %vm330 = vcmp.gt.f32.partialorder %v306, 0.0
    %vm331 = vcmp.gt.f32.partialorder %v307, 0.0
    %vm332 = vcmp.gt.f32.partialorder %v308, 0.0
    %vm333 = vcmp.gt.f32.partialorder %v309, 0.0
    %vm334 = vcmp.gt.f32.partialorder %v310, 0.0
    %vm335 = vcmp.gt.f32.partialorder %v311, 0.0
    %vm336 = vcmp.gt.f32.partialorder %v312, 0.0
    %vm337 = vcmp.gt.f32.partialorder %v313, 0.0
    %vm338 = vcmp.gt.f32.partialorder %v314, 0.0
    %vm339 = vcmp.gt.f32.partialorder %v315, 0.0
    %vm340 = vcmp.gt.f32.partialorder %v316, 0.0
    %vm341 = vcmp.gt.f32.partialorder %v317, 0.0
    %vm342 = vcmp.gt.f32.partialorder %v318, 0.0
    %vm343 = vcmp.gt.f32.partialorder %v319, 0.0
    %vm344 = vcmp.gt.f32.partialorder %v320, 0.0
    %vm345 = vcmp.gt.f32.partialorder %v321, 0.0
    %v346 = vmul.f32 %v298, 0.01
    %v347 = vmul.f32 %v299, 0.01
    %v348 = vmul.f32 %v300, 0.01
    %v349 = vmul.f32 %v301, 0.01
    %v350 = vmul.f32 %v302, 0.01
    %v351 = vmul.f32 %v303, 0.01
    %v352 = vmul.f32 %v304, 0.01
    %v353 = vmul.f32 %v305, 0.01
    %v354 = vmul.f32 %v306, 0.01
    %v355 = vmul.f32 %v307, 0.01
    %v356 = vmul.f32 %v308, 0.01
    %v357 = vmul.f32 %v309, 0.01
    %v358 = vmul.f32 %v310, 0.01
    %v359 = vmul.f32 %v311, 0.01
    %v360 = vmul.f32 %v312, 0.01
    %v361 = vmul.f32 %v313, 0.01
    %v362 = vmul.f32 %v314, 0.01
    %v363 = vmul.f32 %v315, 0.01
    %v364 = vmul.f32 %v316, 0.01
    %v365 = vmul.f32 %v317, 0.01
    %v366 = vmul.f32 %v318, 0.01
    %v367 = vmul.f32 %v319, 0.01
    %v368 = vmul.f32 %v320, 0.01
    %v369 = vmul.f32 %v321, 0.01
    %v370 = vsel %vm322, %v298, %v346
    %v371 = vsel %vm323, %v299, %v347
    %v372 = vsel %vm324, %v300, %v348
    %v373 = vsel %vm325, %v301, %v349
    %v374 = vsel %vm326, %v302, %v350
    %v375 = vsel %vm327, %v303, %v351
    %v376 = vsel %vm328, %v304, %v352
    %v377 = vsel %vm329, %v305, %v353
    %v378 = vsel %vm330, %v306, %v354
    %v379 = vsel %vm331, %v307, %v355
    %v380 = vsel %vm332, %v308, %v356
    %v381 = vsel %vm333, %v309, %v357
    %v382 = vsel %vm334, %v310, %v358
    %v383 = vsel %vm335, %v311, %v359
    %v384 = vsel %vm336, %v312, %v360
    %v385 = vsel %vm337, %v313, %v361
    %v386 = vsel %vm338, %v314, %v362
    %v387 = vsel %vm339, %v315, %v363
    %v388 = vsel %vm340, %v316, %v364
    %v389 = vsel %vm341, %v317, %v365
    %v390 = vsel %vm342, %v318, %v366
    %v391 = vsel %vm343, %v319, %v367
    %v392 = vsel %vm344, %v320, %v368
    %v393 = vsel %vm345, %v321, %v369
    %v394 = vld [vmem:[%s4] sm:$0xff]
    %v395 = vld [vmem:[%s4 + $0x8] sm:$0xff]
    %v396 = vld [vmem:[%s4 + $0x10] sm:$0xff]
    %v397 = vmul.f32 %v370, %v394
    %v398 = vmul.f32 %v371, %v395
    %v399 = vmul.f32 %v372, %v396
    %v400 = vmul.f32 %v373, %v394
    %v401 = vmul.f32 %v374, %v395
    %v402 = vmul.f32 %v375, %v396
    %v403 = vmul.f32 %v376, %v394
    %v404 = vmul.f32 %v377, %v395
    %v405 = vmul.f32 %v378, %v396
    %v406 = vmul.f32 %v379, %v394
    %v407 = vmul.f32 %v380, %v395
    %v408 = vmul.f32 %v381, %v396
    %v409 = vmul.f32 %v382, %v394
    %v410 = vmul.f32 %v383, %v395
    %v411 = vmul.f32 %v384, %v396
    %v412 = vmul.f32 %v385, %v394
    %v413 = vmul.f32 %v386, %v395
    %v414 = vmul.f32 %v387, %v396
    %v415 = vmul.f32 %v388, %v394
    %v416 = vmul.f32 %v389, %v395
    %v417 = vmul.f32 %v390, %v396
    %v418 = vmul.f32 %v391, %v394
    %v419 = vmul.f32 %v392, %v395
    %v420 = vmul.f32 %v393, %v396
    %v421 = vpack.c.bf16 %v398, %v397
    %v422 = vpack.c.bf16 %v400, %v399
    %v423 = vpack.c.bf16 %v402, %v401
    %v424 = vpack.c.bf16 %v404, %v403
    %v425 = vpack.c.bf16 %v406, %v405
    %v426 = vpack.c.bf16 %v408, %v407
    %v427 = vpack.c.bf16 %v410, %v409
    %v428 = vpack.c.bf16 %v412, %v411
    %v429 = vpack.c.bf16 %v414, %v413
    %v430 = vpack.c.bf16 %v416, %v415
    %v431 = vpack.c.bf16 %v418, %v417
    %v432 = vpack.c.bf16 %v420, %v419
    %v433 = vld [vmem:[%s5] sm:$0xf]
    %v434 = vld [vmem:[%s5 + $0x4] sm:$0xf]
    %v435 = vld [vmem:[%s5 + $0x8] sm:$0xf]
    %v436 = vld [vmem:[%s5 + $0xc] sm:$0xf]
    %v437 = vld [vmem:[%s5 + $0x10] sm:$0xf]
    %v438 = vld [vmem:[%s5 + $0x14] sm:$0xf]
    %v439 = vld [vmem:[%s5 + $0x18] sm:$0xf]
    %v440 = vld [vmem:[%s5 + $0x1c] sm:$0xf]
    %v441 = vld [vmem:[%s5 + $0x20] sm:$0xf]
    %v442 = vld [vmem:[%s5 + $0x24] sm:$0xf]
    %v443 = vld [vmem:[%s5 + $0x28] sm:$0xf]
    %v444 = vld [vmem:[%s5 + $0x2c] sm:$0xf]
    %v457 = vunpack.c.l.b16 %v433
    %v458 = vunpack.c.l.b16 %v434
    %v459 = vunpack.c.l.b16 %v435
    %v460 = vunpack.c.l.b16 %v436
    %v461 = vunpack.c.l.b16 %v437
    %v462 = vunpack.c.l.b16 %v438
    %v463 = vunpack.c.l.b16 %v439
    %v464 = vunpack.c.l.b16 %v440
    %v465 = vunpack.c.l.b16 %v441
    %v466 = vunpack.c.l.b16 %v442
    %v467 = vunpack.c.l.b16 %v443
    %v468 = vunpack.c.l.b16 %v444
    %v469 = vpack.c.b16 %v458, %v457
    %v470 = vpack.c.b16 %v460, %v459
    %v471 = vpack.c.b16 %v462, %v461
    %v472 = vpack.c.b16 %v464, %v463
    %v473 = vpack.c.b16 %v466, %v465
    %v474 = vpack.c.b16 %v468, %v467
    %vm481 = vcmask 785408
    %v483 = vsel %vm481, %v421, 0
    %v486 = vsel %vm481, %v422, 0
    %v489 = vsel %vm481, %v423, 0
    %v492 = vsel %vm481, %v424, 0
    %v495 = vsel %vm481, %v425, 0
    %v498 = vsel %vm481, %v426, 0
    %v501 = vsel %vm481, %v427, 0
    %v504 = vsel %vm481, %v428, 0
    %v507 = vsel %vm481, %v429, 0
    %v510 = vsel %vm481, %v430, 0
    %v513 = vsel %vm481, %v431, 0
    %v516 = vsel %vm481, %v432, 0
    %518 = vmatprep.subr.bf16.mxu0 0
    %519 = vmatpush1.bf16.msra.mxu0 %v469
    %520 = vmatprep.subr.bf16.mxu0 0
    %521 = vmatpush1.bf16.msra.mxu0 %v470
    %522 = vmatprep.subr.bf16.mxu0 0
    %523 = vmatpush1.bf16.msra.mxu0 %v471
    %524 = vmatprep.subr.bf16.mxu0 0
    %525 = vmatpush1.bf16.msra.mxu0 %v472
    %526 = vmatprep.subr.bf16.mxu0 0
    %527 = vmatpush1.bf16.msra.mxu0 %v473
    %528 = vmatprep.subr.bf16.mxu0 0
    %529 = vmatpush1.bf16.msra.mxu0 %v474
    %530 = vmatprep.subr.bf16.mxu0 0
    %531 = vmatpush1.bf16.msra.mxu0 0
    %532 = vmatprep.subr.bf16.mxu0 0
    %533 = vmatpush1.bf16.msra.mxu0 0
    %534 = vmatprep.subr.bf16.mxu0 0
    %535 = vmatpush1.bf16.msra.mxu0 0
    %536 = vmatprep.subr.bf16.mxu0 0
    %537 = vmatpush1.bf16.msra.mxu0 0
    %538 = vmatprep.subr.bf16.mxu0 0
    %539 = vmatpush1.bf16.msra.mxu0 0
    %540 = vmatprep.subr.bf16.mxu0 0
    %541 = vmatpush1.bf16.msra.mxu0 0
    %542 = vmatprep.subr.bf16.mxu0 0
    %543 = vmatpush1.bf16.msra.mxu0 0
    %544 = vmatprep.subr.bf16.mxu0 0
    %545 = vmatpush1.bf16.msra.mxu0 0
    %546 = vmatprep.subr.bf16.mxu0 0
    %547 = vmatpush1.bf16.msra.mxu0 0
    %548 = vmatprep.subr.bf16.mxu0 0
    %549 = vmatpush1.bf16.msra.mxu0 0
    %550 = vmatprep.mubr.bf16.mxu0 0
    %551 = vmatmul.mubr.bf16.gmra.mrb[0].mxu0 %v483
    %v552 = vpop.f32.mrb[0].mxu0
    %v553 = vadd.f32 0.0, %v552
    %v554 = vpop.f32.mrb[0].mxu0
    %v555 = vpop.f32.mrb[0].mxu0
    %v556 = vadd.f32 0.0, %v555
    %v557 = vpop.f32.mrb[0].mxu0
    %558 = vmatprep.mubr.bf16.mxu0 0
    %559 = vmatmul.mubr.bf16.gmra.mrb[0].mxu0 %v486
    %v560 = vpop.f32.mrb[0].mxu0
    %v561 = vadd.f32 0.0, %v560
    %v562 = vpop.f32.mrb[0].mxu0
    %v563 = vpop.f32.mrb[0].mxu0
    %v564 = vadd.f32 0.0, %v563
    %v565 = vpop.f32.mrb[0].mxu0
    %566 = vmatprep.mubr.bf16.mxu0 0
    %567 = vmatmul.mubr.bf16.gmra.mrb[0].mxu0 %v489
    %v568 = vpop.f32.mrb[0].mxu0
    %v569 = vadd.f32 0.0, %v568
    %v570 = vpop.f32.mrb[0].mxu0
    %v571 = vpop.f32.mrb[0].mxu0
    %v572 = vadd.f32 0.0, %v571
    %v573 = vpop.f32.mrb[0].mxu0
    %574 = vmatprep.mubr.bf16.mxu0 0
    %575 = vmatmul.mubr.bf16.gmra.mrb[0].mxu0 %v492
    %v576 = vpop.f32.mrb[0].mxu0
    %v577 = vadd.f32 0.0, %v576
    %v578 = vpop.f32.mrb[0].mxu0
    %v579 = vpop.f32.mrb[0].mxu0
    %v580 = vadd.f32 0.0, %v579
    %v581 = vpop.f32.mrb[0].mxu0
    %582 = vmatprep.mubr.bf16.mxu0 0
    %583 = vmatmul.mubr.bf16.gmra.mrb[0].mxu0 %v495
    %v584 = vpop.f32.mrb[0].mxu0
    %v585 = vadd.f32 0.0, %v584
    %v586 = vpop.f32.mrb[0].mxu0
    %v587 = vpop.f32.mrb[0].mxu0
    %v588 = vadd.f32 0.0, %v587
    %v589 = vpop.f32.mrb[0].mxu0
    %590 = vmatprep.mubr.bf16.mxu0 0
    %591 = vmatmul.mubr.bf16.gmra.mrb[0].mxu0 %v498
    %v592 = vpop.f32.mrb[0].mxu0
    %v593 = vadd.f32 0.0, %v592
    %v594 = vpop.f32.mrb[0].mxu0
    %v595 = vpop.f32.mrb[0].mxu0
    %v596 = vadd.f32 0.0, %v595
    %v597 = vpop.f32.mrb[0].mxu0
    %598 = vmatprep.mubr.bf16.mxu0 0
    %599 = vmatmul.mubr.bf16.gmra.mrb[0].mxu0 %v501
    %v600 = vpop.f32.mrb[0].mxu0
    %v601 = vadd.f32 0.0, %v600
    %v602 = vpop.f32.mrb[0].mxu0
    %v603 = vpop.f32.mrb[0].mxu0
    %v604 = vadd.f32 0.0, %v603
    %v605 = vpop.f32.mrb[0].mxu0
    %606 = vmatprep.mubr.bf16.mxu0 0
    %607 = vmatmul.mubr.bf16.gmra.mrb[0].mxu0 %v504
    %v608 = vpop.f32.mrb[0].mxu0
    %v609 = vadd.f32 0.0, %v608
    %v610 = vpop.f32.mrb[0].mxu0
    %v611 = vpop.f32.mrb[0].mxu0
    %v612 = vadd.f32 0.0, %v611
    %v613 = vpop.f32.mrb[0].mxu0
    %614 = vmatprep.mubr.bf16.mxu0 0
    %615 = vmatmul.mubr.bf16.gmra.mrb[0].mxu0 %v507
    %v616 = vpop.f32.mrb[0].mxu0
    %v617 = vadd.f32 0.0, %v616
    %v618 = vpop.f32.mrb[0].mxu0
    %v619 = vpop.f32.mrb[0].mxu0
    %v620 = vadd.f32 0.0, %v619
    %v621 = vpop.f32.mrb[0].mxu0
    %622 = vmatprep.mubr.bf16.mxu0 0
    %623 = vmatmul.mubr.bf16.gmra.mrb[0].mxu0 %v510
    %v624 = vpop.f32.mrb[0].mxu0
    %v625 = vadd.f32 0.0, %v624
    %v626 = vpop.f32.mrb[0].mxu0
    %v627 = vpop.f32.mrb[0].mxu0
    %v628 = vadd.f32 0.0, %v627
    %v629 = vpop.f32.mrb[0].mxu0
    %630 = vmatprep.mubr.bf16.mxu0 0
    %631 = vmatmul.mubr.bf16.gmra.mrb[0].mxu0 %v513
    %v632 = vpop.f32.mrb[0].mxu0
    %v633 = vadd.f32 0.0, %v632
    %v634 = vpop.f32.mrb[0].mxu0
    %v635 = vpop.f32.mrb[0].mxu0
    %v636 = vadd.f32 0.0, %v635
    %v637 = vpop.f32.mrb[0].mxu0
    %638 = vmatprep.mubr.bf16.mxu0 0
    %639 = vmatmul.mubr.bf16.gmra.mrb[0].mxu0 %v516
    %v640 = vpop.f32.mrb[0].mxu0
    %v641 = vadd.f32 0.0, %v640
    %v642 = vpop.f32.mrb[0].mxu0
    %v643 = vpop.f32.mrb[0].mxu0
    %v644 = vadd.f32 0.0, %v643
    %v645 = vpop.f32.mrb[0].mxu0
    %646 = vdwg.mxu0
    %v647 = vld [vmem:[%s6] sm:$0xff]
    %v648 = vld [vmem:[%s6 + $0x8] sm:$0xff]
    %v649 = vld [vmem:[%s6 + $0x10] sm:$0xff]
    %v650 = vadd.f32 %v553, %v647
    %v651 = vadd.f32 %v556, %v648
    %v652 = vadd.f32 %v561, %v649
    %v653 = vadd.f32 %v564, %v647
    %v654 = vadd.f32 %v569, %v648
    %v655 = vadd.f32 %v572, %v649
    %v656 = vadd.f32 %v577, %v647
    %v657 = vadd.f32 %v580, %v648
    %v658 = vadd.f32 %v585, %v649
    %v659 = vadd.f32 %v588, %v647
    %v660 = vadd.f32 %v593, %v648
    %v661 = vadd.f32 %v596, %v649
    %v662 = vadd.f32 %v601, %v647
    %v663 = vadd.f32 %v604, %v648
    %v664 = vadd.f32 %v609, %v649
    %v665 = vadd.f32 %v612, %v647
    %v666 = vadd.f32 %v617, %v648
    %v667 = vadd.f32 %v620, %v649
    %v668 = vadd.f32 %v625, %v647
    %v669 = vadd.f32 %v628, %v648
    %v670 = vadd.f32 %v633, %v649
    %v671 = vadd.f32 %v636, %v647
    %v672 = vadd.f32 %v641, %v648
    %v673 = vadd.f32 %v644, %v649
    %v674 = vsub.f32 1.0, %v91
    %v675 = vsub.f32 1.0, %v92
    %v676 = vsub.f32 1.0, %v93
    %v677 = vsub.f32 1.0, %v94
    %v678 = vsub.f32 1.0, %v95
    %v679 = vsub.f32 1.0, %v96
    %v680 = vsub.f32 1.0, %v97
    %v681 = vsub.f32 1.0, %v98
    %v682 = vmul.f32 %v674, 1e+09
    %v683 = vmul.f32 %v675, 1e+09
    %v684 = vmul.f32 %v676, 1e+09
    %v685 = vmul.f32 %v677, 1e+09
    %v686 = vmul.f32 %v678, 1e+09
    %v687 = vmul.f32 %v679, 1e+09
    %v688 = vmul.f32 %v680, 1e+09
    %v689 = vmul.f32 %v681, 1e+09
    %v690 = vpack.c.bf16 %v651, %v650
    %v691 = vpack.c.bf16 %v653, %v652
    %v692 = vpack.c.bf16 %v655, %v654
    %v693 = vpack.c.bf16 %v657, %v656
    %v694 = vpack.c.bf16 %v659, %v658
    %v695 = vpack.c.bf16 %v661, %v660
    %v696 = vpack.c.bf16 %v663, %v662
    %v697 = vpack.c.bf16 %v665, %v664
    %v698 = vpack.c.bf16 %v667, %v666
    %v699 = vpack.c.bf16 %v669, %v668
    %v700 = vpack.c.bf16 %v671, %v670
    %v701 = vpack.c.bf16 %v673, %v672
    %v702 = vld [vmem:[%s7] sm:$0xf]
    %v703 = vld [vmem:[%s7 + $0x4] sm:$0xf]
    %v704 = vld [vmem:[%s7 + $0x8] sm:$0xf]
    %v705 = vld [vmem:[%s7 + $0xc] sm:$0xf]
    %v710 = vunpack.c.l.b16 %v702
    %v711 = vunpack.c.l.b16 %v703
    %v712 = vunpack.c.l.b16 %v704
    %v713 = vunpack.c.l.b16 %v705
    %v714 = vpack.c.b16 %v711, %v710
    %v715 = vpack.c.b16 %v713, %v712
    %vm718 = vcmask 261120
    %v720 = vsel %vm718, %v690, 0
    %v723 = vsel %vm718, %v691, 0
    %v726 = vsel %vm718, %v692, 0
    %v729 = vsel %vm718, %v693, 0
    %v732 = vsel %vm718, %v694, 0
    %v735 = vsel %vm718, %v695, 0
    %v738 = vsel %vm718, %v696, 0
    %v741 = vsel %vm718, %v697, 0
    %v744 = vsel %vm718, %v698, 0
    %v747 = vsel %vm718, %v699, 0
    %v750 = vsel %vm718, %v700, 0
    %v753 = vsel %vm718, %v701, 0
    %755 = vmatprep.subr.bf16.mxu0 0
    %756 = vmatpush1.bf16.msra.mxu0 %v714
    %757 = vmatprep.subr.bf16.mxu0 0
    %758 = vmatpush1.bf16.msra.mxu0 %v715
    %759 = vmatprep.subr.bf16.mxu0 0
    %760 = vmatpush1.bf16.msra.mxu0 0
    %761 = vmatprep.subr.bf16.mxu0 0
    %762 = vmatpush1.bf16.msra.mxu0 0
    %763 = vmatprep.subr.bf16.mxu0 0
    %764 = vmatpush1.bf16.msra.mxu0 0
    %765 = vmatprep.subr.bf16.mxu0 0
    %766 = vmatpush1.bf16.msra.mxu0 0
    %767 = vmatprep.subr.bf16.mxu0 0
    %768 = vmatpush1.bf16.msra.mxu0 0
    %769 = vmatprep.subr.bf16.mxu0 0
    %770 = vmatpush1.bf16.msra.mxu0 0
    %771 = vmatprep.subr.bf16.mxu0 0
    %772 = vmatpush1.bf16.msra.mxu0 0
    %773 = vmatprep.subr.bf16.mxu0 0
    %774 = vmatpush1.bf16.msra.mxu0 0
    %775 = vmatprep.subr.bf16.mxu0 0
    %776 = vmatpush1.bf16.msra.mxu0 0
    %777 = vmatprep.subr.bf16.mxu0 0
    %778 = vmatpush1.bf16.msra.mxu0 0
    %779 = vmatprep.subr.bf16.mxu0 0
    %780 = vmatpush1.bf16.msra.mxu0 0
    %781 = vmatprep.subr.bf16.mxu0 0
    %782 = vmatpush1.bf16.msra.mxu0 0
    %783 = vmatprep.subr.bf16.mxu0 0
    %784 = vmatpush1.bf16.msra.mxu0 0
    %785 = vmatprep.subr.bf16.mxu0 0
    %786 = vmatpush1.bf16.msra.mxu0 0
    %787 = vmatprep.mubr.bf16.mxu0 0
    %788 = vmatmul.mubr.bf16.gmra.mrb[0].mxu0 %v720
    %v789 = vpop.f32.mrb[0].mxu0
    %v790 = vadd.f32 0.0, %v789
    %v791 = vpop.f32.mrb[0].mxu0
    %v792 = vpop.f32.mrb[0].mxu0
    %v793 = vadd.f32 0.0, %v792
    %v794 = vpop.f32.mrb[0].mxu0
    %795 = vmatprep.mubr.bf16.mxu0 0
    %796 = vmatmul.mubr.bf16.gmra.mrb[0].mxu0 %v723
    %v797 = vpop.f32.mrb[0].mxu0
    %v798 = vadd.f32 0.0, %v797
    %v799 = vpop.f32.mrb[0].mxu0
    %v800 = vpop.f32.mrb[0].mxu0
    %v801 = vadd.f32 0.0, %v800
    %v802 = vpop.f32.mrb[0].mxu0
    %803 = vmatprep.mubr.bf16.mxu0 0
    %804 = vmatmul.mubr.bf16.gmra.mrb[0].mxu0 %v726
    %v805 = vpop.f32.mrb[0].mxu0
    %v806 = vadd.f32 0.0, %v805
    %v807 = vpop.f32.mrb[0].mxu0
    %v808 = vpop.f32.mrb[0].mxu0
    %v809 = vadd.f32 0.0, %v808
    %v810 = vpop.f32.mrb[0].mxu0
    %811 = vmatprep.mubr.bf16.mxu0 0
    %812 = vmatmul.mubr.bf16.gmra.mrb[0].mxu0 %v729
    %v813 = vpop.f32.mrb[0].mxu0
    %v814 = vadd.f32 0.0, %v813
    %v815 = vpop.f32.mrb[0].mxu0
    %v816 = vpop.f32.mrb[0].mxu0
    %v817 = vadd.f32 0.0, %v816
    %v818 = vpop.f32.mrb[0].mxu0
    %819 = vmatprep.mubr.bf16.mxu0 0
    %820 = vmatmul.mubr.bf16.gmra.mrb[0].mxu0 %v732
    %v821 = vpop.f32.mrb[0].mxu0
    %v822 = vadd.f32 0.0, %v821
    %v823 = vpop.f32.mrb[0].mxu0
    %v824 = vpop.f32.mrb[0].mxu0
    %v825 = vadd.f32 0.0, %v824
    %v826 = vpop.f32.mrb[0].mxu0
    %827 = vmatprep.mubr.bf16.mxu0 0
    %828 = vmatmul.mubr.bf16.gmra.mrb[0].mxu0 %v735
    %v829 = vpop.f32.mrb[0].mxu0
    %v830 = vadd.f32 0.0, %v829
    %v831 = vpop.f32.mrb[0].mxu0
    %v832 = vpop.f32.mrb[0].mxu0
    %v833 = vadd.f32 0.0, %v832
    %v834 = vpop.f32.mrb[0].mxu0
    %835 = vmatprep.mubr.bf16.mxu0 0
    %836 = vmatmul.mubr.bf16.gmra.mrb[0].mxu0 %v738
    %v837 = vpop.f32.mrb[0].mxu0
    %v838 = vadd.f32 0.0, %v837
    %v839 = vpop.f32.mrb[0].mxu0
    %v840 = vpop.f32.mrb[0].mxu0
    %v841 = vadd.f32 0.0, %v840
    %v842 = vpop.f32.mrb[0].mxu0
    %843 = vmatprep.mubr.bf16.mxu0 0
    %844 = vmatmul.mubr.bf16.gmra.mrb[0].mxu0 %v741
    %v845 = vpop.f32.mrb[0].mxu0
    %v846 = vadd.f32 0.0, %v845
    %v847 = vpop.f32.mrb[0].mxu0
    %v848 = vpop.f32.mrb[0].mxu0
    %v849 = vadd.f32 0.0, %v848
    %v850 = vpop.f32.mrb[0].mxu0
    %851 = vmatprep.mubr.bf16.mxu0 0
    %852 = vmatmul.mubr.bf16.gmra.mrb[0].mxu0 %v744
    %v853 = vpop.f32.mrb[0].mxu0
    %v854 = vadd.f32 0.0, %v853
    %v855 = vpop.f32.mrb[0].mxu0
    %v856 = vpop.f32.mrb[0].mxu0
    %v857 = vadd.f32 0.0, %v856
    %v858 = vpop.f32.mrb[0].mxu0
    %859 = vmatprep.mubr.bf16.mxu0 0
    %860 = vmatmul.mubr.bf16.gmra.mrb[0].mxu0 %v747
    %v861 = vpop.f32.mrb[0].mxu0
    %v862 = vadd.f32 0.0, %v861
    %v863 = vpop.f32.mrb[0].mxu0
    %v864 = vpop.f32.mrb[0].mxu0
    %v865 = vadd.f32 0.0, %v864
    %v866 = vpop.f32.mrb[0].mxu0
    %867 = vmatprep.mubr.bf16.mxu0 0
    %868 = vmatmul.mubr.bf16.gmra.mrb[0].mxu0 %v750
    %v869 = vpop.f32.mrb[0].mxu0
    %v870 = vadd.f32 0.0, %v869
    %v871 = vpop.f32.mrb[0].mxu0
    %v872 = vpop.f32.mrb[0].mxu0
    %v873 = vadd.f32 0.0, %v872
    %v874 = vpop.f32.mrb[0].mxu0
    %875 = vmatprep.mubr.bf16.mxu0 0
    %876 = vmatmul.mubr.bf16.gmra.mrb[0].mxu0 %v753
    %v877 = vpop.f32.mrb[0].mxu0
    %v878 = vadd.f32 0.0, %v877
    %v879 = vpop.f32.mrb[0].mxu0
    %v880 = vpop.f32.mrb[0].mxu0
    %v881 = vadd.f32 0.0, %v880
    %v882 = vpop.f32.mrb[0].mxu0
    %883 = vdwg.mxu0
    %887 = vrot.lane.b32.xlu0 %v790, 96
    %v888 = vpop.permute.xlu0 %887
    %889 = vrot.lane.b32.xlu0 %v793, 96
    %v890 = vpop.permute.xlu0 %889
    %891 = vrot.lane.b32.xlu0 %v798, 96
    %v892 = vpop.permute.xlu0 %891
    %v893 = vsel %vm718, %v790, 0
    %v895 = vsel %vm718, %v793, 0
    %v897 = vsel %vm718, %v798, 0
    %v899 = vsel %vm718, %v888, 0
    %v901 = vsel %vm718, %v890, 0
    %v903 = vsel %vm718, %v892, 0
    %905 = vmatprep.subr.mxu0 0.0
    %906 = vmatpush1.xpose.msra.mxu0 %v899
    %907 = vmatprep.subr.mxu0 0.0
    %908 = vmatpush1.xpose.msra.mxu0 %v901
    %909 = vmatprep.subr.mxu0 0.0
    %910 = vmatpush1.xpose.msra.mxu0 %v903
    %911 = vmatprep.subr.mxu0 0.0
    %912 = vmatpush1.xpose.msra.mxu0 0.0
    %913 = vmatprep.subr.mxu0 0.0
    %914 = vmatpush1.xpose.msra.mxu0 0.0
    %915 = vmatprep.subr.mxu0 0.0
    %916 = vmatpush1.xpose.msra.mxu0 0.0
    %917 = vmatprep.subr.mxu0 0.0
    %918 = vmatpush1.xpose.msra.mxu0 0.0
    %919 = vmatprep.subr.mxu0 0.0
    %920 = vmatpush1.xpose.msra.mxu0 0.0
    %921 = vmatprep.subr.mxu0 0.0
    %922 = vmatpush1.xpose.msra.mxu0 0.0
    %923 = vmatprep.subr.mxu0 0.0
    %924 = vmatpush1.xpose.msra.mxu0 0.0
    %925 = vmatprep.subr.mxu0 0.0
    %926 = vmatpush1.xpose.msra.mxu0 0.0
    %927 = vmatprep.subr.mxu0 0.0
    %928 = vmatpush1.xpose.msra.mxu0 0.0
    %929 = vmatprep.subr.mxu0 0.0
    %930 = vmatpush1.xpose.msra.mxu0 0.0
    %931 = vmatprep.subr.mxu0 0.0
    %932 = vmatpush1.xpose.msra.mxu0 0.0
    %933 = vmatprep.subr.mxu0 0.0
    %934 = vmatpush1.xpose.msra.mxu0 0.0
    %935 = vmatprep.subr.mxu0 0.0
    %936 = vmatpush1.xpose.msra.mxu0 0.0
    %937 = vmatprep.subr.mxu0 0.0
    %938 = vmatpush1.xpose.msra.mxu0 0.0
    %939 = vmatprep.subr.mxu0 0.0
    %940 = vmatpush1.xpose.msra.mxu0 0.0
    %941 = vmatprep.subr.mxu0 0.0
    %942 = vmatpush1.xpose.msra.mxu0 0.0
    %943 = vmatprep.subr.mxu0 0.0
    %944 = vmatpush1.xpose.msra.mxu0 0.0
    %945 = vmatprep.subr.mxu0 0.0
    %946 = vmatpush1.xpose.msra.mxu0 0.0
    %947 = vmatprep.subr.mxu0 0.0
    %948 = vmatpush1.xpose.msra.mxu0 0.0
    %949 = vmatprep.subr.mxu0 0.0
    %950 = vmatpush1.xpose.msra.mxu0 0.0
    %951 = vmatprep.subr.mxu0 0.0
    %952 = vmatpush1.xpose.msra.mxu0 0.0
    %953 = vmatprep.subr.mxu0 0.0
    %954 = vmatpush1.xpose.msra.mxu0 0.0
    %955 = vmatprep.subr.mxu0 0.0
    %956 = vmatpush1.xpose.msra.mxu0 0.0
    %957 = vmatprep.subr.mxu0 0.0
    %958 = vmatpush1.xpose.msra.mxu0 0.0
    %959 = vmatprep.subr.mxu0 0.0
    %960 = vmatpush1.xpose.msra.mxu0 0.0
    %961 = vmatprep.subr.mxu0 0.0
    %962 = vmatpush1.xpose.msra.mxu0 0.0
    %963 = vmatprep.subr.mxu0 0.0
    %964 = vmatpush1.xpose.msra.mxu0 0.0
    %965 = vmatprep.subr.mxu0 0.0
    %966 = vmatpush1.xpose.msra.mxu0 0.0
    %967 = vmatprep.subr.mxu0 0.0
    %968 = vmatpush1.xpose.msra.mxu0 0.0
    %969 = vmatprep.mubr.f32.mxu0 0.0
    %970 = vmatmul.mubr.f32.gmra.mrb[0].mxu0 %v893
    %v971 = vpop.f32.mrb[0].mxu0
    %v972 = vadd.f32 0.0, %v971
    %v973 = vpop.f32.mrb[0].mxu0
    %974 = vmatprep.mubr.f32.mxu0 0.0
    %975 = vmatmul.mubr.f32.gmra.mrb[0].mxu0 %v895
    %v976 = vpop.f32.mrb[0].mxu0
    %v977 = vadd.f32 0.0, %v976
    %v978 = vpop.f32.mrb[0].mxu0
    %979 = vmatprep.mubr.f32.mxu0 0.0
    %980 = vmatmul.mubr.f32.gmra.mrb[0].mxu0 %v897
    %v981 = vpop.f32.mrb[0].mxu0
    %v982 = vadd.f32 0.0, %v981
    %v983 = vpop.f32.mrb[0].mxu0
    %984 = vdwg.mxu0
    %988 = vrot.lane.b32.xlu0 %v801, 96
    %v989 = vpop.permute.xlu0 %988
    %990 = vrot.lane.b32.xlu0 %v806, 96
    %v991 = vpop.permute.xlu0 %990
    %992 = vrot.lane.b32.xlu0 %v809, 96
    %v993 = vpop.permute.xlu0 %992
    %v994 = vsel %vm718, %v801, 0
    %v996 = vsel %vm718, %v806, 0
    %v998 = vsel %vm718, %v809, 0
    %v1000 = vsel %vm718, %v989, 0
    %v1002 = vsel %vm718, %v991, 0
    %v1004 = vsel %vm718, %v993, 0
    %1006 = vmatprep.subr.mxu0 0.0
    %1007 = vmatpush1.xpose.msra.mxu0 %v1000
    %1008 = vmatprep.subr.mxu0 0.0
    %1009 = vmatpush1.xpose.msra.mxu0 %v1002
    %1010 = vmatprep.subr.mxu0 0.0
    %1011 = vmatpush1.xpose.msra.mxu0 %v1004
    %1012 = vmatprep.subr.mxu0 0.0
    %1013 = vmatpush1.xpose.msra.mxu0 0.0
    %1014 = vmatprep.subr.mxu0 0.0
    %1015 = vmatpush1.xpose.msra.mxu0 0.0
    %1016 = vmatprep.subr.mxu0 0.0
    %1017 = vmatpush1.xpose.msra.mxu0 0.0
    %1018 = vmatprep.subr.mxu0 0.0
    %1019 = vmatpush1.xpose.msra.mxu0 0.0
    %1020 = vmatprep.subr.mxu0 0.0
    %1021 = vmatpush1.xpose.msra.mxu0 0.0
    %1022 = vmatprep.subr.mxu0 0.0
    %1023 = vmatpush1.xpose.msra.mxu0 0.0
    %1024 = vmatprep.subr.mxu0 0.0
    %1025 = vmatpush1.xpose.msra.mxu0 0.0
    %1026 = vmatprep.subr.mxu0 0.0
    %1027 = vmatpush1.xpose.msra.mxu0 0.0
    %1028 = vmatprep.subr.mxu0 0.0
    %1029 = vmatpush1.xpose.msra.mxu0 0.0
    %1030 = vmatprep.subr.mxu0 0.0
    %1031 = vmatpush1.xpose.msra.mxu0 0.0
    %1032 = vmatprep.subr.mxu0 0.0
    %1033 = vmatpush1.xpose.msra.mxu0 0.0
    %1034 = vmatprep.subr.mxu0 0.0
    %1035 = vmatpush1.xpose.msra.mxu0 0.0
    %1036 = vmatprep.subr.mxu0 0.0
    %1037 = vmatpush1.xpose.msra.mxu0 0.0
    %1038 = vmatprep.subr.mxu0 0.0
    %1039 = vmatpush1.xpose.msra.mxu0 0.0
    %1040 = vmatprep.subr.mxu0 0.0
    %1041 = vmatpush1.xpose.msra.mxu0 0.0
    %1042 = vmatprep.subr.mxu0 0.0
    %1043 = vmatpush1.xpose.msra.mxu0 0.0
    %1044 = vmatprep.subr.mxu0 0.0
    %1045 = vmatpush1.xpose.msra.mxu0 0.0
    %1046 = vmatprep.subr.mxu0 0.0
    %1047 = vmatpush1.xpose.msra.mxu0 0.0
    %1048 = vmatprep.subr.mxu0 0.0
    %1049 = vmatpush1.xpose.msra.mxu0 0.0
    %1050 = vmatprep.subr.mxu0 0.0
    %1051 = vmatpush1.xpose.msra.mxu0 0.0
    %1052 = vmatprep.subr.mxu0 0.0
    %1053 = vmatpush1.xpose.msra.mxu0 0.0
    %1054 = vmatprep.subr.mxu0 0.0
    %1055 = vmatpush1.xpose.msra.mxu0 0.0
    %1056 = vmatprep.subr.mxu0 0.0
    %1057 = vmatpush1.xpose.msra.mxu0 0.0
    %1058 = vmatprep.subr.mxu0 0.0
    %1059 = vmatpush1.xpose.msra.mxu0 0.0
    %1060 = vmatprep.subr.mxu0 0.0
    %1061 = vmatpush1.xpose.msra.mxu0 0.0
    %1062 = vmatprep.subr.mxu0 0.0
    %1063 = vmatpush1.xpose.msra.mxu0 0.0
    %1064 = vmatprep.subr.mxu0 0.0
    %1065 = vmatpush1.xpose.msra.mxu0 0.0
    %1066 = vmatprep.subr.mxu0 0.0
    %1067 = vmatpush1.xpose.msra.mxu0 0.0
    %1068 = vmatprep.subr.mxu0 0.0
    %1069 = vmatpush1.xpose.msra.mxu0 0.0
    %1070 = vmatprep.mubr.f32.mxu0 0.0
    %1071 = vmatmul.mubr.f32.gmra.mrb[0].mxu0 %v994
    %v1072 = vpop.f32.mrb[0].mxu0
    %v1073 = vadd.f32 0.0, %v1072
    %v1074 = vpop.f32.mrb[0].mxu0
    %1075 = vmatprep.mubr.f32.mxu0 0.0
    %1076 = vmatmul.mubr.f32.gmra.mrb[0].mxu0 %v996
    %v1077 = vpop.f32.mrb[0].mxu0
    %v1078 = vadd.f32 0.0, %v1077
    %v1079 = vpop.f32.mrb[0].mxu0
    %1080 = vmatprep.mubr.f32.mxu0 0.0
    %1081 = vmatmul.mubr.f32.gmra.mrb[0].mxu0 %v998
    %v1082 = vpop.f32.mrb[0].mxu0
    %v1083 = vadd.f32 0.0, %v1082
    %v1084 = vpop.f32.mrb[0].mxu0
    %1085 = vdwg.mxu0
    %1089 = vrot.lane.b32.xlu0 %v814, 96
    %v1090 = vpop.permute.xlu0 %1089
    %1091 = vrot.lane.b32.xlu0 %v817, 96
    %v1092 = vpop.permute.xlu0 %1091
    %1093 = vrot.lane.b32.xlu0 %v822, 96
    %v1094 = vpop.permute.xlu0 %1093
    %v1095 = vsel %vm718, %v814, 0
    %v1097 = vsel %vm718, %v817, 0
    %v1099 = vsel %vm718, %v822, 0
    %v1101 = vsel %vm718, %v1090, 0
    %v1103 = vsel %vm718, %v1092, 0
    %v1105 = vsel %vm718, %v1094, 0
    %1107 = vmatprep.subr.mxu0 0.0
    %1108 = vmatpush1.xpose.msra.mxu0 %v1101
    %1109 = vmatprep.subr.mxu0 0.0
    %1110 = vmatpush1.xpose.msra.mxu0 %v1103
    %1111 = vmatprep.subr.mxu0 0.0
    %1112 = vmatpush1.xpose.msra.mxu0 %v1105
    %1113 = vmatprep.subr.mxu0 0.0
    %1114 = vmatpush1.xpose.msra.mxu0 0.0
    %1115 = vmatprep.subr.mxu0 0.0
    %1116 = vmatpush1.xpose.msra.mxu0 0.0
    %1117 = vmatprep.subr.mxu0 0.0
    %1118 = vmatpush1.xpose.msra.mxu0 0.0
    %1119 = vmatprep.subr.mxu0 0.0
    %1120 = vmatpush1.xpose.msra.mxu0 0.0
    %1121 = vmatprep.subr.mxu0 0.0
    %1122 = vmatpush1.xpose.msra.mxu0 0.0
    %1123 = vmatprep.subr.mxu0 0.0
    %1124 = vmatpush1.xpose.msra.mxu0 0.0
    %1125 = vmatprep.subr.mxu0 0.0
    %1126 = vmatpush1.xpose.msra.mxu0 0.0
    %1127 = vmatprep.subr.mxu0 0.0
    %1128 = vmatpush1.xpose.msra.mxu0 0.0
    %1129 = vmatprep.subr.mxu0 0.0
    %1130 = vmatpush1.xpose.msra.mxu0 0.0
    %1131 = vmatprep.subr.mxu0 0.0
    %1132 = vmatpush1.xpose.msra.mxu0 0.0
    %1133 = vmatprep.subr.mxu0 0.0
    %1134 = vmatpush1.xpose.msra.mxu0 0.0
    %1135 = vmatprep.subr.mxu0 0.0
    %1136 = vmatpush1.xpose.msra.mxu0 0.0
    %1137 = vmatprep.subr.mxu0 0.0
    %1138 = vmatpush1.xpose.msra.mxu0 0.0
    %1139 = vmatprep.subr.mxu0 0.0
    %1140 = vmatpush1.xpose.msra.mxu0 0.0
    %1141 = vmatprep.subr.mxu0 0.0
    %1142 = vmatpush1.xpose.msra.mxu0 0.0
    %1143 = vmatprep.subr.mxu0 0.0
    %1144 = vmatpush1.xpose.msra.mxu0 0.0
    %1145 = vmatprep.subr.mxu0 0.0
    %1146 = vmatpush1.xpose.msra.mxu0 0.0
    %1147 = vmatprep.subr.mxu0 0.0
    %1148 = vmatpush1.xpose.msra.mxu0 0.0
    %1149 = vmatprep.subr.mxu0 0.0
    %1150 = vmatpush1.xpose.msra.mxu0 0.0
    %1151 = vmatprep.subr.mxu0 0.0
    %1152 = vmatpush1.xpose.msra.mxu0 0.0
    %1153 = vmatprep.subr.mxu0 0.0
    %1154 = vmatpush1.xpose.msra.mxu0 0.0
    %1155 = vmatprep.subr.mxu0 0.0
    %1156 = vmatpush1.xpose.msra.mxu0 0.0
    %1157 = vmatprep.subr.mxu0 0.0
    %1158 = vmatpush1.xpose.msra.mxu0 0.0
    %1159 = vmatprep.subr.mxu0 0.0
    %1160 = vmatpush1.xpose.msra.mxu0 0.0
    %1161 = vmatprep.subr.mxu0 0.0
    %1162 = vmatpush1.xpose.msra.mxu0 0.0
    %1163 = vmatprep.subr.mxu0 0.0
    %1164 = vmatpush1.xpose.msra.mxu0 0.0
    %1165 = vmatprep.subr.mxu0 0.0
    %1166 = vmatpush1.xpose.msra.mxu0 0.0
    %1167 = vmatprep.subr.mxu0 0.0
    %1168 = vmatpush1.xpose.msra.mxu0 0.0
    %1169 = vmatprep.subr.mxu0 0.0
    %1170 = vmatpush1.xpose.msra.mxu0 0.0
    %1171 = vmatprep.mubr.f32.mxu0 0.0
    %1172 = vmatmul.mubr.f32.gmra.mrb[0].mxu0 %v1095
    %v1173 = vpop.f32.mrb[0].mxu0
    %v1174 = vadd.f32 0.0, %v1173
    %v1175 = vpop.f32.mrb[0].mxu0
    %1176 = vmatprep.mubr.f32.mxu0 0.0
    %1177 = vmatmul.mubr.f32.gmra.mrb[0].mxu0 %v1097
    %v1178 = vpop.f32.mrb[0].mxu0
    %v1179 = vadd.f32 0.0, %v1178
    %v1180 = vpop.f32.mrb[0].mxu0
    %1181 = vmatprep.mubr.f32.mxu0 0.0
    %1182 = vmatmul.mubr.f32.gmra.mrb[0].mxu0 %v1099
    %v1183 = vpop.f32.mrb[0].mxu0
    %v1184 = vadd.f32 0.0, %v1183
    %v1185 = vpop.f32.mrb[0].mxu0
    %1186 = vdwg.mxu0
    %1190 = vrot.lane.b32.xlu0 %v825, 96
    %v1191 = vpop.permute.xlu0 %1190
    %1192 = vrot.lane.b32.xlu0 %v830, 96
    %v1193 = vpop.permute.xlu0 %1192
    %1194 = vrot.lane.b32.xlu0 %v833, 96
    %v1195 = vpop.permute.xlu0 %1194
    %v1196 = vsel %vm718, %v825, 0
    %v1198 = vsel %vm718, %v830, 0
    %v1200 = vsel %vm718, %v833, 0
    %v1202 = vsel %vm718, %v1191, 0
    %v1204 = vsel %vm718, %v1193, 0
    %v1206 = vsel %vm718, %v1195, 0
    %1208 = vmatprep.subr.mxu0 0.0
    %1209 = vmatpush1.xpose.msra.mxu0 %v1202
    %1210 = vmatprep.subr.mxu0 0.0
    %1211 = vmatpush1.xpose.msra.mxu0 %v1204
    %1212 = vmatprep.subr.mxu0 0.0
    %1213 = vmatpush1.xpose.msra.mxu0 %v1206
    %1214 = vmatprep.subr.mxu0 0.0
    %1215 = vmatpush1.xpose.msra.mxu0 0.0
    %1216 = vmatprep.subr.mxu0 0.0
    %1217 = vmatpush1.xpose.msra.mxu0 0.0
    %1218 = vmatprep.subr.mxu0 0.0
    %1219 = vmatpush1.xpose.msra.mxu0 0.0
    %1220 = vmatprep.subr.mxu0 0.0
    %1221 = vmatpush1.xpose.msra.mxu0 0.0
    %1222 = vmatprep.subr.mxu0 0.0
    %1223 = vmatpush1.xpose.msra.mxu0 0.0
    %1224 = vmatprep.subr.mxu0 0.0
    %1225 = vmatpush1.xpose.msra.mxu0 0.0
    %1226 = vmatprep.subr.mxu0 0.0
    %1227 = vmatpush1.xpose.msra.mxu0 0.0
    %1228 = vmatprep.subr.mxu0 0.0
    %1229 = vmatpush1.xpose.msra.mxu0 0.0
    %1230 = vmatprep.subr.mxu0 0.0
    %1231 = vmatpush1.xpose.msra.mxu0 0.0
    %1232 = vmatprep.subr.mxu0 0.0
    %1233 = vmatpush1.xpose.msra.mxu0 0.0
    %1234 = vmatprep.subr.mxu0 0.0
    %1235 = vmatpush1.xpose.msra.mxu0 0.0
    %1236 = vmatprep.subr.mxu0 0.0
    %1237 = vmatpush1.xpose.msra.mxu0 0.0
    %1238 = vmatprep.subr.mxu0 0.0
    %1239 = vmatpush1.xpose.msra.mxu0 0.0
    %1240 = vmatprep.subr.mxu0 0.0
    %1241 = vmatpush1.xpose.msra.mxu0 0.0
    %1242 = vmatprep.subr.mxu0 0.0
    %1243 = vmatpush1.xpose.msra.mxu0 0.0
    %1244 = vmatprep.subr.mxu0 0.0
    %1245 = vmatpush1.xpose.msra.mxu0 0.0
    %1246 = vmatprep.subr.mxu0 0.0
    %1247 = vmatpush1.xpose.msra.mxu0 0.0
    %1248 = vmatprep.subr.mxu0 0.0
    %1249 = vmatpush1.xpose.msra.mxu0 0.0
    %1250 = vmatprep.subr.mxu0 0.0
    %1251 = vmatpush1.xpose.msra.mxu0 0.0
    %1252 = vmatprep.subr.mxu0 0.0
    %1253 = vmatpush1.xpose.msra.mxu0 0.0
    %1254 = vmatprep.subr.mxu0 0.0
    %1255 = vmatpush1.xpose.msra.mxu0 0.0
    %1256 = vmatprep.subr.mxu0 0.0
    %1257 = vmatpush1.xpose.msra.mxu0 0.0
    %1258 = vmatprep.subr.mxu0 0.0
    %1259 = vmatpush1.xpose.msra.mxu0 0.0
    %1260 = vmatprep.subr.mxu0 0.0
    %1261 = vmatpush1.xpose.msra.mxu0 0.0
    %1262 = vmatprep.subr.mxu0 0.0
    %1263 = vmatpush1.xpose.msra.mxu0 0.0
    %1264 = vmatprep.subr.mxu0 0.0
    %1265 = vmatpush1.xpose.msra.mxu0 0.0
    %1266 = vmatprep.subr.mxu0 0.0
    %1267 = vmatpush1.xpose.msra.mxu0 0.0
    %1268 = vmatprep.subr.mxu0 0.0
    %1269 = vmatpush1.xpose.msra.mxu0 0.0
    %1270 = vmatprep.subr.mxu0 0.0
    %1271 = vmatpush1.xpose.msra.mxu0 0.0
    %1272 = vmatprep.mubr.f32.mxu0 0.0
    %1273 = vmatmul.mubr.f32.gmra.mrb[0].mxu0 %v1196
    %v1274 = vpop.f32.mrb[0].mxu0
    %v1275 = vadd.f32 0.0, %v1274
    %v1276 = vpop.f32.mrb[0].mxu0
    %1277 = vmatprep.mubr.f32.mxu0 0.0
    %1278 = vmatmul.mubr.f32.gmra.mrb[0].mxu0 %v1198
    %v1279 = vpop.f32.mrb[0].mxu0
    %v1280 = vadd.f32 0.0, %v1279
    %v1281 = vpop.f32.mrb[0].mxu0
    %1282 = vmatprep.mubr.f32.mxu0 0.0
    %1283 = vmatmul.mubr.f32.gmra.mrb[0].mxu0 %v1200
    %v1284 = vpop.f32.mrb[0].mxu0
    %v1285 = vadd.f32 0.0, %v1284
    %v1286 = vpop.f32.mrb[0].mxu0
    %1287 = vdwg.mxu0
    %1291 = vrot.lane.b32.xlu0 %v838, 96
    %v1292 = vpop.permute.xlu0 %1291
    %1293 = vrot.lane.b32.xlu0 %v841, 96
    %v1294 = vpop.permute.xlu0 %1293
    %1295 = vrot.lane.b32.xlu0 %v846, 96
    %v1296 = vpop.permute.xlu0 %1295
    %v1297 = vsel %vm718, %v838, 0
    %v1299 = vsel %vm718, %v841, 0
    %v1301 = vsel %vm718, %v846, 0
    %v1303 = vsel %vm718, %v1292, 0
    %v1305 = vsel %vm718, %v1294, 0
    %v1307 = vsel %vm718, %v1296, 0
    %1309 = vmatprep.subr.mxu0 0.0
    %1310 = vmatpush1.xpose.msra.mxu0 %v1303
    %1311 = vmatprep.subr.mxu0 0.0
    %1312 = vmatpush1.xpose.msra.mxu0 %v1305
    %1313 = vmatprep.subr.mxu0 0.0
    %1314 = vmatpush1.xpose.msra.mxu0 %v1307
    %1315 = vmatprep.subr.mxu0 0.0
    %1316 = vmatpush1.xpose.msra.mxu0 0.0
    %1317 = vmatprep.subr.mxu0 0.0
    %1318 = vmatpush1.xpose.msra.mxu0 0.0
    %1319 = vmatprep.subr.mxu0 0.0
    %1320 = vmatpush1.xpose.msra.mxu0 0.0
    %1321 = vmatprep.subr.mxu0 0.0
    %1322 = vmatpush1.xpose.msra.mxu0 0.0
    %1323 = vmatprep.subr.mxu0 0.0
    %1324 = vmatpush1.xpose.msra.mxu0 0.0
    %1325 = vmatprep.subr.mxu0 0.0
    %1326 = vmatpush1.xpose.msra.mxu0 0.0
    %1327 = vmatprep.subr.mxu0 0.0
    %1328 = vmatpush1.xpose.msra.mxu0 0.0
    %1329 = vmatprep.subr.mxu0 0.0
    %1330 = vmatpush1.xpose.msra.mxu0 0.0
    %1331 = vmatprep.subr.mxu0 0.0
    %1332 = vmatpush1.xpose.msra.mxu0 0.0
    %1333 = vmatprep.subr.mxu0 0.0
    %1334 = vmatpush1.xpose.msra.mxu0 0.0
    %1335 = vmatprep.subr.mxu0 0.0
    %1336 = vmatpush1.xpose.msra.mxu0 0.0
    %1337 = vmatprep.subr.mxu0 0.0
    %1338 = vmatpush1.xpose.msra.mxu0 0.0
    %1339 = vmatprep.subr.mxu0 0.0
    %1340 = vmatpush1.xpose.msra.mxu0 0.0
    %1341 = vmatprep.subr.mxu0 0.0
    %1342 = vmatpush1.xpose.msra.mxu0 0.0
    %1343 = vmatprep.subr.mxu0 0.0
    %1344 = vmatpush1.xpose.msra.mxu0 0.0
    %1345 = vmatprep.subr.mxu0 0.0
    %1346 = vmatpush1.xpose.msra.mxu0 0.0
    %1347 = vmatprep.subr.mxu0 0.0
    %1348 = vmatpush1.xpose.msra.mxu0 0.0
    %1349 = vmatprep.subr.mxu0 0.0
    %1350 = vmatpush1.xpose.msra.mxu0 0.0
    %1351 = vmatprep.subr.mxu0 0.0
    %1352 = vmatpush1.xpose.msra.mxu0 0.0
    %1353 = vmatprep.subr.mxu0 0.0
    %1354 = vmatpush1.xpose.msra.mxu0 0.0
    %1355 = vmatprep.subr.mxu0 0.0
    %1356 = vmatpush1.xpose.msra.mxu0 0.0
    %1357 = vmatprep.subr.mxu0 0.0
    %1358 = vmatpush1.xpose.msra.mxu0 0.0
    %1359 = vmatprep.subr.mxu0 0.0
    %1360 = vmatpush1.xpose.msra.mxu0 0.0
    %1361 = vmatprep.subr.mxu0 0.0
    %1362 = vmatpush1.xpose.msra.mxu0 0.0
    %1363 = vmatprep.subr.mxu0 0.0
    %1364 = vmatpush1.xpose.msra.mxu0 0.0
    %1365 = vmatprep.subr.mxu0 0.0
    %1366 = vmatpush1.xpose.msra.mxu0 0.0
    %1367 = vmatprep.subr.mxu0 0.0
    %1368 = vmatpush1.xpose.msra.mxu0 0.0
    %1369 = vmatprep.subr.mxu0 0.0
    %1370 = vmatpush1.xpose.msra.mxu0 0.0
    %1371 = vmatprep.subr.mxu0 0.0
    %1372 = vmatpush1.xpose.msra.mxu0 0.0
    %1373 = vmatprep.mubr.f32.mxu0 0.0
    %1374 = vmatmul.mubr.f32.gmra.mrb[0].mxu0 %v1297
    %v1375 = vpop.f32.mrb[0].mxu0
    %v1376 = vadd.f32 0.0, %v1375
    %v1377 = vpop.f32.mrb[0].mxu0
    %1378 = vmatprep.mubr.f32.mxu0 0.0
    %1379 = vmatmul.mubr.f32.gmra.mrb[0].mxu0 %v1299
    %v1380 = vpop.f32.mrb[0].mxu0
    %v1381 = vadd.f32 0.0, %v1380
    %v1382 = vpop.f32.mrb[0].mxu0
    %1383 = vmatprep.mubr.f32.mxu0 0.0
    %1384 = vmatmul.mubr.f32.gmra.mrb[0].mxu0 %v1301
    %v1385 = vpop.f32.mrb[0].mxu0
    %v1386 = vadd.f32 0.0, %v1385
    %v1387 = vpop.f32.mrb[0].mxu0
    %1388 = vdwg.mxu0
    %1392 = vrot.lane.b32.xlu0 %v849, 96
    %v1393 = vpop.permute.xlu0 %1392
    %1394 = vrot.lane.b32.xlu0 %v854, 96
    %v1395 = vpop.permute.xlu0 %1394
    %1396 = vrot.lane.b32.xlu0 %v857, 96
    %v1397 = vpop.permute.xlu0 %1396
    %v1398 = vsel %vm718, %v849, 0
    %v1400 = vsel %vm718, %v854, 0
    %v1402 = vsel %vm718, %v857, 0
    %v1404 = vsel %vm718, %v1393, 0
    %v1406 = vsel %vm718, %v1395, 0
    %v1408 = vsel %vm718, %v1397, 0
    %1410 = vmatprep.subr.mxu0 0.0
    %1411 = vmatpush1.xpose.msra.mxu0 %v1404
    %1412 = vmatprep.subr.mxu0 0.0
    %1413 = vmatpush1.xpose.msra.mxu0 %v1406
    %1414 = vmatprep.subr.mxu0 0.0
    %1415 = vmatpush1.xpose.msra.mxu0 %v1408
    %1416 = vmatprep.subr.mxu0 0.0
    %1417 = vmatpush1.xpose.msra.mxu0 0.0
    %1418 = vmatprep.subr.mxu0 0.0
    %1419 = vmatpush1.xpose.msra.mxu0 0.0
    %1420 = vmatprep.subr.mxu0 0.0
    %1421 = vmatpush1.xpose.msra.mxu0 0.0
    %1422 = vmatprep.subr.mxu0 0.0
    %1423 = vmatpush1.xpose.msra.mxu0 0.0
    %1424 = vmatprep.subr.mxu0 0.0
    %1425 = vmatpush1.xpose.msra.mxu0 0.0
    %1426 = vmatprep.subr.mxu0 0.0
    %1427 = vmatpush1.xpose.msra.mxu0 0.0
    %1428 = vmatprep.subr.mxu0 0.0
    %1429 = vmatpush1.xpose.msra.mxu0 0.0
    %1430 = vmatprep.subr.mxu0 0.0
    %1431 = vmatpush1.xpose.msra.mxu0 0.0
    %1432 = vmatprep.subr.mxu0 0.0
    %1433 = vmatpush1.xpose.msra.mxu0 0.0
    %1434 = vmatprep.subr.mxu0 0.0
    %1435 = vmatpush1.xpose.msra.mxu0 0.0
    %1436 = vmatprep.subr.mxu0 0.0
    %1437 = vmatpush1.xpose.msra.mxu0 0.0
    %1438 = vmatprep.subr.mxu0 0.0
    %1439 = vmatpush1.xpose.msra.mxu0 0.0
    %1440 = vmatprep.subr.mxu0 0.0
    %1441 = vmatpush1.xpose.msra.mxu0 0.0
    %1442 = vmatprep.subr.mxu0 0.0
    %1443 = vmatpush1.xpose.msra.mxu0 0.0
    %1444 = vmatprep.subr.mxu0 0.0
    %1445 = vmatpush1.xpose.msra.mxu0 0.0
    %1446 = vmatprep.subr.mxu0 0.0
    %1447 = vmatpush1.xpose.msra.mxu0 0.0
    %1448 = vmatprep.subr.mxu0 0.0
    %1449 = vmatpush1.xpose.msra.mxu0 0.0
    %1450 = vmatprep.subr.mxu0 0.0
    %1451 = vmatpush1.xpose.msra.mxu0 0.0
    %1452 = vmatprep.subr.mxu0 0.0
    %1453 = vmatpush1.xpose.msra.mxu0 0.0
    %1454 = vmatprep.subr.mxu0 0.0
    %1455 = vmatpush1.xpose.msra.mxu0 0.0
    %1456 = vmatprep.subr.mxu0 0.0
    %1457 = vmatpush1.xpose.msra.mxu0 0.0
    %1458 = vmatprep.subr.mxu0 0.0
    %1459 = vmatpush1.xpose.msra.mxu0 0.0
    %1460 = vmatprep.subr.mxu0 0.0
    %1461 = vmatpush1.xpose.msra.mxu0 0.0
    %1462 = vmatprep.subr.mxu0 0.0
    %1463 = vmatpush1.xpose.msra.mxu0 0.0
    %1464 = vmatprep.subr.mxu0 0.0
    %1465 = vmatpush1.xpose.msra.mxu0 0.0
    %1466 = vmatprep.subr.mxu0 0.0
    %1467 = vmatpush1.xpose.msra.mxu0 0.0
    %1468 = vmatprep.subr.mxu0 0.0
    %1469 = vmatpush1.xpose.msra.mxu0 0.0
    %1470 = vmatprep.subr.mxu0 0.0
    %1471 = vmatpush1.xpose.msra.mxu0 0.0
    %1472 = vmatprep.subr.mxu0 0.0
    %1473 = vmatpush1.xpose.msra.mxu0 0.0
    %1474 = vmatprep.mubr.f32.mxu0 0.0
    %1475 = vmatmul.mubr.f32.gmra.mrb[0].mxu0 %v1398
    %v1476 = vpop.f32.mrb[0].mxu0
    %v1477 = vadd.f32 0.0, %v1476
    %v1478 = vpop.f32.mrb[0].mxu0
    %1479 = vmatprep.mubr.f32.mxu0 0.0
    %1480 = vmatmul.mubr.f32.gmra.mrb[0].mxu0 %v1400
    %v1481 = vpop.f32.mrb[0].mxu0
    %v1482 = vadd.f32 0.0, %v1481
    %v1483 = vpop.f32.mrb[0].mxu0
    %1484 = vmatprep.mubr.f32.mxu0 0.0
    %1485 = vmatmul.mubr.f32.gmra.mrb[0].mxu0 %v1402
    %v1486 = vpop.f32.mrb[0].mxu0
    %v1487 = vadd.f32 0.0, %v1486
    %v1488 = vpop.f32.mrb[0].mxu0
    %1489 = vdwg.mxu0
    %1493 = vrot.lane.b32.xlu0 %v862, 96
    %v1494 = vpop.permute.xlu0 %1493
    %1495 = vrot.lane.b32.xlu0 %v865, 96
    %v1496 = vpop.permute.xlu0 %1495
    %1497 = vrot.lane.b32.xlu0 %v870, 96
    %v1498 = vpop.permute.xlu0 %1497
    %v1499 = vsel %vm718, %v862, 0
    %v1501 = vsel %vm718, %v865, 0
    %v1503 = vsel %vm718, %v870, 0
    %v1505 = vsel %vm718, %v1494, 0
    %v1507 = vsel %vm718, %v1496, 0
    %v1509 = vsel %vm718, %v1498, 0
    %1511 = vmatprep.subr.mxu0 0.0
    %1512 = vmatpush1.xpose.msra.mxu0 %v1505
    %1513 = vmatprep.subr.mxu0 0.0
    %1514 = vmatpush1.xpose.msra.mxu0 %v1507
    %1515 = vmatprep.subr.mxu0 0.0
    %1516 = vmatpush1.xpose.msra.mxu0 %v1509
    %1517 = vmatprep.subr.mxu0 0.0
    %1518 = vmatpush1.xpose.msra.mxu0 0.0
    %1519 = vmatprep.subr.mxu0 0.0
    %1520 = vmatpush1.xpose.msra.mxu0 0.0
    %1521 = vmatprep.subr.mxu0 0.0
    %1522 = vmatpush1.xpose.msra.mxu0 0.0
    %1523 = vmatprep.subr.mxu0 0.0
    %1524 = vmatpush1.xpose.msra.mxu0 0.0
    %1525 = vmatprep.subr.mxu0 0.0
    %1526 = vmatpush1.xpose.msra.mxu0 0.0
    %1527 = vmatprep.subr.mxu0 0.0
    %1528 = vmatpush1.xpose.msra.mxu0 0.0
    %1529 = vmatprep.subr.mxu0 0.0
    %1530 = vmatpush1.xpose.msra.mxu0 0.0
    %1531 = vmatprep.subr.mxu0 0.0
    %1532 = vmatpush1.xpose.msra.mxu0 0.0
    %1533 = vmatprep.subr.mxu0 0.0
    %1534 = vmatpush1.xpose.msra.mxu0 0.0
    %1535 = vmatprep.subr.mxu0 0.0
    %1536 = vmatpush1.xpose.msra.mxu0 0.0
    %1537 = vmatprep.subr.mxu0 0.0
    %1538 = vmatpush1.xpose.msra.mxu0 0.0
    %1539 = vmatprep.subr.mxu0 0.0
    %1540 = vmatpush1.xpose.msra.mxu0 0.0
    %1541 = vmatprep.subr.mxu0 0.0
    %1542 = vmatpush1.xpose.msra.mxu0 0.0
    %1543 = vmatprep.subr.mxu0 0.0
    %1544 = vmatpush1.xpose.msra.mxu0 0.0
    %1545 = vmatprep.subr.mxu0 0.0
    %1546 = vmatpush1.xpose.msra.mxu0 0.0
    %1547 = vmatprep.subr.mxu0 0.0
    %1548 = vmatpush1.xpose.msra.mxu0 0.0
    %1549 = vmatprep.subr.mxu0 0.0
    %1550 = vmatpush1.xpose.msra.mxu0 0.0
    %1551 = vmatprep.subr.mxu0 0.0
    %1552 = vmatpush1.xpose.msra.mxu0 0.0
    %1553 = vmatprep.subr.mxu0 0.0
    %1554 = vmatpush1.xpose.msra.mxu0 0.0
    %1555 = vmatprep.subr.mxu0 0.0
    %1556 = vmatpush1.xpose.msra.mxu0 0.0
    %1557 = vmatprep.subr.mxu0 0.0
    %1558 = vmatpush1.xpose.msra.mxu0 0.0
    %1559 = vmatprep.subr.mxu0 0.0
    %1560 = vmatpush1.xpose.msra.mxu0 0.0
    %1561 = vmatprep.subr.mxu0 0.0
    %1562 = vmatpush1.xpose.msra.mxu0 0.0
    %1563 = vmatprep.subr.mxu0 0.0
    %1564 = vmatpush1.xpose.msra.mxu0 0.0
    %1565 = vmatprep.subr.mxu0 0.0
    %1566 = vmatpush1.xpose.msra.mxu0 0.0
    %1567 = vmatprep.subr.mxu0 0.0
    %1568 = vmatpush1.xpose.msra.mxu0 0.0
    %1569 = vmatprep.subr.mxu0 0.0
    %1570 = vmatpush1.xpose.msra.mxu0 0.0
    %1571 = vmatprep.subr.mxu0 0.0
    %1572 = vmatpush1.xpose.msra.mxu0 0.0
    %1573 = vmatprep.subr.mxu0 0.0
    %1574 = vmatpush1.xpose.msra.mxu0 0.0
    %1575 = vmatprep.mubr.f32.mxu0 0.0
    %1576 = vmatmul.mubr.f32.gmra.mrb[0].mxu0 %v1499
    %v1577 = vpop.f32.mrb[0].mxu0
    %v1578 = vadd.f32 0.0, %v1577
    %v1579 = vpop.f32.mrb[0].mxu0
    %1580 = vmatprep.mubr.f32.mxu0 0.0
    %1581 = vmatmul.mubr.f32.gmra.mrb[0].mxu0 %v1501
    %v1582 = vpop.f32.mrb[0].mxu0
    %v1583 = vadd.f32 0.0, %v1582
    %v1584 = vpop.f32.mrb[0].mxu0
    %1585 = vmatprep.mubr.f32.mxu0 0.0
    %1586 = vmatmul.mubr.f32.gmra.mrb[0].mxu0 %v1503
    %v1587 = vpop.f32.mrb[0].mxu0
    %v1588 = vadd.f32 0.0, %v1587
    %v1589 = vpop.f32.mrb[0].mxu0
    %1590 = vdwg.mxu0
    %1594 = vrot.lane.b32.xlu0 %v873, 96
    %v1595 = vpop.permute.xlu0 %1594
    %1596 = vrot.lane.b32.xlu0 %v878, 96
    %v1597 = vpop.permute.xlu0 %1596
    %1598 = vrot.lane.b32.xlu0 %v881, 96
    %v1599 = vpop.permute.xlu0 %1598
    %v1600 = vsel %vm718, %v873, 0
    %v1602 = vsel %vm718, %v878, 0
    %v1604 = vsel %vm718, %v881, 0
    %v1606 = vsel %vm718, %v1595, 0
    %v1608 = vsel %vm718, %v1597, 0
    %v1610 = vsel %vm718, %v1599, 0
    %1612 = vmatprep.subr.mxu0 0.0
    %1613 = vmatpush1.xpose.msra.mxu0 %v1606
    %1614 = vmatprep.subr.mxu0 0.0
    %1615 = vmatpush1.xpose.msra.mxu0 %v1608
    %1616 = vmatprep.subr.mxu0 0.0
    %1617 = vmatpush1.xpose.msra.mxu0 %v1610
    %1618 = vmatprep.subr.mxu0 0.0
    %1619 = vmatpush1.xpose.msra.mxu0 0.0
    %1620 = vmatprep.subr.mxu0 0.0
    %1621 = vmatpush1.xpose.msra.mxu0 0.0
    %1622 = vmatprep.subr.mxu0 0.0
    %1623 = vmatpush1.xpose.msra.mxu0 0.0
    %1624 = vmatprep.subr.mxu0 0.0
    %1625 = vmatpush1.xpose.msra.mxu0 0.0
    %1626 = vmatprep.subr.mxu0 0.0
    %1627 = vmatpush1.xpose.msra.mxu0 0.0
    %1628 = vmatprep.subr.mxu0 0.0
    %1629 = vmatpush1.xpose.msra.mxu0 0.0
    %1630 = vmatprep.subr.mxu0 0.0
    %1631 = vmatpush1.xpose.msra.mxu0 0.0
    %1632 = vmatprep.subr.mxu0 0.0
    %1633 = vmatpush1.xpose.msra.mxu0 0.0
    %1634 = vmatprep.subr.mxu0 0.0
    %1635 = vmatpush1.xpose.msra.mxu0 0.0
    %1636 = vmatprep.subr.mxu0 0.0
    %1637 = vmatpush1.xpose.msra.mxu0 0.0
    %1638 = vmatprep.subr.mxu0 0.0
    %1639 = vmatpush1.xpose.msra.mxu0 0.0
    %1640 = vmatprep.subr.mxu0 0.0
    %1641 = vmatpush1.xpose.msra.mxu0 0.0
    %1642 = vmatprep.subr.mxu0 0.0
    %1643 = vmatpush1.xpose.msra.mxu0 0.0
    %1644 = vmatprep.subr.mxu0 0.0
    %1645 = vmatpush1.xpose.msra.mxu0 0.0
    %1646 = vmatprep.subr.mxu0 0.0
    %1647 = vmatpush1.xpose.msra.mxu0 0.0
    %1648 = vmatprep.subr.mxu0 0.0
    %1649 = vmatpush1.xpose.msra.mxu0 0.0
    %1650 = vmatprep.subr.mxu0 0.0
    %1651 = vmatpush1.xpose.msra.mxu0 0.0
    %1652 = vmatprep.subr.mxu0 0.0
    %1653 = vmatpush1.xpose.msra.mxu0 0.0
    %1654 = vmatprep.subr.mxu0 0.0
    %1655 = vmatpush1.xpose.msra.mxu0 0.0
    %1656 = vmatprep.subr.mxu0 0.0
    %1657 = vmatpush1.xpose.msra.mxu0 0.0
    %1658 = vmatprep.subr.mxu0 0.0
    %1659 = vmatpush1.xpose.msra.mxu0 0.0
    %1660 = vmatprep.subr.mxu0 0.0
    %1661 = vmatpush1.xpose.msra.mxu0 0.0
    %1662 = vmatprep.subr.mxu0 0.0
    %1663 = vmatpush1.xpose.msra.mxu0 0.0
    %1664 = vmatprep.subr.mxu0 0.0
    %1665 = vmatpush1.xpose.msra.mxu0 0.0
    %1666 = vmatprep.subr.mxu0 0.0
    %1667 = vmatpush1.xpose.msra.mxu0 0.0
    %1668 = vmatprep.subr.mxu0 0.0
    %1669 = vmatpush1.xpose.msra.mxu0 0.0
    %1670 = vmatprep.subr.mxu0 0.0
    %1671 = vmatpush1.xpose.msra.mxu0 0.0
    %1672 = vmatprep.subr.mxu0 0.0
    %1673 = vmatpush1.xpose.msra.mxu0 0.0
    %1674 = vmatprep.subr.mxu0 0.0
    %1675 = vmatpush1.xpose.msra.mxu0 0.0
    %1676 = vmatprep.mubr.f32.mxu0 0.0
    %1677 = vmatmul.mubr.f32.gmra.mrb[0].mxu0 %v1600
    %v1678 = vpop.f32.mrb[0].mxu0
    %v1679 = vadd.f32 0.0, %v1678
    %v1680 = vpop.f32.mrb[0].mxu0
    %1681 = vmatprep.mubr.f32.mxu0 0.0
    %1682 = vmatmul.mubr.f32.gmra.mrb[0].mxu0 %v1602
    %v1683 = vpop.f32.mrb[0].mxu0
    %v1684 = vadd.f32 0.0, %v1683
    %v1685 = vpop.f32.mrb[0].mxu0
    %1686 = vmatprep.mubr.f32.mxu0 0.0
    %1687 = vmatmul.mubr.f32.gmra.mrb[0].mxu0 %v1604
    %v1688 = vpop.f32.mrb[0].mxu0
    %v1689 = vadd.f32 0.0, %v1688
    %v1690 = vpop.f32.mrb[0].mxu0
    %1691 = vdwg.mxu0
    %v1692 = vmul.f32 %v972, 0.17677669
    %v1693 = vmul.f32 %v977, 0.17677669
    %v1694 = vmul.f32 %v982, 0.17677669
    %v1695 = vmul.f32 %v1073, 0.17677669
    %v1696 = vmul.f32 %v1078, 0.17677669
    %v1697 = vmul.f32 %v1083, 0.17677669
    %v1698 = vmul.f32 %v1174, 0.17677669
    %v1699 = vmul.f32 %v1179, 0.17677669
    %v1700 = vmul.f32 %v1184, 0.17677669
    %v1701 = vmul.f32 %v1275, 0.17677669
    %v1702 = vmul.f32 %v1280, 0.17677669
    %v1703 = vmul.f32 %v1285, 0.17677669
    %v1704 = vmul.f32 %v1376, 0.17677669
    %v1705 = vmul.f32 %v1381, 0.17677669
    %v1706 = vmul.f32 %v1386, 0.17677669
    %v1707 = vmul.f32 %v1477, 0.17677669
    %v1708 = vmul.f32 %v1482, 0.17677669
    %v1709 = vmul.f32 %v1487, 0.17677669
    %v1710 = vmul.f32 %v1578, 0.17677669
    %v1711 = vmul.f32 %v1583, 0.17677669
    %v1712 = vmul.f32 %v1588, 0.17677669
    %v1713 = vmul.f32 %v1679, 0.17677669
    %v1714 = vmul.f32 %v1684, 0.17677669
    %v1715 = vmul.f32 %v1689, 0.17677669
    %v1724 = vlaneseq
    %v1725 = vshrl.u32 %v1724, 7
    %v1726 = vsub.s32 0, %v1725
    %v1727 = vrot.slane %v682, %v1726
    %v1728 = vlaneseq
    %v1729 = vshrl.u32 %v1728, 7
    %v1730 = vsub.s32 0, %v1729
    %v1731 = vrot.slane %v683, %v1730
    %v1732 = vlaneseq
    %v1733 = vshrl.u32 %v1732, 7
    %v1734 = vsub.s32 0, %v1733
    %v1735 = vrot.slane %v684, %v1734
    %v1736 = vlaneseq
    %v1737 = vshrl.u32 %v1736, 7
    %v1738 = vsub.s32 0, %v1737
    %v1739 = vrot.slane %v685, %v1738
    %v1740 = vlaneseq
    %v1741 = vshrl.u32 %v1740, 7
    %v1742 = vsub.s32 0, %v1741
    %v1743 = vrot.slane %v686, %v1742
    %v1744 = vlaneseq
    %v1745 = vshrl.u32 %v1744, 7
    %v1746 = vsub.s32 0, %v1745
    %v1747 = vrot.slane %v687, %v1746
    %v1748 = vlaneseq
    %v1749 = vshrl.u32 %v1748, 7
    %v1750 = vsub.s32 0, %v1749
    %v1751 = vrot.slane %v688, %v1750
    %v1752 = vlaneseq
    %v1753 = vshrl.u32 %v1752, 7
    %v1754 = vsub.s32 0, %v1753
    %v1755 = vrot.slane %v689, %v1754
    %v1764 = vsub.f32 %v1692, %v1727
    %v1765 = vsub.f32 %v1693, %v1727
    %v1766 = vsub.f32 %v1694, %v1727
    %v1767 = vsub.f32 %v1695, %v1731
    %v1768 = vsub.f32 %v1696, %v1731
    %v1769 = vsub.f32 %v1697, %v1731
    %v1770 = vsub.f32 %v1698, %v1735
    %v1771 = vsub.f32 %v1699, %v1735
    %v1772 = vsub.f32 %v1700, %v1735
    %v1773 = vsub.f32 %v1701, %v1739
    %v1774 = vsub.f32 %v1702, %v1739
    %v1775 = vsub.f32 %v1703, %v1739
    %v1776 = vsub.f32 %v1704, %v1743
    %v1777 = vsub.f32 %v1705, %v1743
    %v1778 = vsub.f32 %v1706, %v1743
    %v1779 = vsub.f32 %v1707, %v1747
    %v1780 = vsub.f32 %v1708, %v1747
    %v1781 = vsub.f32 %v1709, %v1747
    %v1782 = vsub.f32 %v1710, %v1751
    %v1783 = vsub.f32 %v1711, %v1751
    %v1784 = vsub.f32 %v1712, %v1751
    %v1785 = vsub.f32 %v1713, %v1755
    %v1786 = vsub.f32 %v1714, %v1755
    %v1787 = vsub.f32 %v1715, %v1755
    %vm1788 = vcmask 195584
    %v1789 = vsel %vm1788, %v1764, -inf
    %1790 = vmax.xlane.f32.xlu0 %v1789
    %v1791 = vpop.xlane.xlu0 %1790
    %v1792 = vsel %vm1788, %v1765, -inf
    %1793 = vmax.xlane.f32.xlu0 %v1792
    %v1794 = vpop.xlane.xlu0 %1793
    %v1795 = vsel %vm1788, %v1766, -inf
    %1796 = vmax.xlane.f32.xlu0 %v1795
    %v1797 = vpop.xlane.xlu0 %1796
    %v1798 = vsel %vm1788, %v1767, -inf
    %1799 = vmax.xlane.f32.xlu0 %v1798
    %v1800 = vpop.xlane.xlu0 %1799
    %v1801 = vsel %vm1788, %v1768, -inf
    %1802 = vmax.xlane.f32.xlu0 %v1801
    %v1803 = vpop.xlane.xlu0 %1802
    %v1804 = vsel %vm1788, %v1769, -inf
    %1805 = vmax.xlane.f32.xlu0 %v1804
    %v1806 = vpop.xlane.xlu0 %1805
    %v1807 = vsel %vm1788, %v1770, -inf
    %1808 = vmax.xlane.f32.xlu0 %v1807
    %v1809 = vpop.xlane.xlu0 %1808
    %v1810 = vsel %vm1788, %v1771, -inf
    %1811 = vmax.xlane.f32.xlu0 %v1810
    %v1812 = vpop.xlane.xlu0 %1811
    %v1813 = vsel %vm1788, %v1772, -inf
    %1814 = vmax.xlane.f32.xlu0 %v1813
    %v1815 = vpop.xlane.xlu0 %1814
    %v1816 = vsel %vm1788, %v1773, -inf
    %1817 = vmax.xlane.f32.xlu0 %v1816
    %v1818 = vpop.xlane.xlu0 %1817
    %v1819 = vsel %vm1788, %v1774, -inf
    %1820 = vmax.xlane.f32.xlu0 %v1819
    %v1821 = vpop.xlane.xlu0 %1820
    %v1822 = vsel %vm1788, %v1775, -inf
    %1823 = vmax.xlane.f32.xlu0 %v1822
    %v1824 = vpop.xlane.xlu0 %1823
    %v1825 = vsel %vm1788, %v1776, -inf
    %1826 = vmax.xlane.f32.xlu0 %v1825
    %v1827 = vpop.xlane.xlu0 %1826
    %v1828 = vsel %vm1788, %v1777, -inf
    %1829 = vmax.xlane.f32.xlu0 %v1828
    %v1830 = vpop.xlane.xlu0 %1829
    %v1831 = vsel %vm1788, %v1778, -inf
    %1832 = vmax.xlane.f32.xlu0 %v1831
    %v1833 = vpop.xlane.xlu0 %1832
    %v1834 = vsel %vm1788, %v1779, -inf
    %1835 = vmax.xlane.f32.xlu0 %v1834
    %v1836 = vpop.xlane.xlu0 %1835
    %v1837 = vsel %vm1788, %v1780, -inf
    %1838 = vmax.xlane.f32.xlu0 %v1837
    %v1839 = vpop.xlane.xlu0 %1838
    %v1840 = vsel %vm1788, %v1781, -inf
    %1841 = vmax.xlane.f32.xlu0 %v1840
    %v1842 = vpop.xlane.xlu0 %1841
    %v1843 = vsel %vm1788, %v1782, -inf
    %1844 = vmax.xlane.f32.xlu0 %v1843
    %v1845 = vpop.xlane.xlu0 %1844
    %v1846 = vsel %vm1788, %v1783, -inf
    %1847 = vmax.xlane.f32.xlu0 %v1846
    %v1848 = vpop.xlane.xlu0 %1847
    %v1849 = vsel %vm1788, %v1784, -inf
    %1850 = vmax.xlane.f32.xlu0 %v1849
    %v1851 = vpop.xlane.xlu0 %1850
    %v1852 = vsel %vm1788, %v1785, -inf
    %1853 = vmax.xlane.f32.xlu0 %v1852
    %v1854 = vpop.xlane.xlu0 %1853
    %v1855 = vsel %vm1788, %v1786, -inf
    %1856 = vmax.xlane.f32.xlu0 %v1855
    %v1857 = vpop.xlane.xlu0 %1856
    %v1858 = vsel %vm1788, %v1787, -inf
    %1859 = vmax.xlane.f32.xlu0 %v1858
    %v1860 = vpop.xlane.xlu0 %1859
    %v1861 = vsub.f32 %v1764, %v1791
    %v1862 = vsub.f32 %v1765, %v1794
    %v1863 = vsub.f32 %v1766, %v1797
    %v1864 = vsub.f32 %v1767, %v1800
    %v1865 = vsub.f32 %v1768, %v1803
    %v1866 = vsub.f32 %v1769, %v1806
    %v1867 = vsub.f32 %v1770, %v1809
    %v1868 = vsub.f32 %v1771, %v1812
    %v1869 = vsub.f32 %v1772, %v1815
    %v1870 = vsub.f32 %v1773, %v1818
    %v1871 = vsub.f32 %v1774, %v1821
    %v1872 = vsub.f32 %v1775, %v1824
    %v1873 = vsub.f32 %v1776, %v1827
    %v1874 = vsub.f32 %v1777, %v1830
    %v1875 = vsub.f32 %v1778, %v1833
    %v1876 = vsub.f32 %v1779, %v1836
    %v1877 = vsub.f32 %v1780, %v1839
    %v1878 = vsub.f32 %v1781, %v1842
    %v1879 = vsub.f32 %v1782, %v1845
    %v1880 = vsub.f32 %v1783, %v1848
    %v1881 = vsub.f32 %v1784, %v1851
    %v1882 = vsub.f32 %v1785, %v1854
    %v1883 = vsub.f32 %v1786, %v1857
    %v1884 = vsub.f32 %v1787, %v1860
    %v1885 = vmul.f32 %v1861, 1.442695
    %v1886 = vpow.pop %v1885
    %v1887 = vmul.f32 %v1862, 1.442695
    %v1888 = vpow.pop %v1887
    %v1889 = vmul.f32 %v1863, 1.442695
    %v1890 = vpow.pop %v1889
    %v1891 = vmul.f32 %v1864, 1.442695
    %v1892 = vpow.pop %v1891
    %v1893 = vmul.f32 %v1865, 1.442695
    %v1894 = vpow.pop %v1893
    %v1895 = vmul.f32 %v1866, 1.442695
    %v1896 = vpow.pop %v1895
    %v1897 = vmul.f32 %v1867, 1.442695
    %v1898 = vpow.pop %v1897
    %v1899 = vmul.f32 %v1868, 1.442695
    %v1900 = vpow.pop %v1899
    %v1901 = vmul.f32 %v1869, 1.442695
    %v1902 = vpow.pop %v1901
    %v1903 = vmul.f32 %v1870, 1.442695
    %v1904 = vpow.pop %v1903
    %v1905 = vmul.f32 %v1871, 1.442695
    %v1906 = vpow.pop %v1905
    %v1907 = vmul.f32 %v1872, 1.442695
    %v1908 = vpow.pop %v1907
    %v1909 = vmul.f32 %v1873, 1.442695
    %v1910 = vpow.pop %v1909
    %v1911 = vmul.f32 %v1874, 1.442695
    %v1912 = vpow.pop %v1911
    %v1913 = vmul.f32 %v1875, 1.442695
    %v1914 = vpow.pop %v1913
    %v1915 = vmul.f32 %v1876, 1.442695
    %v1916 = vpow.pop %v1915
    %v1917 = vmul.f32 %v1877, 1.442695
    %v1918 = vpow.pop %v1917
    %v1919 = vmul.f32 %v1878, 1.442695
    %v1920 = vpow.pop %v1919
    %v1921 = vmul.f32 %v1879, 1.442695
    %v1922 = vpow.pop %v1921
    %v1923 = vmul.f32 %v1880, 1.442695
    %v1924 = vpow.pop %v1923
    %v1925 = vmul.f32 %v1881, 1.442695
    %v1926 = vpow.pop %v1925
    %v1927 = vmul.f32 %v1882, 1.442695
    %v1928 = vpow.pop %v1927
    %v1929 = vmul.f32 %v1883, 1.442695
    %v1930 = vpow.pop %v1929
    %v1931 = vmul.f32 %v1884, 1.442695
    %v1932 = vpow.pop %v1931
    %v1933 = vsel %vm1788, %v1886, 0.0
    %1934 = vadd.xlane.f32.xlu0 %v1933
    %v1935 = vpop.xlane.xlu0 %1934
    %v1936 = vsel %vm1788, %v1888, 0.0
    %1937 = vadd.xlane.f32.xlu0 %v1936
    %v1938 = vpop.xlane.xlu0 %1937
    %v1939 = vsel %vm1788, %v1890, 0.0
    %1940 = vadd.xlane.f32.xlu0 %v1939
    %v1941 = vpop.xlane.xlu0 %1940
    %v1942 = vsel %vm1788, %v1892, 0.0
    %1943 = vadd.xlane.f32.xlu0 %v1942
    %v1944 = vpop.xlane.xlu0 %1943
    %v1945 = vsel %vm1788, %v1894, 0.0
    %1946 = vadd.xlane.f32.xlu0 %v1945
    %v1947 = vpop.xlane.xlu0 %1946
    %v1948 = vsel %vm1788, %v1896, 0.0
    %1949 = vadd.xlane.f32.xlu0 %v1948
    %v1950 = vpop.xlane.xlu0 %1949
    %v1951 = vsel %vm1788, %v1898, 0.0
    %1952 = vadd.xlane.f32.xlu0 %v1951
    %v1953 = vpop.xlane.xlu0 %1952
    %v1954 = vsel %vm1788, %v1900, 0.0
    %1955 = vadd.xlane.f32.xlu0 %v1954
    %v1956 = vpop.xlane.xlu0 %1955
    %v1957 = vsel %vm1788, %v1902, 0.0
    %1958 = vadd.xlane.f32.xlu0 %v1957
    %v1959 = vpop.xlane.xlu0 %1958
    %v1960 = vsel %vm1788, %v1904, 0.0
    %1961 = vadd.xlane.f32.xlu0 %v1960
    %v1962 = vpop.xlane.xlu0 %1961
    %v1963 = vsel %vm1788, %v1906, 0.0
    %1964 = vadd.xlane.f32.xlu0 %v1963
    %v1965 = vpop.xlane.xlu0 %1964
    %v1966 = vsel %vm1788, %v1908, 0.0
    %1967 = vadd.xlane.f32.xlu0 %v1966
    %v1968 = vpop.xlane.xlu0 %1967
    %v1969 = vsel %vm1788, %v1910, 0.0
    %1970 = vadd.xlane.f32.xlu0 %v1969
    %v1971 = vpop.xlane.xlu0 %1970
    %v1972 = vsel %vm1788, %v1912, 0.0
    %1973 = vadd.xlane.f32.xlu0 %v1972
    %v1974 = vpop.xlane.xlu0 %1973
    %v1975 = vsel %vm1788, %v1914, 0.0
    %1976 = vadd.xlane.f32.xlu0 %v1975
    %v1977 = vpop.xlane.xlu0 %1976
    %v1978 = vsel %vm1788, %v1916, 0.0
    %1979 = vadd.xlane.f32.xlu0 %v1978
    %v1980 = vpop.xlane.xlu0 %1979
    %v1981 = vsel %vm1788, %v1918, 0.0
    %1982 = vadd.xlane.f32.xlu0 %v1981
    %v1983 = vpop.xlane.xlu0 %1982
    %v1984 = vsel %vm1788, %v1920, 0.0
    %1985 = vadd.xlane.f32.xlu0 %v1984
    %v1986 = vpop.xlane.xlu0 %1985
    %v1987 = vsel %vm1788, %v1922, 0.0
    %1988 = vadd.xlane.f32.xlu0 %v1987
    %v1989 = vpop.xlane.xlu0 %1988
    %v1990 = vsel %vm1788, %v1924, 0.0
    %1991 = vadd.xlane.f32.xlu0 %v1990
    %v1992 = vpop.xlane.xlu0 %1991
    %v1993 = vsel %vm1788, %v1926, 0.0
    %1994 = vadd.xlane.f32.xlu0 %v1993
    %v1995 = vpop.xlane.xlu0 %1994
    %v1996 = vsel %vm1788, %v1928, 0.0
    %1997 = vadd.xlane.f32.xlu0 %v1996
    %v1998 = vpop.xlane.xlu0 %1997
    %v1999 = vsel %vm1788, %v1930, 0.0
    %2000 = vadd.xlane.f32.xlu0 %v1999
    %v2001 = vpop.xlane.xlu0 %2000
    %v2002 = vsel %vm1788, %v1932, 0.0
    %2003 = vadd.xlane.f32.xlu0 %v2002
    %v2004 = vpop.xlane.xlu0 %2003
    %v2005 = vrcp.pop %v1935
    %v2006 = vrcp.pop %v1938
    %v2007 = vrcp.pop %v1941
    %v2008 = vrcp.pop %v1944
    %v2009 = vrcp.pop %v1947
    %v2010 = vrcp.pop %v1950
    %v2011 = vrcp.pop %v1953
    %v2012 = vrcp.pop %v1956
    %v2013 = vrcp.pop %v1959
    %v2014 = vrcp.pop %v1962
    %v2015 = vrcp.pop %v1965
    %v2016 = vrcp.pop %v1968
    %v2017 = vrcp.pop %v1971
    %v2018 = vrcp.pop %v1974
    %v2019 = vrcp.pop %v1977
    %v2020 = vrcp.pop %v1980
    %v2021 = vrcp.pop %v1983
    %v2022 = vrcp.pop %v1986
    %v2023 = vrcp.pop %v1989
    %v2024 = vrcp.pop %v1992
    %v2025 = vrcp.pop %v1995
    %v2026 = vrcp.pop %v1998
    %v2027 = vrcp.pop %v2001
    %v2028 = vrcp.pop %v2004
    %v2029 = vmul.f32 %v1886, %v2005
    %v2030 = vmul.f32 %v1888, %v2006
    %v2031 = vmul.f32 %v1890, %v2007
    %v2032 = vmul.f32 %v1892, %v2008
    %v2033 = vmul.f32 %v1894, %v2009
    %v2034 = vmul.f32 %v1896, %v2010
    %v2035 = vmul.f32 %v1898, %v2011
    %v2036 = vmul.f32 %v1900, %v2012
    %v2037 = vmul.f32 %v1902, %v2013
    %v2038 = vmul.f32 %v1904, %v2014
    %v2039 = vmul.f32 %v1906, %v2015
    %v2040 = vmul.f32 %v1908, %v2016
    %v2041 = vmul.f32 %v1910, %v2017
    %v2042 = vmul.f32 %v1912, %v2018
    %v2043 = vmul.f32 %v1914, %v2019
    %v2044 = vmul.f32 %v1916, %v2020
    %v2045 = vmul.f32 %v1918, %v2021
    %v2046 = vmul.f32 %v1920, %v2022
    %v2047 = vmul.f32 %v1922, %v2023
    %v2048 = vmul.f32 %v1924, %v2024
    %v2049 = vmul.f32 %v1926, %v2025
    %v2050 = vmul.f32 %v1928, %v2026
    %v2051 = vmul.f32 %v1930, %v2027
    %v2052 = vmul.f32 %v1932, %v2028
    %2053 = vrot.lane.b32.xlu0 %v790, 64
    %v2054 = vpop.permute.xlu0 %2053
    %2055 = vrot.lane.b32.xlu0 %v793, 64
    %v2056 = vpop.permute.xlu0 %2055
    %2057 = vrot.lane.b32.xlu0 %v798, 64
    %v2058 = vpop.permute.xlu0 %2057
    %v2063 = vsel %vm1788, %v2029, 0
    %v2066 = vsel %vm1788, %v2030, 0
    %v2069 = vsel %vm1788, %v2031, 0
    %2071 = vmatprep.subr.mxu0 0.0
    %2072 = vmatpush1.msra.mxu0 %v2054
    %2073 = vmatprep.subr.mxu0 0.0
    %2074 = vmatpush1.msra.mxu0 %v2056
    %2075 = vmatprep.subr.mxu0 0.0
    %2076 = vmatpush1.msra.mxu0 %v2058
    %2077 = vmatprep.subr.mxu0 0.0
    %2078 = vmatpush1.msra.mxu0 0.0
    %2079 = vmatprep.subr.mxu0 0.0
    %2080 = vmatpush1.msra.mxu0 0.0
    %2081 = vmatprep.subr.mxu0 0.0
    %2082 = vmatpush1.msra.mxu0 0.0
    %2083 = vmatprep.subr.mxu0 0.0
    %2084 = vmatpush1.msra.mxu0 0.0
    %2085 = vmatprep.subr.mxu0 0.0
    %2086 = vmatpush1.msra.mxu0 0.0
    %2087 = vmatprep.subr.mxu0 0.0
    %2088 = vmatpush1.msra.mxu0 0.0
    %2089 = vmatprep.subr.mxu0 0.0
    %2090 = vmatpush1.msra.mxu0 0.0
    %2091 = vmatprep.subr.mxu0 0.0
    %2092 = vmatpush1.msra.mxu0 0.0
    %2093 = vmatprep.subr.mxu0 0.0
    %2094 = vmatpush1.msra.mxu0 0.0
    %2095 = vmatprep.subr.mxu0 0.0
    %2096 = vmatpush1.msra.mxu0 0.0
    %2097 = vmatprep.subr.mxu0 0.0
    %2098 = vmatpush1.msra.mxu0 0.0
    %2099 = vmatprep.subr.mxu0 0.0
    %2100 = vmatpush1.msra.mxu0 0.0
    %2101 = vmatprep.subr.mxu0 0.0
    %2102 = vmatpush1.msra.mxu0 0.0
    %2103 = vmatprep.subr.mxu0 0.0
    %2104 = vmatpush1.msra.mxu0 0.0
    %2105 = vmatprep.subr.mxu0 0.0
    %2106 = vmatpush1.msra.mxu0 0.0
    %2107 = vmatprep.subr.mxu0 0.0
    %2108 = vmatpush1.msra.mxu0 0.0
    %2109 = vmatprep.subr.mxu0 0.0
    %2110 = vmatpush1.msra.mxu0 0.0
    %2111 = vmatprep.subr.mxu0 0.0
    %2112 = vmatpush1.msra.mxu0 0.0
    %2113 = vmatprep.subr.mxu0 0.0
    %2114 = vmatpush1.msra.mxu0 0.0
    %2115 = vmatprep.subr.mxu0 0.0
    %2116 = vmatpush1.msra.mxu0 0.0
    %2117 = vmatprep.subr.mxu0 0.0
    %2118 = vmatpush1.msra.mxu0 0.0
    %2119 = vmatprep.subr.mxu0 0.0
    %2120 = vmatpush1.msra.mxu0 0.0
    %2121 = vmatprep.subr.mxu0 0.0
    %2122 = vmatpush1.msra.mxu0 0.0
    %2123 = vmatprep.subr.mxu0 0.0
    %2124 = vmatpush1.msra.mxu0 0.0
    %2125 = vmatprep.subr.mxu0 0.0
    %2126 = vmatpush1.msra.mxu0 0.0
    %2127 = vmatprep.subr.mxu0 0.0
    %2128 = vmatpush1.msra.mxu0 0.0
    %2129 = vmatprep.subr.mxu0 0.0
    %2130 = vmatpush1.msra.mxu0 0.0
    %2131 = vmatprep.subr.mxu0 0.0
    %2132 = vmatpush1.msra.mxu0 0.0
    %2133 = vmatprep.subr.mxu0 0.0
    %2134 = vmatpush1.msra.mxu0 0.0
    %2135 = vmatprep.mubr.f32.mxu0 0.0
    %2136 = vmatmul.mubr.f32.gmra.mrb[0].mxu0 %v2063
    %v2137 = vpop.f32.mrb[0].mxu0
    %v2138 = vadd.f32 0.0, %v2137
    %v2139 = vpop.f32.mrb[0].mxu0
    %2140 = vmatprep.mubr.f32.mxu0 0.0
    %2141 = vmatmul.mubr.f32.gmra.mrb[0].mxu0 %v2066
    %v2142 = vpop.f32.mrb[0].mxu0
    %v2143 = vadd.f32 0.0, %v2142
    %v2144 = vpop.f32.mrb[0].mxu0
    %2145 = vmatprep.mubr.f32.mxu0 0.0
    %2146 = vmatmul.mubr.f32.gmra.mrb[0].mxu0 %v2069
    %v2147 = vpop.f32.mrb[0].mxu0
    %v2148 = vadd.f32 0.0, %v2147
    %v2149 = vpop.f32.mrb[0].mxu0
    %2150 = vdwg.mxu0
    %2151 = vrot.lane.b32.xlu0 %v801, 64
    %v2152 = vpop.permute.xlu0 %2151
    %2153 = vrot.lane.b32.xlu0 %v806, 64
    %v2154 = vpop.permute.xlu0 %2153
    %2155 = vrot.lane.b32.xlu0 %v809, 64
    %v2156 = vpop.permute.xlu0 %2155
    %v2161 = vsel %vm1788, %v2032, 0
    %v2164 = vsel %vm1788, %v2033, 0
    %v2167 = vsel %vm1788, %v2034, 0
    %2169 = vmatprep.subr.mxu0 0.0
    %2170 = vmatpush1.msra.mxu0 %v2152
    %2171 = vmatprep.subr.mxu0 0.0
    %2172 = vmatpush1.msra.mxu0 %v2154
    %2173 = vmatprep.subr.mxu0 0.0
    %2174 = vmatpush1.msra.mxu0 %v2156
    %2175 = vmatprep.subr.mxu0 0.0
    %2176 = vmatpush1.msra.mxu0 0.0
    %2177 = vmatprep.subr.mxu0 0.0
    %2178 = vmatpush1.msra.mxu0 0.0
    %2179 = vmatprep.subr.mxu0 0.0
    %2180 = vmatpush1.msra.mxu0 0.0
    %2181 = vmatprep.subr.mxu0 0.0
    %2182 = vmatpush1.msra.mxu0 0.0
    %2183 = vmatprep.subr.mxu0 0.0
    %2184 = vmatpush1.msra.mxu0 0.0
    %2185 = vmatprep.subr.mxu0 0.0
    %2186 = vmatpush1.msra.mxu0 0.0
    %2187 = vmatprep.subr.mxu0 0.0
    %2188 = vmatpush1.msra.mxu0 0.0
    %2189 = vmatprep.subr.mxu0 0.0
    %2190 = vmatpush1.msra.mxu0 0.0
    %2191 = vmatprep.subr.mxu0 0.0
    %2192 = vmatpush1.msra.mxu0 0.0
    %2193 = vmatprep.subr.mxu0 0.0
    %2194 = vmatpush1.msra.mxu0 0.0
    %2195 = vmatprep.subr.mxu0 0.0
    %2196 = vmatpush1.msra.mxu0 0.0
    %2197 = vmatprep.subr.mxu0 0.0
    %2198 = vmatpush1.msra.mxu0 0.0
    %2199 = vmatprep.subr.mxu0 0.0
    %2200 = vmatpush1.msra.mxu0 0.0
    %2201 = vmatprep.subr.mxu0 0.0
    %2202 = vmatpush1.msra.mxu0 0.0
    %2203 = vmatprep.subr.mxu0 0.0
    %2204 = vmatpush1.msra.mxu0 0.0
    %2205 = vmatprep.subr.mxu0 0.0
    %2206 = vmatpush1.msra.mxu0 0.0
    %2207 = vmatprep.subr.mxu0 0.0
    %2208 = vmatpush1.msra.mxu0 0.0
    %2209 = vmatprep.subr.mxu0 0.0
    %2210 = vmatpush1.msra.mxu0 0.0
    %2211 = vmatprep.subr.mxu0 0.0
    %2212 = vmatpush1.msra.mxu0 0.0
    %2213 = vmatprep.subr.mxu0 0.0
    %2214 = vmatpush1.msra.mxu0 0.0
    %2215 = vmatprep.subr.mxu0 0.0
    %2216 = vmatpush1.msra.mxu0 0.0
    %2217 = vmatprep.subr.mxu0 0.0
    %2218 = vmatpush1.msra.mxu0 0.0
    %2219 = vmatprep.subr.mxu0 0.0
    %2220 = vmatpush1.msra.mxu0 0.0
    %2221 = vmatprep.subr.mxu0 0.0
    %2222 = vmatpush1.msra.mxu0 0.0
    %2223 = vmatprep.subr.mxu0 0.0
    %2224 = vmatpush1.msra.mxu0 0.0
    %2225 = vmatprep.subr.mxu0 0.0
    %2226 = vmatpush1.msra.mxu0 0.0
    %2227 = vmatprep.subr.mxu0 0.0
    %2228 = vmatpush1.msra.mxu0 0.0
    %2229 = vmatprep.subr.mxu0 0.0
    %2230 = vmatpush1.msra.mxu0 0.0
    %2231 = vmatprep.subr.mxu0 0.0
    %2232 = vmatpush1.msra.mxu0 0.0
    %2233 = vmatprep.mubr.f32.mxu0 0.0
    %2234 = vmatmul.mubr.f32.gmra.mrb[0].mxu0 %v2161
    %v2235 = vpop.f32.mrb[0].mxu0
    %v2236 = vadd.f32 0.0, %v2235
    %v2237 = vpop.f32.mrb[0].mxu0
    %2238 = vmatprep.mubr.f32.mxu0 0.0
    %2239 = vmatmul.mubr.f32.gmra.mrb[0].mxu0 %v2164
    %v2240 = vpop.f32.mrb[0].mxu0
    %v2241 = vadd.f32 0.0, %v2240
    %v2242 = vpop.f32.mrb[0].mxu0
    %2243 = vmatprep.mubr.f32.mxu0 0.0
    %2244 = vmatmul.mubr.f32.gmra.mrb[0].mxu0 %v2167
    %v2245 = vpop.f32.mrb[0].mxu0
    %v2246 = vadd.f32 0.0, %v2245
    %v2247 = vpop.f32.mrb[0].mxu0
    %2248 = vdwg.mxu0
    %2249 = vrot.lane.b32.xlu0 %v814, 64
    %v2250 = vpop.permute.xlu0 %2249
    %2251 = vrot.lane.b32.xlu0 %v817, 64
    %v2252 = vpop.permute.xlu0 %2251
    %2253 = vrot.lane.b32.xlu0 %v822, 64
    %v2254 = vpop.permute.xlu0 %2253
    %v2259 = vsel %vm1788, %v2035, 0
    %v2262 = vsel %vm1788, %v2036, 0
    %v2265 = vsel %vm1788, %v2037, 0
    %2267 = vmatprep.subr.mxu0 0.0
    %2268 = vmatpush1.msra.mxu0 %v2250
    %2269 = vmatprep.subr.mxu0 0.0
    %2270 = vmatpush1.msra.mxu0 %v2252
    %2271 = vmatprep.subr.mxu0 0.0
    %2272 = vmatpush1.msra.mxu0 %v2254
    %2273 = vmatprep.subr.mxu0 0.0
    %2274 = vmatpush1.msra.mxu0 0.0
    %2275 = vmatprep.subr.mxu0 0.0
    %2276 = vmatpush1.msra.mxu0 0.0
    %2277 = vmatprep.subr.mxu0 0.0
    %2278 = vmatpush1.msra.mxu0 0.0
    %2279 = vmatprep.subr.mxu0 0.0
    %2280 = vmatpush1.msra.mxu0 0.0
    %2281 = vmatprep.subr.mxu0 0.0
    %2282 = vmatpush1.msra.mxu0 0.0
    %2283 = vmatprep.subr.mxu0 0.0
    %2284 = vmatpush1.msra.mxu0 0.0
    %2285 = vmatprep.subr.mxu0 0.0
    %2286 = vmatpush1.msra.mxu0 0.0
    %2287 = vmatprep.subr.mxu0 0.0
    %2288 = vmatpush1.msra.mxu0 0.0
    %2289 = vmatprep.subr.mxu0 0.0
    %2290 = vmatpush1.msra.mxu0 0.0
    %2291 = vmatprep.subr.mxu0 0.0
    %2292 = vmatpush1.msra.mxu0 0.0
    %2293 = vmatprep.subr.mxu0 0.0
    %2294 = vmatpush1.msra.mxu0 0.0
    %2295 = vmatprep.subr.mxu0 0.0
    %2296 = vmatpush1.msra.mxu0 0.0
    %2297 = vmatprep.subr.mxu0 0.0
    %2298 = vmatpush1.msra.mxu0 0.0
    %2299 = vmatprep.subr.mxu0 0.0
    %2300 = vmatpush1.msra.mxu0 0.0
    %2301 = vmatprep.subr.mxu0 0.0
    %2302 = vmatpush1.msra.mxu0 0.0
    %2303 = vmatprep.subr.mxu0 0.0
    %2304 = vmatpush1.msra.mxu0 0.0
    %2305 = vmatprep.subr.mxu0 0.0
    %2306 = vmatpush1.msra.mxu0 0.0
    %2307 = vmatprep.subr.mxu0 0.0
    %2308 = vmatpush1.msra.mxu0 0.0
    %2309 = vmatprep.subr.mxu0 0.0
    %2310 = vmatpush1.msra.mxu0 0.0
    %2311 = vmatprep.subr.mxu0 0.0
    %2312 = vmatpush1.msra.mxu0 0.0
    %2313 = vmatprep.subr.mxu0 0.0
    %2314 = vmatpush1.msra.mxu0 0.0
    %2315 = vmatprep.subr.mxu0 0.0
    %2316 = vmatpush1.msra.mxu0 0.0
    %2317 = vmatprep.subr.mxu0 0.0
    %2318 = vmatpush1.msra.mxu0 0.0
    %2319 = vmatprep.subr.mxu0 0.0
    %2320 = vmatpush1.msra.mxu0 0.0
    %2321 = vmatprep.subr.mxu0 0.0
    %2322 = vmatpush1.msra.mxu0 0.0
    %2323 = vmatprep.subr.mxu0 0.0
    %2324 = vmatpush1.msra.mxu0 0.0
    %2325 = vmatprep.subr.mxu0 0.0
    %2326 = vmatpush1.msra.mxu0 0.0
    %2327 = vmatprep.subr.mxu0 0.0
    %2328 = vmatpush1.msra.mxu0 0.0
    %2329 = vmatprep.subr.mxu0 0.0
    %2330 = vmatpush1.msra.mxu0 0.0
    %2331 = vmatprep.mubr.f32.mxu0 0.0
    %2332 = vmatmul.mubr.f32.gmra.mrb[0].mxu0 %v2259
    %v2333 = vpop.f32.mrb[0].mxu0
    %v2334 = vadd.f32 0.0, %v2333
    %v2335 = vpop.f32.mrb[0].mxu0
    %2336 = vmatprep.mubr.f32.mxu0 0.0
    %2337 = vmatmul.mubr.f32.gmra.mrb[0].mxu0 %v2262
    %v2338 = vpop.f32.mrb[0].mxu0
    %v2339 = vadd.f32 0.0, %v2338
    %v2340 = vpop.f32.mrb[0].mxu0
    %2341 = vmatprep.mubr.f32.mxu0 0.0
    %2342 = vmatmul.mubr.f32.gmra.mrb[0].mxu0 %v2265
    %v2343 = vpop.f32.mrb[0].mxu0
    %v2344 = vadd.f32 0.0, %v2343
    %v2345 = vpop.f32.mrb[0].mxu0
    %2346 = vdwg.mxu0
    %2347 = vrot.lane.b32.xlu0 %v825, 64
    %v2348 = vpop.permute.xlu0 %2347
    %2349 = vrot.lane.b32.xlu0 %v830, 64
    %v2350 = vpop.permute.xlu0 %2349
    %2351 = vrot.lane.b32.xlu0 %v833, 64
    %v2352 = vpop.permute.xlu0 %2351
    %v2357 = vsel %vm1788, %v2038, 0
    %v2360 = vsel %vm1788, %v2039, 0
    %v2363 = vsel %vm1788, %v2040, 0
    %2365 = vmatprep.subr.mxu0 0.0
    %2366 = vmatpush1.msra.mxu0 %v2348
    %2367 = vmatprep.subr.mxu0 0.0
    %2368 = vmatpush1.msra.mxu0 %v2350
    %2369 = vmatprep.subr.mxu0 0.0
    %2370 = vmatpush1.msra.mxu0 %v2352
    %2371 = vmatprep.subr.mxu0 0.0
    %2372 = vmatpush1.msra.mxu0 0.0
    %2373 = vmatprep.subr.mxu0 0.0
    %2374 = vmatpush1.msra.mxu0 0.0
    %2375 = vmatprep.subr.mxu0 0.0
    %2376 = vmatpush1.msra.mxu0 0.0
    %2377 = vmatprep.subr.mxu0 0.0
    %2378 = vmatpush1.msra.mxu0 0.0
    %2379 = vmatprep.subr.mxu0 0.0
    %2380 = vmatpush1.msra.mxu0 0.0
    %2381 = vmatprep.subr.mxu0 0.0
    %2382 = vmatpush1.msra.mxu0 0.0
    %2383 = vmatprep.subr.mxu0 0.0
    %2384 = vmatpush1.msra.mxu0 0.0
    %2385 = vmatprep.subr.mxu0 0.0
    %2386 = vmatpush1.msra.mxu0 0.0
    %2387 = vmatprep.subr.mxu0 0.0
    %2388 = vmatpush1.msra.mxu0 0.0
    %2389 = vmatprep.subr.mxu0 0.0
    %2390 = vmatpush1.msra.mxu0 0.0
    %2391 = vmatprep.subr.mxu0 0.0
    %2392 = vmatpush1.msra.mxu0 0.0
    %2393 = vmatprep.subr.mxu0 0.0
    %2394 = vmatpush1.msra.mxu0 0.0
    %2395 = vmatprep.subr.mxu0 0.0
    %2396 = vmatpush1.msra.mxu0 0.0
    %2397 = vmatprep.subr.mxu0 0.0
    %2398 = vmatpush1.msra.mxu0 0.0
    %2399 = vmatprep.subr.mxu0 0.0
    %2400 = vmatpush1.msra.mxu0 0.0
    %2401 = vmatprep.subr.mxu0 0.0
    %2402 = vmatpush1.msra.mxu0 0.0
    %2403 = vmatprep.subr.mxu0 0.0
    %2404 = vmatpush1.msra.mxu0 0.0
    %2405 = vmatprep.subr.mxu0 0.0
    %2406 = vmatpush1.msra.mxu0 0.0
    %2407 = vmatprep.subr.mxu0 0.0
    %2408 = vmatpush1.msra.mxu0 0.0
    %2409 = vmatprep.subr.mxu0 0.0
    %2410 = vmatpush1.msra.mxu0 0.0
    %2411 = vmatprep.subr.mxu0 0.0
    %2412 = vmatpush1.msra.mxu0 0.0
    %2413 = vmatprep.subr.mxu0 0.0
    %2414 = vmatpush1.msra.mxu0 0.0
    %2415 = vmatprep.subr.mxu0 0.0
    %2416 = vmatpush1.msra.mxu0 0.0
    %2417 = vmatprep.subr.mxu0 0.0
    %2418 = vmatpush1.msra.mxu0 0.0
    %2419 = vmatprep.subr.mxu0 0.0
    %2420 = vmatpush1.msra.mxu0 0.0
    %2421 = vmatprep.subr.mxu0 0.0
    %2422 = vmatpush1.msra.mxu0 0.0
    %2423 = vmatprep.subr.mxu0 0.0
    %2424 = vmatpush1.msra.mxu0 0.0
    %2425 = vmatprep.subr.mxu0 0.0
    %2426 = vmatpush1.msra.mxu0 0.0
    %2427 = vmatprep.subr.mxu0 0.0
    %2428 = vmatpush1.msra.mxu0 0.0
    %2429 = vmatprep.mubr.f32.mxu0 0.0
    %2430 = vmatmul.mubr.f32.gmra.mrb[0].mxu0 %v2357
    %v2431 = vpop.f32.mrb[0].mxu0
    %v2432 = vadd.f32 0.0, %v2431
    %v2433 = vpop.f32.mrb[0].mxu0
    %2434 = vmatprep.mubr.f32.mxu0 0.0
    %2435 = vmatmul.mubr.f32.gmra.mrb[0].mxu0 %v2360
    %v2436 = vpop.f32.mrb[0].mxu0
    %v2437 = vadd.f32 0.0, %v2436
    %v2438 = vpop.f32.mrb[0].mxu0
    %2439 = vmatprep.mubr.f32.mxu0 0.0
    %2440 = vmatmul.mubr.f32.gmra.mrb[0].mxu0 %v2363
    %v2441 = vpop.f32.mrb[0].mxu0
    %v2442 = vadd.f32 0.0, %v2441
    %v2443 = vpop.f32.mrb[0].mxu0
    %2444 = vdwg.mxu0
    %2445 = vrot.lane.b32.xlu0 %v838, 64
    %v2446 = vpop.permute.xlu0 %2445
    %2447 = vrot.lane.b32.xlu0 %v841, 64
    %v2448 = vpop.permute.xlu0 %2447
    %2449 = vrot.lane.b32.xlu0 %v846, 64
    %v2450 = vpop.permute.xlu0 %2449
    %v2455 = vsel %vm1788, %v2041, 0
    %v2458 = vsel %vm1788, %v2042, 0
    %v2461 = vsel %vm1788, %v2043, 0
    %2463 = vmatprep.subr.mxu0 0.0
    %2464 = vmatpush1.msra.mxu0 %v2446
    %2465 = vmatprep.subr.mxu0 0.0
    %2466 = vmatpush1.msra.mxu0 %v2448
    %2467 = vmatprep.subr.mxu0 0.0
    %2468 = vmatpush1.msra.mxu0 %v2450
    %2469 = vmatprep.subr.mxu0 0.0
    %2470 = vmatpush1.msra.mxu0 0.0
    %2471 = vmatprep.subr.mxu0 0.0
    %2472 = vmatpush1.msra.mxu0 0.0
    %2473 = vmatprep.subr.mxu0 0.0
    %2474 = vmatpush1.msra.mxu0 0.0
    %2475 = vmatprep.subr.mxu0 0.0
    %2476 = vmatpush1.msra.mxu0 0.0
    %2477 = vmatprep.subr.mxu0 0.0
    %2478 = vmatpush1.msra.mxu0 0.0
    %2479 = vmatprep.subr.mxu0 0.0
    %2480 = vmatpush1.msra.mxu0 0.0
    %2481 = vmatprep.subr.mxu0 0.0
    %2482 = vmatpush1.msra.mxu0 0.0
    %2483 = vmatprep.subr.mxu0 0.0
    %2484 = vmatpush1.msra.mxu0 0.0
    %2485 = vmatprep.subr.mxu0 0.0
    %2486 = vmatpush1.msra.mxu0 0.0
    %2487 = vmatprep.subr.mxu0 0.0
    %2488 = vmatpush1.msra.mxu0 0.0
    %2489 = vmatprep.subr.mxu0 0.0
    %2490 = vmatpush1.msra.mxu0 0.0
    %2491 = vmatprep.subr.mxu0 0.0
    %2492 = vmatpush1.msra.mxu0 0.0
    %2493 = vmatprep.subr.mxu0 0.0
    %2494 = vmatpush1.msra.mxu0 0.0
    %2495 = vmatprep.subr.mxu0 0.0
    %2496 = vmatpush1.msra.mxu0 0.0
    %2497 = vmatprep.subr.mxu0 0.0
    %2498 = vmatpush1.msra.mxu0 0.0
    %2499 = vmatprep.subr.mxu0 0.0
    %2500 = vmatpush1.msra.mxu0 0.0
    %2501 = vmatprep.subr.mxu0 0.0
    %2502 = vmatpush1.msra.mxu0 0.0
    %2503 = vmatprep.subr.mxu0 0.0
    %2504 = vmatpush1.msra.mxu0 0.0
    %2505 = vmatprep.subr.mxu0 0.0
    %2506 = vmatpush1.msra.mxu0 0.0
    %2507 = vmatprep.subr.mxu0 0.0
    %2508 = vmatpush1.msra.mxu0 0.0
    %2509 = vmatprep.subr.mxu0 0.0
    %2510 = vmatpush1.msra.mxu0 0.0
    %2511 = vmatprep.subr.mxu0 0.0
    %2512 = vmatpush1.msra.mxu0 0.0
    %2513 = vmatprep.subr.mxu0 0.0
    %2514 = vmatpush1.msra.mxu0 0.0
    %2515 = vmatprep.subr.mxu0 0.0
    %2516 = vmatpush1.msra.mxu0 0.0
    %2517 = vmatprep.subr.mxu0 0.0
    %2518 = vmatpush1.msra.mxu0 0.0
    %2519 = vmatprep.subr.mxu0 0.0
    %2520 = vmatpush1.msra.mxu0 0.0
    %2521 = vmatprep.subr.mxu0 0.0
    %2522 = vmatpush1.msra.mxu0 0.0
    %2523 = vmatprep.subr.mxu0 0.0
    %2524 = vmatpush1.msra.mxu0 0.0
    %2525 = vmatprep.subr.mxu0 0.0
    %2526 = vmatpush1.msra.mxu0 0.0
    %2527 = vmatprep.mubr.f32.mxu0 0.0
    %2528 = vmatmul.mubr.f32.gmra.mrb[0].mxu0 %v2455
    %v2529 = vpop.f32.mrb[0].mxu0
    %v2530 = vadd.f32 0.0, %v2529
    %v2531 = vpop.f32.mrb[0].mxu0
    %2532 = vmatprep.mubr.f32.mxu0 0.0
    %2533 = vmatmul.mubr.f32.gmra.mrb[0].mxu0 %v2458
    %v2534 = vpop.f32.mrb[0].mxu0
    %v2535 = vadd.f32 0.0, %v2534
    %v2536 = vpop.f32.mrb[0].mxu0
    %2537 = vmatprep.mubr.f32.mxu0 0.0
    %2538 = vmatmul.mubr.f32.gmra.mrb[0].mxu0 %v2461
    %v2539 = vpop.f32.mrb[0].mxu0
    %v2540 = vadd.f32 0.0, %v2539
    %v2541 = vpop.f32.mrb[0].mxu0
    %2542 = vdwg.mxu0
    %2543 = vrot.lane.b32.xlu0 %v849, 64
    %v2544 = vpop.permute.xlu0 %2543
    %2545 = vrot.lane.b32.xlu0 %v854, 64
    %v2546 = vpop.permute.xlu0 %2545
    %2547 = vrot.lane.b32.xlu0 %v857, 64
    %v2548 = vpop.permute.xlu0 %2547
    %v2553 = vsel %vm1788, %v2044, 0
    %v2556 = vsel %vm1788, %v2045, 0
    %v2559 = vsel %vm1788, %v2046, 0
    %2561 = vmatprep.subr.mxu0 0.0
    %2562 = vmatpush1.msra.mxu0 %v2544
    %2563 = vmatprep.subr.mxu0 0.0
    %2564 = vmatpush1.msra.mxu0 %v2546
    %2565 = vmatprep.subr.mxu0 0.0
    %2566 = vmatpush1.msra.mxu0 %v2548
    %2567 = vmatprep.subr.mxu0 0.0
    %2568 = vmatpush1.msra.mxu0 0.0
    %2569 = vmatprep.subr.mxu0 0.0
    %2570 = vmatpush1.msra.mxu0 0.0
    %2571 = vmatprep.subr.mxu0 0.0
    %2572 = vmatpush1.msra.mxu0 0.0
    %2573 = vmatprep.subr.mxu0 0.0
    %2574 = vmatpush1.msra.mxu0 0.0
    %2575 = vmatprep.subr.mxu0 0.0
    %2576 = vmatpush1.msra.mxu0 0.0
    %2577 = vmatprep.subr.mxu0 0.0
    %2578 = vmatpush1.msra.mxu0 0.0
    %2579 = vmatprep.subr.mxu0 0.0
    %2580 = vmatpush1.msra.mxu0 0.0
    %2581 = vmatprep.subr.mxu0 0.0
    %2582 = vmatpush1.msra.mxu0 0.0
    %2583 = vmatprep.subr.mxu0 0.0
    %2584 = vmatpush1.msra.mxu0 0.0
    %2585 = vmatprep.subr.mxu0 0.0
    %2586 = vmatpush1.msra.mxu0 0.0
    %2587 = vmatprep.subr.mxu0 0.0
    %2588 = vmatpush1.msra.mxu0 0.0
    %2589 = vmatprep.subr.mxu0 0.0
    %2590 = vmatpush1.msra.mxu0 0.0
    %2591 = vmatprep.subr.mxu0 0.0
    %2592 = vmatpush1.msra.mxu0 0.0
    %2593 = vmatprep.subr.mxu0 0.0
    %2594 = vmatpush1.msra.mxu0 0.0
    %2595 = vmatprep.subr.mxu0 0.0
    %2596 = vmatpush1.msra.mxu0 0.0
    %2597 = vmatprep.subr.mxu0 0.0
    %2598 = vmatpush1.msra.mxu0 0.0
    %2599 = vmatprep.subr.mxu0 0.0
    %2600 = vmatpush1.msra.mxu0 0.0
    %2601 = vmatprep.subr.mxu0 0.0
    %2602 = vmatpush1.msra.mxu0 0.0
    %2603 = vmatprep.subr.mxu0 0.0
    %2604 = vmatpush1.msra.mxu0 0.0
    %2605 = vmatprep.subr.mxu0 0.0
    %2606 = vmatpush1.msra.mxu0 0.0
    %2607 = vmatprep.subr.mxu0 0.0
    %2608 = vmatpush1.msra.mxu0 0.0
    %2609 = vmatprep.subr.mxu0 0.0
    %2610 = vmatpush1.msra.mxu0 0.0
    %2611 = vmatprep.subr.mxu0 0.0
    %2612 = vmatpush1.msra.mxu0 0.0
    %2613 = vmatprep.subr.mxu0 0.0
    %2614 = vmatpush1.msra.mxu0 0.0
    %2615 = vmatprep.subr.mxu0 0.0
    %2616 = vmatpush1.msra.mxu0 0.0
    %2617 = vmatprep.subr.mxu0 0.0
    %2618 = vmatpush1.msra.mxu0 0.0
    %2619 = vmatprep.subr.mxu0 0.0
    %2620 = vmatpush1.msra.mxu0 0.0
    %2621 = vmatprep.subr.mxu0 0.0
    %2622 = vmatpush1.msra.mxu0 0.0
    %2623 = vmatprep.subr.mxu0 0.0
    %2624 = vmatpush1.msra.mxu0 0.0
    %2625 = vmatprep.mubr.f32.mxu0 0.0
    %2626 = vmatmul.mubr.f32.gmra.mrb[0].mxu0 %v2553
    %v2627 = vpop.f32.mrb[0].mxu0
    %v2628 = vadd.f32 0.0, %v2627
    %v2629 = vpop.f32.mrb[0].mxu0
    %2630 = vmatprep.mubr.f32.mxu0 0.0
    %2631 = vmatmul.mubr.f32.gmra.mrb[0].mxu0 %v2556
    %v2632 = vpop.f32.mrb[0].mxu0
    %v2633 = vadd.f32 0.0, %v2632
    %v2634 = vpop.f32.mrb[0].mxu0
    %2635 = vmatprep.mubr.f32.mxu0 0.0
    %2636 = vmatmul.mubr.f32.gmra.mrb[0].mxu0 %v2559
    %v2637 = vpop.f32.mrb[0].mxu0
    %v2638 = vadd.f32 0.0, %v2637
    %v2639 = vpop.f32.mrb[0].mxu0
    %2640 = vdwg.mxu0
    %2641 = vrot.lane.b32.xlu0 %v862, 64
    %v2642 = vpop.permute.xlu0 %2641
    %2643 = vrot.lane.b32.xlu0 %v865, 64
    %v2644 = vpop.permute.xlu0 %2643
    %2645 = vrot.lane.b32.xlu0 %v870, 64
    %v2646 = vpop.permute.xlu0 %2645
    %v2651 = vsel %vm1788, %v2047, 0
    %v2654 = vsel %vm1788, %v2048, 0
    %v2657 = vsel %vm1788, %v2049, 0
    %2659 = vmatprep.subr.mxu0 0.0
    %2660 = vmatpush1.msra.mxu0 %v2642
    %2661 = vmatprep.subr.mxu0 0.0
    %2662 = vmatpush1.msra.mxu0 %v2644
    %2663 = vmatprep.subr.mxu0 0.0
    %2664 = vmatpush1.msra.mxu0 %v2646
    %2665 = vmatprep.subr.mxu0 0.0
    %2666 = vmatpush1.msra.mxu0 0.0
    %2667 = vmatprep.subr.mxu0 0.0
    %2668 = vmatpush1.msra.mxu0 0.0
    %2669 = vmatprep.subr.mxu0 0.0
    %2670 = vmatpush1.msra.mxu0 0.0
    %2671 = vmatprep.subr.mxu0 0.0
    %2672 = vmatpush1.msra.mxu0 0.0
    %2673 = vmatprep.subr.mxu0 0.0
    %2674 = vmatpush1.msra.mxu0 0.0
    %2675 = vmatprep.subr.mxu0 0.0
    %2676 = vmatpush1.msra.mxu0 0.0
    %2677 = vmatprep.subr.mxu0 0.0
    %2678 = vmatpush1.msra.mxu0 0.0
    %2679 = vmatprep.subr.mxu0 0.0
    %2680 = vmatpush1.msra.mxu0 0.0
    %2681 = vmatprep.subr.mxu0 0.0
    %2682 = vmatpush1.msra.mxu0 0.0
    %2683 = vmatprep.subr.mxu0 0.0
    %2684 = vmatpush1.msra.mxu0 0.0
    %2685 = vmatprep.subr.mxu0 0.0
    %2686 = vmatpush1.msra.mxu0 0.0
    %2687 = vmatprep.subr.mxu0 0.0
    %2688 = vmatpush1.msra.mxu0 0.0
    %2689 = vmatprep.subr.mxu0 0.0
    %2690 = vmatpush1.msra.mxu0 0.0
    %2691 = vmatprep.subr.mxu0 0.0
    %2692 = vmatpush1.msra.mxu0 0.0
    %2693 = vmatprep.subr.mxu0 0.0
    %2694 = vmatpush1.msra.mxu0 0.0
    %2695 = vmatprep.subr.mxu0 0.0
    %2696 = vmatpush1.msra.mxu0 0.0
    %2697 = vmatprep.subr.mxu0 0.0
    %2698 = vmatpush1.msra.mxu0 0.0
    %2699 = vmatprep.subr.mxu0 0.0
    %2700 = vmatpush1.msra.mxu0 0.0
    %2701 = vmatprep.subr.mxu0 0.0
    %2702 = vmatpush1.msra.mxu0 0.0
    %2703 = vmatprep.subr.mxu0 0.0
    %2704 = vmatpush1.msra.mxu0 0.0
    %2705 = vmatprep.subr.mxu0 0.0
    %2706 = vmatpush1.msra.mxu0 0.0
    %2707 = vmatprep.subr.mxu0 0.0
    %2708 = vmatpush1.msra.mxu0 0.0
    %2709 = vmatprep.subr.mxu0 0.0
    %2710 = vmatpush1.msra.mxu0 0.0
    %2711 = vmatprep.subr.mxu0 0.0
    %2712 = vmatpush1.msra.mxu0 0.0
    %2713 = vmatprep.subr.mxu0 0.0
    %2714 = vmatpush1.msra.mxu0 0.0
    %2715 = vmatprep.subr.mxu0 0.0
    %2716 = vmatpush1.msra.mxu0 0.0
    %2717 = vmatprep.subr.mxu0 0.0
    %2718 = vmatpush1.msra.mxu0 0.0
    %2719 = vmatprep.subr.mxu0 0.0
    %2720 = vmatpush1.msra.mxu0 0.0
    %2721 = vmatprep.subr.mxu0 0.0
    %2722 = vmatpush1.msra.mxu0 0.0
    %2723 = vmatprep.mubr.f32.mxu0 0.0
    %2724 = vmatmul.mubr.f32.gmra.mrb[0].mxu0 %v2651
    %v2725 = vpop.f32.mrb[0].mxu0
    %v2726 = vadd.f32 0.0, %v2725
    %v2727 = vpop.f32.mrb[0].mxu0
    %2728 = vmatprep.mubr.f32.mxu0 0.0
    %2729 = vmatmul.mubr.f32.gmra.mrb[0].mxu0 %v2654
    %v2730 = vpop.f32.mrb[0].mxu0
    %v2731 = vadd.f32 0.0, %v2730
    %v2732 = vpop.f32.mrb[0].mxu0
    %2733 = vmatprep.mubr.f32.mxu0 0.0
    %2734 = vmatmul.mubr.f32.gmra.mrb[0].mxu0 %v2657
    %v2735 = vpop.f32.mrb[0].mxu0
    %v2736 = vadd.f32 0.0, %v2735
    %v2737 = vpop.f32.mrb[0].mxu0
    %2738 = vdwg.mxu0
    %2739 = vrot.lane.b32.xlu0 %v873, 64
    %v2740 = vpop.permute.xlu0 %2739
    %2741 = vrot.lane.b32.xlu0 %v878, 64
    %v2742 = vpop.permute.xlu0 %2741
    %2743 = vrot.lane.b32.xlu0 %v881, 64
    %v2744 = vpop.permute.xlu0 %2743
    %v2749 = vsel %vm1788, %v2050, 0
    %v2752 = vsel %vm1788, %v2051, 0
    %v2755 = vsel %vm1788, %v2052, 0
    %2757 = vmatprep.subr.mxu0 0.0
    %2758 = vmatpush1.msra.mxu0 %v2740
    %2759 = vmatprep.subr.mxu0 0.0
    %2760 = vmatpush1.msra.mxu0 %v2742
    %2761 = vmatprep.subr.mxu0 0.0
    %2762 = vmatpush1.msra.mxu0 %v2744
    %2763 = vmatprep.subr.mxu0 0.0
    %2764 = vmatpush1.msra.mxu0 0.0
    %2765 = vmatprep.subr.mxu0 0.0
    %2766 = vmatpush1.msra.mxu0 0.0
    %2767 = vmatprep.subr.mxu0 0.0
    %2768 = vmatpush1.msra.mxu0 0.0
    %2769 = vmatprep.subr.mxu0 0.0
    %2770 = vmatpush1.msra.mxu0 0.0
    %2771 = vmatprep.subr.mxu0 0.0
    %2772 = vmatpush1.msra.mxu0 0.0
    %2773 = vmatprep.subr.mxu0 0.0
    %2774 = vmatpush1.msra.mxu0 0.0
    %2775 = vmatprep.subr.mxu0 0.0
    %2776 = vmatpush1.msra.mxu0 0.0
    %2777 = vmatprep.subr.mxu0 0.0
    %2778 = vmatpush1.msra.mxu0 0.0
    %2779 = vmatprep.subr.mxu0 0.0
    %2780 = vmatpush1.msra.mxu0 0.0
    %2781 = vmatprep.subr.mxu0 0.0
    %2782 = vmatpush1.msra.mxu0 0.0
    %2783 = vmatprep.subr.mxu0 0.0
    %2784 = vmatpush1.msra.mxu0 0.0
    %2785 = vmatprep.subr.mxu0 0.0
    %2786 = vmatpush1.msra.mxu0 0.0
    %2787 = vmatprep.subr.mxu0 0.0
    %2788 = vmatpush1.msra.mxu0 0.0
    %2789 = vmatprep.subr.mxu0 0.0
    %2790 = vmatpush1.msra.mxu0 0.0
    %2791 = vmatprep.subr.mxu0 0.0
    %2792 = vmatpush1.msra.mxu0 0.0
    %2793 = vmatprep.subr.mxu0 0.0
    %2794 = vmatpush1.msra.mxu0 0.0
    %2795 = vmatprep.subr.mxu0 0.0
    %2796 = vmatpush1.msra.mxu0 0.0
    %2797 = vmatprep.subr.mxu0 0.0
    %2798 = vmatpush1.msra.mxu0 0.0
    %2799 = vmatprep.subr.mxu0 0.0
    %2800 = vmatpush1.msra.mxu0 0.0
    %2801 = vmatprep.subr.mxu0 0.0
    %2802 = vmatpush1.msra.mxu0 0.0
    %2803 = vmatprep.subr.mxu0 0.0
    %2804 = vmatpush1.msra.mxu0 0.0
    %2805 = vmatprep.subr.mxu0 0.0
    %2806 = vmatpush1.msra.mxu0 0.0
    %2807 = vmatprep.subr.mxu0 0.0
    %2808 = vmatpush1.msra.mxu0 0.0
    %2809 = vmatprep.subr.mxu0 0.0
    %2810 = vmatpush1.msra.mxu0 0.0
    %2811 = vmatprep.subr.mxu0 0.0
    %2812 = vmatpush1.msra.mxu0 0.0
    %2813 = vmatprep.subr.mxu0 0.0
    %2814 = vmatpush1.msra.mxu0 0.0
    %2815 = vmatprep.subr.mxu0 0.0
    %2816 = vmatpush1.msra.mxu0 0.0
    %2817 = vmatprep.subr.mxu0 0.0
    %2818 = vmatpush1.msra.mxu0 0.0
    %2819 = vmatprep.subr.mxu0 0.0
    %2820 = vmatpush1.msra.mxu0 0.0
    %2821 = vmatprep.mubr.f32.mxu0 0.0
    %2822 = vmatmul.mubr.f32.gmra.mrb[0].mxu0 %v2749
    %v2823 = vpop.f32.mrb[0].mxu0
    %v2824 = vadd.f32 0.0, %v2823
    %v2825 = vpop.f32.mrb[0].mxu0
    %2826 = vmatprep.mubr.f32.mxu0 0.0
    %2827 = vmatmul.mubr.f32.gmra.mrb[0].mxu0 %v2752
    %v2828 = vpop.f32.mrb[0].mxu0
    %v2829 = vadd.f32 0.0, %v2828
    %v2830 = vpop.f32.mrb[0].mxu0
    %2831 = vmatprep.mubr.f32.mxu0 0.0
    %2832 = vmatmul.mubr.f32.gmra.mrb[0].mxu0 %v2755
    %v2833 = vpop.f32.mrb[0].mxu0
    %v2834 = vadd.f32 0.0, %v2833
    %v2835 = vpop.f32.mrb[0].mxu0
    %2836 = vdwg.mxu0
    %v2837 = vpack.c.bf16 %v2143, %v2138
    %v2838 = vpack.c.bf16 %v2236, %v2148
    %v2839 = vpack.c.bf16 %v2246, %v2241
    %v2840 = vpack.c.bf16 %v2339, %v2334
    %v2841 = vpack.c.bf16 %v2432, %v2344
    %v2842 = vpack.c.bf16 %v2442, %v2437
    %v2843 = vpack.c.bf16 %v2535, %v2530
    %v2844 = vpack.c.bf16 %v2628, %v2540
    %v2845 = vpack.c.bf16 %v2638, %v2633
    %v2846 = vpack.c.bf16 %v2731, %v2726
    %v2847 = vpack.c.bf16 %v2824, %v2736
    %v2848 = vpack.c.bf16 %v2834, %v2829
    %v2849 = vld [vmem:[%s8] sm:$0xf]
    %v2850 = vld [vmem:[%s8 + $0x4] sm:$0xf]
    %v2851 = vld [vmem:[%s8 + $0x8] sm:$0xf]
    %v2852 = vld [vmem:[%s8 + $0xc] sm:$0xf]
    %v2857 = vunpack.c.l.b16 %v2849
    %v2858 = vunpack.c.l.b16 %v2850
    %v2859 = vunpack.c.l.b16 %v2851
    %v2860 = vunpack.c.l.b16 %v2852
    %v2861 = vpack.c.b16 %v2858, %v2857
    %v2862 = vpack.c.b16 %v2860, %v2859
    %v2866 = vsel %vm718, %v2837, 0
    %v2869 = vsel %vm718, %v2838, 0
    %v2872 = vsel %vm718, %v2839, 0
    %v2875 = vsel %vm718, %v2840, 0
    %v2878 = vsel %vm718, %v2841, 0
    %v2881 = vsel %vm718, %v2842, 0
    %v2884 = vsel %vm718, %v2843, 0
    %v2887 = vsel %vm718, %v2844, 0
    %v2890 = vsel %vm718, %v2845, 0
    %v2893 = vsel %vm718, %v2846, 0
    %v2896 = vsel %vm718, %v2847, 0
    %v2899 = vsel %vm718, %v2848, 0
    %2901 = vmatprep.subr.bf16.mxu0 0
    %2902 = vmatpush1.bf16.msra.mxu0 %v2861
    %2903 = vmatprep.subr.bf16.mxu0 0
    %2904 = vmatpush1.bf16.msra.mxu0 %v2862
    %2905 = vmatprep.subr.bf16.mxu0 0
    %2906 = vmatpush1.bf16.msra.mxu0 0
    %2907 = vmatprep.subr.bf16.mxu0 0
    %2908 = vmatpush1.bf16.msra.mxu0 0
    %2909 = vmatprep.subr.bf16.mxu0 0
    %2910 = vmatpush1.bf16.msra.mxu0 0
    %2911 = vmatprep.subr.bf16.mxu0 0
    %2912 = vmatpush1.bf16.msra.mxu0 0
    %2913 = vmatprep.subr.bf16.mxu0 0
    %2914 = vmatpush1.bf16.msra.mxu0 0
    %2915 = vmatprep.subr.bf16.mxu0 0
    %2916 = vmatpush1.bf16.msra.mxu0 0
    %2917 = vmatprep.subr.bf16.mxu0 0
    %2918 = vmatpush1.bf16.msra.mxu0 0
    %2919 = vmatprep.subr.bf16.mxu0 0
    %2920 = vmatpush1.bf16.msra.mxu0 0
    %2921 = vmatprep.subr.bf16.mxu0 0
    %2922 = vmatpush1.bf16.msra.mxu0 0
    %2923 = vmatprep.subr.bf16.mxu0 0
    %2924 = vmatpush1.bf16.msra.mxu0 0
    %2925 = vmatprep.subr.bf16.mxu0 0
    %2926 = vmatpush1.bf16.msra.mxu0 0
    %2927 = vmatprep.subr.bf16.mxu0 0
    %2928 = vmatpush1.bf16.msra.mxu0 0
    %2929 = vmatprep.subr.bf16.mxu0 0
    %2930 = vmatpush1.bf16.msra.mxu0 0
    %2931 = vmatprep.subr.bf16.mxu0 0
    %2932 = vmatpush1.bf16.msra.mxu0 0
    %2933 = vmatprep.mubr.bf16.mxu0 0
    %2934 = vmatmul.mubr.bf16.gmra.mrb[0].mxu0 %v2866
    %v2935 = vpop.f32.mrb[0].mxu0
    %v2936 = vadd.f32 0.0, %v2935
    %v2937 = vpop.f32.mrb[0].mxu0
    %v2938 = vpop.f32.mrb[0].mxu0
    %v2939 = vadd.f32 0.0, %v2938
    %v2940 = vpop.f32.mrb[0].mxu0
    %2941 = vmatprep.mubr.bf16.mxu0 0
    %2942 = vmatmul.mubr.bf16.gmra.mrb[0].mxu0 %v2869
    %v2943 = vpop.f32.mrb[0].mxu0
    %v2944 = vadd.f32 0.0, %v2943
    %v2945 = vpop.f32.mrb[0].mxu0
    %v2946 = vpop.f32.mrb[0].mxu0
    %v2947 = vadd.f32 0.0, %v2946
    %v2948 = vpop.f32.mrb[0].mxu0
    %2949 = vmatprep.mubr.bf16.mxu0 0
    %2950 = vmatmul.mubr.bf16.gmra.mrb[0].mxu0 %v2872
    %v2951 = vpop.f32.mrb[0].mxu0
    %v2952 = vadd.f32 0.0, %v2951
    %v2953 = vpop.f32.mrb[0].mxu0
    %v2954 = vpop.f32.mrb[0].mxu0
    %v2955 = vadd.f32 0.0, %v2954
    %v2956 = vpop.f32.mrb[0].mxu0
    %2957 = vmatprep.mubr.bf16.mxu0 0
    %2958 = vmatmul.mubr.bf16.gmra.mrb[0].mxu0 %v2875
    %v2959 = vpop.f32.mrb[0].mxu0
    %v2960 = vadd.f32 0.0, %v2959
    %v2961 = vpop.f32.mrb[0].mxu0
    %v2962 = vpop.f32.mrb[0].mxu0
    %v2963 = vadd.f32 0.0, %v2962
    %v2964 = vpop.f32.mrb[0].mxu0
    %2965 = vmatprep.mubr.bf16.mxu0 0
    %2966 = vmatmul.mubr.bf16.gmra.mrb[0].mxu0 %v2878
    %v2967 = vpop.f32.mrb[0].mxu0
    %v2968 = vadd.f32 0.0, %v2967
    %v2969 = vpop.f32.mrb[0].mxu0
    %v2970 = vpop.f32.mrb[0].mxu0
    %v2971 = vadd.f32 0.0, %v2970
    %v2972 = vpop.f32.mrb[0].mxu0
    %2973 = vmatprep.mubr.bf16.mxu0 0
    %2974 = vmatmul.mubr.bf16.gmra.mrb[0].mxu0 %v2881
    %v2975 = vpop.f32.mrb[0].mxu0
    %v2976 = vadd.f32 0.0, %v2975
    %v2977 = vpop.f32.mrb[0].mxu0
    %v2978 = vpop.f32.mrb[0].mxu0
    %v2979 = vadd.f32 0.0, %v2978
    %v2980 = vpop.f32.mrb[0].mxu0
    %2981 = vmatprep.mubr.bf16.mxu0 0
    %2982 = vmatmul.mubr.bf16.gmra.mrb[0].mxu0 %v2884
    %v2983 = vpop.f32.mrb[0].mxu0
    %v2984 = vadd.f32 0.0, %v2983
    %v2985 = vpop.f32.mrb[0].mxu0
    %v2986 = vpop.f32.mrb[0].mxu0
    %v2987 = vadd.f32 0.0, %v2986
    %v2988 = vpop.f32.mrb[0].mxu0
    %2989 = vmatprep.mubr.bf16.mxu0 0
    %2990 = vmatmul.mubr.bf16.gmra.mrb[0].mxu0 %v2887
    %v2991 = vpop.f32.mrb[0].mxu0
    %v2992 = vadd.f32 0.0, %v2991
    %v2993 = vpop.f32.mrb[0].mxu0
    %v2994 = vpop.f32.mrb[0].mxu0
    %v2995 = vadd.f32 0.0, %v2994
    %v2996 = vpop.f32.mrb[0].mxu0
    %2997 = vmatprep.mubr.bf16.mxu0 0
    %2998 = vmatmul.mubr.bf16.gmra.mrb[0].mxu0 %v2890
    %v2999 = vpop.f32.mrb[0].mxu0
    %v3000 = vadd.f32 0.0, %v2999
    %v3001 = vpop.f32.mrb[0].mxu0
    %v3002 = vpop.f32.mrb[0].mxu0
    %v3003 = vadd.f32 0.0, %v3002
    %v3004 = vpop.f32.mrb[0].mxu0
    %3005 = vmatprep.mubr.bf16.mxu0 0
    %3006 = vmatmul.mubr.bf16.gmra.mrb[0].mxu0 %v2893
    %v3007 = vpop.f32.mrb[0].mxu0
    %v3008 = vadd.f32 0.0, %v3007
    %v3009 = vpop.f32.mrb[0].mxu0
    %v3010 = vpop.f32.mrb[0].mxu0
    %v3011 = vadd.f32 0.0, %v3010
    %v3012 = vpop.f32.mrb[0].mxu0
    %3013 = vmatprep.mubr.bf16.mxu0 0
    %3014 = vmatmul.mubr.bf16.gmra.mrb[0].mxu0 %v2896
    %v3015 = vpop.f32.mrb[0].mxu0
    %v3016 = vadd.f32 0.0, %v3015
    %v3017 = vpop.f32.mrb[0].mxu0
    %v3018 = vpop.f32.mrb[0].mxu0
    %v3019 = vadd.f32 0.0, %v3018
    %v3020 = vpop.f32.mrb[0].mxu0
    %3021 = vmatprep.mubr.bf16.mxu0 0
    %3022 = vmatmul.mubr.bf16.gmra.mrb[0].mxu0 %v2899
    %v3023 = vpop.f32.mrb[0].mxu0
    %v3024 = vadd.f32 0.0, %v3023
    %v3025 = vpop.f32.mrb[0].mxu0
    %v3026 = vpop.f32.mrb[0].mxu0
    %v3027 = vadd.f32 0.0, %v3026
    %v3028 = vpop.f32.mrb[0].mxu0
    %3029 = vdwg.mxu0
    %v3030 = vadd.f32 %v650, %v2936
    %v3031 = vadd.f32 %v651, %v2939
    %v3032 = vadd.f32 %v652, %v2944
    %v3033 = vadd.f32 %v653, %v2947
    %v3034 = vadd.f32 %v654, %v2952
    %v3035 = vadd.f32 %v655, %v2955
    %v3036 = vadd.f32 %v656, %v2960
    %v3037 = vadd.f32 %v657, %v2963
    %v3038 = vadd.f32 %v658, %v2968
    %v3039 = vadd.f32 %v659, %v2971
    %v3040 = vadd.f32 %v660, %v2976
    %v3041 = vadd.f32 %v661, %v2979
    %v3042 = vadd.f32 %v662, %v2984
    %v3043 = vadd.f32 %v663, %v2987
    %v3044 = vadd.f32 %v664, %v2992
    %v3045 = vadd.f32 %v665, %v2995
    %v3046 = vadd.f32 %v666, %v3000
    %v3047 = vadd.f32 %v667, %v3003
    %v3048 = vadd.f32 %v668, %v3008
    %v3049 = vadd.f32 %v669, %v3011
    %v3050 = vadd.f32 %v670, %v3016
    %v3051 = vadd.f32 %v671, %v3019
    %v3052 = vadd.f32 %v672, %v3024
    %v3053 = vadd.f32 %v673, %v3027
    %v3054 = vsel %vm718, %v3030, 0.0
    %3055 = vadd.xlane.f32.xlu0 %v3054
    %v3056 = vpop.xlane.xlu0 %3055
    %v3057 = vsel %vm718, %v3031, 0.0
    %3058 = vadd.xlane.f32.xlu0 %v3057
    %v3059 = vpop.xlane.xlu0 %3058
    %v3060 = vsel %vm718, %v3032, 0.0
    %3061 = vadd.xlane.f32.xlu0 %v3060
    %v3062 = vpop.xlane.xlu0 %3061
    %v3063 = vsel %vm718, %v3033, 0.0
    %3064 = vadd.xlane.f32.xlu0 %v3063
    %v3065 = vpop.xlane.xlu0 %3064
    %v3066 = vsel %vm718, %v3034, 0.0
    %3067 = vadd.xlane.f32.xlu0 %v3066
    %v3068 = vpop.xlane.xlu0 %3067
    %v3069 = vsel %vm718, %v3035, 0.0
    %3070 = vadd.xlane.f32.xlu0 %v3069
    %v3071 = vpop.xlane.xlu0 %3070
    %v3072 = vsel %vm718, %v3036, 0.0
    %3073 = vadd.xlane.f32.xlu0 %v3072
    %v3074 = vpop.xlane.xlu0 %3073
    %v3075 = vsel %vm718, %v3037, 0.0
    %3076 = vadd.xlane.f32.xlu0 %v3075
    %v3077 = vpop.xlane.xlu0 %3076
    %v3078 = vsel %vm718, %v3038, 0.0
    %3079 = vadd.xlane.f32.xlu0 %v3078
    %v3080 = vpop.xlane.xlu0 %3079
    %v3081 = vsel %vm718, %v3039, 0.0
    %3082 = vadd.xlane.f32.xlu0 %v3081
    %v3083 = vpop.xlane.xlu0 %3082
    %v3084 = vsel %vm718, %v3040, 0.0
    %3085 = vadd.xlane.f32.xlu0 %v3084
    %v3086 = vpop.xlane.xlu0 %3085
    %v3087 = vsel %vm718, %v3041, 0.0
    %3088 = vadd.xlane.f32.xlu0 %v3087
    %v3089 = vpop.xlane.xlu0 %3088
    %v3090 = vsel %vm718, %v3042, 0.0
    %3091 = vadd.xlane.f32.xlu0 %v3090
    %v3092 = vpop.xlane.xlu0 %3091
    %v3093 = vsel %vm718, %v3043, 0.0
    %3094 = vadd.xlane.f32.xlu0 %v3093
    %v3095 = vpop.xlane.xlu0 %3094
    %v3096 = vsel %vm718, %v3044, 0.0
    %3097 = vadd.xlane.f32.xlu0 %v3096
    %v3098 = vpop.xlane.xlu0 %3097
    %v3099 = vsel %vm718, %v3045, 0.0
    %3100 = vadd.xlane.f32.xlu0 %v3099
    %v3101 = vpop.xlane.xlu0 %3100
    %v3102 = vsel %vm718, %v3046, 0.0
    %3103 = vadd.xlane.f32.xlu0 %v3102
    %v3104 = vpop.xlane.xlu0 %3103
    %v3105 = vsel %vm718, %v3047, 0.0
    %3106 = vadd.xlane.f32.xlu0 %v3105
    %v3107 = vpop.xlane.xlu0 %3106
    %v3108 = vsel %vm718, %v3048, 0.0
    %3109 = vadd.xlane.f32.xlu0 %v3108
    %v3110 = vpop.xlane.xlu0 %3109
    %v3111 = vsel %vm718, %v3049, 0.0
    %3112 = vadd.xlane.f32.xlu0 %v3111
    %v3113 = vpop.xlane.xlu0 %3112
    %v3114 = vsel %vm718, %v3050, 0.0
    %3115 = vadd.xlane.f32.xlu0 %v3114
    %v3116 = vpop.xlane.xlu0 %3115
    %v3117 = vsel %vm718, %v3051, 0.0
    %3118 = vadd.xlane.f32.xlu0 %v3117
    %v3119 = vpop.xlane.xlu0 %3118
    %v3120 = vsel %vm718, %v3052, 0.0
    %3121 = vadd.xlane.f32.xlu0 %v3120
    %v3122 = vpop.xlane.xlu0 %3121
    %v3123 = vsel %vm718, %v3053, 0.0
    %3124 = vadd.xlane.f32.xlu0 %v3123
    %v3125 = vpop.xlane.xlu0 %3124
    %v3126 = vrcp.pop 32.0
    %v3127 = vmul.f32 %v3056, %v3126
    %v3128 = vmul.f32 %v3059, %v3126
    %v3129 = vmul.f32 %v3062, %v3126
    %v3130 = vmul.f32 %v3065, %v3126
    %v3131 = vmul.f32 %v3068, %v3126
    %v3132 = vmul.f32 %v3071, %v3126
    %v3133 = vmul.f32 %v3074, %v3126
    %v3134 = vmul.f32 %v3077, %v3126
    %v3135 = vmul.f32 %v3080, %v3126
    %v3136 = vmul.f32 %v3083, %v3126
    %v3137 = vmul.f32 %v3086, %v3126
    %v3138 = vmul.f32 %v3089, %v3126
    %v3139 = vmul.f32 %v3092, %v3126
    %v3140 = vmul.f32 %v3095, %v3126
    %v3141 = vmul.f32 %v3098, %v3126
    %v3142 = vmul.f32 %v3101, %v3126
    %v3143 = vmul.f32 %v3104, %v3126
    %v3144 = vmul.f32 %v3107, %v3126
    %v3145 = vmul.f32 %v3110, %v3126
    %v3146 = vmul.f32 %v3113, %v3126
    %v3147 = vmul.f32 %v3116, %v3126
    %v3148 = vmul.f32 %v3119, %v3126
    %v3149 = vmul.f32 %v3122, %v3126
    %v3150 = vmul.f32 %v3125, %v3126
    %v3151 = vsub.f32 %v3030, %v3127
    %v3152 = vsub.f32 %v3031, %v3128
    %v3153 = vsub.f32 %v3032, %v3129
    %v3154 = vsub.f32 %v3033, %v3130
    %v3155 = vsub.f32 %v3034, %v3131
    %v3156 = vsub.f32 %v3035, %v3132
    %v3157 = vsub.f32 %v3036, %v3133
    %v3158 = vsub.f32 %v3037, %v3134
    %v3159 = vsub.f32 %v3038, %v3135
    %v3160 = vsub.f32 %v3039, %v3136
    %v3161 = vsub.f32 %v3040, %v3137
    %v3162 = vsub.f32 %v3041, %v3138
    %v3163 = vsub.f32 %v3042, %v3139
    %v3164 = vsub.f32 %v3043, %v3140
    %v3165 = vsub.f32 %v3044, %v3141
    %v3166 = vsub.f32 %v3045, %v3142
    %v3167 = vsub.f32 %v3046, %v3143
    %v3168 = vsub.f32 %v3047, %v3144
    %v3169 = vsub.f32 %v3048, %v3145
    %v3170 = vsub.f32 %v3049, %v3146
    %v3171 = vsub.f32 %v3050, %v3147
    %v3172 = vsub.f32 %v3051, %v3148
    %v3173 = vsub.f32 %v3052, %v3149
    %v3174 = vsub.f32 %v3053, %v3150
    %v3175 = vmul.f32 %v3151, %v3151
    %v3176 = vmul.f32 %v3152, %v3152
    %v3177 = vmul.f32 %v3153, %v3153
    %v3178 = vmul.f32 %v3154, %v3154
    %v3179 = vmul.f32 %v3155, %v3155
    %v3180 = vmul.f32 %v3156, %v3156
    %v3181 = vmul.f32 %v3157, %v3157
    %v3182 = vmul.f32 %v3158, %v3158
    %v3183 = vmul.f32 %v3159, %v3159
    %v3184 = vmul.f32 %v3160, %v3160
    %v3185 = vmul.f32 %v3161, %v3161
    %v3186 = vmul.f32 %v3162, %v3162
    %v3187 = vmul.f32 %v3163, %v3163
    %v3188 = vmul.f32 %v3164, %v3164
    %v3189 = vmul.f32 %v3165, %v3165
    %v3190 = vmul.f32 %v3166, %v3166
    %v3191 = vmul.f32 %v3167, %v3167
    %v3192 = vmul.f32 %v3168, %v3168
    %v3193 = vmul.f32 %v3169, %v3169
    %v3194 = vmul.f32 %v3170, %v3170
    %v3195 = vmul.f32 %v3171, %v3171
    %v3196 = vmul.f32 %v3172, %v3172
    %v3197 = vmul.f32 %v3173, %v3173
    %v3198 = vmul.f32 %v3174, %v3174
    %v3199 = vsel %vm718, %v3175, 0.0
    %3200 = vadd.xlane.f32.xlu0 %v3199
    %v3201 = vpop.xlane.xlu0 %3200
    %v3202 = vsel %vm718, %v3176, 0.0
    %3203 = vadd.xlane.f32.xlu0 %v3202
    %v3204 = vpop.xlane.xlu0 %3203
    %v3205 = vsel %vm718, %v3177, 0.0
    %3206 = vadd.xlane.f32.xlu0 %v3205
    %v3207 = vpop.xlane.xlu0 %3206
    %v3208 = vsel %vm718, %v3178, 0.0
    %3209 = vadd.xlane.f32.xlu0 %v3208
    %v3210 = vpop.xlane.xlu0 %3209
    %v3211 = vsel %vm718, %v3179, 0.0
    %3212 = vadd.xlane.f32.xlu0 %v3211
    %v3213 = vpop.xlane.xlu0 %3212
    %v3214 = vsel %vm718, %v3180, 0.0
    %3215 = vadd.xlane.f32.xlu0 %v3214
    %v3216 = vpop.xlane.xlu0 %3215
    %v3217 = vsel %vm718, %v3181, 0.0
    %3218 = vadd.xlane.f32.xlu0 %v3217
    %v3219 = vpop.xlane.xlu0 %3218
    %v3220 = vsel %vm718, %v3182, 0.0
    %3221 = vadd.xlane.f32.xlu0 %v3220
    %v3222 = vpop.xlane.xlu0 %3221
    %v3223 = vsel %vm718, %v3183, 0.0
    %3224 = vadd.xlane.f32.xlu0 %v3223
    %v3225 = vpop.xlane.xlu0 %3224
    %v3226 = vsel %vm718, %v3184, 0.0
    %3227 = vadd.xlane.f32.xlu0 %v3226
    %v3228 = vpop.xlane.xlu0 %3227
    %v3229 = vsel %vm718, %v3185, 0.0
    %3230 = vadd.xlane.f32.xlu0 %v3229
    %v3231 = vpop.xlane.xlu0 %3230
    %v3232 = vsel %vm718, %v3186, 0.0
    %3233 = vadd.xlane.f32.xlu0 %v3232
    %v3234 = vpop.xlane.xlu0 %3233
    %v3235 = vsel %vm718, %v3187, 0.0
    %3236 = vadd.xlane.f32.xlu0 %v3235
    %v3237 = vpop.xlane.xlu0 %3236
    %v3238 = vsel %vm718, %v3188, 0.0
    %3239 = vadd.xlane.f32.xlu0 %v3238
    %v3240 = vpop.xlane.xlu0 %3239
    %v3241 = vsel %vm718, %v3189, 0.0
    %3242 = vadd.xlane.f32.xlu0 %v3241
    %v3243 = vpop.xlane.xlu0 %3242
    %v3244 = vsel %vm718, %v3190, 0.0
    %3245 = vadd.xlane.f32.xlu0 %v3244
    %v3246 = vpop.xlane.xlu0 %3245
    %v3247 = vsel %vm718, %v3191, 0.0
    %3248 = vadd.xlane.f32.xlu0 %v3247
    %v3249 = vpop.xlane.xlu0 %3248
    %v3250 = vsel %vm718, %v3192, 0.0
    %3251 = vadd.xlane.f32.xlu0 %v3250
    %v3252 = vpop.xlane.xlu0 %3251
    %v3253 = vsel %vm718, %v3193, 0.0
    %3254 = vadd.xlane.f32.xlu0 %v3253
    %v3255 = vpop.xlane.xlu0 %3254
    %v3256 = vsel %vm718, %v3194, 0.0
    %3257 = vadd.xlane.f32.xlu0 %v3256
    %v3258 = vpop.xlane.xlu0 %3257
    %v3259 = vsel %vm718, %v3195, 0.0
    %3260 = vadd.xlane.f32.xlu0 %v3259
    %v3261 = vpop.xlane.xlu0 %3260
    %v3262 = vsel %vm718, %v3196, 0.0
    %3263 = vadd.xlane.f32.xlu0 %v3262
    %v3264 = vpop.xlane.xlu0 %3263
    %v3265 = vsel %vm718, %v3197, 0.0
    %3266 = vadd.xlane.f32.xlu0 %v3265
    %v3267 = vpop.xlane.xlu0 %3266
    %v3268 = vsel %vm718, %v3198, 0.0
    %3269 = vadd.xlane.f32.xlu0 %v3268
    %v3270 = vpop.xlane.xlu0 %3269
    %v3271 = vmul.f32 %v3201, %v3126
    %v3272 = vmul.f32 %v3204, %v3126
    %v3273 = vmul.f32 %v3207, %v3126
    %v3274 = vmul.f32 %v3210, %v3126
    %v3275 = vmul.f32 %v3213, %v3126
    %v3276 = vmul.f32 %v3216, %v3126
    %v3277 = vmul.f32 %v3219, %v3126
    %v3278 = vmul.f32 %v3222, %v3126
    %v3279 = vmul.f32 %v3225, %v3126
    %v3280 = vmul.f32 %v3228, %v3126
    %v3281 = vmul.f32 %v3231, %v3126
    %v3282 = vmul.f32 %v3234, %v3126
    %v3283 = vmul.f32 %v3237, %v3126
    %v3284 = vmul.f32 %v3240, %v3126
    %v3285 = vmul.f32 %v3243, %v3126
    %v3286 = vmul.f32 %v3246, %v3126
    %v3287 = vmul.f32 %v3249, %v3126
    %v3288 = vmul.f32 %v3252, %v3126
    %v3289 = vmul.f32 %v3255, %v3126
    %v3290 = vmul.f32 %v3258, %v3126
    %v3291 = vmul.f32 %v3261, %v3126
    %v3292 = vmul.f32 %v3264, %v3126
    %v3293 = vmul.f32 %v3267, %v3126
    %v3294 = vmul.f32 %v3270, %v3126
    %v3295 = vadd.f32 %v3271, 1e-05
    %v3296 = vadd.f32 %v3272, 1e-05
    %v3297 = vadd.f32 %v3273, 1e-05
    %v3298 = vadd.f32 %v3274, 1e-05
    %v3299 = vadd.f32 %v3275, 1e-05
    %v3300 = vadd.f32 %v3276, 1e-05
    %v3301 = vadd.f32 %v3277, 1e-05
    %v3302 = vadd.f32 %v3278, 1e-05
    %v3303 = vadd.f32 %v3279, 1e-05
    %v3304 = vadd.f32 %v3280, 1e-05
    %v3305 = vadd.f32 %v3281, 1e-05
    %v3306 = vadd.f32 %v3282, 1e-05
    %v3307 = vadd.f32 %v3283, 1e-05
    %v3308 = vadd.f32 %v3284, 1e-05
    %v3309 = vadd.f32 %v3285, 1e-05
    %v3310 = vadd.f32 %v3286, 1e-05
    %v3311 = vadd.f32 %v3287, 1e-05
    %v3312 = vadd.f32 %v3288, 1e-05
    %v3313 = vadd.f32 %v3289, 1e-05
    %v3314 = vadd.f32 %v3290, 1e-05
    %v3315 = vadd.f32 %v3291, 1e-05
    %v3316 = vadd.f32 %v3292, 1e-05
    %v3317 = vadd.f32 %v3293, 1e-05
    %v3318 = vadd.f32 %v3294, 1e-05
    %v3319 = vrsqrt.pop %v3295
    %v3320 = vrsqrt.pop %v3296
    %v3321 = vrsqrt.pop %v3297
    %v3322 = vrsqrt.pop %v3298
    %v3323 = vrsqrt.pop %v3299
    %v3324 = vrsqrt.pop %v3300
    %v3325 = vrsqrt.pop %v3301
    %v3326 = vrsqrt.pop %v3302
    %v3327 = vrsqrt.pop %v3303
    %v3328 = vrsqrt.pop %v3304
    %v3329 = vrsqrt.pop %v3305
    %v3330 = vrsqrt.pop %v3306
    %v3331 = vrsqrt.pop %v3307
    %v3332 = vrsqrt.pop %v3308
    %v3333 = vrsqrt.pop %v3309
    %v3334 = vrsqrt.pop %v3310
    %v3335 = vrsqrt.pop %v3311
    %v3336 = vrsqrt.pop %v3312
    %v3337 = vrsqrt.pop %v3313
    %v3338 = vrsqrt.pop %v3314
    %v3339 = vrsqrt.pop %v3315
    %v3340 = vrsqrt.pop %v3316
    %v3341 = vrsqrt.pop %v3317
    %v3342 = vrsqrt.pop %v3318
    %v3343 = vmul.f32 %v3151, %v3319
    %v3344 = vmul.f32 %v3152, %v3320
    %v3345 = vmul.f32 %v3153, %v3321
    %v3346 = vmul.f32 %v3154, %v3322
    %v3347 = vmul.f32 %v3155, %v3323
    %v3348 = vmul.f32 %v3156, %v3324
    %v3349 = vmul.f32 %v3157, %v3325
    %v3350 = vmul.f32 %v3158, %v3326
    %v3351 = vmul.f32 %v3159, %v3327
    %v3352 = vmul.f32 %v3160, %v3328
    %v3353 = vmul.f32 %v3161, %v3329
    %v3354 = vmul.f32 %v3162, %v3330
    %v3355 = vmul.f32 %v3163, %v3331
    %v3356 = vmul.f32 %v3164, %v3332
    %v3357 = vmul.f32 %v3165, %v3333
    %v3358 = vmul.f32 %v3166, %v3334
    %v3359 = vmul.f32 %v3167, %v3335
    %v3360 = vmul.f32 %v3168, %v3336
    %v3361 = vmul.f32 %v3169, %v3337
    %v3362 = vmul.f32 %v3170, %v3338
    %v3363 = vmul.f32 %v3171, %v3339
    %v3364 = vmul.f32 %v3172, %v3340
    %v3365 = vmul.f32 %v3173, %v3341
    %v3366 = vmul.f32 %v3174, %v3342
    %v3367 = vld [vmem:[%s9] sm:$0x1]
    %v3369 = vlaneseq
    %v3370 = vshrl.u32 %v3369, 7
    %v3371 = vsub.s32 0, %v3370
    %v3372 = vrot.slane %v3367, %v3371
    %v3374 = vmul.f32 %v3343, %v3372
    %v3375 = vmul.f32 %v3344, %v3372
    %v3376 = vmul.f32 %v3345, %v3372
    %v3377 = vmul.f32 %v3346, %v3372
    %v3378 = vmul.f32 %v3347, %v3372
    %v3379 = vmul.f32 %v3348, %v3372
    %v3380 = vmul.f32 %v3349, %v3372
    %v3381 = vmul.f32 %v3350, %v3372
    %v3382 = vmul.f32 %v3351, %v3372
    %v3383 = vmul.f32 %v3352, %v3372
    %v3384 = vmul.f32 %v3353, %v3372
    %v3385 = vmul.f32 %v3354, %v3372
    %v3386 = vmul.f32 %v3355, %v3372
    %v3387 = vmul.f32 %v3356, %v3372
    %v3388 = vmul.f32 %v3357, %v3372
    %v3389 = vmul.f32 %v3358, %v3372
    %v3390 = vmul.f32 %v3359, %v3372
    %v3391 = vmul.f32 %v3360, %v3372
    %v3392 = vmul.f32 %v3361, %v3372
    %v3393 = vmul.f32 %v3362, %v3372
    %v3394 = vmul.f32 %v3363, %v3372
    %v3395 = vmul.f32 %v3364, %v3372
    %v3396 = vmul.f32 %v3365, %v3372
    %v3397 = vmul.f32 %v3366, %v3372
    %v3398 = vld [vmem:[%s10] sm:$0x1]
    %v3400 = vlaneseq
    %v3401 = vshrl.u32 %v3400, 7
    %v3402 = vsub.s32 0, %v3401
    %v3403 = vrot.slane %v3398, %v3402
    %v3405 = vadd.f32 %v3374, %v3403
    %v3406 = vadd.f32 %v3375, %v3403
    %v3407 = vadd.f32 %v3376, %v3403
    %v3408 = vadd.f32 %v3377, %v3403
    %v3409 = vadd.f32 %v3378, %v3403
    %v3410 = vadd.f32 %v3379, %v3403
    %v3411 = vadd.f32 %v3380, %v3403
    %v3412 = vadd.f32 %v3381, %v3403
    %v3413 = vadd.f32 %v3382, %v3403
    %v3414 = vadd.f32 %v3383, %v3403
    %v3415 = vadd.f32 %v3384, %v3403
    %v3416 = vadd.f32 %v3385, %v3403
    %v3417 = vadd.f32 %v3386, %v3403
    %v3418 = vadd.f32 %v3387, %v3403
    %v3419 = vadd.f32 %v3388, %v3403
    %v3420 = vadd.f32 %v3389, %v3403
    %v3421 = vadd.f32 %v3390, %v3403
    %v3422 = vadd.f32 %v3391, %v3403
    %v3423 = vadd.f32 %v3392, %v3403
    %v3424 = vadd.f32 %v3393, %v3403
    %v3425 = vadd.f32 %v3394, %v3403
    %v3426 = vadd.f32 %v3395, %v3403
    %v3427 = vadd.f32 %v3396, %v3403
    %v3428 = vadd.f32 %v3397, %v3403
    %v3429 = vpack.c.bf16 %v3406, %v3405
    %v3430 = vpack.c.bf16 %v3408, %v3407
    %v3431 = vpack.c.bf16 %v3410, %v3409
    %v3432 = vpack.c.bf16 %v3412, %v3411
    %v3433 = vpack.c.bf16 %v3414, %v3413
    %v3434 = vpack.c.bf16 %v3416, %v3415
    %v3435 = vpack.c.bf16 %v3418, %v3417
    %v3436 = vpack.c.bf16 %v3420, %v3419
    %v3437 = vpack.c.bf16 %v3422, %v3421
    %v3438 = vpack.c.bf16 %v3424, %v3423
    %v3439 = vpack.c.bf16 %v3426, %v3425
    %v3440 = vpack.c.bf16 %v3428, %v3427
    %v3441 = vld [vmem:[%s11] sm:$0xf]
    %v3442 = vld [vmem:[%s11 + $0x4] sm:$0xf]
    %v3443 = vld [vmem:[%s11 + $0x8] sm:$0xf]
    %v3444 = vld [vmem:[%s11 + $0xc] sm:$0xf]
    %v3445 = vld [vmem:[%s12] sm:$0x1]
    %v3447 = vlaneseq
    %v3448 = vshrl.u32 %v3447, 7
    %v3449 = vsub.s32 0, %v3448
    %v3450 = vrot.slane %v3445, %v3449
    %v3456 = vunpack.c.l.b16 %v3441
    %v3457 = vunpack.c.l.b16 %v3442
    %v3458 = vunpack.c.l.b16 %v3443
    %v3459 = vunpack.c.l.b16 %v3444
    %v3460 = vpack.c.b16 %v3457, %v3456
    %v3461 = vpack.c.b16 %v3459, %v3458
    %v3465 = vsel %vm718, %v3429, 0
    %v3468 = vsel %vm718, %v3430, 0
    %v3471 = vsel %vm718, %v3431, 0
    %v3474 = vsel %vm718, %v3432, 0
    %v3477 = vsel %vm718, %v3433, 0
    %v3480 = vsel %vm718, %v3434, 0
    %v3483 = vsel %vm718, %v3435, 0
    %v3486 = vsel %vm718, %v3436, 0
    %v3489 = vsel %vm718, %v3437, 0
    %v3492 = vsel %vm718, %v3438, 0
    %v3495 = vsel %vm718, %v3439, 0
    %v3498 = vsel %vm718, %v3440, 0
    %3500 = vmatprep.subr.bf16.mxu0 0
    %3501 = vmatpush1.bf16.msra.mxu0 %v3460
    %3502 = vmatprep.subr.bf16.mxu0 0
    %3503 = vmatpush1.bf16.msra.mxu0 %v3461
    %3504 = vmatprep.subr.bf16.mxu0 0
    %3505 = vmatpush1.bf16.msra.mxu0 0
    %3506 = vmatprep.subr.bf16.mxu0 0
    %3507 = vmatpush1.bf16.msra.mxu0 0
    %3508 = vmatprep.subr.bf16.mxu0 0
    %3509 = vmatpush1.bf16.msra.mxu0 0
    %3510 = vmatprep.subr.bf16.mxu0 0
    %3511 = vmatpush1.bf16.msra.mxu0 0
    %3512 = vmatprep.subr.bf16.mxu0 0
    %3513 = vmatpush1.bf16.msra.mxu0 0
    %3514 = vmatprep.subr.bf16.mxu0 0
    %3515 = vmatpush1.bf16.msra.mxu0 0
    %3516 = vmatprep.subr.bf16.mxu0 0
    %3517 = vmatpush1.bf16.msra.mxu0 0
    %3518 = vmatprep.subr.bf16.mxu0 0
    %3519 = vmatpush1.bf16.msra.mxu0 0
    %3520 = vmatprep.subr.bf16.mxu0 0
    %3521 = vmatpush1.bf16.msra.mxu0 0
    %3522 = vmatprep.subr.bf16.mxu0 0
    %3523 = vmatpush1.bf16.msra.mxu0 0
    %3524 = vmatprep.subr.bf16.mxu0 0
    %3525 = vmatpush1.bf16.msra.mxu0 0
    %3526 = vmatprep.subr.bf16.mxu0 0
    %3527 = vmatpush1.bf16.msra.mxu0 0
    %3528 = vmatprep.subr.bf16.mxu0 0
    %3529 = vmatpush1.bf16.msra.mxu0 0
    %3530 = vmatprep.subr.bf16.mxu0 0
    %3531 = vmatpush1.bf16.msra.mxu0 0
    %3532 = vmatprep.mubr.bf16.mxu0 0
    %3533 = vmatmul.mubr.bf16.gmra.mrb[0].mxu0 %v3465
    %v3534 = vpop.f32.mrb[0].mxu0
    %v3535 = vadd.f32 %v3450, %v3534
    %v3536 = vpop.f32.mrb[0].mxu0
    %v3537 = vpop.f32.mrb[0].mxu0
    %v3538 = vadd.f32 %v3450, %v3537
    %v3539 = vpop.f32.mrb[0].mxu0
    %3540 = vmatprep.mubr.bf16.mxu0 0
    %3541 = vmatmul.mubr.bf16.gmra.mrb[0].mxu0 %v3468
    %v3542 = vpop.f32.mrb[0].mxu0
    %v3543 = vadd.f32 %v3450, %v3542
    %v3544 = vpop.f32.mrb[0].mxu0
    %v3545 = vpop.f32.mrb[0].mxu0
    %v3546 = vadd.f32 %v3450, %v3545
    %v3547 = vpop.f32.mrb[0].mxu0
    %3548 = vmatprep.mubr.bf16.mxu0 0
    %3549 = vmatmul.mubr.bf16.gmra.mrb[0].mxu0 %v3471
    %v3550 = vpop.f32.mrb[0].mxu0
    %v3551 = vadd.f32 %v3450, %v3550
    %v3552 = vpop.f32.mrb[0].mxu0
    %v3553 = vpop.f32.mrb[0].mxu0
    %v3554 = vadd.f32 %v3450, %v3553
    %v3555 = vpop.f32.mrb[0].mxu0
    %3556 = vmatprep.mubr.bf16.mxu0 0
    %3557 = vmatmul.mubr.bf16.gmra.mrb[0].mxu0 %v3474
    %v3558 = vpop.f32.mrb[0].mxu0
    %v3559 = vadd.f32 %v3450, %v3558
    %v3560 = vpop.f32.mrb[0].mxu0
    %v3561 = vpop.f32.mrb[0].mxu0
    %v3562 = vadd.f32 %v3450, %v3561
    %v3563 = vpop.f32.mrb[0].mxu0
    %3564 = vmatprep.mubr.bf16.mxu0 0
    %3565 = vmatmul.mubr.bf16.gmra.mrb[0].mxu0 %v3477
    %v3566 = vpop.f32.mrb[0].mxu0
    %v3567 = vadd.f32 %v3450, %v3566
    %v3568 = vpop.f32.mrb[0].mxu0
    %v3569 = vpop.f32.mrb[0].mxu0
    %v3570 = vadd.f32 %v3450, %v3569
    %v3571 = vpop.f32.mrb[0].mxu0
    %3572 = vmatprep.mubr.bf16.mxu0 0
    %3573 = vmatmul.mubr.bf16.gmra.mrb[0].mxu0 %v3480
    %v3574 = vpop.f32.mrb[0].mxu0
    %v3575 = vadd.f32 %v3450, %v3574
    %v3576 = vpop.f32.mrb[0].mxu0
    %v3577 = vpop.f32.mrb[0].mxu0
    %v3578 = vadd.f32 %v3450, %v3577
    %v3579 = vpop.f32.mrb[0].mxu0
    %3580 = vmatprep.mubr.bf16.mxu0 0
    %3581 = vmatmul.mubr.bf16.gmra.mrb[0].mxu0 %v3483
    %v3582 = vpop.f32.mrb[0].mxu0
    %v3583 = vadd.f32 %v3450, %v3582
    %v3584 = vpop.f32.mrb[0].mxu0
    %v3585 = vpop.f32.mrb[0].mxu0
    %v3586 = vadd.f32 %v3450, %v3585
    %v3587 = vpop.f32.mrb[0].mxu0
    %3588 = vmatprep.mubr.bf16.mxu0 0
    %3589 = vmatmul.mubr.bf16.gmra.mrb[0].mxu0 %v3486
    %v3590 = vpop.f32.mrb[0].mxu0
    %v3591 = vadd.f32 %v3450, %v3590
    %v3592 = vpop.f32.mrb[0].mxu0
    %v3593 = vpop.f32.mrb[0].mxu0
    %v3594 = vadd.f32 %v3450, %v3593
    %v3595 = vpop.f32.mrb[0].mxu0
    %3596 = vmatprep.mubr.bf16.mxu0 0
    %3597 = vmatmul.mubr.bf16.gmra.mrb[0].mxu0 %v3489
    %v3598 = vpop.f32.mrb[0].mxu0
    %v3599 = vadd.f32 %v3450, %v3598
    %v3600 = vpop.f32.mrb[0].mxu0
    %v3601 = vpop.f32.mrb[0].mxu0
    %v3602 = vadd.f32 %v3450, %v3601
    %v3603 = vpop.f32.mrb[0].mxu0
    %3604 = vmatprep.mubr.bf16.mxu0 0
    %3605 = vmatmul.mubr.bf16.gmra.mrb[0].mxu0 %v3492
    %v3606 = vpop.f32.mrb[0].mxu0
    %v3607 = vadd.f32 %v3450, %v3606
    %v3608 = vpop.f32.mrb[0].mxu0
    %v3609 = vpop.f32.mrb[0].mxu0
    %v3610 = vadd.f32 %v3450, %v3609
    %v3611 = vpop.f32.mrb[0].mxu0
    %3612 = vmatprep.mubr.bf16.mxu0 0
    %3613 = vmatmul.mubr.bf16.gmra.mrb[0].mxu0 %v3495
    %v3614 = vpop.f32.mrb[0].mxu0
    %v3615 = vadd.f32 %v3450, %v3614
    %v3616 = vpop.f32.mrb[0].mxu0
    %v3617 = vpop.f32.mrb[0].mxu0
    %v3618 = vadd.f32 %v3450, %v3617
    %v3619 = vpop.f32.mrb[0].mxu0
    %3620 = vmatprep.mubr.bf16.mxu0 0
    %3621 = vmatmul.mubr.bf16.gmra.mrb[0].mxu0 %v3498
    %v3622 = vpop.f32.mrb[0].mxu0
    %v3623 = vadd.f32 %v3450, %v3622
    %v3624 = vpop.f32.mrb[0].mxu0
    %v3625 = vpop.f32.mrb[0].mxu0
    %v3626 = vadd.f32 %v3450, %v3625
    %v3627 = vpop.f32.mrb[0].mxu0
    %3628 = vdwg.mxu0
    %v3629 = vmax.f32 %v3535, 0.0
    %v3630 = vmax.f32 %v3538, 0.0
    %v3631 = vmax.f32 %v3543, 0.0
    %v3632 = vmax.f32 %v3546, 0.0
    %v3633 = vmax.f32 %v3551, 0.0
    %v3634 = vmax.f32 %v3554, 0.0
    %v3635 = vmax.f32 %v3559, 0.0
    %v3636 = vmax.f32 %v3562, 0.0
    %v3637 = vmax.f32 %v3567, 0.0
    %v3638 = vmax.f32 %v3570, 0.0
    %v3639 = vmax.f32 %v3575, 0.0
    %v3640 = vmax.f32 %v3578, 0.0
    %v3641 = vmax.f32 %v3583, 0.0
    %v3642 = vmax.f32 %v3586, 0.0
    %v3643 = vmax.f32 %v3591, 0.0
    %v3644 = vmax.f32 %v3594, 0.0
    %v3645 = vmax.f32 %v3599, 0.0
    %v3646 = vmax.f32 %v3602, 0.0
    %v3647 = vmax.f32 %v3607, 0.0
    %v3648 = vmax.f32 %v3610, 0.0
    %v3649 = vmax.f32 %v3615, 0.0
    %v3650 = vmax.f32 %v3618, 0.0
    %v3651 = vmax.f32 %v3623, 0.0
    %v3652 = vmax.f32 %v3626, 0.0
    %v3653 = vpack.c.bf16 %v3630, %v3629
    %v3654 = vpack.c.bf16 %v3632, %v3631
    %v3655 = vpack.c.bf16 %v3634, %v3633
    %v3656 = vpack.c.bf16 %v3636, %v3635
    %v3657 = vpack.c.bf16 %v3638, %v3637
    %v3658 = vpack.c.bf16 %v3640, %v3639
    %v3659 = vpack.c.bf16 %v3642, %v3641
    %v3660 = vpack.c.bf16 %v3644, %v3643
    %v3661 = vpack.c.bf16 %v3646, %v3645
    %v3662 = vpack.c.bf16 %v3648, %v3647
    %v3663 = vpack.c.bf16 %v3650, %v3649
    %v3664 = vpack.c.bf16 %v3652, %v3651
    %v3665 = vld [vmem:[%s13] sm:$0xf]
    %v3666 = vld [vmem:[%s13 + $0x4] sm:$0xf]
    %v3667 = vld [vmem:[%s13 + $0x8] sm:$0xf]
    %v3668 = vld [vmem:[%s13 + $0xc] sm:$0xf]
    %v3669 = vld [vmem:[%s13 + $0x10] sm:$0xf]
    %v3670 = vld [vmem:[%s13 + $0x14] sm:$0xf]
    %v3671 = vld [vmem:[%s13 + $0x18] sm:$0xf]
    %v3672 = vld [vmem:[%s13 + $0x1c] sm:$0xf]
    %v3673 = vld [vmem:[%s14] sm:$0x1]
    %v3675 = vlaneseq
    %v3676 = vshrl.u32 %v3675, 7
    %v3677 = vsub.s32 0, %v3676
    %v3678 = vrot.slane %v3673, %v3677
    %v3688 = vunpack.c.l.b16 %v3665
    %v3689 = vunpack.c.l.b16 %v3666
    %v3690 = vunpack.c.l.b16 %v3667
    %v3691 = vunpack.c.l.b16 %v3668
    %v3692 = vunpack.c.l.b16 %v3669
    %v3693 = vunpack.c.l.b16 %v3670
    %v3694 = vunpack.c.l.b16 %v3671
    %v3695 = vunpack.c.l.b16 %v3672
    %v3696 = vpack.c.b16 %v3689, %v3688
    %v3697 = vpack.c.b16 %v3691, %v3690
    %v3698 = vpack.c.b16 %v3693, %v3692
    %v3699 = vpack.c.b16 %v3695, %v3694
    %vm3704 = vcmask 523264
    %v3706 = vsel %vm3704, %v3653, 0
    %v3709 = vsel %vm3704, %v3654, 0
    %v3712 = vsel %vm3704, %v3655, 0
    %v3715 = vsel %vm3704, %v3656, 0
    %v3718 = vsel %vm3704, %v3657, 0
    %v3721 = vsel %vm3704, %v3658, 0
    %v3724 = vsel %vm3704, %v3659, 0
    %v3727 = vsel %vm3704, %v3660, 0
    %v3730 = vsel %vm3704, %v3661, 0
    %v3733 = vsel %vm3704, %v3662, 0
    %v3736 = vsel %vm3704, %v3663, 0
    %v3739 = vsel %vm3704, %v3664, 0
    %3741 = vmatprep.subr.bf16.mxu0 0
    %3742 = vmatpush1.bf16.msra.mxu0 %v3696
    %3743 = vmatprep.subr.bf16.mxu0 0
    %3744 = vmatpush1.bf16.msra.mxu0 %v3697
    %3745 = vmatprep.subr.bf16.mxu0 0
    %3746 = vmatpush1.bf16.msra.mxu0 %v3698
    %3747 = vmatprep.subr.bf16.mxu0 0
    %3748 = vmatpush1.bf16.msra.mxu0 %v3699
    %3749 = vmatprep.subr.bf16.mxu0 0
    %3750 = vmatpush1.bf16.msra.mxu0 0
    %3751 = vmatprep.subr.bf16.mxu0 0
    %3752 = vmatpush1.bf16.msra.mxu0 0
    %3753 = vmatprep.subr.bf16.mxu0 0
    %3754 = vmatpush1.bf16.msra.mxu0 0
    %3755 = vmatprep.subr.bf16.mxu0 0
    %3756 = vmatpush1.bf16.msra.mxu0 0
    %3757 = vmatprep.subr.bf16.mxu0 0
    %3758 = vmatpush1.bf16.msra.mxu0 0
    %3759 = vmatprep.subr.bf16.mxu0 0
    %3760 = vmatpush1.bf16.msra.mxu0 0
    %3761 = vmatprep.subr.bf16.mxu0 0
    %3762 = vmatpush1.bf16.msra.mxu0 0
    %3763 = vmatprep.subr.bf16.mxu0 0
    %3764 = vmatpush1.bf16.msra.mxu0 0
    %3765 = vmatprep.subr.bf16.mxu0 0
    %3766 = vmatpush1.bf16.msra.mxu0 0
    %3767 = vmatprep.subr.bf16.mxu0 0
    %3768 = vmatpush1.bf16.msra.mxu0 0
    %3769 = vmatprep.subr.bf16.mxu0 0
    %3770 = vmatpush1.bf16.msra.mxu0 0
    %3771 = vmatprep.subr.bf16.mxu0 0
    %3772 = vmatpush1.bf16.msra.mxu0 0
    %3773 = vmatprep.mubr.bf16.mxu0 0
    %3774 = vmatmul.mubr.bf16.gmra.mrb[0].mxu0 %v3706
    %v3775 = vpop.f32.mrb[0].mxu0
    %v3776 = vadd.f32 %v3678, %v3775
    %v3777 = vpop.f32.mrb[0].mxu0
    %v3778 = vpop.f32.mrb[0].mxu0
    %v3779 = vadd.f32 %v3678, %v3778
    %v3780 = vpop.f32.mrb[0].mxu0
    %3781 = vmatprep.mubr.bf16.mxu0 0
    %3782 = vmatmul.mubr.bf16.gmra.mrb[0].mxu0 %v3709
    %v3783 = vpop.f32.mrb[0].mxu0
    %v3784 = vadd.f32 %v3678, %v3783
    %v3785 = vpop.f32.mrb[0].mxu0
    %v3786 = vpop.f32.mrb[0].mxu0
    %v3787 = vadd.f32 %v3678, %v3786
    %v3788 = vpop.f32.mrb[0].mxu0
    %3789 = vmatprep.mubr.bf16.mxu0 0
    %3790 = vmatmul.mubr.bf16.gmra.mrb[0].mxu0 %v3712
    %v3791 = vpop.f32.mrb[0].mxu0
    %v3792 = vadd.f32 %v3678, %v3791
    %v3793 = vpop.f32.mrb[0].mxu0
    %v3794 = vpop.f32.mrb[0].mxu0
    %v3795 = vadd.f32 %v3678, %v3794
    %v3796 = vpop.f32.mrb[0].mxu0
    %3797 = vmatprep.mubr.bf16.mxu0 0
    %3798 = vmatmul.mubr.bf16.gmra.mrb[0].mxu0 %v3715
    %v3799 = vpop.f32.mrb[0].mxu0
    %v3800 = vadd.f32 %v3678, %v3799
    %v3801 = vpop.f32.mrb[0].mxu0
    %v3802 = vpop.f32.mrb[0].mxu0
    %v3803 = vadd.f32 %v3678, %v3802
    %v3804 = vpop.f32.mrb[0].mxu0
    %3805 = vmatprep.mubr.bf16.mxu0 0
    %3806 = vmatmul.mubr.bf16.gmra.mrb[0].mxu0 %v3718
    %v3807 = vpop.f32.mrb[0].mxu0
    %v3808 = vadd.f32 %v3678, %v3807
    %v3809 = vpop.f32.mrb[0].mxu0
    %v3810 = vpop.f32.mrb[0].mxu0
    %v3811 = vadd.f32 %v3678, %v3810
    %v3812 = vpop.f32.mrb[0].mxu0
    %3813 = vmatprep.mubr.bf16.mxu0 0
    %3814 = vmatmul.mubr.bf16.gmra.mrb[0].mxu0 %v3721
    %v3815 = vpop.f32.mrb[0].mxu0
    %v3816 = vadd.f32 %v3678, %v3815
    %v3817 = vpop.f32.mrb[0].mxu0
    %v3818 = vpop.f32.mrb[0].mxu0
    %v3819 = vadd.f32 %v3678, %v3818
    %v3820 = vpop.f32.mrb[0].mxu0
    %3821 = vmatprep.mubr.bf16.mxu0 0
    %3822 = vmatmul.mubr.bf16.gmra.mrb[0].mxu0 %v3724
    %v3823 = vpop.f32.mrb[0].mxu0
    %v3824 = vadd.f32 %v3678, %v3823
    %v3825 = vpop.f32.mrb[0].mxu0
    %v3826 = vpop.f32.mrb[0].mxu0
    %v3827 = vadd.f32 %v3678, %v3826
    %v3828 = vpop.f32.mrb[0].mxu0
    %3829 = vmatprep.mubr.bf16.mxu0 0
    %3830 = vmatmul.mubr.bf16.gmra.mrb[0].mxu0 %v3727
    %v3831 = vpop.f32.mrb[0].mxu0
    %v3832 = vadd.f32 %v3678, %v3831
    %v3833 = vpop.f32.mrb[0].mxu0
    %v3834 = vpop.f32.mrb[0].mxu0
    %v3835 = vadd.f32 %v3678, %v3834
    %v3836 = vpop.f32.mrb[0].mxu0
    %3837 = vmatprep.mubr.bf16.mxu0 0
    %3838 = vmatmul.mubr.bf16.gmra.mrb[0].mxu0 %v3730
    %v3839 = vpop.f32.mrb[0].mxu0
    %v3840 = vadd.f32 %v3678, %v3839
    %v3841 = vpop.f32.mrb[0].mxu0
    %v3842 = vpop.f32.mrb[0].mxu0
    %v3843 = vadd.f32 %v3678, %v3842
    %v3844 = vpop.f32.mrb[0].mxu0
    %3845 = vmatprep.mubr.bf16.mxu0 0
    %3846 = vmatmul.mubr.bf16.gmra.mrb[0].mxu0 %v3733
    %v3847 = vpop.f32.mrb[0].mxu0
    %v3848 = vadd.f32 %v3678, %v3847
    %v3849 = vpop.f32.mrb[0].mxu0
    %v3850 = vpop.f32.mrb[0].mxu0
    %v3851 = vadd.f32 %v3678, %v3850
    %v3852 = vpop.f32.mrb[0].mxu0
    %3853 = vmatprep.mubr.bf16.mxu0 0
    %3854 = vmatmul.mubr.bf16.gmra.mrb[0].mxu0 %v3736
    %v3855 = vpop.f32.mrb[0].mxu0
    %v3856 = vadd.f32 %v3678, %v3855
    %v3857 = vpop.f32.mrb[0].mxu0
    %v3858 = vpop.f32.mrb[0].mxu0
    %v3859 = vadd.f32 %v3678, %v3858
    %v3860 = vpop.f32.mrb[0].mxu0
    %3861 = vmatprep.mubr.bf16.mxu0 0
    %3862 = vmatmul.mubr.bf16.gmra.mrb[0].mxu0 %v3739
    %v3863 = vpop.f32.mrb[0].mxu0
    %v3864 = vadd.f32 %v3678, %v3863
    %v3865 = vpop.f32.mrb[0].mxu0
    %v3866 = vpop.f32.mrb[0].mxu0
    %v3867 = vadd.f32 %v3678, %v3866
    %v3868 = vpop.f32.mrb[0].mxu0
    %3869 = vdwg.mxu0
    %v3870 = vadd.f32 %v3405, %v3776
    %v3871 = vadd.f32 %v3406, %v3779
    %v3872 = vadd.f32 %v3407, %v3784
    %v3873 = vadd.f32 %v3408, %v3787
    %v3874 = vadd.f32 %v3409, %v3792
    %v3875 = vadd.f32 %v3410, %v3795
    %v3876 = vadd.f32 %v3411, %v3800
    %v3877 = vadd.f32 %v3412, %v3803
    %v3878 = vadd.f32 %v3413, %v3808
    %v3879 = vadd.f32 %v3414, %v3811
    %v3880 = vadd.f32 %v3415, %v3816
    %v3881 = vadd.f32 %v3416, %v3819
    %v3882 = vadd.f32 %v3417, %v3824
    %v3883 = vadd.f32 %v3418, %v3827
    %v3884 = vadd.f32 %v3419, %v3832
    %v3885 = vadd.f32 %v3420, %v3835
    %v3886 = vadd.f32 %v3421, %v3840
    %v3887 = vadd.f32 %v3422, %v3843
    %v3888 = vadd.f32 %v3423, %v3848
    %v3889 = vadd.f32 %v3424, %v3851
    %v3890 = vadd.f32 %v3425, %v3856
    %v3891 = vadd.f32 %v3426, %v3859
    %v3892 = vadd.f32 %v3427, %v3864
    %v3893 = vadd.f32 %v3428, %v3867
    %v3894 = vsel %vm718, %v3870, 0.0
    %3895 = vadd.xlane.f32.xlu0 %v3894
    %v3896 = vpop.xlane.xlu0 %3895
    %v3897 = vsel %vm718, %v3871, 0.0
    %3898 = vadd.xlane.f32.xlu0 %v3897
    %v3899 = vpop.xlane.xlu0 %3898
    %v3900 = vsel %vm718, %v3872, 0.0
    %3901 = vadd.xlane.f32.xlu0 %v3900
    %v3902 = vpop.xlane.xlu0 %3901
    %v3903 = vsel %vm718, %v3873, 0.0
    %3904 = vadd.xlane.f32.xlu0 %v3903
    %v3905 = vpop.xlane.xlu0 %3904
    %v3906 = vsel %vm718, %v3874, 0.0
    %3907 = vadd.xlane.f32.xlu0 %v3906
    %v3908 = vpop.xlane.xlu0 %3907
    %v3909 = vsel %vm718, %v3875, 0.0
    %3910 = vadd.xlane.f32.xlu0 %v3909
    %v3911 = vpop.xlane.xlu0 %3910
    %v3912 = vsel %vm718, %v3876, 0.0
    %3913 = vadd.xlane.f32.xlu0 %v3912
    %v3914 = vpop.xlane.xlu0 %3913
    %v3915 = vsel %vm718, %v3877, 0.0
    %3916 = vadd.xlane.f32.xlu0 %v3915
    %v3917 = vpop.xlane.xlu0 %3916
    %v3918 = vsel %vm718, %v3878, 0.0
    %3919 = vadd.xlane.f32.xlu0 %v3918
    %v3920 = vpop.xlane.xlu0 %3919
    %v3921 = vsel %vm718, %v3879, 0.0
    %3922 = vadd.xlane.f32.xlu0 %v3921
    %v3923 = vpop.xlane.xlu0 %3922
    %v3924 = vsel %vm718, %v3880, 0.0
    %3925 = vadd.xlane.f32.xlu0 %v3924
    %v3926 = vpop.xlane.xlu0 %3925
    %v3927 = vsel %vm718, %v3881, 0.0
    %3928 = vadd.xlane.f32.xlu0 %v3927
    %v3929 = vpop.xlane.xlu0 %3928
    %v3930 = vsel %vm718, %v3882, 0.0
    %3931 = vadd.xlane.f32.xlu0 %v3930
    %v3932 = vpop.xlane.xlu0 %3931
    %v3933 = vsel %vm718, %v3883, 0.0
    %3934 = vadd.xlane.f32.xlu0 %v3933
    %v3935 = vpop.xlane.xlu0 %3934
    %v3936 = vsel %vm718, %v3884, 0.0
    %3937 = vadd.xlane.f32.xlu0 %v3936
    %v3938 = vpop.xlane.xlu0 %3937
    %v3939 = vsel %vm718, %v3885, 0.0
    %3940 = vadd.xlane.f32.xlu0 %v3939
    %v3941 = vpop.xlane.xlu0 %3940
    %v3942 = vsel %vm718, %v3886, 0.0
    %3943 = vadd.xlane.f32.xlu0 %v3942
    %v3944 = vpop.xlane.xlu0 %3943
    %v3945 = vsel %vm718, %v3887, 0.0
    %3946 = vadd.xlane.f32.xlu0 %v3945
    %v3947 = vpop.xlane.xlu0 %3946
    %v3948 = vsel %vm718, %v3888, 0.0
    %3949 = vadd.xlane.f32.xlu0 %v3948
    %v3950 = vpop.xlane.xlu0 %3949
    %v3951 = vsel %vm718, %v3889, 0.0
    %3952 = vadd.xlane.f32.xlu0 %v3951
    %v3953 = vpop.xlane.xlu0 %3952
    %v3954 = vsel %vm718, %v3890, 0.0
    %3955 = vadd.xlane.f32.xlu0 %v3954
    %v3956 = vpop.xlane.xlu0 %3955
    %v3957 = vsel %vm718, %v3891, 0.0
    %3958 = vadd.xlane.f32.xlu0 %v3957
    %v3959 = vpop.xlane.xlu0 %3958
    %v3960 = vsel %vm718, %v3892, 0.0
    %3961 = vadd.xlane.f32.xlu0 %v3960
    %v3962 = vpop.xlane.xlu0 %3961
    %v3963 = vsel %vm718, %v3893, 0.0
    %3964 = vadd.xlane.f32.xlu0 %v3963
    %v3965 = vpop.xlane.xlu0 %3964
    %v3966 = vmul.f32 %v3896, %v3126
    %v3967 = vmul.f32 %v3899, %v3126
    %v3968 = vmul.f32 %v3902, %v3126
    %v3969 = vmul.f32 %v3905, %v3126
    %v3970 = vmul.f32 %v3908, %v3126
    %v3971 = vmul.f32 %v3911, %v3126
    %v3972 = vmul.f32 %v3914, %v3126
    %v3973 = vmul.f32 %v3917, %v3126
    %v3974 = vmul.f32 %v3920, %v3126
    %v3975 = vmul.f32 %v3923, %v3126
    %v3976 = vmul.f32 %v3926, %v3126
    %v3977 = vmul.f32 %v3929, %v3126
    %v3978 = vmul.f32 %v3932, %v3126
    %v3979 = vmul.f32 %v3935, %v3126
    %v3980 = vmul.f32 %v3938, %v3126
    %v3981 = vmul.f32 %v3941, %v3126
    %v3982 = vmul.f32 %v3944, %v3126
    %v3983 = vmul.f32 %v3947, %v3126
    %v3984 = vmul.f32 %v3950, %v3126
    %v3985 = vmul.f32 %v3953, %v3126
    %v3986 = vmul.f32 %v3956, %v3126
    %v3987 = vmul.f32 %v3959, %v3126
    %v3988 = vmul.f32 %v3962, %v3126
    %v3989 = vmul.f32 %v3965, %v3126
    %v3990 = vsub.f32 %v3870, %v3966
    %v3991 = vsub.f32 %v3871, %v3967
    %v3992 = vsub.f32 %v3872, %v3968
    %v3993 = vsub.f32 %v3873, %v3969
    %v3994 = vsub.f32 %v3874, %v3970
    %v3995 = vsub.f32 %v3875, %v3971
    %v3996 = vsub.f32 %v3876, %v3972
    %v3997 = vsub.f32 %v3877, %v3973
    %v3998 = vsub.f32 %v3878, %v3974
    %v3999 = vsub.f32 %v3879, %v3975
    %v4000 = vsub.f32 %v3880, %v3976
    %v4001 = vsub.f32 %v3881, %v3977
    %v4002 = vsub.f32 %v3882, %v3978
    %v4003 = vsub.f32 %v3883, %v3979
    %v4004 = vsub.f32 %v3884, %v3980
    %v4005 = vsub.f32 %v3885, %v3981
    %v4006 = vsub.f32 %v3886, %v3982
    %v4007 = vsub.f32 %v3887, %v3983
    %v4008 = vsub.f32 %v3888, %v3984
    %v4009 = vsub.f32 %v3889, %v3985
    %v4010 = vsub.f32 %v3890, %v3986
    %v4011 = vsub.f32 %v3891, %v3987
    %v4012 = vsub.f32 %v3892, %v3988
    %v4013 = vsub.f32 %v3893, %v3989
    %v4014 = vmul.f32 %v3990, %v3990
    %v4015 = vmul.f32 %v3991, %v3991
    %v4016 = vmul.f32 %v3992, %v3992
    %v4017 = vmul.f32 %v3993, %v3993
    %v4018 = vmul.f32 %v3994, %v3994
    %v4019 = vmul.f32 %v3995, %v3995
    %v4020 = vmul.f32 %v3996, %v3996
    %v4021 = vmul.f32 %v3997, %v3997
    %v4022 = vmul.f32 %v3998, %v3998
    %v4023 = vmul.f32 %v3999, %v3999
    %v4024 = vmul.f32 %v4000, %v4000
    %v4025 = vmul.f32 %v4001, %v4001
    %v4026 = vmul.f32 %v4002, %v4002
    %v4027 = vmul.f32 %v4003, %v4003
    %v4028 = vmul.f32 %v4004, %v4004
    %v4029 = vmul.f32 %v4005, %v4005
    %v4030 = vmul.f32 %v4006, %v4006
    %v4031 = vmul.f32 %v4007, %v4007
    %v4032 = vmul.f32 %v4008, %v4008
    %v4033 = vmul.f32 %v4009, %v4009
    %v4034 = vmul.f32 %v4010, %v4010
    %v4035 = vmul.f32 %v4011, %v4011
    %v4036 = vmul.f32 %v4012, %v4012
    %v4037 = vmul.f32 %v4013, %v4013
    %v4038 = vsel %vm718, %v4014, 0.0
    %4039 = vadd.xlane.f32.xlu0 %v4038
    %v4040 = vpop.xlane.xlu0 %4039
    %v4041 = vsel %vm718, %v4015, 0.0
    %4042 = vadd.xlane.f32.xlu0 %v4041
    %v4043 = vpop.xlane.xlu0 %4042
    %v4044 = vsel %vm718, %v4016, 0.0
    %4045 = vadd.xlane.f32.xlu0 %v4044
    %v4046 = vpop.xlane.xlu0 %4045
    %v4047 = vsel %vm718, %v4017, 0.0
    %4048 = vadd.xlane.f32.xlu0 %v4047
    %v4049 = vpop.xlane.xlu0 %4048
    %v4050 = vsel %vm718, %v4018, 0.0
    %4051 = vadd.xlane.f32.xlu0 %v4050
    %v4052 = vpop.xlane.xlu0 %4051
    %v4053 = vsel %vm718, %v4019, 0.0
    %4054 = vadd.xlane.f32.xlu0 %v4053
    %v4055 = vpop.xlane.xlu0 %4054
    %v4056 = vsel %vm718, %v4020, 0.0
    %4057 = vadd.xlane.f32.xlu0 %v4056
    %v4058 = vpop.xlane.xlu0 %4057
    %v4059 = vsel %vm718, %v4021, 0.0
    %4060 = vadd.xlane.f32.xlu0 %v4059
    %v4061 = vpop.xlane.xlu0 %4060
    %v4062 = vsel %vm718, %v4022, 0.0
    %4063 = vadd.xlane.f32.xlu0 %v4062
    %v4064 = vpop.xlane.xlu0 %4063
    %v4065 = vsel %vm718, %v4023, 0.0
    %4066 = vadd.xlane.f32.xlu0 %v4065
    %v4067 = vpop.xlane.xlu0 %4066
    %v4068 = vsel %vm718, %v4024, 0.0
    %4069 = vadd.xlane.f32.xlu0 %v4068
    %v4070 = vpop.xlane.xlu0 %4069
    %v4071 = vsel %vm718, %v4025, 0.0
    %4072 = vadd.xlane.f32.xlu0 %v4071
    %v4073 = vpop.xlane.xlu0 %4072
    %v4074 = vsel %vm718, %v4026, 0.0
    %4075 = vadd.xlane.f32.xlu0 %v4074
    %v4076 = vpop.xlane.xlu0 %4075
    %v4077 = vsel %vm718, %v4027, 0.0
    %4078 = vadd.xlane.f32.xlu0 %v4077
    %v4079 = vpop.xlane.xlu0 %4078
    %v4080 = vsel %vm718, %v4028, 0.0
    %4081 = vadd.xlane.f32.xlu0 %v4080
    %v4082 = vpop.xlane.xlu0 %4081
    %v4083 = vsel %vm718, %v4029, 0.0
    %4084 = vadd.xlane.f32.xlu0 %v4083
    %v4085 = vpop.xlane.xlu0 %4084
    %v4086 = vsel %vm718, %v4030, 0.0
    %4087 = vadd.xlane.f32.xlu0 %v4086
    %v4088 = vpop.xlane.xlu0 %4087
    %v4089 = vsel %vm718, %v4031, 0.0
    %4090 = vadd.xlane.f32.xlu0 %v4089
    %v4091 = vpop.xlane.xlu0 %4090
    %v4092 = vsel %vm718, %v4032, 0.0
    %4093 = vadd.xlane.f32.xlu0 %v4092
    %v4094 = vpop.xlane.xlu0 %4093
    %v4095 = vsel %vm718, %v4033, 0.0
    %4096 = vadd.xlane.f32.xlu0 %v4095
    %v4097 = vpop.xlane.xlu0 %4096
    %v4098 = vsel %vm718, %v4034, 0.0
    %4099 = vadd.xlane.f32.xlu0 %v4098
    %v4100 = vpop.xlane.xlu0 %4099
    %v4101 = vsel %vm718, %v4035, 0.0
    %4102 = vadd.xlane.f32.xlu0 %v4101
    %v4103 = vpop.xlane.xlu0 %4102
    %v4104 = vsel %vm718, %v4036, 0.0
    %4105 = vadd.xlane.f32.xlu0 %v4104
    %v4106 = vpop.xlane.xlu0 %4105
    %v4107 = vsel %vm718, %v4037, 0.0
    %4108 = vadd.xlane.f32.xlu0 %v4107
    %v4109 = vpop.xlane.xlu0 %4108
    %v4110 = vmul.f32 %v4040, %v3126
    %v4111 = vmul.f32 %v4043, %v3126
    %v4112 = vmul.f32 %v4046, %v3126
    %v4113 = vmul.f32 %v4049, %v3126
    %v4114 = vmul.f32 %v4052, %v3126
    %v4115 = vmul.f32 %v4055, %v3126
    %v4116 = vmul.f32 %v4058, %v3126
    %v4117 = vmul.f32 %v4061, %v3126
    %v4118 = vmul.f32 %v4064, %v3126
    %v4119 = vmul.f32 %v4067, %v3126
    %v4120 = vmul.f32 %v4070, %v3126
    %v4121 = vmul.f32 %v4073, %v3126
    %v4122 = vmul.f32 %v4076, %v3126
    %v4123 = vmul.f32 %v4079, %v3126
    %v4124 = vmul.f32 %v4082, %v3126
    %v4125 = vmul.f32 %v4085, %v3126
    %v4126 = vmul.f32 %v4088, %v3126
    %v4127 = vmul.f32 %v4091, %v3126
    %v4128 = vmul.f32 %v4094, %v3126
    %v4129 = vmul.f32 %v4097, %v3126
    %v4130 = vmul.f32 %v4100, %v3126
    %v4131 = vmul.f32 %v4103, %v3126
    %v4132 = vmul.f32 %v4106, %v3126
    %v4133 = vmul.f32 %v4109, %v3126
    %v4134 = vadd.f32 %v4110, 1e-05
    %v4135 = vadd.f32 %v4111, 1e-05
    %v4136 = vadd.f32 %v4112, 1e-05
    %v4137 = vadd.f32 %v4113, 1e-05
    %v4138 = vadd.f32 %v4114, 1e-05
    %v4139 = vadd.f32 %v4115, 1e-05
    %v4140 = vadd.f32 %v4116, 1e-05
    %v4141 = vadd.f32 %v4117, 1e-05
    %v4142 = vadd.f32 %v4118, 1e-05
    %v4143 = vadd.f32 %v4119, 1e-05
    %v4144 = vadd.f32 %v4120, 1e-05
    %v4145 = vadd.f32 %v4121, 1e-05
    %v4146 = vadd.f32 %v4122, 1e-05
    %v4147 = vadd.f32 %v4123, 1e-05
    %v4148 = vadd.f32 %v4124, 1e-05
    %v4149 = vadd.f32 %v4125, 1e-05
    %v4150 = vadd.f32 %v4126, 1e-05
    %v4151 = vadd.f32 %v4127, 1e-05
    %v4152 = vadd.f32 %v4128, 1e-05
    %v4153 = vadd.f32 %v4129, 1e-05
    %v4154 = vadd.f32 %v4130, 1e-05
    %v4155 = vadd.f32 %v4131, 1e-05
    %v4156 = vadd.f32 %v4132, 1e-05
    %v4157 = vadd.f32 %v4133, 1e-05
    %v4158 = vrsqrt.pop %v4134
    %v4159 = vrsqrt.pop %v4135
    %v4160 = vrsqrt.pop %v4136
    %v4161 = vrsqrt.pop %v4137
    %v4162 = vrsqrt.pop %v4138
    %v4163 = vrsqrt.pop %v4139
    %v4164 = vrsqrt.pop %v4140
    %v4165 = vrsqrt.pop %v4141
    %v4166 = vrsqrt.pop %v4142
    %v4167 = vrsqrt.pop %v4143
    %v4168 = vrsqrt.pop %v4144
    %v4169 = vrsqrt.pop %v4145
    %v4170 = vrsqrt.pop %v4146
    %v4171 = vrsqrt.pop %v4147
    %v4172 = vrsqrt.pop %v4148
    %v4173 = vrsqrt.pop %v4149
    %v4174 = vrsqrt.pop %v4150
    %v4175 = vrsqrt.pop %v4151
    %v4176 = vrsqrt.pop %v4152
    %v4177 = vrsqrt.pop %v4153
    %v4178 = vrsqrt.pop %v4154
    %v4179 = vrsqrt.pop %v4155
    %v4180 = vrsqrt.pop %v4156
    %v4181 = vrsqrt.pop %v4157
    %v4182 = vmul.f32 %v3990, %v4158
    %v4183 = vmul.f32 %v3991, %v4159
    %v4184 = vmul.f32 %v3992, %v4160
    %v4185 = vmul.f32 %v3993, %v4161
    %v4186 = vmul.f32 %v3994, %v4162
    %v4187 = vmul.f32 %v3995, %v4163
    %v4188 = vmul.f32 %v3996, %v4164
    %v4189 = vmul.f32 %v3997, %v4165
    %v4190 = vmul.f32 %v3998, %v4166
    %v4191 = vmul.f32 %v3999, %v4167
    %v4192 = vmul.f32 %v4000, %v4168
    %v4193 = vmul.f32 %v4001, %v4169
    %v4194 = vmul.f32 %v4002, %v4170
    %v4195 = vmul.f32 %v4003, %v4171
    %v4196 = vmul.f32 %v4004, %v4172
    %v4197 = vmul.f32 %v4005, %v4173
    %v4198 = vmul.f32 %v4006, %v4174
    %v4199 = vmul.f32 %v4007, %v4175
    %v4200 = vmul.f32 %v4008, %v4176
    %v4201 = vmul.f32 %v4009, %v4177
    %v4202 = vmul.f32 %v4010, %v4178
    %v4203 = vmul.f32 %v4011, %v4179
    %v4204 = vmul.f32 %v4012, %v4180
    %v4205 = vmul.f32 %v4013, %v4181
    %v4206 = vld [vmem:[%s15] sm:$0x1]
    %v4208 = vlaneseq
    %v4209 = vshrl.u32 %v4208, 7
    %v4210 = vsub.s32 0, %v4209
    %v4211 = vrot.slane %v4206, %v4210
    %v4213 = vmul.f32 %v4182, %v4211
    %v4214 = vmul.f32 %v4183, %v4211
    %v4215 = vmul.f32 %v4184, %v4211
    %v4216 = vmul.f32 %v4185, %v4211
    %v4217 = vmul.f32 %v4186, %v4211
    %v4218 = vmul.f32 %v4187, %v4211
    %v4219 = vmul.f32 %v4188, %v4211
    %v4220 = vmul.f32 %v4189, %v4211
    %v4221 = vmul.f32 %v4190, %v4211
    %v4222 = vmul.f32 %v4191, %v4211
    %v4223 = vmul.f32 %v4192, %v4211
    %v4224 = vmul.f32 %v4193, %v4211
    %v4225 = vmul.f32 %v4194, %v4211
    %v4226 = vmul.f32 %v4195, %v4211
    %v4227 = vmul.f32 %v4196, %v4211
    %v4228 = vmul.f32 %v4197, %v4211
    %v4229 = vmul.f32 %v4198, %v4211
    %v4230 = vmul.f32 %v4199, %v4211
    %v4231 = vmul.f32 %v4200, %v4211
    %v4232 = vmul.f32 %v4201, %v4211
    %v4233 = vmul.f32 %v4202, %v4211
    %v4234 = vmul.f32 %v4203, %v4211
    %v4235 = vmul.f32 %v4204, %v4211
    %v4236 = vmul.f32 %v4205, %v4211
    %v4237 = vld [vmem:[%s16] sm:$0x1]
    %v4239 = vlaneseq
    %v4240 = vshrl.u32 %v4239, 7
    %v4241 = vsub.s32 0, %v4240
    %v4242 = vrot.slane %v4237, %v4241
    %v4244 = vadd.f32 %v4213, %v4242
    %v4245 = vadd.f32 %v4214, %v4242
    %v4246 = vadd.f32 %v4215, %v4242
    %v4247 = vadd.f32 %v4216, %v4242
    %v4248 = vadd.f32 %v4217, %v4242
    %v4249 = vadd.f32 %v4218, %v4242
    %v4250 = vadd.f32 %v4219, %v4242
    %v4251 = vadd.f32 %v4220, %v4242
    %v4252 = vadd.f32 %v4221, %v4242
    %v4253 = vadd.f32 %v4222, %v4242
    %v4254 = vadd.f32 %v4223, %v4242
    %v4255 = vadd.f32 %v4224, %v4242
    %v4256 = vadd.f32 %v4225, %v4242
    %v4257 = vadd.f32 %v4226, %v4242
    %v4258 = vadd.f32 %v4227, %v4242
    %v4259 = vadd.f32 %v4228, %v4242
    %v4260 = vadd.f32 %v4229, %v4242
    %v4261 = vadd.f32 %v4230, %v4242
    %v4262 = vadd.f32 %v4231, %v4242
    %v4263 = vadd.f32 %v4232, %v4242
    %v4264 = vadd.f32 %v4233, %v4242
    %v4265 = vadd.f32 %v4234, %v4242
    %v4266 = vadd.f32 %v4235, %v4242
    %v4267 = vadd.f32 %v4236, %v4242
    %v4268 = vpack.c.bf16 %v4245, %v4244
    %v4269 = vpack.c.bf16 %v4247, %v4246
    %v4270 = vpack.c.bf16 %v4249, %v4248
    %v4271 = vpack.c.bf16 %v4251, %v4250
    %v4272 = vpack.c.bf16 %v4253, %v4252
    %v4273 = vpack.c.bf16 %v4255, %v4254
    %v4274 = vpack.c.bf16 %v4257, %v4256
    %v4275 = vpack.c.bf16 %v4259, %v4258
    %v4276 = vpack.c.bf16 %v4261, %v4260
    %v4277 = vpack.c.bf16 %v4263, %v4262
    %v4278 = vpack.c.bf16 %v4265, %v4264
    %v4279 = vpack.c.bf16 %v4267, %v4266
    %s4280 = scalar_lea.vmem %s7, 16
    %v4281 = vld [vmem:[%s4280] sm:$0xf]
    %v4282 = vld [vmem:[%s4280 + $0x4] sm:$0xf]
    %v4283 = vld [vmem:[%s4280 + $0x8] sm:$0xf]
    %v4284 = vld [vmem:[%s4280 + $0xc] sm:$0xf]
    %v4289 = vunpack.c.l.b16 %v4281
    %v4290 = vunpack.c.l.b16 %v4282
    %v4291 = vunpack.c.l.b16 %v4283
    %v4292 = vunpack.c.l.b16 %v4284
    %v4293 = vpack.c.b16 %v4290, %v4289
    %v4294 = vpack.c.b16 %v4292, %v4291
    %v4298 = vsel %vm718, %v4268, 0
    %v4301 = vsel %vm718, %v4269, 0
    %v4304 = vsel %vm718, %v4270, 0
    %v4307 = vsel %vm718, %v4271, 0
    %v4310 = vsel %vm718, %v4272, 0
    %v4313 = vsel %vm718, %v4273, 0
    %v4316 = vsel %vm718, %v4274, 0
    %v4319 = vsel %vm718, %v4275, 0
    %v4322 = vsel %vm718, %v4276, 0
    %v4325 = vsel %vm718, %v4277, 0
    %v4328 = vsel %vm718, %v4278, 0
    %v4331 = vsel %vm718, %v4279, 0
    %4333 = vmatprep.subr.bf16.mxu0 0
    %4334 = vmatpush1.bf16.msra.mxu0 %v4293
    %4335 = vmatprep.subr.bf16.mxu0 0
    %4336 = vmatpush1.bf16.msra.mxu0 %v4294
    %4337 = vmatprep.subr.bf16.mxu0 0
    %4338 = vmatpush1.bf16.msra.mxu0 0
    %4339 = vmatprep.subr.bf16.mxu0 0
    %4340 = vmatpush1.bf16.msra.mxu0 0
    %4341 = vmatprep.subr.bf16.mxu0 0
    %4342 = vmatpush1.bf16.msra.mxu0 0
    %4343 = vmatprep.subr.bf16.mxu0 0
    %4344 = vmatpush1.bf16.msra.mxu0 0
    %4345 = vmatprep.subr.bf16.mxu0 0
    %4346 = vmatpush1.bf16.msra.mxu0 0
    %4347 = vmatprep.subr.bf16.mxu0 0
    %4348 = vmatpush1.bf16.msra.mxu0 0
    %4349 = vmatprep.subr.bf16.mxu0 0
    %4350 = vmatpush1.bf16.msra.mxu0 0
    %4351 = vmatprep.subr.bf16.mxu0 0
    %4352 = vmatpush1.bf16.msra.mxu0 0
    %4353 = vmatprep.subr.bf16.mxu0 0
    %4354 = vmatpush1.bf16.msra.mxu0 0
    %4355 = vmatprep.subr.bf16.mxu0 0
    %4356 = vmatpush1.bf16.msra.mxu0 0
    %4357 = vmatprep.subr.bf16.mxu0 0
    %4358 = vmatpush1.bf16.msra.mxu0 0
    %4359 = vmatprep.subr.bf16.mxu0 0
    %4360 = vmatpush1.bf16.msra.mxu0 0
    %4361 = vmatprep.subr.bf16.mxu0 0
    %4362 = vmatpush1.bf16.msra.mxu0 0
    %4363 = vmatprep.subr.bf16.mxu0 0
    %4364 = vmatpush1.bf16.msra.mxu0 0
    %4365 = vmatprep.mubr.bf16.mxu0 0
    %4366 = vmatmul.mubr.bf16.gmra.mrb[0].mxu0 %v4298
    %v4367 = vpop.f32.mrb[0].mxu0
    %v4368 = vadd.f32 0.0, %v4367
    %v4369 = vpop.f32.mrb[0].mxu0
    %v4370 = vpop.f32.mrb[0].mxu0
    %v4371 = vadd.f32 0.0, %v4370
    %v4372 = vpop.f32.mrb[0].mxu0
    %4373 = vmatprep.mubr.bf16.mxu0 0
    %4374 = vmatmul.mubr.bf16.gmra.mrb[0].mxu0 %v4301
    %v4375 = vpop.f32.mrb[0].mxu0
    %v4376 = vadd.f32 0.0, %v4375
    %v4377 = vpop.f32.mrb[0].mxu0
    %v4378 = vpop.f32.mrb[0].mxu0
    %v4379 = vadd.f32 0.0, %v4378
    %v4380 = vpop.f32.mrb[0].mxu0
    %4381 = vmatprep.mubr.bf16.mxu0 0
    %4382 = vmatmul.mubr.bf16.gmra.mrb[0].mxu0 %v4304
    %v4383 = vpop.f32.mrb[0].mxu0
    %v4384 = vadd.f32 0.0, %v4383
    %v4385 = vpop.f32.mrb[0].mxu0
    %v4386 = vpop.f32.mrb[0].mxu0
    %v4387 = vadd.f32 0.0, %v4386
    %v4388 = vpop.f32.mrb[0].mxu0
    %4389 = vmatprep.mubr.bf16.mxu0 0
    %4390 = vmatmul.mubr.bf16.gmra.mrb[0].mxu0 %v4307
    %v4391 = vpop.f32.mrb[0].mxu0
    %v4392 = vadd.f32 0.0, %v4391
    %v4393 = vpop.f32.mrb[0].mxu0
    %v4394 = vpop.f32.mrb[0].mxu0
    %v4395 = vadd.f32 0.0, %v4394
    %v4396 = vpop.f32.mrb[0].mxu0
    %4397 = vmatprep.mubr.bf16.mxu0 0
    %4398 = vmatmul.mubr.bf16.gmra.mrb[0].mxu0 %v4310
    %v4399 = vpop.f32.mrb[0].mxu0
    %v4400 = vadd.f32 0.0, %v4399
    %v4401 = vpop.f32.mrb[0].mxu0
    %v4402 = vpop.f32.mrb[0].mxu0
    %v4403 = vadd.f32 0.0, %v4402
    %v4404 = vpop.f32.mrb[0].mxu0
    %4405 = vmatprep.mubr.bf16.mxu0 0
    %4406 = vmatmul.mubr.bf16.gmra.mrb[0].mxu0 %v4313
    %v4407 = vpop.f32.mrb[0].mxu0
    %v4408 = vadd.f32 0.0, %v4407
    %v4409 = vpop.f32.mrb[0].mxu0
    %v4410 = vpop.f32.mrb[0].mxu0
    %v4411 = vadd.f32 0.0, %v4410
    %v4412 = vpop.f32.mrb[0].mxu0
    %4413 = vmatprep.mubr.bf16.mxu0 0
    %4414 = vmatmul.mubr.bf16.gmra.mrb[0].mxu0 %v4316
    %v4415 = vpop.f32.mrb[0].mxu0
    %v4416 = vadd.f32 0.0, %v4415
    %v4417 = vpop.f32.mrb[0].mxu0
    %v4418 = vpop.f32.mrb[0].mxu0
    %v4419 = vadd.f32 0.0, %v4418
    %v4420 = vpop.f32.mrb[0].mxu0
    %4421 = vmatprep.mubr.bf16.mxu0 0
    %4422 = vmatmul.mubr.bf16.gmra.mrb[0].mxu0 %v4319
    %v4423 = vpop.f32.mrb[0].mxu0
    %v4424 = vadd.f32 0.0, %v4423
    %v4425 = vpop.f32.mrb[0].mxu0
    %v4426 = vpop.f32.mrb[0].mxu0
    %v4427 = vadd.f32 0.0, %v4426
    %v4428 = vpop.f32.mrb[0].mxu0
    %4429 = vmatprep.mubr.bf16.mxu0 0
    %4430 = vmatmul.mubr.bf16.gmra.mrb[0].mxu0 %v4322
    %v4431 = vpop.f32.mrb[0].mxu0
    %v4432 = vadd.f32 0.0, %v4431
    %v4433 = vpop.f32.mrb[0].mxu0
    %v4434 = vpop.f32.mrb[0].mxu0
    %v4435 = vadd.f32 0.0, %v4434
    %v4436 = vpop.f32.mrb[0].mxu0
    %4437 = vmatprep.mubr.bf16.mxu0 0
    %4438 = vmatmul.mubr.bf16.gmra.mrb[0].mxu0 %v4325
    %v4439 = vpop.f32.mrb[0].mxu0
    %v4440 = vadd.f32 0.0, %v4439
    %v4441 = vpop.f32.mrb[0].mxu0
    %v4442 = vpop.f32.mrb[0].mxu0
    %v4443 = vadd.f32 0.0, %v4442
    %v4444 = vpop.f32.mrb[0].mxu0
    %4445 = vmatprep.mubr.bf16.mxu0 0
    %4446 = vmatmul.mubr.bf16.gmra.mrb[0].mxu0 %v4328
    %v4447 = vpop.f32.mrb[0].mxu0
    %v4448 = vadd.f32 0.0, %v4447
    %v4449 = vpop.f32.mrb[0].mxu0
    %v4450 = vpop.f32.mrb[0].mxu0
    %v4451 = vadd.f32 0.0, %v4450
    %v4452 = vpop.f32.mrb[0].mxu0
    %4453 = vmatprep.mubr.bf16.mxu0 0
    %4454 = vmatmul.mubr.bf16.gmra.mrb[0].mxu0 %v4331
    %v4455 = vpop.f32.mrb[0].mxu0
    %v4456 = vadd.f32 0.0, %v4455
    %v4457 = vpop.f32.mrb[0].mxu0
    %v4458 = vpop.f32.mrb[0].mxu0
    %v4459 = vadd.f32 0.0, %v4458
    %v4460 = vpop.f32.mrb[0].mxu0
    %4461 = vdwg.mxu0
    %4465 = vrot.lane.b32.xlu0 %v4368, 96
    %v4466 = vpop.permute.xlu0 %4465
    %4467 = vrot.lane.b32.xlu0 %v4371, 96
    %v4468 = vpop.permute.xlu0 %4467
    %4469 = vrot.lane.b32.xlu0 %v4376, 96
    %v4470 = vpop.permute.xlu0 %4469
    %v4471 = vsel %vm718, %v4368, 0
    %v4473 = vsel %vm718, %v4371, 0
    %v4475 = vsel %vm718, %v4376, 0
    %v4477 = vsel %vm718, %v4466, 0
    %v4479 = vsel %vm718, %v4468, 0
    %v4481 = vsel %vm718, %v4470, 0
    %4483 = vmatprep.subr.mxu0 0.0
    %4484 = vmatpush1.xpose.msra.mxu0 %v4477
    %4485 = vmatprep.subr.mxu0 0.0
    %4486 = vmatpush1.xpose.msra.mxu0 %v4479
    %4487 = vmatprep.subr.mxu0 0.0
    %4488 = vmatpush1.xpose.msra.mxu0 %v4481
    %4489 = vmatprep.subr.mxu0 0.0
    %4490 = vmatpush1.xpose.msra.mxu0 0.0
    %4491 = vmatprep.subr.mxu0 0.0
    %4492 = vmatpush1.xpose.msra.mxu0 0.0
    %4493 = vmatprep.subr.mxu0 0.0
    %4494 = vmatpush1.xpose.msra.mxu0 0.0
    %4495 = vmatprep.subr.mxu0 0.0
    %4496 = vmatpush1.xpose.msra.mxu0 0.0
    %4497 = vmatprep.subr.mxu0 0.0
    %4498 = vmatpush1.xpose.msra.mxu0 0.0
    %4499 = vmatprep.subr.mxu0 0.0
    %4500 = vmatpush1.xpose.msra.mxu0 0.0
    %4501 = vmatprep.subr.mxu0 0.0
    %4502 = vmatpush1.xpose.msra.mxu0 0.0
    %4503 = vmatprep.subr.mxu0 0.0
    %4504 = vmatpush1.xpose.msra.mxu0 0.0
    %4505 = vmatprep.subr.mxu0 0.0
    %4506 = vmatpush1.xpose.msra.mxu0 0.0
    %4507 = vmatprep.subr.mxu0 0.0
    %4508 = vmatpush1.xpose.msra.mxu0 0.0
    %4509 = vmatprep.subr.mxu0 0.0
    %4510 = vmatpush1.xpose.msra.mxu0 0.0
    %4511 = vmatprep.subr.mxu0 0.0
    %4512 = vmatpush1.xpose.msra.mxu0 0.0
    %4513 = vmatprep.subr.mxu0 0.0
    %4514 = vmatpush1.xpose.msra.mxu0 0.0
    %4515 = vmatprep.subr.mxu0 0.0
    %4516 = vmatpush1.xpose.msra.mxu0 0.0
    %4517 = vmatprep.subr.mxu0 0.0
    %4518 = vmatpush1.xpose.msra.mxu0 0.0
    %4519 = vmatprep.subr.mxu0 0.0
    %4520 = vmatpush1.xpose.msra.mxu0 0.0
    %4521 = vmatprep.subr.mxu0 0.0
    %4522 = vmatpush1.xpose.msra.mxu0 0.0
    %4523 = vmatprep.subr.mxu0 0.0
    %4524 = vmatpush1.xpose.msra.mxu0 0.0
    %4525 = vmatprep.subr.mxu0 0.0
    %4526 = vmatpush1.xpose.msra.mxu0 0.0
    %4527 = vmatprep.subr.mxu0 0.0
    %4528 = vmatpush1.xpose.msra.mxu0 0.0
    %4529 = vmatprep.subr.mxu0 0.0
    %4530 = vmatpush1.xpose.msra.mxu0 0.0
    %4531 = vmatprep.subr.mxu0 0.0
    %4532 = vmatpush1.xpose.msra.mxu0 0.0
    %4533 = vmatprep.subr.mxu0 0.0
    %4534 = vmatpush1.xpose.msra.mxu0 0.0
    %4535 = vmatprep.subr.mxu0 0.0
    %4536 = vmatpush1.xpose.msra.mxu0 0.0
    %4537 = vmatprep.subr.mxu0 0.0
    %4538 = vmatpush1.xpose.msra.mxu0 0.0
    %4539 = vmatprep.subr.mxu0 0.0
    %4540 = vmatpush1.xpose.msra.mxu0 0.0
    %4541 = vmatprep.subr.mxu0 0.0
    %4542 = vmatpush1.xpose.msra.mxu0 0.0
    %4543 = vmatprep.subr.mxu0 0.0
    %4544 = vmatpush1.xpose.msra.mxu0 0.0
    %4545 = vmatprep.subr.mxu0 0.0
    %4546 = vmatpush1.xpose.msra.mxu0 0.0
    %4547 = vmatprep.mubr.f32.mxu0 0.0
    %4548 = vmatmul.mubr.f32.gmra.mrb[0].mxu0 %v4471
    %v4549 = vpop.f32.mrb[0].mxu0
    %v4550 = vadd.f32 0.0, %v4549
    %v4551 = vpop.f32.mrb[0].mxu0
    %4552 = vmatprep.mubr.f32.mxu0 0.0
    %4553 = vmatmul.mubr.f32.gmra.mrb[0].mxu0 %v4473
    %v4554 = vpop.f32.mrb[0].mxu0
    %v4555 = vadd.f32 0.0, %v4554
    %v4556 = vpop.f32.mrb[0].mxu0
    %4557 = vmatprep.mubr.f32.mxu0 0.0
    %4558 = vmatmul.mubr.f32.gmra.mrb[0].mxu0 %v4475
    %v4559 = vpop.f32.mrb[0].mxu0
    %v4560 = vadd.f32 0.0, %v4559
    %v4561 = vpop.f32.mrb[0].mxu0
    %4562 = vdwg.mxu0
    %4566 = vrot.lane.b32.xlu0 %v4379, 96
    %v4567 = vpop.permute.xlu0 %4566
    %4568 = vrot.lane.b32.xlu0 %v4384, 96
    %v4569 = vpop.permute.xlu0 %4568
    %4570 = vrot.lane.b32.xlu0 %v4387, 96
    %v4571 = vpop.permute.xlu0 %4570
    %v4572 = vsel %vm718, %v4379, 0
    %v4574 = vsel %vm718, %v4384, 0
    %v4576 = vsel %vm718, %v4387, 0
    %v4578 = vsel %vm718, %v4567, 0
    %v4580 = vsel %vm718, %v4569, 0
    %v4582 = vsel %vm718, %v4571, 0
    %4584 = vmatprep.subr.mxu0 0.0
    %4585 = vmatpush1.xpose.msra.mxu0 %v4578
    %4586 = vmatprep.subr.mxu0 0.0
    %4587 = vmatpush1.xpose.msra.mxu0 %v4580
    %4588 = vmatprep.subr.mxu0 0.0
    %4589 = vmatpush1.xpose.msra.mxu0 %v4582
    %4590 = vmatprep.subr.mxu0 0.0
    %4591 = vmatpush1.xpose.msra.mxu0 0.0
    %4592 = vmatprep.subr.mxu0 0.0
    %4593 = vmatpush1.xpose.msra.mxu0 0.0
    %4594 = vmatprep.subr.mxu0 0.0
    %4595 = vmatpush1.xpose.msra.mxu0 0.0
    %4596 = vmatprep.subr.mxu0 0.0
    %4597 = vmatpush1.xpose.msra.mxu0 0.0
    %4598 = vmatprep.subr.mxu0 0.0
    %4599 = vmatpush1.xpose.msra.mxu0 0.0
    %4600 = vmatprep.subr.mxu0 0.0
    %4601 = vmatpush1.xpose.msra.mxu0 0.0
    %4602 = vmatprep.subr.mxu0 0.0
    %4603 = vmatpush1.xpose.msra.mxu0 0.0
    %4604 = vmatprep.subr.mxu0 0.0
    %4605 = vmatpush1.xpose.msra.mxu0 0.0
    %4606 = vmatprep.subr.mxu0 0.0
    %4607 = vmatpush1.xpose.msra.mxu0 0.0
    %4608 = vmatprep.subr.mxu0 0.0
    %4609 = vmatpush1.xpose.msra.mxu0 0.0
    %4610 = vmatprep.subr.mxu0 0.0
    %4611 = vmatpush1.xpose.msra.mxu0 0.0
    %4612 = vmatprep.subr.mxu0 0.0
    %4613 = vmatpush1.xpose.msra.mxu0 0.0
    %4614 = vmatprep.subr.mxu0 0.0
    %4615 = vmatpush1.xpose.msra.mxu0 0.0
    %4616 = vmatprep.subr.mxu0 0.0
    %4617 = vmatpush1.xpose.msra.mxu0 0.0
    %4618 = vmatprep.subr.mxu0 0.0
    %4619 = vmatpush1.xpose.msra.mxu0 0.0
    %4620 = vmatprep.subr.mxu0 0.0
    %4621 = vmatpush1.xpose.msra.mxu0 0.0
    %4622 = vmatprep.subr.mxu0 0.0
    %4623 = vmatpush1.xpose.msra.mxu0 0.0
    %4624 = vmatprep.subr.mxu0 0.0
    %4625 = vmatpush1.xpose.msra.mxu0 0.0
    %4626 = vmatprep.subr.mxu0 0.0
    %4627 = vmatpush1.xpose.msra.mxu0 0.0
    %4628 = vmatprep.subr.mxu0 0.0
    %4629 = vmatpush1.xpose.msra.mxu0 0.0
    %4630 = vmatprep.subr.mxu0 0.0
    %4631 = vmatpush1.xpose.msra.mxu0 0.0
    %4632 = vmatprep.subr.mxu0 0.0
    %4633 = vmatpush1.xpose.msra.mxu0 0.0
    %4634 = vmatprep.subr.mxu0 0.0
    %4635 = vmatpush1.xpose.msra.mxu0 0.0
    %4636 = vmatprep.subr.mxu0 0.0
    %4637 = vmatpush1.xpose.msra.mxu0 0.0
    %4638 = vmatprep.subr.mxu0 0.0
    %4639 = vmatpush1.xpose.msra.mxu0 0.0
    %4640 = vmatprep.subr.mxu0 0.0
    %4641 = vmatpush1.xpose.msra.mxu0 0.0
    %4642 = vmatprep.subr.mxu0 0.0
    %4643 = vmatpush1.xpose.msra.mxu0 0.0
    %4644 = vmatprep.subr.mxu0 0.0
    %4645 = vmatpush1.xpose.msra.mxu0 0.0
    %4646 = vmatprep.subr.mxu0 0.0
    %4647 = vmatpush1.xpose.msra.mxu0 0.0
    %4648 = vmatprep.mubr.f32.mxu0 0.0
    %4649 = vmatmul.mubr.f32.gmra.mrb[0].mxu0 %v4572
    %v4650 = vpop.f32.mrb[0].mxu0
    %v4651 = vadd.f32 0.0, %v4650
    %v4652 = vpop.f32.mrb[0].mxu0
    %4653 = vmatprep.mubr.f32.mxu0 0.0
    %4654 = vmatmul.mubr.f32.gmra.mrb[0].mxu0 %v4574
    %v4655 = vpop.f32.mrb[0].mxu0
    %v4656 = vadd.f32 0.0, %v4655
    %v4657 = vpop.f32.mrb[0].mxu0
    %4658 = vmatprep.mubr.f32.mxu0 0.0
    %4659 = vmatmul.mubr.f32.gmra.mrb[0].mxu0 %v4576
    %v4660 = vpop.f32.mrb[0].mxu0
    %v4661 = vadd.f32 0.0, %v4660
    %v4662 = vpop.f32.mrb[0].mxu0
    %4663 = vdwg.mxu0
    %4667 = vrot.lane.b32.xlu0 %v4392, 96
    %v4668 = vpop.permute.xlu0 %4667
    %4669 = vrot.lane.b32.xlu0 %v4395, 96
    %v4670 = vpop.permute.xlu0 %4669
    %4671 = vrot.lane.b32.xlu0 %v4400, 96
    %v4672 = vpop.permute.xlu0 %4671
    %v4673 = vsel %vm718, %v4392, 0
    %v4675 = vsel %vm718, %v4395, 0
    %v4677 = vsel %vm718, %v4400, 0
    %v4679 = vsel %vm718, %v4668, 0
    %v4681 = vsel %vm718, %v4670, 0
    %v4683 = vsel %vm718, %v4672, 0
    %4685 = vmatprep.subr.mxu0 0.0
    %4686 = vmatpush1.xpose.msra.mxu0 %v4679
    %4687 = vmatprep.subr.mxu0 0.0
    %4688 = vmatpush1.xpose.msra.mxu0 %v4681
    %4689 = vmatprep.subr.mxu0 0.0
    %4690 = vmatpush1.xpose.msra.mxu0 %v4683
    %4691 = vmatprep.subr.mxu0 0.0
    %4692 = vmatpush1.xpose.msra.mxu0 0.0
    %4693 = vmatprep.subr.mxu0 0.0
    %4694 = vmatpush1.xpose.msra.mxu0 0.0
    %4695 = vmatprep.subr.mxu0 0.0
    %4696 = vmatpush1.xpose.msra.mxu0 0.0
    %4697 = vmatprep.subr.mxu0 0.0
    %4698 = vmatpush1.xpose.msra.mxu0 0.0
    %4699 = vmatprep.subr.mxu0 0.0
    %4700 = vmatpush1.xpose.msra.mxu0 0.0
    %4701 = vmatprep.subr.mxu0 0.0
    %4702 = vmatpush1.xpose.msra.mxu0 0.0
    %4703 = vmatprep.subr.mxu0 0.0
    %4704 = vmatpush1.xpose.msra.mxu0 0.0
    %4705 = vmatprep.subr.mxu0 0.0
    %4706 = vmatpush1.xpose.msra.mxu0 0.0
    %4707 = vmatprep.subr.mxu0 0.0
    %4708 = vmatpush1.xpose.msra.mxu0 0.0
    %4709 = vmatprep.subr.mxu0 0.0
    %4710 = vmatpush1.xpose.msra.mxu0 0.0
    %4711 = vmatprep.subr.mxu0 0.0
    %4712 = vmatpush1.xpose.msra.mxu0 0.0
    %4713 = vmatprep.subr.mxu0 0.0
    %4714 = vmatpush1.xpose.msra.mxu0 0.0
    %4715 = vmatprep.subr.mxu0 0.0
    %4716 = vmatpush1.xpose.msra.mxu0 0.0
    %4717 = vmatprep.subr.mxu0 0.0
    %4718 = vmatpush1.xpose.msra.mxu0 0.0
    %4719 = vmatprep.subr.mxu0 0.0
    %4720 = vmatpush1.xpose.msra.mxu0 0.0
    %4721 = vmatprep.subr.mxu0 0.0
    %4722 = vmatpush1.xpose.msra.mxu0 0.0
    %4723 = vmatprep.subr.mxu0 0.0
    %4724 = vmatpush1.xpose.msra.mxu0 0.0
    %4725 = vmatprep.subr.mxu0 0.0
    %4726 = vmatpush1.xpose.msra.mxu0 0.0
    %4727 = vmatprep.subr.mxu0 0.0
    %4728 = vmatpush1.xpose.msra.mxu0 0.0
    %4729 = vmatprep.subr.mxu0 0.0
    %4730 = vmatpush1.xpose.msra.mxu0 0.0
    %4731 = vmatprep.subr.mxu0 0.0
    %4732 = vmatpush1.xpose.msra.mxu0 0.0
    %4733 = vmatprep.subr.mxu0 0.0
    %4734 = vmatpush1.xpose.msra.mxu0 0.0
    %4735 = vmatprep.subr.mxu0 0.0
    %4736 = vmatpush1.xpose.msra.mxu0 0.0
    %4737 = vmatprep.subr.mxu0 0.0
    %4738 = vmatpush1.xpose.msra.mxu0 0.0
    %4739 = vmatprep.subr.mxu0 0.0
    %4740 = vmatpush1.xpose.msra.mxu0 0.0
    %4741 = vmatprep.subr.mxu0 0.0
    %4742 = vmatpush1.xpose.msra.mxu0 0.0
    %4743 = vmatprep.subr.mxu0 0.0
    %4744 = vmatpush1.xpose.msra.mxu0 0.0
    %4745 = vmatprep.subr.mxu0 0.0
    %4746 = vmatpush1.xpose.msra.mxu0 0.0
    %4747 = vmatprep.subr.mxu0 0.0
    %4748 = vmatpush1.xpose.msra.mxu0 0.0
    %4749 = vmatprep.mubr.f32.mxu0 0.0
    %4750 = vmatmul.mubr.f32.gmra.mrb[0].mxu0 %v4673
    %v4751 = vpop.f32.mrb[0].mxu0
    %v4752 = vadd.f32 0.0, %v4751
    %v4753 = vpop.f32.mrb[0].mxu0
    %4754 = vmatprep.mubr.f32.mxu0 0.0
    %4755 = vmatmul.mubr.f32.gmra.mrb[0].mxu0 %v4675
    %v4756 = vpop.f32.mrb[0].mxu0
    %v4757 = vadd.f32 0.0, %v4756
    %v4758 = vpop.f32.mrb[0].mxu0
    %4759 = vmatprep.mubr.f32.mxu0 0.0
    %4760 = vmatmul.mubr.f32.gmra.mrb[0].mxu0 %v4677
    %v4761 = vpop.f32.mrb[0].mxu0
    %v4762 = vadd.f32 0.0, %v4761
    %v4763 = vpop.f32.mrb[0].mxu0
    %4764 = vdwg.mxu0
    %4768 = vrot.lane.b32.xlu0 %v4403, 96
    %v4769 = vpop.permute.xlu0 %4768
    %4770 = vrot.lane.b32.xlu0 %v4408, 96
    %v4771 = vpop.permute.xlu0 %4770
    %4772 = vrot.lane.b32.xlu0 %v4411, 96
    %v4773 = vpop.permute.xlu0 %4772
    %v4774 = vsel %vm718, %v4403, 0
    %v4776 = vsel %vm718, %v4408, 0
    %v4778 = vsel %vm718, %v4411, 0
    %v4780 = vsel %vm718, %v4769, 0
    %v4782 = vsel %vm718, %v4771, 0
    %v4784 = vsel %vm718, %v4773, 0
    %4786 = vmatprep.subr.mxu0 0.0
    %4787 = vmatpush1.xpose.msra.mxu0 %v4780
    %4788 = vmatprep.subr.mxu0 0.0
    %4789 = vmatpush1.xpose.msra.mxu0 %v4782
    %4790 = vmatprep.subr.mxu0 0.0
    %4791 = vmatpush1.xpose.msra.mxu0 %v4784
    %4792 = vmatprep.subr.mxu0 0.0
    %4793 = vmatpush1.xpose.msra.mxu0 0.0
    %4794 = vmatprep.subr.mxu0 0.0
    %4795 = vmatpush1.xpose.msra.mxu0 0.0
    %4796 = vmatprep.subr.mxu0 0.0
    %4797 = vmatpush1.xpose.msra.mxu0 0.0
    %4798 = vmatprep.subr.mxu0 0.0
    %4799 = vmatpush1.xpose.msra.mxu0 0.0
    %4800 = vmatprep.subr.mxu0 0.0
    %4801 = vmatpush1.xpose.msra.mxu0 0.0
    %4802 = vmatprep.subr.mxu0 0.0
    %4803 = vmatpush1.xpose.msra.mxu0 0.0
    %4804 = vmatprep.subr.mxu0 0.0
    %4805 = vmatpush1.xpose.msra.mxu0 0.0
    %4806 = vmatprep.subr.mxu0 0.0
    %4807 = vmatpush1.xpose.msra.mxu0 0.0
    %4808 = vmatprep.subr.mxu0 0.0
    %4809 = vmatpush1.xpose.msra.mxu0 0.0
    %4810 = vmatprep.subr.mxu0 0.0
    %4811 = vmatpush1.xpose.msra.mxu0 0.0
    %4812 = vmatprep.subr.mxu0 0.0
    %4813 = vmatpush1.xpose.msra.mxu0 0.0
    %4814 = vmatprep.subr.mxu0 0.0
    %4815 = vmatpush1.xpose.msra.mxu0 0.0
    %4816 = vmatprep.subr.mxu0 0.0
    %4817 = vmatpush1.xpose.msra.mxu0 0.0
    %4818 = vmatprep.subr.mxu0 0.0
    %4819 = vmatpush1.xpose.msra.mxu0 0.0
    %4820 = vmatprep.subr.mxu0 0.0
    %4821 = vmatpush1.xpose.msra.mxu0 0.0
    %4822 = vmatprep.subr.mxu0 0.0
    %4823 = vmatpush1.xpose.msra.mxu0 0.0
    %4824 = vmatprep.subr.mxu0 0.0
    %4825 = vmatpush1.xpose.msra.mxu0 0.0
    %4826 = vmatprep.subr.mxu0 0.0
    %4827 = vmatpush1.xpose.msra.mxu0 0.0
    %4828 = vmatprep.subr.mxu0 0.0
    %4829 = vmatpush1.xpose.msra.mxu0 0.0
    %4830 = vmatprep.subr.mxu0 0.0
    %4831 = vmatpush1.xpose.msra.mxu0 0.0
    %4832 = vmatprep.subr.mxu0 0.0
    %4833 = vmatpush1.xpose.msra.mxu0 0.0
    %4834 = vmatprep.subr.mxu0 0.0
    %4835 = vmatpush1.xpose.msra.mxu0 0.0
    %4836 = vmatprep.subr.mxu0 0.0
    %4837 = vmatpush1.xpose.msra.mxu0 0.0
    %4838 = vmatprep.subr.mxu0 0.0
    %4839 = vmatpush1.xpose.msra.mxu0 0.0
    %4840 = vmatprep.subr.mxu0 0.0
    %4841 = vmatpush1.xpose.msra.mxu0 0.0
    %4842 = vmatprep.subr.mxu0 0.0
    %4843 = vmatpush1.xpose.msra.mxu0 0.0
    %4844 = vmatprep.subr.mxu0 0.0
    %4845 = vmatpush1.xpose.msra.mxu0 0.0
    %4846 = vmatprep.subr.mxu0 0.0
    %4847 = vmatpush1.xpose.msra.mxu0 0.0
    %4848 = vmatprep.subr.mxu0 0.0
    %4849 = vmatpush1.xpose.msra.mxu0 0.0
    %4850 = vmatprep.mubr.f32.mxu0 0.0
    %4851 = vmatmul.mubr.f32.gmra.mrb[0].mxu0 %v4774
    %v4852 = vpop.f32.mrb[0].mxu0
    %v4853 = vadd.f32 0.0, %v4852
    %v4854 = vpop.f32.mrb[0].mxu0
    %4855 = vmatprep.mubr.f32.mxu0 0.0
    %4856 = vmatmul.mubr.f32.gmra.mrb[0].mxu0 %v4776
    %v4857 = vpop.f32.mrb[0].mxu0
    %v4858 = vadd.f32 0.0, %v4857
    %v4859 = vpop.f32.mrb[0].mxu0
    %4860 = vmatprep.mubr.f32.mxu0 0.0
    %4861 = vmatmul.mubr.f32.gmra.mrb[0].mxu0 %v4778
    %v4862 = vpop.f32.mrb[0].mxu0
    %v4863 = vadd.f32 0.0, %v4862
    %v4864 = vpop.f32.mrb[0].mxu0
    %4865 = vdwg.mxu0
    %4869 = vrot.lane.b32.xlu0 %v4416, 96
    %v4870 = vpop.permute.xlu0 %4869
    %4871 = vrot.lane.b32.xlu0 %v4419, 96
    %v4872 = vpop.permute.xlu0 %4871
    %4873 = vrot.lane.b32.xlu0 %v4424, 96
    %v4874 = vpop.permute.xlu0 %4873
    %v4875 = vsel %vm718, %v4416, 0
    %v4877 = vsel %vm718, %v4419, 0
    %v4879 = vsel %vm718, %v4424, 0
    %v4881 = vsel %vm718, %v4870, 0
    %v4883 = vsel %vm718, %v4872, 0
    %v4885 = vsel %vm718, %v4874, 0
    %4887 = vmatprep.subr.mxu0 0.0
    %4888 = vmatpush1.xpose.msra.mxu0 %v4881
    %4889 = vmatprep.subr.mxu0 0.0
    %4890 = vmatpush1.xpose.msra.mxu0 %v4883
    %4891 = vmatprep.subr.mxu0 0.0
    %4892 = vmatpush1.xpose.msra.mxu0 %v4885
    %4893 = vmatprep.subr.mxu0 0.0
    %4894 = vmatpush1.xpose.msra.mxu0 0.0
    %4895 = vmatprep.subr.mxu0 0.0
    %4896 = vmatpush1.xpose.msra.mxu0 0.0
    %4897 = vmatprep.subr.mxu0 0.0
    %4898 = vmatpush1.xpose.msra.mxu0 0.0
    %4899 = vmatprep.subr.mxu0 0.0
    %4900 = vmatpush1.xpose.msra.mxu0 0.0
    %4901 = vmatprep.subr.mxu0 0.0
    %4902 = vmatpush1.xpose.msra.mxu0 0.0
    %4903 = vmatprep.subr.mxu0 0.0
    %4904 = vmatpush1.xpose.msra.mxu0 0.0
    %4905 = vmatprep.subr.mxu0 0.0
    %4906 = vmatpush1.xpose.msra.mxu0 0.0
    %4907 = vmatprep.subr.mxu0 0.0
    %4908 = vmatpush1.xpose.msra.mxu0 0.0
    %4909 = vmatprep.subr.mxu0 0.0
    %4910 = vmatpush1.xpose.msra.mxu0 0.0
    %4911 = vmatprep.subr.mxu0 0.0
    %4912 = vmatpush1.xpose.msra.mxu0 0.0
    %4913 = vmatprep.subr.mxu0 0.0
    %4914 = vmatpush1.xpose.msra.mxu0 0.0
    %4915 = vmatprep.subr.mxu0 0.0
    %4916 = vmatpush1.xpose.msra.mxu0 0.0
    %4917 = vmatprep.subr.mxu0 0.0
    %4918 = vmatpush1.xpose.msra.mxu0 0.0
    %4919 = vmatprep.subr.mxu0 0.0
    %4920 = vmatpush1.xpose.msra.mxu0 0.0
    %4921 = vmatprep.subr.mxu0 0.0
    %4922 = vmatpush1.xpose.msra.mxu0 0.0
    %4923 = vmatprep.subr.mxu0 0.0
    %4924 = vmatpush1.xpose.msra.mxu0 0.0
    %4925 = vmatprep.subr.mxu0 0.0
    %4926 = vmatpush1.xpose.msra.mxu0 0.0
    %4927 = vmatprep.subr.mxu0 0.0
    %4928 = vmatpush1.xpose.msra.mxu0 0.0
    %4929 = vmatprep.subr.mxu0 0.0
    %4930 = vmatpush1.xpose.msra.mxu0 0.0
    %4931 = vmatprep.subr.mxu0 0.0
    %4932 = vmatpush1.xpose.msra.mxu0 0.0
    %4933 = vmatprep.subr.mxu0 0.0
    %4934 = vmatpush1.xpose.msra.mxu0 0.0
    %4935 = vmatprep.subr.mxu0 0.0
    %4936 = vmatpush1.xpose.msra.mxu0 0.0
    %4937 = vmatprep.subr.mxu0 0.0
    %4938 = vmatpush1.xpose.msra.mxu0 0.0
    %4939 = vmatprep.subr.mxu0 0.0
    %4940 = vmatpush1.xpose.msra.mxu0 0.0
    %4941 = vmatprep.subr.mxu0 0.0
    %4942 = vmatpush1.xpose.msra.mxu0 0.0
    %4943 = vmatprep.subr.mxu0 0.0
    %4944 = vmatpush1.xpose.msra.mxu0 0.0
    %4945 = vmatprep.subr.mxu0 0.0
    %4946 = vmatpush1.xpose.msra.mxu0 0.0
    %4947 = vmatprep.subr.mxu0 0.0
    %4948 = vmatpush1.xpose.msra.mxu0 0.0
    %4949 = vmatprep.subr.mxu0 0.0
    %4950 = vmatpush1.xpose.msra.mxu0 0.0
    %4951 = vmatprep.mubr.f32.mxu0 0.0
    %4952 = vmatmul.mubr.f32.gmra.mrb[0].mxu0 %v4875
    %v4953 = vpop.f32.mrb[0].mxu0
    %v4954 = vadd.f32 0.0, %v4953
    %v4955 = vpop.f32.mrb[0].mxu0
    %4956 = vmatprep.mubr.f32.mxu0 0.0
    %4957 = vmatmul.mubr.f32.gmra.mrb[0].mxu0 %v4877
    %v4958 = vpop.f32.mrb[0].mxu0
    %v4959 = vadd.f32 0.0, %v4958
    %v4960 = vpop.f32.mrb[0].mxu0
    %4961 = vmatprep.mubr.f32.mxu0 0.0
    %4962 = vmatmul.mubr.f32.gmra.mrb[0].mxu0 %v4879
    %v4963 = vpop.f32.mrb[0].mxu0
    %v4964 = vadd.f32 0.0, %v4963
    %v4965 = vpop.f32.mrb[0].mxu0
    %4966 = vdwg.mxu0
    %4970 = vrot.lane.b32.xlu0 %v4427, 96
    %v4971 = vpop.permute.xlu0 %4970
    %4972 = vrot.lane.b32.xlu0 %v4432, 96
    %v4973 = vpop.permute.xlu0 %4972
    %4974 = vrot.lane.b32.xlu0 %v4435, 96
    %v4975 = vpop.permute.xlu0 %4974
    %v4976 = vsel %vm718, %v4427, 0
    %v4978 = vsel %vm718, %v4432, 0
    %v4980 = vsel %vm718, %v4435, 0
    %v4982 = vsel %vm718, %v4971, 0
    %v4984 = vsel %vm718, %v4973, 0
    %v4986 = vsel %vm718, %v4975, 0
    %4988 = vmatprep.subr.mxu0 0.0
    %4989 = vmatpush1.xpose.msra.mxu0 %v4982
    %4990 = vmatprep.subr.mxu0 0.0
    %4991 = vmatpush1.xpose.msra.mxu0 %v4984
    %4992 = vmatprep.subr.mxu0 0.0
    %4993 = vmatpush1.xpose.msra.mxu0 %v4986
    %4994 = vmatprep.subr.mxu0 0.0
    %4995 = vmatpush1.xpose.msra.mxu0 0.0
    %4996 = vmatprep.subr.mxu0 0.0
    %4997 = vmatpush1.xpose.msra.mxu0 0.0
    %4998 = vmatprep.subr.mxu0 0.0
    %4999 = vmatpush1.xpose.msra.mxu0 0.0
    %5000 = vmatprep.subr.mxu0 0.0
    %5001 = vmatpush1.xpose.msra.mxu0 0.0
    %5002 = vmatprep.subr.mxu0 0.0
    %5003 = vmatpush1.xpose.msra.mxu0 0.0
    %5004 = vmatprep.subr.mxu0 0.0
    %5005 = vmatpush1.xpose.msra.mxu0 0.0
    %5006 = vmatprep.subr.mxu0 0.0
    %5007 = vmatpush1.xpose.msra.mxu0 0.0
    %5008 = vmatprep.subr.mxu0 0.0
    %5009 = vmatpush1.xpose.msra.mxu0 0.0
    %5010 = vmatprep.subr.mxu0 0.0
    %5011 = vmatpush1.xpose.msra.mxu0 0.0
    %5012 = vmatprep.subr.mxu0 0.0
    %5013 = vmatpush1.xpose.msra.mxu0 0.0
    %5014 = vmatprep.subr.mxu0 0.0
    %5015 = vmatpush1.xpose.msra.mxu0 0.0
    %5016 = vmatprep.subr.mxu0 0.0
    %5017 = vmatpush1.xpose.msra.mxu0 0.0
    %5018 = vmatprep.subr.mxu0 0.0
    %5019 = vmatpush1.xpose.msra.mxu0 0.0
    %5020 = vmatprep.subr.mxu0 0.0
    %5021 = vmatpush1.xpose.msra.mxu0 0.0
    %5022 = vmatprep.subr.mxu0 0.0
    %5023 = vmatpush1.xpose.msra.mxu0 0.0
    %5024 = vmatprep.subr.mxu0 0.0
    %5025 = vmatpush1.xpose.msra.mxu0 0.0
    %5026 = vmatprep.subr.mxu0 0.0
    %5027 = vmatpush1.xpose.msra.mxu0 0.0
    %5028 = vmatprep.subr.mxu0 0.0
    %5029 = vmatpush1.xpose.msra.mxu0 0.0
    %5030 = vmatprep.subr.mxu0 0.0
    %5031 = vmatpush1.xpose.msra.mxu0 0.0
    %5032 = vmatprep.subr.mxu0 0.0
    %5033 = vmatpush1.xpose.msra.mxu0 0.0
    %5034 = vmatprep.subr.mxu0 0.0
    %5035 = vmatpush1.xpose.msra.mxu0 0.0
    %5036 = vmatprep.subr.mxu0 0.0
    %5037 = vmatpush1.xpose.msra.mxu0 0.0
    %5038 = vmatprep.subr.mxu0 0.0
    %5039 = vmatpush1.xpose.msra.mxu0 0.0
    %5040 = vmatprep.subr.mxu0 0.0
    %5041 = vmatpush1.xpose.msra.mxu0 0.0
    %5042 = vmatprep.subr.mxu0 0.0
    %5043 = vmatpush1.xpose.msra.mxu0 0.0
    %5044 = vmatprep.subr.mxu0 0.0
    %5045 = vmatpush1.xpose.msra.mxu0 0.0
    %5046 = vmatprep.subr.mxu0 0.0
    %5047 = vmatpush1.xpose.msra.mxu0 0.0
    %5048 = vmatprep.subr.mxu0 0.0
    %5049 = vmatpush1.xpose.msra.mxu0 0.0
    %5050 = vmatprep.subr.mxu0 0.0
    %5051 = vmatpush1.xpose.msra.mxu0 0.0
    %5052 = vmatprep.mubr.f32.mxu0 0.0
    %5053 = vmatmul.mubr.f32.gmra.mrb[0].mxu0 %v4976
    %v5054 = vpop.f32.mrb[0].mxu0
    %v5055 = vadd.f32 0.0, %v5054
    %v5056 = vpop.f32.mrb[0].mxu0
    %5057 = vmatprep.mubr.f32.mxu0 0.0
    %5058 = vmatmul.mubr.f32.gmra.mrb[0].mxu0 %v4978
    %v5059 = vpop.f32.mrb[0].mxu0
    %v5060 = vadd.f32 0.0, %v5059
    %v5061 = vpop.f32.mrb[0].mxu0
    %5062 = vmatprep.mubr.f32.mxu0 0.0
    %5063 = vmatmul.mubr.f32.gmra.mrb[0].mxu0 %v4980
    %v5064 = vpop.f32.mrb[0].mxu0
    %v5065 = vadd.f32 0.0, %v5064
    %v5066 = vpop.f32.mrb[0].mxu0
    %5067 = vdwg.mxu0
    %5071 = vrot.lane.b32.xlu0 %v4440, 96
    %v5072 = vpop.permute.xlu0 %5071
    %5073 = vrot.lane.b32.xlu0 %v4443, 96
    %v5074 = vpop.permute.xlu0 %5073
    %5075 = vrot.lane.b32.xlu0 %v4448, 96
    %v5076 = vpop.permute.xlu0 %5075
    %v5077 = vsel %vm718, %v4440, 0
    %v5079 = vsel %vm718, %v4443, 0
    %v5081 = vsel %vm718, %v4448, 0
    %v5083 = vsel %vm718, %v5072, 0
    %v5085 = vsel %vm718, %v5074, 0
    %v5087 = vsel %vm718, %v5076, 0
    %5089 = vmatprep.subr.mxu0 0.0
    %5090 = vmatpush1.xpose.msra.mxu0 %v5083
    %5091 = vmatprep.subr.mxu0 0.0
    %5092 = vmatpush1.xpose.msra.mxu0 %v5085
    %5093 = vmatprep.subr.mxu0 0.0
    %5094 = vmatpush1.xpose.msra.mxu0 %v5087
    %5095 = vmatprep.subr.mxu0 0.0
    %5096 = vmatpush1.xpose.msra.mxu0 0.0
    %5097 = vmatprep.subr.mxu0 0.0
    %5098 = vmatpush1.xpose.msra.mxu0 0.0
    %5099 = vmatprep.subr.mxu0 0.0
    %5100 = vmatpush1.xpose.msra.mxu0 0.0
    %5101 = vmatprep.subr.mxu0 0.0
    %5102 = vmatpush1.xpose.msra.mxu0 0.0
    %5103 = vmatprep.subr.mxu0 0.0
    %5104 = vmatpush1.xpose.msra.mxu0 0.0
    %5105 = vmatprep.subr.mxu0 0.0
    %5106 = vmatpush1.xpose.msra.mxu0 0.0
    %5107 = vmatprep.subr.mxu0 0.0
    %5108 = vmatpush1.xpose.msra.mxu0 0.0
    %5109 = vmatprep.subr.mxu0 0.0
    %5110 = vmatpush1.xpose.msra.mxu0 0.0
    %5111 = vmatprep.subr.mxu0 0.0
    %5112 = vmatpush1.xpose.msra.mxu0 0.0
    %5113 = vmatprep.subr.mxu0 0.0
    %5114 = vmatpush1.xpose.msra.mxu0 0.0
    %5115 = vmatprep.subr.mxu0 0.0
    %5116 = vmatpush1.xpose.msra.mxu0 0.0
    %5117 = vmatprep.subr.mxu0 0.0
    %5118 = vmatpush1.xpose.msra.mxu0 0.0
    %5119 = vmatprep.subr.mxu0 0.0
    %5120 = vmatpush1.xpose.msra.mxu0 0.0
    %5121 = vmatprep.subr.mxu0 0.0
    %5122 = vmatpush1.xpose.msra.mxu0 0.0
    %5123 = vmatprep.subr.mxu0 0.0
    %5124 = vmatpush1.xpose.msra.mxu0 0.0
    %5125 = vmatprep.subr.mxu0 0.0
    %5126 = vmatpush1.xpose.msra.mxu0 0.0
    %5127 = vmatprep.subr.mxu0 0.0
    %5128 = vmatpush1.xpose.msra.mxu0 0.0
    %5129 = vmatprep.subr.mxu0 0.0
    %5130 = vmatpush1.xpose.msra.mxu0 0.0
    %5131 = vmatprep.subr.mxu0 0.0
    %5132 = vmatpush1.xpose.msra.mxu0 0.0
    %5133 = vmatprep.subr.mxu0 0.0
    %5134 = vmatpush1.xpose.msra.mxu0 0.0
    %5135 = vmatprep.subr.mxu0 0.0
    %5136 = vmatpush1.xpose.msra.mxu0 0.0
    %5137 = vmatprep.subr.mxu0 0.0
    %5138 = vmatpush1.xpose.msra.mxu0 0.0
    %5139 = vmatprep.subr.mxu0 0.0
    %5140 = vmatpush1.xpose.msra.mxu0 0.0
    %5141 = vmatprep.subr.mxu0 0.0
    %5142 = vmatpush1.xpose.msra.mxu0 0.0
    %5143 = vmatprep.subr.mxu0 0.0
    %5144 = vmatpush1.xpose.msra.mxu0 0.0
    %5145 = vmatprep.subr.mxu0 0.0
    %5146 = vmatpush1.xpose.msra.mxu0 0.0
    %5147 = vmatprep.subr.mxu0 0.0
    %5148 = vmatpush1.xpose.msra.mxu0 0.0
    %5149 = vmatprep.subr.mxu0 0.0
    %5150 = vmatpush1.xpose.msra.mxu0 0.0
    %5151 = vmatprep.subr.mxu0 0.0
    %5152 = vmatpush1.xpose.msra.mxu0 0.0
    %5153 = vmatprep.mubr.f32.mxu0 0.0
    %5154 = vmatmul.mubr.f32.gmra.mrb[0].mxu0 %v5077
    %v5155 = vpop.f32.mrb[0].mxu0
    %v5156 = vadd.f32 0.0, %v5155
    %v5157 = vpop.f32.mrb[0].mxu0
    %5158 = vmatprep.mubr.f32.mxu0 0.0
    %5159 = vmatmul.mubr.f32.gmra.mrb[0].mxu0 %v5079
    %v5160 = vpop.f32.mrb[0].mxu0
    %v5161 = vadd.f32 0.0, %v5160
    %v5162 = vpop.f32.mrb[0].mxu0
    %5163 = vmatprep.mubr.f32.mxu0 0.0
    %5164 = vmatmul.mubr.f32.gmra.mrb[0].mxu0 %v5081
    %v5165 = vpop.f32.mrb[0].mxu0
    %v5166 = vadd.f32 0.0, %v5165
    %v5167 = vpop.f32.mrb[0].mxu0
    %5168 = vdwg.mxu0
    %5172 = vrot.lane.b32.xlu0 %v4451, 96
    %v5173 = vpop.permute.xlu0 %5172
    %5174 = vrot.lane.b32.xlu0 %v4456, 96
    %v5175 = vpop.permute.xlu0 %5174
    %5176 = vrot.lane.b32.xlu0 %v4459, 96
    %v5177 = vpop.permute.xlu0 %5176
    %v5178 = vsel %vm718, %v4451, 0
    %v5180 = vsel %vm718, %v4456, 0
    %v5182 = vsel %vm718, %v4459, 0
    %v5184 = vsel %vm718, %v5173, 0
    %v5186 = vsel %vm718, %v5175, 0
    %v5188 = vsel %vm718, %v5177, 0
    %5190 = vmatprep.subr.mxu0 0.0
    %5191 = vmatpush1.xpose.msra.mxu0 %v5184
    %5192 = vmatprep.subr.mxu0 0.0
    %5193 = vmatpush1.xpose.msra.mxu0 %v5186
    %5194 = vmatprep.subr.mxu0 0.0
    %5195 = vmatpush1.xpose.msra.mxu0 %v5188
    %5196 = vmatprep.subr.mxu0 0.0
    %5197 = vmatpush1.xpose.msra.mxu0 0.0
    %5198 = vmatprep.subr.mxu0 0.0
    %5199 = vmatpush1.xpose.msra.mxu0 0.0
    %5200 = vmatprep.subr.mxu0 0.0
    %5201 = vmatpush1.xpose.msra.mxu0 0.0
    %5202 = vmatprep.subr.mxu0 0.0
    %5203 = vmatpush1.xpose.msra.mxu0 0.0
    %5204 = vmatprep.subr.mxu0 0.0
    %5205 = vmatpush1.xpose.msra.mxu0 0.0
    %5206 = vmatprep.subr.mxu0 0.0
    %5207 = vmatpush1.xpose.msra.mxu0 0.0
    %5208 = vmatprep.subr.mxu0 0.0
    %5209 = vmatpush1.xpose.msra.mxu0 0.0
    %5210 = vmatprep.subr.mxu0 0.0
    %5211 = vmatpush1.xpose.msra.mxu0 0.0
    %5212 = vmatprep.subr.mxu0 0.0
    %5213 = vmatpush1.xpose.msra.mxu0 0.0
    %5214 = vmatprep.subr.mxu0 0.0
    %5215 = vmatpush1.xpose.msra.mxu0 0.0
    %5216 = vmatprep.subr.mxu0 0.0
    %5217 = vmatpush1.xpose.msra.mxu0 0.0
    %5218 = vmatprep.subr.mxu0 0.0
    %5219 = vmatpush1.xpose.msra.mxu0 0.0
    %5220 = vmatprep.subr.mxu0 0.0
    %5221 = vmatpush1.xpose.msra.mxu0 0.0
    %5222 = vmatprep.subr.mxu0 0.0
    %5223 = vmatpush1.xpose.msra.mxu0 0.0
    %5224 = vmatprep.subr.mxu0 0.0
    %5225 = vmatpush1.xpose.msra.mxu0 0.0
    %5226 = vmatprep.subr.mxu0 0.0
    %5227 = vmatpush1.xpose.msra.mxu0 0.0
    %5228 = vmatprep.subr.mxu0 0.0
    %5229 = vmatpush1.xpose.msra.mxu0 0.0
    %5230 = vmatprep.subr.mxu0 0.0
    %5231 = vmatpush1.xpose.msra.mxu0 0.0
    %5232 = vmatprep.subr.mxu0 0.0
    %5233 = vmatpush1.xpose.msra.mxu0 0.0
    %5234 = vmatprep.subr.mxu0 0.0
    %5235 = vmatpush1.xpose.msra.mxu0 0.0
    %5236 = vmatprep.subr.mxu0 0.0
    %5237 = vmatpush1.xpose.msra.mxu0 0.0
    %5238 = vmatprep.subr.mxu0 0.0
    %5239 = vmatpush1.xpose.msra.mxu0 0.0
    %5240 = vmatprep.subr.mxu0 0.0
    %5241 = vmatpush1.xpose.msra.mxu0 0.0
    %5242 = vmatprep.subr.mxu0 0.0
    %5243 = vmatpush1.xpose.msra.mxu0 0.0
    %5244 = vmatprep.subr.mxu0 0.0
    %5245 = vmatpush1.xpose.msra.mxu0 0.0
    %5246 = vmatprep.subr.mxu0 0.0
    %5247 = vmatpush1.xpose.msra.mxu0 0.0
    %5248 = vmatprep.subr.mxu0 0.0
    %5249 = vmatpush1.xpose.msra.mxu0 0.0
    %5250 = vmatprep.subr.mxu0 0.0
    %5251 = vmatpush1.xpose.msra.mxu0 0.0
    %5252 = vmatprep.subr.mxu0 0.0
    %5253 = vmatpush1.xpose.msra.mxu0 0.0
    %5254 = vmatprep.mubr.f32.mxu0 0.0
    %5255 = vmatmul.mubr.f32.gmra.mrb[0].mxu0 %v5178
    %v5256 = vpop.f32.mrb[0].mxu0
    %v5257 = vadd.f32 0.0, %v5256
    %v5258 = vpop.f32.mrb[0].mxu0
    %5259 = vmatprep.mubr.f32.mxu0 0.0
    %5260 = vmatmul.mubr.f32.gmra.mrb[0].mxu0 %v5180
    %v5261 = vpop.f32.mrb[0].mxu0
    %v5262 = vadd.f32 0.0, %v5261
    %v5263 = vpop.f32.mrb[0].mxu0
    %5264 = vmatprep.mubr.f32.mxu0 0.0
    %5265 = vmatmul.mubr.f32.gmra.mrb[0].mxu0 %v5182
    %v5266 = vpop.f32.mrb[0].mxu0
    %v5267 = vadd.f32 0.0, %v5266
    %v5268 = vpop.f32.mrb[0].mxu0
    %5269 = vdwg.mxu0
    %v5270 = vmul.f32 %v4550, 0.17677669
    %v5271 = vmul.f32 %v4555, 0.17677669
    %v5272 = vmul.f32 %v4560, 0.17677669
    %v5273 = vmul.f32 %v4651, 0.17677669
    %v5274 = vmul.f32 %v4656, 0.17677669
    %v5275 = vmul.f32 %v4661, 0.17677669
    %v5276 = vmul.f32 %v4752, 0.17677669
    %v5277 = vmul.f32 %v4757, 0.17677669
    %v5278 = vmul.f32 %v4762, 0.17677669
    %v5279 = vmul.f32 %v4853, 0.17677669
    %v5280 = vmul.f32 %v4858, 0.17677669
    %v5281 = vmul.f32 %v4863, 0.17677669
    %v5282 = vmul.f32 %v4954, 0.17677669
    %v5283 = vmul.f32 %v4959, 0.17677669
    %v5284 = vmul.f32 %v4964, 0.17677669
    %v5285 = vmul.f32 %v5055, 0.17677669
    %v5286 = vmul.f32 %v5060, 0.17677669
    %v5287 = vmul.f32 %v5065, 0.17677669
    %v5288 = vmul.f32 %v5156, 0.17677669
    %v5289 = vmul.f32 %v5161, 0.17677669
    %v5290 = vmul.f32 %v5166, 0.17677669
    %v5291 = vmul.f32 %v5257, 0.17677669
    %v5292 = vmul.f32 %v5262, 0.17677669
    %v5293 = vmul.f32 %v5267, 0.17677669
    %v5294 = vsub.f32 %v5270, %v1727
    %v5295 = vsub.f32 %v5271, %v1727
    %v5296 = vsub.f32 %v5272, %v1727
    %v5297 = vsub.f32 %v5273, %v1731
    %v5298 = vsub.f32 %v5274, %v1731
    %v5299 = vsub.f32 %v5275, %v1731
    %v5300 = vsub.f32 %v5276, %v1735
    %v5301 = vsub.f32 %v5277, %v1735
    %v5302 = vsub.f32 %v5278, %v1735
    %v5303 = vsub.f32 %v5279, %v1739
    %v5304 = vsub.f32 %v5280, %v1739
    %v5305 = vsub.f32 %v5281, %v1739
    %v5306 = vsub.f32 %v5282, %v1743
    %v5307 = vsub.f32 %v5283, %v1743
    %v5308 = vsub.f32 %v5284, %v1743
    %v5309 = vsub.f32 %v5285, %v1747
    %v5310 = vsub.f32 %v5286, %v1747
    %v5311 = vsub.f32 %v5287, %v1747
    %v5312 = vsub.f32 %v5288, %v1751
    %v5313 = vsub.f32 %v5289, %v1751
    %v5314 = vsub.f32 %v5290, %v1751
    %v5315 = vsub.f32 %v5291, %v1755
    %v5316 = vsub.f32 %v5292, %v1755
    %v5317 = vsub.f32 %v5293, %v1755
    %v5318 = vsel %vm1788, %v5294, -inf
    %5319 = vmax.xlane.f32.xlu0 %v5318
    %v5320 = vpop.xlane.xlu0 %5319
    %v5321 = vsel %vm1788, %v5295, -inf
    %5322 = vmax.xlane.f32.xlu0 %v5321
    %v5323 = vpop.xlane.xlu0 %5322
    %v5324 = vsel %vm1788, %v5296, -inf
    %5325 = vmax.xlane.f32.xlu0 %v5324
    %v5326 = vpop.xlane.xlu0 %5325
    %v5327 = vsel %vm1788, %v5297, -inf
    %5328 = vmax.xlane.f32.xlu0 %v5327
    %v5329 = vpop.xlane.xlu0 %5328
    %v5330 = vsel %vm1788, %v5298, -inf
    %5331 = vmax.xlane.f32.xlu0 %v5330
    %v5332 = vpop.xlane.xlu0 %5331
    %v5333 = vsel %vm1788, %v5299, -inf
    %5334 = vmax.xlane.f32.xlu0 %v5333
    %v5335 = vpop.xlane.xlu0 %5334
    %v5336 = vsel %vm1788, %v5300, -inf
    %5337 = vmax.xlane.f32.xlu0 %v5336
    %v5338 = vpop.xlane.xlu0 %5337
    %v5339 = vsel %vm1788, %v5301, -inf
    %5340 = vmax.xlane.f32.xlu0 %v5339
    %v5341 = vpop.xlane.xlu0 %5340
    %v5342 = vsel %vm1788, %v5302, -inf
    %5343 = vmax.xlane.f32.xlu0 %v5342
    %v5344 = vpop.xlane.xlu0 %5343
    %v5345 = vsel %vm1788, %v5303, -inf
    %5346 = vmax.xlane.f32.xlu0 %v5345
    %v5347 = vpop.xlane.xlu0 %5346
    %v5348 = vsel %vm1788, %v5304, -inf
    %5349 = vmax.xlane.f32.xlu0 %v5348
    %v5350 = vpop.xlane.xlu0 %5349
    %v5351 = vsel %vm1788, %v5305, -inf
    %5352 = vmax.xlane.f32.xlu0 %v5351
    %v5353 = vpop.xlane.xlu0 %5352
    %v5354 = vsel %vm1788, %v5306, -inf
    %5355 = vmax.xlane.f32.xlu0 %v5354
    %v5356 = vpop.xlane.xlu0 %5355
    %v5357 = vsel %vm1788, %v5307, -inf
    %5358 = vmax.xlane.f32.xlu0 %v5357
    %v5359 = vpop.xlane.xlu0 %5358
    %v5360 = vsel %vm1788, %v5308, -inf
    %5361 = vmax.xlane.f32.xlu0 %v5360
    %v5362 = vpop.xlane.xlu0 %5361
    %v5363 = vsel %vm1788, %v5309, -inf
    %5364 = vmax.xlane.f32.xlu0 %v5363
    %v5365 = vpop.xlane.xlu0 %5364
    %v5366 = vsel %vm1788, %v5310, -inf
    %5367 = vmax.xlane.f32.xlu0 %v5366
    %v5368 = vpop.xlane.xlu0 %5367
    %v5369 = vsel %vm1788, %v5311, -inf
    %5370 = vmax.xlane.f32.xlu0 %v5369
    %v5371 = vpop.xlane.xlu0 %5370
    %v5372 = vsel %vm1788, %v5312, -inf
    %5373 = vmax.xlane.f32.xlu0 %v5372
    %v5374 = vpop.xlane.xlu0 %5373
    %v5375 = vsel %vm1788, %v5313, -inf
    %5376 = vmax.xlane.f32.xlu0 %v5375
    %v5377 = vpop.xlane.xlu0 %5376
    %v5378 = vsel %vm1788, %v5314, -inf
    %5379 = vmax.xlane.f32.xlu0 %v5378
    %v5380 = vpop.xlane.xlu0 %5379
    %v5381 = vsel %vm1788, %v5315, -inf
    %5382 = vmax.xlane.f32.xlu0 %v5381
    %v5383 = vpop.xlane.xlu0 %5382
    %v5384 = vsel %vm1788, %v5316, -inf
    %5385 = vmax.xlane.f32.xlu0 %v5384
    %v5386 = vpop.xlane.xlu0 %5385
    %v5387 = vsel %vm1788, %v5317, -inf
    %5388 = vmax.xlane.f32.xlu0 %v5387
    %v5389 = vpop.xlane.xlu0 %5388
    %v5390 = vsub.f32 %v5294, %v5320
    %v5391 = vsub.f32 %v5295, %v5323
    %v5392 = vsub.f32 %v5296, %v5326
    %v5393 = vsub.f32 %v5297, %v5329
    %v5394 = vsub.f32 %v5298, %v5332
    %v5395 = vsub.f32 %v5299, %v5335
    %v5396 = vsub.f32 %v5300, %v5338
    %v5397 = vsub.f32 %v5301, %v5341
    %v5398 = vsub.f32 %v5302, %v5344
    %v5399 = vsub.f32 %v5303, %v5347
    %v5400 = vsub.f32 %v5304, %v5350
    %v5401 = vsub.f32 %v5305, %v5353
    %v5402 = vsub.f32 %v5306, %v5356
    %v5403 = vsub.f32 %v5307, %v5359
    %v5404 = vsub.f32 %v5308, %v5362
    %v5405 = vsub.f32 %v5309, %v5365
    %v5406 = vsub.f32 %v5310, %v5368
    %v5407 = vsub.f32 %v5311, %v5371
    %v5408 = vsub.f32 %v5312, %v5374
    %v5409 = vsub.f32 %v5313, %v5377
    %v5410 = vsub.f32 %v5314, %v5380
    %v5411 = vsub.f32 %v5315, %v5383
    %v5412 = vsub.f32 %v5316, %v5386
    %v5413 = vsub.f32 %v5317, %v5389
    %v5414 = vmul.f32 %v5390, 1.442695
    %v5415 = vpow.pop %v5414
    %v5416 = vmul.f32 %v5391, 1.442695
    %v5417 = vpow.pop %v5416
    %v5418 = vmul.f32 %v5392, 1.442695
    %v5419 = vpow.pop %v5418
    %v5420 = vmul.f32 %v5393, 1.442695
    %v5421 = vpow.pop %v5420
    %v5422 = vmul.f32 %v5394, 1.442695
    %v5423 = vpow.pop %v5422
    %v5424 = vmul.f32 %v5395, 1.442695
    %v5425 = vpow.pop %v5424
    %v5426 = vmul.f32 %v5396, 1.442695
    %v5427 = vpow.pop %v5426
    %v5428 = vmul.f32 %v5397, 1.442695
    %v5429 = vpow.pop %v5428
    %v5430 = vmul.f32 %v5398, 1.442695
    %v5431 = vpow.pop %v5430
    %v5432 = vmul.f32 %v5399, 1.442695
    %v5433 = vpow.pop %v5432
    %v5434 = vmul.f32 %v5400, 1.442695
    %v5435 = vpow.pop %v5434
    %v5436 = vmul.f32 %v5401, 1.442695
    %v5437 = vpow.pop %v5436
    %v5438 = vmul.f32 %v5402, 1.442695
    %v5439 = vpow.pop %v5438
    %v5440 = vmul.f32 %v5403, 1.442695
    %v5441 = vpow.pop %v5440
    %v5442 = vmul.f32 %v5404, 1.442695
    %v5443 = vpow.pop %v5442
    %v5444 = vmul.f32 %v5405, 1.442695
    %v5445 = vpow.pop %v5444
    %v5446 = vmul.f32 %v5406, 1.442695
    %v5447 = vpow.pop %v5446
    %v5448 = vmul.f32 %v5407, 1.442695
    %v5449 = vpow.pop %v5448
    %v5450 = vmul.f32 %v5408, 1.442695
    %v5451 = vpow.pop %v5450
    %v5452 = vmul.f32 %v5409, 1.442695
    %v5453 = vpow.pop %v5452
    %v5454 = vmul.f32 %v5410, 1.442695
    %v5455 = vpow.pop %v5454
    %v5456 = vmul.f32 %v5411, 1.442695
    %v5457 = vpow.pop %v5456
    %v5458 = vmul.f32 %v5412, 1.442695
    %v5459 = vpow.pop %v5458
    %v5460 = vmul.f32 %v5413, 1.442695
    %v5461 = vpow.pop %v5460
    %v5462 = vsel %vm1788, %v5415, 0.0
    %5463 = vadd.xlane.f32.xlu0 %v5462
    %v5464 = vpop.xlane.xlu0 %5463
    %v5465 = vsel %vm1788, %v5417, 0.0
    %5466 = vadd.xlane.f32.xlu0 %v5465
    %v5467 = vpop.xlane.xlu0 %5466
    %v5468 = vsel %vm1788, %v5419, 0.0
    %5469 = vadd.xlane.f32.xlu0 %v5468
    %v5470 = vpop.xlane.xlu0 %5469
    %v5471 = vsel %vm1788, %v5421, 0.0
    %5472 = vadd.xlane.f32.xlu0 %v5471
    %v5473 = vpop.xlane.xlu0 %5472
    %v5474 = vsel %vm1788, %v5423, 0.0
    %5475 = vadd.xlane.f32.xlu0 %v5474
    %v5476 = vpop.xlane.xlu0 %5475
    %v5477 = vsel %vm1788, %v5425, 0.0
    %5478 = vadd.xlane.f32.xlu0 %v5477
    %v5479 = vpop.xlane.xlu0 %5478
    %v5480 = vsel %vm1788, %v5427, 0.0
    %5481 = vadd.xlane.f32.xlu0 %v5480
    %v5482 = vpop.xlane.xlu0 %5481
    %v5483 = vsel %vm1788, %v5429, 0.0
    %5484 = vadd.xlane.f32.xlu0 %v5483
    %v5485 = vpop.xlane.xlu0 %5484
    %v5486 = vsel %vm1788, %v5431, 0.0
    %5487 = vadd.xlane.f32.xlu0 %v5486
    %v5488 = vpop.xlane.xlu0 %5487
    %v5489 = vsel %vm1788, %v5433, 0.0
    %5490 = vadd.xlane.f32.xlu0 %v5489
    %v5491 = vpop.xlane.xlu0 %5490
    %v5492 = vsel %vm1788, %v5435, 0.0
    %5493 = vadd.xlane.f32.xlu0 %v5492
    %v5494 = vpop.xlane.xlu0 %5493
    %v5495 = vsel %vm1788, %v5437, 0.0
    %5496 = vadd.xlane.f32.xlu0 %v5495
    %v5497 = vpop.xlane.xlu0 %5496
    %v5498 = vsel %vm1788, %v5439, 0.0
    %5499 = vadd.xlane.f32.xlu0 %v5498
    %v5500 = vpop.xlane.xlu0 %5499
    %v5501 = vsel %vm1788, %v5441, 0.0
    %5502 = vadd.xlane.f32.xlu0 %v5501
    %v5503 = vpop.xlane.xlu0 %5502
    %v5504 = vsel %vm1788, %v5443, 0.0
    %5505 = vadd.xlane.f32.xlu0 %v5504
    %v5506 = vpop.xlane.xlu0 %5505
    %v5507 = vsel %vm1788, %v5445, 0.0
    %5508 = vadd.xlane.f32.xlu0 %v5507
    %v5509 = vpop.xlane.xlu0 %5508
    %v5510 = vsel %vm1788, %v5447, 0.0
    %5511 = vadd.xlane.f32.xlu0 %v5510
    %v5512 = vpop.xlane.xlu0 %5511
    %v5513 = vsel %vm1788, %v5449, 0.0
    %5514 = vadd.xlane.f32.xlu0 %v5513
    %v5515 = vpop.xlane.xlu0 %5514
    %v5516 = vsel %vm1788, %v5451, 0.0
    %5517 = vadd.xlane.f32.xlu0 %v5516
    %v5518 = vpop.xlane.xlu0 %5517
    %v5519 = vsel %vm1788, %v5453, 0.0
    %5520 = vadd.xlane.f32.xlu0 %v5519
    %v5521 = vpop.xlane.xlu0 %5520
    %v5522 = vsel %vm1788, %v5455, 0.0
    %5523 = vadd.xlane.f32.xlu0 %v5522
    %v5524 = vpop.xlane.xlu0 %5523
    %v5525 = vsel %vm1788, %v5457, 0.0
    %5526 = vadd.xlane.f32.xlu0 %v5525
    %v5527 = vpop.xlane.xlu0 %5526
    %v5528 = vsel %vm1788, %v5459, 0.0
    %5529 = vadd.xlane.f32.xlu0 %v5528
    %v5530 = vpop.xlane.xlu0 %5529
    %v5531 = vsel %vm1788, %v5461, 0.0
    %5532 = vadd.xlane.f32.xlu0 %v5531
    %v5533 = vpop.xlane.xlu0 %5532
    %v5534 = vrcp.pop %v5464
    %v5535 = vrcp.pop %v5467
    %v5536 = vrcp.pop %v5470
    %v5537 = vrcp.pop %v5473
    %v5538 = vrcp.pop %v5476
    %v5539 = vrcp.pop %v5479
    %v5540 = vrcp.pop %v5482
    %v5541 = vrcp.pop %v5485
    %v5542 = vrcp.pop %v5488
    %v5543 = vrcp.pop %v5491
    %v5544 = vrcp.pop %v5494
    %v5545 = vrcp.pop %v5497
    %v5546 = vrcp.pop %v5500
    %v5547 = vrcp.pop %v5503
    %v5548 = vrcp.pop %v5506
    %v5549 = vrcp.pop %v5509
    %v5550 = vrcp.pop %v5512
    %v5551 = vrcp.pop %v5515
    %v5552 = vrcp.pop %v5518
    %v5553 = vrcp.pop %v5521
    %v5554 = vrcp.pop %v5524
    %v5555 = vrcp.pop %v5527
    %v5556 = vrcp.pop %v5530
    %v5557 = vrcp.pop %v5533
    %v5558 = vmul.f32 %v5415, %v5534
    %v5559 = vmul.f32 %v5417, %v5535
    %v5560 = vmul.f32 %v5419, %v5536
    %v5561 = vmul.f32 %v5421, %v5537
    %v5562 = vmul.f32 %v5423, %v5538
    %v5563 = vmul.f32 %v5425, %v5539
    %v5564 = vmul.f32 %v5427, %v5540
    %v5565 = vmul.f32 %v5429, %v5541
    %v5566 = vmul.f32 %v5431, %v5542
    %v5567 = vmul.f32 %v5433, %v5543
    %v5568 = vmul.f32 %v5435, %v5544
    %v5569 = vmul.f32 %v5437, %v5545
    %v5570 = vmul.f32 %v5439, %v5546
    %v5571 = vmul.f32 %v5441, %v5547
    %v5572 = vmul.f32 %v5443, %v5548
    %v5573 = vmul.f32 %v5445, %v5549
    %v5574 = vmul.f32 %v5447, %v5550
    %v5575 = vmul.f32 %v5449, %v5551
    %v5576 = vmul.f32 %v5451, %v5552
    %v5577 = vmul.f32 %v5453, %v5553
    %v5578 = vmul.f32 %v5455, %v5554
    %v5579 = vmul.f32 %v5457, %v5555
    %v5580 = vmul.f32 %v5459, %v5556
    %v5581 = vmul.f32 %v5461, %v5557
    %5582 = vrot.lane.b32.xlu0 %v4368, 64
    %v5583 = vpop.permute.xlu0 %5582
    %5584 = vrot.lane.b32.xlu0 %v4371, 64
    %v5585 = vpop.permute.xlu0 %5584
    %5586 = vrot.lane.b32.xlu0 %v4376, 64
    %v5587 = vpop.permute.xlu0 %5586
    %v5592 = vsel %vm1788, %v5558, 0
    %v5595 = vsel %vm1788, %v5559, 0
    %v5598 = vsel %vm1788, %v5560, 0
    %5600 = vmatprep.subr.mxu0 0.0
    %5601 = vmatpush1.msra.mxu0 %v5583
    %5602 = vmatprep.subr.mxu0 0.0
    %5603 = vmatpush1.msra.mxu0 %v5585
    %5604 = vmatprep.subr.mxu0 0.0
    %5605 = vmatpush1.msra.mxu0 %v5587
    %5606 = vmatprep.subr.mxu0 0.0
    %5607 = vmatpush1.msra.mxu0 0.0
    %5608 = vmatprep.subr.mxu0 0.0
    %5609 = vmatpush1.msra.mxu0 0.0
    %5610 = vmatprep.subr.mxu0 0.0
    %5611 = vmatpush1.msra.mxu0 0.0
    %5612 = vmatprep.subr.mxu0 0.0
    %5613 = vmatpush1.msra.mxu0 0.0
    %5614 = vmatprep.subr.mxu0 0.0
    %5615 = vmatpush1.msra.mxu0 0.0
    %5616 = vmatprep.subr.mxu0 0.0
    %5617 = vmatpush1.msra.mxu0 0.0
    %5618 = vmatprep.subr.mxu0 0.0
    %5619 = vmatpush1.msra.mxu0 0.0
    %5620 = vmatprep.subr.mxu0 0.0
    %5621 = vmatpush1.msra.mxu0 0.0
    %5622 = vmatprep.subr.mxu0 0.0
    %5623 = vmatpush1.msra.mxu0 0.0
    %5624 = vmatprep.subr.mxu0 0.0
    %5625 = vmatpush1.msra.mxu0 0.0
    %5626 = vmatprep.subr.mxu0 0.0
    %5627 = vmatpush1.msra.mxu0 0.0
    %5628 = vmatprep.subr.mxu0 0.0
    %5629 = vmatpush1.msra.mxu0 0.0
    %5630 = vmatprep.subr.mxu0 0.0
    %5631 = vmatpush1.msra.mxu0 0.0
    %5632 = vmatprep.subr.mxu0 0.0
    %5633 = vmatpush1.msra.mxu0 0.0
    %5634 = vmatprep.subr.mxu0 0.0
    %5635 = vmatpush1.msra.mxu0 0.0
    %5636 = vmatprep.subr.mxu0 0.0
    %5637 = vmatpush1.msra.mxu0 0.0
    %5638 = vmatprep.subr.mxu0 0.0
    %5639 = vmatpush1.msra.mxu0 0.0
    %5640 = vmatprep.subr.mxu0 0.0
    %5641 = vmatpush1.msra.mxu0 0.0
    %5642 = vmatprep.subr.mxu0 0.0
    %5643 = vmatpush1.msra.mxu0 0.0
    %5644 = vmatprep.subr.mxu0 0.0
    %5645 = vmatpush1.msra.mxu0 0.0
    %5646 = vmatprep.subr.mxu0 0.0
    %5647 = vmatpush1.msra.mxu0 0.0
    %5648 = vmatprep.subr.mxu0 0.0
    %5649 = vmatpush1.msra.mxu0 0.0
    %5650 = vmatprep.subr.mxu0 0.0
    %5651 = vmatpush1.msra.mxu0 0.0
    %5652 = vmatprep.subr.mxu0 0.0
    %5653 = vmatpush1.msra.mxu0 0.0
    %5654 = vmatprep.subr.mxu0 0.0
    %5655 = vmatpush1.msra.mxu0 0.0
    %5656 = vmatprep.subr.mxu0 0.0
    %5657 = vmatpush1.msra.mxu0 0.0
    %5658 = vmatprep.subr.mxu0 0.0
    %5659 = vmatpush1.msra.mxu0 0.0
    %5660 = vmatprep.subr.mxu0 0.0
    %5661 = vmatpush1.msra.mxu0 0.0
    %5662 = vmatprep.subr.mxu0 0.0
    %5663 = vmatpush1.msra.mxu0 0.0
    %5664 = vmatprep.mubr.f32.mxu0 0.0
    %5665 = vmatmul.mubr.f32.gmra.mrb[0].mxu0 %v5592
    %v5666 = vpop.f32.mrb[0].mxu0
    %v5667 = vadd.f32 0.0, %v5666
    %v5668 = vpop.f32.mrb[0].mxu0
    %5669 = vmatprep.mubr.f32.mxu0 0.0
    %5670 = vmatmul.mubr.f32.gmra.mrb[0].mxu0 %v5595
    %v5671 = vpop.f32.mrb[0].mxu0
    %v5672 = vadd.f32 0.0, %v5671
    %v5673 = vpop.f32.mrb[0].mxu0
    %5674 = vmatprep.mubr.f32.mxu0 0.0
    %5675 = vmatmul.mubr.f32.gmra.mrb[0].mxu0 %v5598
    %v5676 = vpop.f32.mrb[0].mxu0
    %v5677 = vadd.f32 0.0, %v5676
    %v5678 = vpop.f32.mrb[0].mxu0
    %5679 = vdwg.mxu0
    %5680 = vrot.lane.b32.xlu0 %v4379, 64
    %v5681 = vpop.permute.xlu0 %5680
    %5682 = vrot.lane.b32.xlu0 %v4384, 64
    %v5683 = vpop.permute.xlu0 %5682
    %5684 = vrot.lane.b32.xlu0 %v4387, 64
    %v5685 = vpop.permute.xlu0 %5684
    %v5690 = vsel %vm1788, %v5561, 0
    %v5693 = vsel %vm1788, %v5562, 0
    %v5696 = vsel %vm1788, %v5563, 0
    %5698 = vmatprep.subr.mxu0 0.0
    %5699 = vmatpush1.msra.mxu0 %v5681
    %5700 = vmatprep.subr.mxu0 0.0
    %5701 = vmatpush1.msra.mxu0 %v5683
    %5702 = vmatprep.subr.mxu0 0.0
    %5703 = vmatpush1.msra.mxu0 %v5685
    %5704 = vmatprep.subr.mxu0 0.0
    %5705 = vmatpush1.msra.mxu0 0.0
    %5706 = vmatprep.subr.mxu0 0.0
    %5707 = vmatpush1.msra.mxu0 0.0
    %5708 = vmatprep.subr.mxu0 0.0
    %5709 = vmatpush1.msra.mxu0 0.0
    %5710 = vmatprep.subr.mxu0 0.0
    %5711 = vmatpush1.msra.mxu0 0.0
    %5712 = vmatprep.subr.mxu0 0.0
    %5713 = vmatpush1.msra.mxu0 0.0
    %5714 = vmatprep.subr.mxu0 0.0
    %5715 = vmatpush1.msra.mxu0 0.0
    %5716 = vmatprep.subr.mxu0 0.0
    %5717 = vmatpush1.msra.mxu0 0.0
    %5718 = vmatprep.subr.mxu0 0.0
    %5719 = vmatpush1.msra.mxu0 0.0
    %5720 = vmatprep.subr.mxu0 0.0
    %5721 = vmatpush1.msra.mxu0 0.0
    %5722 = vmatprep.subr.mxu0 0.0
    %5723 = vmatpush1.msra.mxu0 0.0
    %5724 = vmatprep.subr.mxu0 0.0
    %5725 = vmatpush1.msra.mxu0 0.0
    %5726 = vmatprep.subr.mxu0 0.0
    %5727 = vmatpush1.msra.mxu0 0.0
    %5728 = vmatprep.subr.mxu0 0.0
    %5729 = vmatpush1.msra.mxu0 0.0
    %5730 = vmatprep.subr.mxu0 0.0
    %5731 = vmatpush1.msra.mxu0 0.0
    %5732 = vmatprep.subr.mxu0 0.0
    %5733 = vmatpush1.msra.mxu0 0.0
    %5734 = vmatprep.subr.mxu0 0.0
    %5735 = vmatpush1.msra.mxu0 0.0
    %5736 = vmatprep.subr.mxu0 0.0
    %5737 = vmatpush1.msra.mxu0 0.0
    %5738 = vmatprep.subr.mxu0 0.0
    %5739 = vmatpush1.msra.mxu0 0.0
    %5740 = vmatprep.subr.mxu0 0.0
    %5741 = vmatpush1.msra.mxu0 0.0
    %5742 = vmatprep.subr.mxu0 0.0
    %5743 = vmatpush1.msra.mxu0 0.0
    %5744 = vmatprep.subr.mxu0 0.0
    %5745 = vmatpush1.msra.mxu0 0.0
    %5746 = vmatprep.subr.mxu0 0.0
    %5747 = vmatpush1.msra.mxu0 0.0
    %5748 = vmatprep.subr.mxu0 0.0
    %5749 = vmatpush1.msra.mxu0 0.0
    %5750 = vmatprep.subr.mxu0 0.0
    %5751 = vmatpush1.msra.mxu0 0.0
    %5752 = vmatprep.subr.mxu0 0.0
    %5753 = vmatpush1.msra.mxu0 0.0
    %5754 = vmatprep.subr.mxu0 0.0
    %5755 = vmatpush1.msra.mxu0 0.0
    %5756 = vmatprep.subr.mxu0 0.0
    %5757 = vmatpush1.msra.mxu0 0.0
    %5758 = vmatprep.subr.mxu0 0.0
    %5759 = vmatpush1.msra.mxu0 0.0
    %5760 = vmatprep.subr.mxu0 0.0
    %5761 = vmatpush1.msra.mxu0 0.0
    %5762 = vmatprep.mubr.f32.mxu0 0.0
    %5763 = vmatmul.mubr.f32.gmra.mrb[0].mxu0 %v5690
    %v5764 = vpop.f32.mrb[0].mxu0
    %v5765 = vadd.f32 0.0, %v5764
    %v5766 = vpop.f32.mrb[0].mxu0
    %5767 = vmatprep.mubr.f32.mxu0 0.0
    %5768 = vmatmul.mubr.f32.gmra.mrb[0].mxu0 %v5693
    %v5769 = vpop.f32.mrb[0].mxu0
    %v5770 = vadd.f32 0.0, %v5769
    %v5771 = vpop.f32.mrb[0].mxu0
    %5772 = vmatprep.mubr.f32.mxu0 0.0
    %5773 = vmatmul.mubr.f32.gmra.mrb[0].mxu0 %v5696
    %v5774 = vpop.f32.mrb[0].mxu0
    %v5775 = vadd.f32 0.0, %v5774
    %v5776 = vpop.f32.mrb[0].mxu0
    %5777 = vdwg.mxu0
    %5778 = vrot.lane.b32.xlu0 %v4392, 64
    %v5779 = vpop.permute.xlu0 %5778
    %5780 = vrot.lane.b32.xlu0 %v4395, 64
    %v5781 = vpop.permute.xlu0 %5780
    %5782 = vrot.lane.b32.xlu0 %v4400, 64
    %v5783 = vpop.permute.xlu0 %5782
    %v5788 = vsel %vm1788, %v5564, 0
    %v5791 = vsel %vm1788, %v5565, 0
    %v5794 = vsel %vm1788, %v5566, 0
    %5796 = vmatprep.subr.mxu0 0.0
    %5797 = vmatpush1.msra.mxu0 %v5779
    %5798 = vmatprep.subr.mxu0 0.0
    %5799 = vmatpush1.msra.mxu0 %v5781
    %5800 = vmatprep.subr.mxu0 0.0
    %5801 = vmatpush1.msra.mxu0 %v5783
    %5802 = vmatprep.subr.mxu0 0.0
    %5803 = vmatpush1.msra.mxu0 0.0
    %5804 = vmatprep.subr.mxu0 0.0
    %5805 = vmatpush1.msra.mxu0 0.0
    %5806 = vmatprep.subr.mxu0 0.0
    %5807 = vmatpush1.msra.mxu0 0.0
    %5808 = vmatprep.subr.mxu0 0.0
    %5809 = vmatpush1.msra.mxu0 0.0
    %5810 = vmatprep.subr.mxu0 0.0
    %5811 = vmatpush1.msra.mxu0 0.0
    %5812 = vmatprep.subr.mxu0 0.0
    %5813 = vmatpush1.msra.mxu0 0.0
    %5814 = vmatprep.subr.mxu0 0.0
    %5815 = vmatpush1.msra.mxu0 0.0
    %5816 = vmatprep.subr.mxu0 0.0
    %5817 = vmatpush1.msra.mxu0 0.0
    %5818 = vmatprep.subr.mxu0 0.0
    %5819 = vmatpush1.msra.mxu0 0.0
    %5820 = vmatprep.subr.mxu0 0.0
    %5821 = vmatpush1.msra.mxu0 0.0
    %5822 = vmatprep.subr.mxu0 0.0
    %5823 = vmatpush1.msra.mxu0 0.0
    %5824 = vmatprep.subr.mxu0 0.0
    %5825 = vmatpush1.msra.mxu0 0.0
    %5826 = vmatprep.subr.mxu0 0.0
    %5827 = vmatpush1.msra.mxu0 0.0
    %5828 = vmatprep.subr.mxu0 0.0
    %5829 = vmatpush1.msra.mxu0 0.0
    %5830 = vmatprep.subr.mxu0 0.0
    %5831 = vmatpush1.msra.mxu0 0.0
    %5832 = vmatprep.subr.mxu0 0.0
    %5833 = vmatpush1.msra.mxu0 0.0
    %5834 = vmatprep.subr.mxu0 0.0
    %5835 = vmatpush1.msra.mxu0 0.0
    %5836 = vmatprep.subr.mxu0 0.0
    %5837 = vmatpush1.msra.mxu0 0.0
    %5838 = vmatprep.subr.mxu0 0.0
    %5839 = vmatpush1.msra.mxu0 0.0
    %5840 = vmatprep.subr.mxu0 0.0
    %5841 = vmatpush1.msra.mxu0 0.0
    %5842 = vmatprep.subr.mxu0 0.0
    %5843 = vmatpush1.msra.mxu0 0.0
    %5844 = vmatprep.subr.mxu0 0.0
    %5845 = vmatpush1.msra.mxu0 0.0
    %5846 = vmatprep.subr.mxu0 0.0
    %5847 = vmatpush1.msra.mxu0 0.0
    %5848 = vmatprep.subr.mxu0 0.0
    %5849 = vmatpush1.msra.mxu0 0.0
    %5850 = vmatprep.subr.mxu0 0.0
    %5851 = vmatpush1.msra.mxu0 0.0
    %5852 = vmatprep.subr.mxu0 0.0
    %5853 = vmatpush1.msra.mxu0 0.0
    %5854 = vmatprep.subr.mxu0 0.0
    %5855 = vmatpush1.msra.mxu0 0.0
    %5856 = vmatprep.subr.mxu0 0.0
    %5857 = vmatpush1.msra.mxu0 0.0
    %5858 = vmatprep.subr.mxu0 0.0
    %5859 = vmatpush1.msra.mxu0 0.0
    %5860 = vmatprep.mubr.f32.mxu0 0.0
    %5861 = vmatmul.mubr.f32.gmra.mrb[0].mxu0 %v5788
    %v5862 = vpop.f32.mrb[0].mxu0
    %v5863 = vadd.f32 0.0, %v5862
    %v5864 = vpop.f32.mrb[0].mxu0
    %5865 = vmatprep.mubr.f32.mxu0 0.0
    %5866 = vmatmul.mubr.f32.gmra.mrb[0].mxu0 %v5791
    %v5867 = vpop.f32.mrb[0].mxu0
    %v5868 = vadd.f32 0.0, %v5867
    %v5869 = vpop.f32.mrb[0].mxu0
    %5870 = vmatprep.mubr.f32.mxu0 0.0
    %5871 = vmatmul.mubr.f32.gmra.mrb[0].mxu0 %v5794
    %v5872 = vpop.f32.mrb[0].mxu0
    %v5873 = vadd.f32 0.0, %v5872
    %v5874 = vpop.f32.mrb[0].mxu0
    %5875 = vdwg.mxu0
    %5876 = vrot.lane.b32.xlu0 %v4403, 64
    %v5877 = vpop.permute.xlu0 %5876
    %5878 = vrot.lane.b32.xlu0 %v4408, 64
    %v5879 = vpop.permute.xlu0 %5878
    %5880 = vrot.lane.b32.xlu0 %v4411, 64
    %v5881 = vpop.permute.xlu0 %5880
    %v5886 = vsel %vm1788, %v5567, 0
    %v5889 = vsel %vm1788, %v5568, 0
    %v5892 = vsel %vm1788, %v5569, 0
    %5894 = vmatprep.subr.mxu0 0.0
    %5895 = vmatpush1.msra.mxu0 %v5877
    %5896 = vmatprep.subr.mxu0 0.0
    %5897 = vmatpush1.msra.mxu0 %v5879
    %5898 = vmatprep.subr.mxu0 0.0
    %5899 = vmatpush1.msra.mxu0 %v5881
    %5900 = vmatprep.subr.mxu0 0.0
    %5901 = vmatpush1.msra.mxu0 0.0
    %5902 = vmatprep.subr.mxu0 0.0
    %5903 = vmatpush1.msra.mxu0 0.0
    %5904 = vmatprep.subr.mxu0 0.0
    %5905 = vmatpush1.msra.mxu0 0.0
    %5906 = vmatprep.subr.mxu0 0.0
    %5907 = vmatpush1.msra.mxu0 0.0
    %5908 = vmatprep.subr.mxu0 0.0
    %5909 = vmatpush1.msra.mxu0 0.0
    %5910 = vmatprep.subr.mxu0 0.0
    %5911 = vmatpush1.msra.mxu0 0.0
    %5912 = vmatprep.subr.mxu0 0.0
    %5913 = vmatpush1.msra.mxu0 0.0
    %5914 = vmatprep.subr.mxu0 0.0
    %5915 = vmatpush1.msra.mxu0 0.0
    %5916 = vmatprep.subr.mxu0 0.0
    %5917 = vmatpush1.msra.mxu0 0.0
    %5918 = vmatprep.subr.mxu0 0.0
    %5919 = vmatpush1.msra.mxu0 0.0
    %5920 = vmatprep.subr.mxu0 0.0
    %5921 = vmatpush1.msra.mxu0 0.0
    %5922 = vmatprep.subr.mxu0 0.0
    %5923 = vmatpush1.msra.mxu0 0.0
    %5924 = vmatprep.subr.mxu0 0.0
    %5925 = vmatpush1.msra.mxu0 0.0
    %5926 = vmatprep.subr.mxu0 0.0
    %5927 = vmatpush1.msra.mxu0 0.0
    %5928 = vmatprep.subr.mxu0 0.0
    %5929 = vmatpush1.msra.mxu0 0.0
    %5930 = vmatprep.subr.mxu0 0.0
    %5931 = vmatpush1.msra.mxu0 0.0
    %5932 = vmatprep.subr.mxu0 0.0
    %5933 = vmatpush1.msra.mxu0 0.0
    %5934 = vmatprep.subr.mxu0 0.0
    %5935 = vmatpush1.msra.mxu0 0.0
    %5936 = vmatprep.subr.mxu0 0.0
    %5937 = vmatpush1.msra.mxu0 0.0
    %5938 = vmatprep.subr.mxu0 0.0
    %5939 = vmatpush1.msra.mxu0 0.0
    %5940 = vmatprep.subr.mxu0 0.0
    %5941 = vmatpush1.msra.mxu0 0.0
    %5942 = vmatprep.subr.mxu0 0.0
    %5943 = vmatpush1.msra.mxu0 0.0
    %5944 = vmatprep.subr.mxu0 0.0
    %5945 = vmatpush1.msra.mxu0 0.0
    %5946 = vmatprep.subr.mxu0 0.0
    %5947 = vmatpush1.msra.mxu0 0.0
    %5948 = vmatprep.subr.mxu0 0.0
    %5949 = vmatpush1.msra.mxu0 0.0
    %5950 = vmatprep.subr.mxu0 0.0
    %5951 = vmatpush1.msra.mxu0 0.0
    %5952 = vmatprep.subr.mxu0 0.0
    %5953 = vmatpush1.msra.mxu0 0.0
    %5954 = vmatprep.subr.mxu0 0.0
    %5955 = vmatpush1.msra.mxu0 0.0
    %5956 = vmatprep.subr.mxu0 0.0
    %5957 = vmatpush1.msra.mxu0 0.0
    %5958 = vmatprep.mubr.f32.mxu0 0.0
    %5959 = vmatmul.mubr.f32.gmra.mrb[0].mxu0 %v5886
    %v5960 = vpop.f32.mrb[0].mxu0
    %v5961 = vadd.f32 0.0, %v5960
    %v5962 = vpop.f32.mrb[0].mxu0
    %5963 = vmatprep.mubr.f32.mxu0 0.0
    %5964 = vmatmul.mubr.f32.gmra.mrb[0].mxu0 %v5889
    %v5965 = vpop.f32.mrb[0].mxu0
    %v5966 = vadd.f32 0.0, %v5965
    %v5967 = vpop.f32.mrb[0].mxu0
    %5968 = vmatprep.mubr.f32.mxu0 0.0
    %5969 = vmatmul.mubr.f32.gmra.mrb[0].mxu0 %v5892
    %v5970 = vpop.f32.mrb[0].mxu0
    %v5971 = vadd.f32 0.0, %v5970
    %v5972 = vpop.f32.mrb[0].mxu0
    %5973 = vdwg.mxu0
    %5974 = vrot.lane.b32.xlu0 %v4416, 64
    %v5975 = vpop.permute.xlu0 %5974
    %5976 = vrot.lane.b32.xlu0 %v4419, 64
    %v5977 = vpop.permute.xlu0 %5976
    %5978 = vrot.lane.b32.xlu0 %v4424, 64
    %v5979 = vpop.permute.xlu0 %5978
    %v5984 = vsel %vm1788, %v5570, 0
    %v5987 = vsel %vm1788, %v5571, 0
    %v5990 = vsel %vm1788, %v5572, 0
    %5992 = vmatprep.subr.mxu0 0.0
    %5993 = vmatpush1.msra.mxu0 %v5975
    %5994 = vmatprep.subr.mxu0 0.0
    %5995 = vmatpush1.msra.mxu0 %v5977
    %5996 = vmatprep.subr.mxu0 0.0
    %5997 = vmatpush1.msra.mxu0 %v5979
    %5998 = vmatprep.subr.mxu0 0.0
    %5999 = vmatpush1.msra.mxu0 0.0
    %6000 = vmatprep.subr.mxu0 0.0
    %6001 = vmatpush1.msra.mxu0 0.0
    %6002 = vmatprep.subr.mxu0 0.0
    %6003 = vmatpush1.msra.mxu0 0.0
    %6004 = vmatprep.subr.mxu0 0.0
    %6005 = vmatpush1.msra.mxu0 0.0
    %6006 = vmatprep.subr.mxu0 0.0
    %6007 = vmatpush1.msra.mxu0 0.0
    %6008 = vmatprep.subr.mxu0 0.0
    %6009 = vmatpush1.msra.mxu0 0.0
    %6010 = vmatprep.subr.mxu0 0.0
    %6011 = vmatpush1.msra.mxu0 0.0
    %6012 = vmatprep.subr.mxu0 0.0
    %6013 = vmatpush1.msra.mxu0 0.0
    %6014 = vmatprep.subr.mxu0 0.0
    %6015 = vmatpush1.msra.mxu0 0.0
    %6016 = vmatprep.subr.mxu0 0.0
    %6017 = vmatpush1.msra.mxu0 0.0
    %6018 = vmatprep.subr.mxu0 0.0
    %6019 = vmatpush1.msra.mxu0 0.0
    %6020 = vmatprep.subr.mxu0 0.0
    %6021 = vmatpush1.msra.mxu0 0.0
    %6022 = vmatprep.subr.mxu0 0.0
    %6023 = vmatpush1.msra.mxu0 0.0
    %6024 = vmatprep.subr.mxu0 0.0
    %6025 = vmatpush1.msra.mxu0 0.0
    %6026 = vmatprep.subr.mxu0 0.0
    %6027 = vmatpush1.msra.mxu0 0.0
    %6028 = vmatprep.subr.mxu0 0.0
    %6029 = vmatpush1.msra.mxu0 0.0
    %6030 = vmatprep.subr.mxu0 0.0
    %6031 = vmatpush1.msra.mxu0 0.0
    %6032 = vmatprep.subr.mxu0 0.0
    %6033 = vmatpush1.msra.mxu0 0.0
    %6034 = vmatprep.subr.mxu0 0.0
    %6035 = vmatpush1.msra.mxu0 0.0
    %6036 = vmatprep.subr.mxu0 0.0
    %6037 = vmatpush1.msra.mxu0 0.0
    %6038 = vmatprep.subr.mxu0 0.0
    %6039 = vmatpush1.msra.mxu0 0.0
    %6040 = vmatprep.subr.mxu0 0.0
    %6041 = vmatpush1.msra.mxu0 0.0
    %6042 = vmatprep.subr.mxu0 0.0
    %6043 = vmatpush1.msra.mxu0 0.0
    %6044 = vmatprep.subr.mxu0 0.0
    %6045 = vmatpush1.msra.mxu0 0.0
    %6046 = vmatprep.subr.mxu0 0.0
    %6047 = vmatpush1.msra.mxu0 0.0
    %6048 = vmatprep.subr.mxu0 0.0
    %6049 = vmatpush1.msra.mxu0 0.0
    %6050 = vmatprep.subr.mxu0 0.0
    %6051 = vmatpush1.msra.mxu0 0.0
    %6052 = vmatprep.subr.mxu0 0.0
    %6053 = vmatpush1.msra.mxu0 0.0
    %6054 = vmatprep.subr.mxu0 0.0
    %6055 = vmatpush1.msra.mxu0 0.0
    %6056 = vmatprep.mubr.f32.mxu0 0.0
    %6057 = vmatmul.mubr.f32.gmra.mrb[0].mxu0 %v5984
    %v6058 = vpop.f32.mrb[0].mxu0
    %v6059 = vadd.f32 0.0, %v6058
    %v6060 = vpop.f32.mrb[0].mxu0
    %6061 = vmatprep.mubr.f32.mxu0 0.0
    %6062 = vmatmul.mubr.f32.gmra.mrb[0].mxu0 %v5987
    %v6063 = vpop.f32.mrb[0].mxu0
    %v6064 = vadd.f32 0.0, %v6063
    %v6065 = vpop.f32.mrb[0].mxu0
    %6066 = vmatprep.mubr.f32.mxu0 0.0
    %6067 = vmatmul.mubr.f32.gmra.mrb[0].mxu0 %v5990
    %v6068 = vpop.f32.mrb[0].mxu0
    %v6069 = vadd.f32 0.0, %v6068
    %v6070 = vpop.f32.mrb[0].mxu0
    %6071 = vdwg.mxu0
    %6072 = vrot.lane.b32.xlu0 %v4427, 64
    %v6073 = vpop.permute.xlu0 %6072
    %6074 = vrot.lane.b32.xlu0 %v4432, 64
    %v6075 = vpop.permute.xlu0 %6074
    %6076 = vrot.lane.b32.xlu0 %v4435, 64
    %v6077 = vpop.permute.xlu0 %6076
    %v6082 = vsel %vm1788, %v5573, 0
    %v6085 = vsel %vm1788, %v5574, 0
    %v6088 = vsel %vm1788, %v5575, 0
    %6090 = vmatprep.subr.mxu0 0.0
    %6091 = vmatpush1.msra.mxu0 %v6073
    %6092 = vmatprep.subr.mxu0 0.0
    %6093 = vmatpush1.msra.mxu0 %v6075
    %6094 = vmatprep.subr.mxu0 0.0
    %6095 = vmatpush1.msra.mxu0 %v6077
    %6096 = vmatprep.subr.mxu0 0.0
    %6097 = vmatpush1.msra.mxu0 0.0
    %6098 = vmatprep.subr.mxu0 0.0
    %6099 = vmatpush1.msra.mxu0 0.0
    %6100 = vmatprep.subr.mxu0 0.0
    %6101 = vmatpush1.msra.mxu0 0.0
    %6102 = vmatprep.subr.mxu0 0.0
    %6103 = vmatpush1.msra.mxu0 0.0
    %6104 = vmatprep.subr.mxu0 0.0
    %6105 = vmatpush1.msra.mxu0 0.0
    %6106 = vmatprep.subr.mxu0 0.0
    %6107 = vmatpush1.msra.mxu0 0.0
    %6108 = vmatprep.subr.mxu0 0.0
    %6109 = vmatpush1.msra.mxu0 0.0
    %6110 = vmatprep.subr.mxu0 0.0
    %6111 = vmatpush1.msra.mxu0 0.0
    %6112 = vmatprep.subr.mxu0 0.0
    %6113 = vmatpush1.msra.mxu0 0.0
    %6114 = vmatprep.subr.mxu0 0.0
    %6115 = vmatpush1.msra.mxu0 0.0
    %6116 = vmatprep.subr.mxu0 0.0
    %6117 = vmatpush1.msra.mxu0 0.0
    %6118 = vmatprep.subr.mxu0 0.0
    %6119 = vmatpush1.msra.mxu0 0.0
    %6120 = vmatprep.subr.mxu0 0.0
    %6121 = vmatpush1.msra.mxu0 0.0
    %6122 = vmatprep.subr.mxu0 0.0
    %6123 = vmatpush1.msra.mxu0 0.0
    %6124 = vmatprep.subr.mxu0 0.0
    %6125 = vmatpush1.msra.mxu0 0.0
    %6126 = vmatprep.subr.mxu0 0.0
    %6127 = vmatpush1.msra.mxu0 0.0
    %6128 = vmatprep.subr.mxu0 0.0
    %6129 = vmatpush1.msra.mxu0 0.0
    %6130 = vmatprep.subr.mxu0 0.0
    %6131 = vmatpush1.msra.mxu0 0.0
    %6132 = vmatprep.subr.mxu0 0.0
    %6133 = vmatpush1.msra.mxu0 0.0
    %6134 = vmatprep.subr.mxu0 0.0
    %6135 = vmatpush1.msra.mxu0 0.0
    %6136 = vmatprep.subr.mxu0 0.0
    %6137 = vmatpush1.msra.mxu0 0.0
    %6138 = vmatprep.subr.mxu0 0.0
    %6139 = vmatpush1.msra.mxu0 0.0
    %6140 = vmatprep.subr.mxu0 0.0
    %6141 = vmatpush1.msra.mxu0 0.0
    %6142 = vmatprep.subr.mxu0 0.0
    %6143 = vmatpush1.msra.mxu0 0.0
    %6144 = vmatprep.subr.mxu0 0.0
    %6145 = vmatpush1.msra.mxu0 0.0
    %6146 = vmatprep.subr.mxu0 0.0
    %6147 = vmatpush1.msra.mxu0 0.0
    %6148 = vmatprep.subr.mxu0 0.0
    %6149 = vmatpush1.msra.mxu0 0.0
    %6150 = vmatprep.subr.mxu0 0.0
    %6151 = vmatpush1.msra.mxu0 0.0
    %6152 = vmatprep.subr.mxu0 0.0
    %6153 = vmatpush1.msra.mxu0 0.0
    %6154 = vmatprep.mubr.f32.mxu0 0.0
    %6155 = vmatmul.mubr.f32.gmra.mrb[0].mxu0 %v6082
    %v6156 = vpop.f32.mrb[0].mxu0
    %v6157 = vadd.f32 0.0, %v6156
    %v6158 = vpop.f32.mrb[0].mxu0
    %6159 = vmatprep.mubr.f32.mxu0 0.0
    %6160 = vmatmul.mubr.f32.gmra.mrb[0].mxu0 %v6085
    %v6161 = vpop.f32.mrb[0].mxu0
    %v6162 = vadd.f32 0.0, %v6161
    %v6163 = vpop.f32.mrb[0].mxu0
    %6164 = vmatprep.mubr.f32.mxu0 0.0
    %6165 = vmatmul.mubr.f32.gmra.mrb[0].mxu0 %v6088
    %v6166 = vpop.f32.mrb[0].mxu0
    %v6167 = vadd.f32 0.0, %v6166
    %v6168 = vpop.f32.mrb[0].mxu0
    %6169 = vdwg.mxu0
    %6170 = vrot.lane.b32.xlu0 %v4440, 64
    %v6171 = vpop.permute.xlu0 %6170
    %6172 = vrot.lane.b32.xlu0 %v4443, 64
    %v6173 = vpop.permute.xlu0 %6172
    %6174 = vrot.lane.b32.xlu0 %v4448, 64
    %v6175 = vpop.permute.xlu0 %6174
    %v6180 = vsel %vm1788, %v5576, 0
    %v6183 = vsel %vm1788, %v5577, 0
    %v6186 = vsel %vm1788, %v5578, 0
    %6188 = vmatprep.subr.mxu0 0.0
    %6189 = vmatpush1.msra.mxu0 %v6171
    %6190 = vmatprep.subr.mxu0 0.0
    %6191 = vmatpush1.msra.mxu0 %v6173
    %6192 = vmatprep.subr.mxu0 0.0
    %6193 = vmatpush1.msra.mxu0 %v6175
    %6194 = vmatprep.subr.mxu0 0.0
    %6195 = vmatpush1.msra.mxu0 0.0
    %6196 = vmatprep.subr.mxu0 0.0
    %6197 = vmatpush1.msra.mxu0 0.0
    %6198 = vmatprep.subr.mxu0 0.0
    %6199 = vmatpush1.msra.mxu0 0.0
    %6200 = vmatprep.subr.mxu0 0.0
    %6201 = vmatpush1.msra.mxu0 0.0
    %6202 = vmatprep.subr.mxu0 0.0
    %6203 = vmatpush1.msra.mxu0 0.0
    %6204 = vmatprep.subr.mxu0 0.0
    %6205 = vmatpush1.msra.mxu0 0.0
    %6206 = vmatprep.subr.mxu0 0.0
    %6207 = vmatpush1.msra.mxu0 0.0
    %6208 = vmatprep.subr.mxu0 0.0
    %6209 = vmatpush1.msra.mxu0 0.0
    %6210 = vmatprep.subr.mxu0 0.0
    %6211 = vmatpush1.msra.mxu0 0.0
    %6212 = vmatprep.subr.mxu0 0.0
    %6213 = vmatpush1.msra.mxu0 0.0
    %6214 = vmatprep.subr.mxu0 0.0
    %6215 = vmatpush1.msra.mxu0 0.0
    %6216 = vmatprep.subr.mxu0 0.0
    %6217 = vmatpush1.msra.mxu0 0.0
    %6218 = vmatprep.subr.mxu0 0.0
    %6219 = vmatpush1.msra.mxu0 0.0
    %6220 = vmatprep.subr.mxu0 0.0
    %6221 = vmatpush1.msra.mxu0 0.0
    %6222 = vmatprep.subr.mxu0 0.0
    %6223 = vmatpush1.msra.mxu0 0.0
    %6224 = vmatprep.subr.mxu0 0.0
    %6225 = vmatpush1.msra.mxu0 0.0
    %6226 = vmatprep.subr.mxu0 0.0
    %6227 = vmatpush1.msra.mxu0 0.0
    %6228 = vmatprep.subr.mxu0 0.0
    %6229 = vmatpush1.msra.mxu0 0.0
    %6230 = vmatprep.subr.mxu0 0.0
    %6231 = vmatpush1.msra.mxu0 0.0
    %6232 = vmatprep.subr.mxu0 0.0
    %6233 = vmatpush1.msra.mxu0 0.0
    %6234 = vmatprep.subr.mxu0 0.0
    %6235 = vmatpush1.msra.mxu0 0.0
    %6236 = vmatprep.subr.mxu0 0.0
    %6237 = vmatpush1.msra.mxu0 0.0
    %6238 = vmatprep.subr.mxu0 0.0
    %6239 = vmatpush1.msra.mxu0 0.0
    %6240 = vmatprep.subr.mxu0 0.0
    %6241 = vmatpush1.msra.mxu0 0.0
    %6242 = vmatprep.subr.mxu0 0.0
    %6243 = vmatpush1.msra.mxu0 0.0
    %6244 = vmatprep.subr.mxu0 0.0
    %6245 = vmatpush1.msra.mxu0 0.0
    %6246 = vmatprep.subr.mxu0 0.0
    %6247 = vmatpush1.msra.mxu0 0.0
    %6248 = vmatprep.subr.mxu0 0.0
    %6249 = vmatpush1.msra.mxu0 0.0
    %6250 = vmatprep.subr.mxu0 0.0
    %6251 = vmatpush1.msra.mxu0 0.0
    %6252 = vmatprep.mubr.f32.mxu0 0.0
    %6253 = vmatmul.mubr.f32.gmra.mrb[0].mxu0 %v6180
    %v6254 = vpop.f32.mrb[0].mxu0
    %v6255 = vadd.f32 0.0, %v6254
    %v6256 = vpop.f32.mrb[0].mxu0
    %6257 = vmatprep.mubr.f32.mxu0 0.0
    %6258 = vmatmul.mubr.f32.gmra.mrb[0].mxu0 %v6183
    %v6259 = vpop.f32.mrb[0].mxu0
    %v6260 = vadd.f32 0.0, %v6259
    %v6261 = vpop.f32.mrb[0].mxu0
    %6262 = vmatprep.mubr.f32.mxu0 0.0
    %6263 = vmatmul.mubr.f32.gmra.mrb[0].mxu0 %v6186
    %v6264 = vpop.f32.mrb[0].mxu0
    %v6265 = vadd.f32 0.0, %v6264
    %v6266 = vpop.f32.mrb[0].mxu0
    %6267 = vdwg.mxu0
    %6268 = vrot.lane.b32.xlu0 %v4451, 64
    %v6269 = vpop.permute.xlu0 %6268
    %6270 = vrot.lane.b32.xlu0 %v4456, 64
    %v6271 = vpop.permute.xlu0 %6270
    %6272 = vrot.lane.b32.xlu0 %v4459, 64
    %v6273 = vpop.permute.xlu0 %6272
    %v6278 = vsel %vm1788, %v5579, 0
    %v6281 = vsel %vm1788, %v5580, 0
    %v6284 = vsel %vm1788, %v5581, 0
    %6286 = vmatprep.subr.mxu0 0.0
    %6287 = vmatpush1.msra.mxu0 %v6269
    %6288 = vmatprep.subr.mxu0 0.0
    %6289 = vmatpush1.msra.mxu0 %v6271
    %6290 = vmatprep.subr.mxu0 0.0
    %6291 = vmatpush1.msra.mxu0 %v6273
    %6292 = vmatprep.subr.mxu0 0.0
    %6293 = vmatpush1.msra.mxu0 0.0
    %6294 = vmatprep.subr.mxu0 0.0
    %6295 = vmatpush1.msra.mxu0 0.0
    %6296 = vmatprep.subr.mxu0 0.0
    %6297 = vmatpush1.msra.mxu0 0.0
    %6298 = vmatprep.subr.mxu0 0.0
    %6299 = vmatpush1.msra.mxu0 0.0
    %6300 = vmatprep.subr.mxu0 0.0
    %6301 = vmatpush1.msra.mxu0 0.0
    %6302 = vmatprep.subr.mxu0 0.0
    %6303 = vmatpush1.msra.mxu0 0.0
    %6304 = vmatprep.subr.mxu0 0.0
    %6305 = vmatpush1.msra.mxu0 0.0
    %6306 = vmatprep.subr.mxu0 0.0
    %6307 = vmatpush1.msra.mxu0 0.0
    %6308 = vmatprep.subr.mxu0 0.0
    %6309 = vmatpush1.msra.mxu0 0.0
    %6310 = vmatprep.subr.mxu0 0.0
    %6311 = vmatpush1.msra.mxu0 0.0
    %6312 = vmatprep.subr.mxu0 0.0
    %6313 = vmatpush1.msra.mxu0 0.0
    %6314 = vmatprep.subr.mxu0 0.0
    %6315 = vmatpush1.msra.mxu0 0.0
    %6316 = vmatprep.subr.mxu0 0.0
    %6317 = vmatpush1.msra.mxu0 0.0
    %6318 = vmatprep.subr.mxu0 0.0
    %6319 = vmatpush1.msra.mxu0 0.0
    %6320 = vmatprep.subr.mxu0 0.0
    %6321 = vmatpush1.msra.mxu0 0.0
    %6322 = vmatprep.subr.mxu0 0.0
    %6323 = vmatpush1.msra.mxu0 0.0
    %6324 = vmatprep.subr.mxu0 0.0
    %6325 = vmatpush1.msra.mxu0 0.0
    %6326 = vmatprep.subr.mxu0 0.0
    %6327 = vmatpush1.msra.mxu0 0.0
    %6328 = vmatprep.subr.mxu0 0.0
    %6329 = vmatpush1.msra.mxu0 0.0
    %6330 = vmatprep.subr.mxu0 0.0
    %6331 = vmatpush1.msra.mxu0 0.0
    %6332 = vmatprep.subr.mxu0 0.0
    %6333 = vmatpush1.msra.mxu0 0.0
    %6334 = vmatprep.subr.mxu0 0.0
    %6335 = vmatpush1.msra.mxu0 0.0
    %6336 = vmatprep.subr.mxu0 0.0
    %6337 = vmatpush1.msra.mxu0 0.0
    %6338 = vmatprep.subr.mxu0 0.0
    %6339 = vmatpush1.msra.mxu0 0.0
    %6340 = vmatprep.subr.mxu0 0.0
    %6341 = vmatpush1.msra.mxu0 0.0
    %6342 = vmatprep.subr.mxu0 0.0
    %6343 = vmatpush1.msra.mxu0 0.0
    %6344 = vmatprep.subr.mxu0 0.0
    %6345 = vmatpush1.msra.mxu0 0.0
    %6346 = vmatprep.subr.mxu0 0.0
    %6347 = vmatpush1.msra.mxu0 0.0
    %6348 = vmatprep.subr.mxu0 0.0
    %6349 = vmatpush1.msra.mxu0 0.0
    %6350 = vmatprep.mubr.f32.mxu0 0.0
    %6351 = vmatmul.mubr.f32.gmra.mrb[0].mxu0 %v6278
    %v6352 = vpop.f32.mrb[0].mxu0
    %v6353 = vadd.f32 0.0, %v6352
    %v6354 = vpop.f32.mrb[0].mxu0
    %6355 = vmatprep.mubr.f32.mxu0 0.0
    %6356 = vmatmul.mubr.f32.gmra.mrb[0].mxu0 %v6281
    %v6357 = vpop.f32.mrb[0].mxu0
    %v6358 = vadd.f32 0.0, %v6357
    %v6359 = vpop.f32.mrb[0].mxu0
    %6360 = vmatprep.mubr.f32.mxu0 0.0
    %6361 = vmatmul.mubr.f32.gmra.mrb[0].mxu0 %v6284
    %v6362 = vpop.f32.mrb[0].mxu0
    %v6363 = vadd.f32 0.0, %v6362
    %v6364 = vpop.f32.mrb[0].mxu0
    %6365 = vdwg.mxu0
    %v6366 = vpack.c.bf16 %v5672, %v5667
    %v6367 = vpack.c.bf16 %v5765, %v5677
    %v6368 = vpack.c.bf16 %v5775, %v5770
    %v6369 = vpack.c.bf16 %v5868, %v5863
    %v6370 = vpack.c.bf16 %v5961, %v5873
    %v6371 = vpack.c.bf16 %v5971, %v5966
    %v6372 = vpack.c.bf16 %v6064, %v6059
    %v6373 = vpack.c.bf16 %v6157, %v6069
    %v6374 = vpack.c.bf16 %v6167, %v6162
    %v6375 = vpack.c.bf16 %v6260, %v6255
    %v6376 = vpack.c.bf16 %v6353, %v6265
    %v6377 = vpack.c.bf16 %v6363, %v6358
    %s6378 = scalar_lea.vmem %s8, 16
    %v6379 = vld [vmem:[%s6378] sm:$0xf]
    %v6380 = vld [vmem:[%s6378 + $0x4] sm:$0xf]
    %v6381 = vld [vmem:[%s6378 + $0x8] sm:$0xf]
    %v6382 = vld [vmem:[%s6378 + $0xc] sm:$0xf]
    %v6387 = vunpack.c.l.b16 %v6379
    %v6388 = vunpack.c.l.b16 %v6380
    %v6389 = vunpack.c.l.b16 %v6381
    %v6390 = vunpack.c.l.b16 %v6382
    %v6391 = vpack.c.b16 %v6388, %v6387
    %v6392 = vpack.c.b16 %v6390, %v6389
    %v6396 = vsel %vm718, %v6366, 0
    %v6399 = vsel %vm718, %v6367, 0
    %v6402 = vsel %vm718, %v6368, 0
    %v6405 = vsel %vm718, %v6369, 0
    %v6408 = vsel %vm718, %v6370, 0
    %v6411 = vsel %vm718, %v6371, 0
    %v6414 = vsel %vm718, %v6372, 0
    %v6417 = vsel %vm718, %v6373, 0
    %v6420 = vsel %vm718, %v6374, 0
    %v6423 = vsel %vm718, %v6375, 0
    %v6426 = vsel %vm718, %v6376, 0
    %v6429 = vsel %vm718, %v6377, 0
    %6431 = vmatprep.subr.bf16.mxu0 0
    %6432 = vmatpush1.bf16.msra.mxu0 %v6391
    %6433 = vmatprep.subr.bf16.mxu0 0
    %6434 = vmatpush1.bf16.msra.mxu0 %v6392
    %6435 = vmatprep.subr.bf16.mxu0 0
    %6436 = vmatpush1.bf16.msra.mxu0 0
    %6437 = vmatprep.subr.bf16.mxu0 0
    %6438 = vmatpush1.bf16.msra.mxu0 0
    %6439 = vmatprep.subr.bf16.mxu0 0
    %6440 = vmatpush1.bf16.msra.mxu0 0
    %6441 = vmatprep.subr.bf16.mxu0 0
    %6442 = vmatpush1.bf16.msra.mxu0 0
    %6443 = vmatprep.subr.bf16.mxu0 0
    %6444 = vmatpush1.bf16.msra.mxu0 0
    %6445 = vmatprep.subr.bf16.mxu0 0
    %6446 = vmatpush1.bf16.msra.mxu0 0
    %6447 = vmatprep.subr.bf16.mxu0 0
    %6448 = vmatpush1.bf16.msra.mxu0 0
    %6449 = vmatprep.subr.bf16.mxu0 0
    %6450 = vmatpush1.bf16.msra.mxu0 0
    %6451 = vmatprep.subr.bf16.mxu0 0
    %6452 = vmatpush1.bf16.msra.mxu0 0
    %6453 = vmatprep.subr.bf16.mxu0 0
    %6454 = vmatpush1.bf16.msra.mxu0 0
    %6455 = vmatprep.subr.bf16.mxu0 0
    %6456 = vmatpush1.bf16.msra.mxu0 0
    %6457 = vmatprep.subr.bf16.mxu0 0
    %6458 = vmatpush1.bf16.msra.mxu0 0
    %6459 = vmatprep.subr.bf16.mxu0 0
    %6460 = vmatpush1.bf16.msra.mxu0 0
    %6461 = vmatprep.subr.bf16.mxu0 0
    %6462 = vmatpush1.bf16.msra.mxu0 0
    %6463 = vmatprep.mubr.bf16.mxu0 0
    %6464 = vmatmul.mubr.bf16.gmra.mrb[0].mxu0 %v6396
    %v6465 = vpop.f32.mrb[0].mxu0
    %v6466 = vadd.f32 0.0, %v6465
    %v6467 = vpop.f32.mrb[0].mxu0
    %v6468 = vpop.f32.mrb[0].mxu0
    %v6469 = vadd.f32 0.0, %v6468
    %v6470 = vpop.f32.mrb[0].mxu0
    %6471 = vmatprep.mubr.bf16.mxu0 0
    %6472 = vmatmul.mubr.bf16.gmra.mrb[0].mxu0 %v6399
    %v6473 = vpop.f32.mrb[0].mxu0
    %v6474 = vadd.f32 0.0, %v6473
    %v6475 = vpop.f32.mrb[0].mxu0
    %v6476 = vpop.f32.mrb[0].mxu0
    %v6477 = vadd.f32 0.0, %v6476
    %v6478 = vpop.f32.mrb[0].mxu0
    %6479 = vmatprep.mubr.bf16.mxu0 0
    %6480 = vmatmul.mubr.bf16.gmra.mrb[0].mxu0 %v6402
    %v6481 = vpop.f32.mrb[0].mxu0
    %v6482 = vadd.f32 0.0, %v6481
    %v6483 = vpop.f32.mrb[0].mxu0
    %v6484 = vpop.f32.mrb[0].mxu0
    %v6485 = vadd.f32 0.0, %v6484
    %v6486 = vpop.f32.mrb[0].mxu0
    %6487 = vmatprep.mubr.bf16.mxu0 0
    %6488 = vmatmul.mubr.bf16.gmra.mrb[0].mxu0 %v6405
    %v6489 = vpop.f32.mrb[0].mxu0
    %v6490 = vadd.f32 0.0, %v6489
    %v6491 = vpop.f32.mrb[0].mxu0
    %v6492 = vpop.f32.mrb[0].mxu0
    %v6493 = vadd.f32 0.0, %v6492
    %v6494 = vpop.f32.mrb[0].mxu0
    %6495 = vmatprep.mubr.bf16.mxu0 0
    %6496 = vmatmul.mubr.bf16.gmra.mrb[0].mxu0 %v6408
    %v6497 = vpop.f32.mrb[0].mxu0
    %v6498 = vadd.f32 0.0, %v6497
    %v6499 = vpop.f32.mrb[0].mxu0
    %v6500 = vpop.f32.mrb[0].mxu0
    %v6501 = vadd.f32 0.0, %v6500
    %v6502 = vpop.f32.mrb[0].mxu0
    %6503 = vmatprep.mubr.bf16.mxu0 0
    %6504 = vmatmul.mubr.bf16.gmra.mrb[0].mxu0 %v6411
    %v6505 = vpop.f32.mrb[0].mxu0
    %v6506 = vadd.f32 0.0, %v6505
    %v6507 = vpop.f32.mrb[0].mxu0
    %v6508 = vpop.f32.mrb[0].mxu0
    %v6509 = vadd.f32 0.0, %v6508
    %v6510 = vpop.f32.mrb[0].mxu0
    %6511 = vmatprep.mubr.bf16.mxu0 0
    %6512 = vmatmul.mubr.bf16.gmra.mrb[0].mxu0 %v6414
    %v6513 = vpop.f32.mrb[0].mxu0
    %v6514 = vadd.f32 0.0, %v6513
    %v6515 = vpop.f32.mrb[0].mxu0
    %v6516 = vpop.f32.mrb[0].mxu0
    %v6517 = vadd.f32 0.0, %v6516
    %v6518 = vpop.f32.mrb[0].mxu0
    %6519 = vmatprep.mubr.bf16.mxu0 0
    %6520 = vmatmul.mubr.bf16.gmra.mrb[0].mxu0 %v6417
    %v6521 = vpop.f32.mrb[0].mxu0
    %v6522 = vadd.f32 0.0, %v6521
    %v6523 = vpop.f32.mrb[0].mxu0
    %v6524 = vpop.f32.mrb[0].mxu0
    %v6525 = vadd.f32 0.0, %v6524
    %v6526 = vpop.f32.mrb[0].mxu0
    %6527 = vmatprep.mubr.bf16.mxu0 0
    %6528 = vmatmul.mubr.bf16.gmra.mrb[0].mxu0 %v6420
    %v6529 = vpop.f32.mrb[0].mxu0
    %v6530 = vadd.f32 0.0, %v6529
    %v6531 = vpop.f32.mrb[0].mxu0
    %v6532 = vpop.f32.mrb[0].mxu0
    %v6533 = vadd.f32 0.0, %v6532
    %v6534 = vpop.f32.mrb[0].mxu0
    %6535 = vmatprep.mubr.bf16.mxu0 0
    %6536 = vmatmul.mubr.bf16.gmra.mrb[0].mxu0 %v6423
    %v6537 = vpop.f32.mrb[0].mxu0
    %v6538 = vadd.f32 0.0, %v6537
    %v6539 = vpop.f32.mrb[0].mxu0
    %v6540 = vpop.f32.mrb[0].mxu0
    %v6541 = vadd.f32 0.0, %v6540
    %v6542 = vpop.f32.mrb[0].mxu0
    %6543 = vmatprep.mubr.bf16.mxu0 0
    %6544 = vmatmul.mubr.bf16.gmra.mrb[0].mxu0 %v6426
    %v6545 = vpop.f32.mrb[0].mxu0
    %v6546 = vadd.f32 0.0, %v6545
    %v6547 = vpop.f32.mrb[0].mxu0
    %v6548 = vpop.f32.mrb[0].mxu0
    %v6549 = vadd.f32 0.0, %v6548
    %v6550 = vpop.f32.mrb[0].mxu0
    %6551 = vmatprep.mubr.bf16.mxu0 0
    %6552 = vmatmul.mubr.bf16.gmra.mrb[0].mxu0 %v6429
    %v6553 = vpop.f32.mrb[0].mxu0
    %v6554 = vadd.f32 0.0, %v6553
    %v6555 = vpop.f32.mrb[0].mxu0
    %v6556 = vpop.f32.mrb[0].mxu0
    %v6557 = vadd.f32 0.0, %v6556
    %v6558 = vpop.f32.mrb[0].mxu0
    %6559 = vdwg.mxu0
    %v6560 = vadd.f32 %v4244, %v6466
    %v6561 = vadd.f32 %v4245, %v6469
    %v6562 = vadd.f32 %v4246, %v6474
    %v6563 = vadd.f32 %v4247, %v6477
    %v6564 = vadd.f32 %v4248, %v6482
    %v6565 = vadd.f32 %v4249, %v6485
    %v6566 = vadd.f32 %v4250, %v6490
    %v6567 = vadd.f32 %v4251, %v6493
    %v6568 = vadd.f32 %v4252, %v6498
    %v6569 = vadd.f32 %v4253, %v6501
    %v6570 = vadd.f32 %v4254, %v6506
    %v6571 = vadd.f32 %v4255, %v6509
    %v6572 = vadd.f32 %v4256, %v6514
    %v6573 = vadd.f32 %v4257, %v6517
    %v6574 = vadd.f32 %v4258, %v6522
    %v6575 = vadd.f32 %v4259, %v6525
    %v6576 = vadd.f32 %v4260, %v6530
    %v6577 = vadd.f32 %v4261, %v6533
    %v6578 = vadd.f32 %v4262, %v6538
    %v6579 = vadd.f32 %v4263, %v6541
    %v6580 = vadd.f32 %v4264, %v6546
    %v6581 = vadd.f32 %v4265, %v6549
    %v6582 = vadd.f32 %v4266, %v6554
    %v6583 = vadd.f32 %v4267, %v6557
    %v6584 = vsel %vm718, %v6560, 0.0
    %6585 = vadd.xlane.f32.xlu0 %v6584
    %v6586 = vpop.xlane.xlu0 %6585
    %v6587 = vsel %vm718, %v6561, 0.0
    %6588 = vadd.xlane.f32.xlu0 %v6587
    %v6589 = vpop.xlane.xlu0 %6588
    %v6590 = vsel %vm718, %v6562, 0.0
    %6591 = vadd.xlane.f32.xlu0 %v6590
    %v6592 = vpop.xlane.xlu0 %6591
    %v6593 = vsel %vm718, %v6563, 0.0
    %6594 = vadd.xlane.f32.xlu0 %v6593
    %v6595 = vpop.xlane.xlu0 %6594
    %v6596 = vsel %vm718, %v6564, 0.0
    %6597 = vadd.xlane.f32.xlu0 %v6596
    %v6598 = vpop.xlane.xlu0 %6597
    %v6599 = vsel %vm718, %v6565, 0.0
    %6600 = vadd.xlane.f32.xlu0 %v6599
    %v6601 = vpop.xlane.xlu0 %6600
    %v6602 = vsel %vm718, %v6566, 0.0
    %6603 = vadd.xlane.f32.xlu0 %v6602
    %v6604 = vpop.xlane.xlu0 %6603
    %v6605 = vsel %vm718, %v6567, 0.0
    %6606 = vadd.xlane.f32.xlu0 %v6605
    %v6607 = vpop.xlane.xlu0 %6606
    %v6608 = vsel %vm718, %v6568, 0.0
    %6609 = vadd.xlane.f32.xlu0 %v6608
    %v6610 = vpop.xlane.xlu0 %6609
    %v6611 = vsel %vm718, %v6569, 0.0
    %6612 = vadd.xlane.f32.xlu0 %v6611
    %v6613 = vpop.xlane.xlu0 %6612
    %v6614 = vsel %vm718, %v6570, 0.0
    %6615 = vadd.xlane.f32.xlu0 %v6614
    %v6616 = vpop.xlane.xlu0 %6615
    %v6617 = vsel %vm718, %v6571, 0.0
    %6618 = vadd.xlane.f32.xlu0 %v6617
    %v6619 = vpop.xlane.xlu0 %6618
    %v6620 = vsel %vm718, %v6572, 0.0
    %6621 = vadd.xlane.f32.xlu0 %v6620
    %v6622 = vpop.xlane.xlu0 %6621
    %v6623 = vsel %vm718, %v6573, 0.0
    %6624 = vadd.xlane.f32.xlu0 %v6623
    %v6625 = vpop.xlane.xlu0 %6624
    %v6626 = vsel %vm718, %v6574, 0.0
    %6627 = vadd.xlane.f32.xlu0 %v6626
    %v6628 = vpop.xlane.xlu0 %6627
    %v6629 = vsel %vm718, %v6575, 0.0
    %6630 = vadd.xlane.f32.xlu0 %v6629
    %v6631 = vpop.xlane.xlu0 %6630
    %v6632 = vsel %vm718, %v6576, 0.0
    %6633 = vadd.xlane.f32.xlu0 %v6632
    %v6634 = vpop.xlane.xlu0 %6633
    %v6635 = vsel %vm718, %v6577, 0.0
    %6636 = vadd.xlane.f32.xlu0 %v6635
    %v6637 = vpop.xlane.xlu0 %6636
    %v6638 = vsel %vm718, %v6578, 0.0
    %6639 = vadd.xlane.f32.xlu0 %v6638
    %v6640 = vpop.xlane.xlu0 %6639
    %v6641 = vsel %vm718, %v6579, 0.0
    %6642 = vadd.xlane.f32.xlu0 %v6641
    %v6643 = vpop.xlane.xlu0 %6642
    %v6644 = vsel %vm718, %v6580, 0.0
    %6645 = vadd.xlane.f32.xlu0 %v6644
    %v6646 = vpop.xlane.xlu0 %6645
    %v6647 = vsel %vm718, %v6581, 0.0
    %6648 = vadd.xlane.f32.xlu0 %v6647
    %v6649 = vpop.xlane.xlu0 %6648
    %v6650 = vsel %vm718, %v6582, 0.0
    %6651 = vadd.xlane.f32.xlu0 %v6650
    %v6652 = vpop.xlane.xlu0 %6651
    %v6653 = vsel %vm718, %v6583, 0.0
    %6654 = vadd.xlane.f32.xlu0 %v6653
    %v6655 = vpop.xlane.xlu0 %6654
    %v6656 = vmul.f32 %v6586, %v3126
    %v6657 = vmul.f32 %v6589, %v3126
    %v6658 = vmul.f32 %v6592, %v3126
    %v6659 = vmul.f32 %v6595, %v3126
    %v6660 = vmul.f32 %v6598, %v3126
    %v6661 = vmul.f32 %v6601, %v3126
    %v6662 = vmul.f32 %v6604, %v3126
    %v6663 = vmul.f32 %v6607, %v3126
    %v6664 = vmul.f32 %v6610, %v3126
    %v6665 = vmul.f32 %v6613, %v3126
    %v6666 = vmul.f32 %v6616, %v3126
    %v6667 = vmul.f32 %v6619, %v3126
    %v6668 = vmul.f32 %v6622, %v3126
    %v6669 = vmul.f32 %v6625, %v3126
    %v6670 = vmul.f32 %v6628, %v3126
    %v6671 = vmul.f32 %v6631, %v3126
    %v6672 = vmul.f32 %v6634, %v3126
    %v6673 = vmul.f32 %v6637, %v3126
    %v6674 = vmul.f32 %v6640, %v3126
    %v6675 = vmul.f32 %v6643, %v3126
    %v6676 = vmul.f32 %v6646, %v3126
    %v6677 = vmul.f32 %v6649, %v3126
    %v6678 = vmul.f32 %v6652, %v3126
    %v6679 = vmul.f32 %v6655, %v3126
    %v6680 = vsub.f32 %v6560, %v6656
    %v6681 = vsub.f32 %v6561, %v6657
    %v6682 = vsub.f32 %v6562, %v6658
    %v6683 = vsub.f32 %v6563, %v6659
    %v6684 = vsub.f32 %v6564, %v6660
    %v6685 = vsub.f32 %v6565, %v6661
    %v6686 = vsub.f32 %v6566, %v6662
    %v6687 = vsub.f32 %v6567, %v6663
    %v6688 = vsub.f32 %v6568, %v6664
    %v6689 = vsub.f32 %v6569, %v6665
    %v6690 = vsub.f32 %v6570, %v6666
    %v6691 = vsub.f32 %v6571, %v6667
    %v6692 = vsub.f32 %v6572, %v6668
    %v6693 = vsub.f32 %v6573, %v6669
    %v6694 = vsub.f32 %v6574, %v6670
    %v6695 = vsub.f32 %v6575, %v6671
    %v6696 = vsub.f32 %v6576, %v6672
    %v6697 = vsub.f32 %v6577, %v6673
    %v6698 = vsub.f32 %v6578, %v6674
    %v6699 = vsub.f32 %v6579, %v6675
    %v6700 = vsub.f32 %v6580, %v6676
    %v6701 = vsub.f32 %v6581, %v6677
    %v6702 = vsub.f32 %v6582, %v6678
    %v6703 = vsub.f32 %v6583, %v6679
    %v6704 = vmul.f32 %v6680, %v6680
    %v6705 = vmul.f32 %v6681, %v6681
    %v6706 = vmul.f32 %v6682, %v6682
    %v6707 = vmul.f32 %v6683, %v6683
    %v6708 = vmul.f32 %v6684, %v6684
    %v6709 = vmul.f32 %v6685, %v6685
    %v6710 = vmul.f32 %v6686, %v6686
    %v6711 = vmul.f32 %v6687, %v6687
    %v6712 = vmul.f32 %v6688, %v6688
    %v6713 = vmul.f32 %v6689, %v6689
    %v6714 = vmul.f32 %v6690, %v6690
    %v6715 = vmul.f32 %v6691, %v6691
    %v6716 = vmul.f32 %v6692, %v6692
    %v6717 = vmul.f32 %v6693, %v6693
    %v6718 = vmul.f32 %v6694, %v6694
    %v6719 = vmul.f32 %v6695, %v6695
    %v6720 = vmul.f32 %v6696, %v6696
    %v6721 = vmul.f32 %v6697, %v6697
    %v6722 = vmul.f32 %v6698, %v6698
    %v6723 = vmul.f32 %v6699, %v6699
    %v6724 = vmul.f32 %v6700, %v6700
    %v6725 = vmul.f32 %v6701, %v6701
    %v6726 = vmul.f32 %v6702, %v6702
    %v6727 = vmul.f32 %v6703, %v6703
    %v6728 = vsel %vm718, %v6704, 0.0
    %6729 = vadd.xlane.f32.xlu0 %v6728
    %v6730 = vpop.xlane.xlu0 %6729
    %v6731 = vsel %vm718, %v6705, 0.0
    %6732 = vadd.xlane.f32.xlu0 %v6731
    %v6733 = vpop.xlane.xlu0 %6732
    %v6734 = vsel %vm718, %v6706, 0.0
    %6735 = vadd.xlane.f32.xlu0 %v6734
    %v6736 = vpop.xlane.xlu0 %6735
    %v6737 = vsel %vm718, %v6707, 0.0
    %6738 = vadd.xlane.f32.xlu0 %v6737
    %v6739 = vpop.xlane.xlu0 %6738
    %v6740 = vsel %vm718, %v6708, 0.0
    %6741 = vadd.xlane.f32.xlu0 %v6740
    %v6742 = vpop.xlane.xlu0 %6741
    %v6743 = vsel %vm718, %v6709, 0.0
    %6744 = vadd.xlane.f32.xlu0 %v6743
    %v6745 = vpop.xlane.xlu0 %6744
    %v6746 = vsel %vm718, %v6710, 0.0
    %6747 = vadd.xlane.f32.xlu0 %v6746
    %v6748 = vpop.xlane.xlu0 %6747
    %v6749 = vsel %vm718, %v6711, 0.0
    %6750 = vadd.xlane.f32.xlu0 %v6749
    %v6751 = vpop.xlane.xlu0 %6750
    %v6752 = vsel %vm718, %v6712, 0.0
    %6753 = vadd.xlane.f32.xlu0 %v6752
    %v6754 = vpop.xlane.xlu0 %6753
    %v6755 = vsel %vm718, %v6713, 0.0
    %6756 = vadd.xlane.f32.xlu0 %v6755
    %v6757 = vpop.xlane.xlu0 %6756
    %v6758 = vsel %vm718, %v6714, 0.0
    %6759 = vadd.xlane.f32.xlu0 %v6758
    %v6760 = vpop.xlane.xlu0 %6759
    %v6761 = vsel %vm718, %v6715, 0.0
    %6762 = vadd.xlane.f32.xlu0 %v6761
    %v6763 = vpop.xlane.xlu0 %6762
    %v6764 = vsel %vm718, %v6716, 0.0
    %6765 = vadd.xlane.f32.xlu0 %v6764
    %v6766 = vpop.xlane.xlu0 %6765
    %v6767 = vsel %vm718, %v6717, 0.0
    %6768 = vadd.xlane.f32.xlu0 %v6767
    %v6769 = vpop.xlane.xlu0 %6768
    %v6770 = vsel %vm718, %v6718, 0.0
    %6771 = vadd.xlane.f32.xlu0 %v6770
    %v6772 = vpop.xlane.xlu0 %6771
    %v6773 = vsel %vm718, %v6719, 0.0
    %6774 = vadd.xlane.f32.xlu0 %v6773
    %v6775 = vpop.xlane.xlu0 %6774
    %v6776 = vsel %vm718, %v6720, 0.0
    %6777 = vadd.xlane.f32.xlu0 %v6776
    %v6778 = vpop.xlane.xlu0 %6777
    %v6779 = vsel %vm718, %v6721, 0.0
    %6780 = vadd.xlane.f32.xlu0 %v6779
    %v6781 = vpop.xlane.xlu0 %6780
    %v6782 = vsel %vm718, %v6722, 0.0
    %6783 = vadd.xlane.f32.xlu0 %v6782
    %v6784 = vpop.xlane.xlu0 %6783
    %v6785 = vsel %vm718, %v6723, 0.0
    %6786 = vadd.xlane.f32.xlu0 %v6785
    %v6787 = vpop.xlane.xlu0 %6786
    %v6788 = vsel %vm718, %v6724, 0.0
    %6789 = vadd.xlane.f32.xlu0 %v6788
    %v6790 = vpop.xlane.xlu0 %6789
    %v6791 = vsel %vm718, %v6725, 0.0
    %6792 = vadd.xlane.f32.xlu0 %v6791
    %v6793 = vpop.xlane.xlu0 %6792
    %v6794 = vsel %vm718, %v6726, 0.0
    %6795 = vadd.xlane.f32.xlu0 %v6794
    %v6796 = vpop.xlane.xlu0 %6795
    %v6797 = vsel %vm718, %v6727, 0.0
    %6798 = vadd.xlane.f32.xlu0 %v6797
    %v6799 = vpop.xlane.xlu0 %6798
    %v6800 = vmul.f32 %v6730, %v3126
    %v6801 = vmul.f32 %v6733, %v3126
    %v6802 = vmul.f32 %v6736, %v3126
    %v6803 = vmul.f32 %v6739, %v3126
    %v6804 = vmul.f32 %v6742, %v3126
    %v6805 = vmul.f32 %v6745, %v3126
    %v6806 = vmul.f32 %v6748, %v3126
    %v6807 = vmul.f32 %v6751, %v3126
    %v6808 = vmul.f32 %v6754, %v3126
    %v6809 = vmul.f32 %v6757, %v3126
    %v6810 = vmul.f32 %v6760, %v3126
    %v6811 = vmul.f32 %v6763, %v3126
    %v6812 = vmul.f32 %v6766, %v3126
    %v6813 = vmul.f32 %v6769, %v3126
    %v6814 = vmul.f32 %v6772, %v3126
    %v6815 = vmul.f32 %v6775, %v3126
    %v6816 = vmul.f32 %v6778, %v3126
    %v6817 = vmul.f32 %v6781, %v3126
    %v6818 = vmul.f32 %v6784, %v3126
    %v6819 = vmul.f32 %v6787, %v3126
    %v6820 = vmul.f32 %v6790, %v3126
    %v6821 = vmul.f32 %v6793, %v3126
    %v6822 = vmul.f32 %v6796, %v3126
    %v6823 = vmul.f32 %v6799, %v3126
    %v6824 = vadd.f32 %v6800, 1e-05
    %v6825 = vadd.f32 %v6801, 1e-05
    %v6826 = vadd.f32 %v6802, 1e-05
    %v6827 = vadd.f32 %v6803, 1e-05
    %v6828 = vadd.f32 %v6804, 1e-05
    %v6829 = vadd.f32 %v6805, 1e-05
    %v6830 = vadd.f32 %v6806, 1e-05
    %v6831 = vadd.f32 %v6807, 1e-05
    %v6832 = vadd.f32 %v6808, 1e-05
    %v6833 = vadd.f32 %v6809, 1e-05
    %v6834 = vadd.f32 %v6810, 1e-05
    %v6835 = vadd.f32 %v6811, 1e-05
    %v6836 = vadd.f32 %v6812, 1e-05
    %v6837 = vadd.f32 %v6813, 1e-05
    %v6838 = vadd.f32 %v6814, 1e-05
    %v6839 = vadd.f32 %v6815, 1e-05
    %v6840 = vadd.f32 %v6816, 1e-05
    %v6841 = vadd.f32 %v6817, 1e-05
    %v6842 = vadd.f32 %v6818, 1e-05
    %v6843 = vadd.f32 %v6819, 1e-05
    %v6844 = vadd.f32 %v6820, 1e-05
    %v6845 = vadd.f32 %v6821, 1e-05
    %v6846 = vadd.f32 %v6822, 1e-05
    %v6847 = vadd.f32 %v6823, 1e-05
    %v6848 = vrsqrt.pop %v6824
    %v6849 = vrsqrt.pop %v6825
    %v6850 = vrsqrt.pop %v6826
    %v6851 = vrsqrt.pop %v6827
    %v6852 = vrsqrt.pop %v6828
    %v6853 = vrsqrt.pop %v6829
    %v6854 = vrsqrt.pop %v6830
    %v6855 = vrsqrt.pop %v6831
    %v6856 = vrsqrt.pop %v6832
    %v6857 = vrsqrt.pop %v6833
    %v6858 = vrsqrt.pop %v6834
    %v6859 = vrsqrt.pop %v6835
    %v6860 = vrsqrt.pop %v6836
    %v6861 = vrsqrt.pop %v6837
    %v6862 = vrsqrt.pop %v6838
    %v6863 = vrsqrt.pop %v6839
    %v6864 = vrsqrt.pop %v6840
    %v6865 = vrsqrt.pop %v6841
    %v6866 = vrsqrt.pop %v6842
    %v6867 = vrsqrt.pop %v6843
    %v6868 = vrsqrt.pop %v6844
    %v6869 = vrsqrt.pop %v6845
    %v6870 = vrsqrt.pop %v6846
    %v6871 = vrsqrt.pop %v6847
    %v6872 = vmul.f32 %v6680, %v6848
    %v6873 = vmul.f32 %v6681, %v6849
    %v6874 = vmul.f32 %v6682, %v6850
    %v6875 = vmul.f32 %v6683, %v6851
    %v6876 = vmul.f32 %v6684, %v6852
    %v6877 = vmul.f32 %v6685, %v6853
    %v6878 = vmul.f32 %v6686, %v6854
    %v6879 = vmul.f32 %v6687, %v6855
    %v6880 = vmul.f32 %v6688, %v6856
    %v6881 = vmul.f32 %v6689, %v6857
    %v6882 = vmul.f32 %v6690, %v6858
    %v6883 = vmul.f32 %v6691, %v6859
    %v6884 = vmul.f32 %v6692, %v6860
    %v6885 = vmul.f32 %v6693, %v6861
    %v6886 = vmul.f32 %v6694, %v6862
    %v6887 = vmul.f32 %v6695, %v6863
    %v6888 = vmul.f32 %v6696, %v6864
    %v6889 = vmul.f32 %v6697, %v6865
    %v6890 = vmul.f32 %v6698, %v6866
    %v6891 = vmul.f32 %v6699, %v6867
    %v6892 = vmul.f32 %v6700, %v6868
    %v6893 = vmul.f32 %v6701, %v6869
    %v6894 = vmul.f32 %v6702, %v6870
    %v6895 = vmul.f32 %v6703, %v6871
    %s6896 = scalar_lea.vmem %s9, 1
    %v6897 = vld [vmem:[%s6896] sm:$0x1]
    %v6899 = vlaneseq
    %v6900 = vshrl.u32 %v6899, 7
    %v6901 = vsub.s32 0, %v6900
    %v6902 = vrot.slane %v6897, %v6901
    %v6904 = vmul.f32 %v6872, %v6902
    %v6905 = vmul.f32 %v6873, %v6902
    %v6906 = vmul.f32 %v6874, %v6902
    %v6907 = vmul.f32 %v6875, %v6902
    %v6908 = vmul.f32 %v6876, %v6902
    %v6909 = vmul.f32 %v6877, %v6902
    %v6910 = vmul.f32 %v6878, %v6902
    %v6911 = vmul.f32 %v6879, %v6902
    %v6912 = vmul.f32 %v6880, %v6902
    %v6913 = vmul.f32 %v6881, %v6902
    %v6914 = vmul.f32 %v6882, %v6902
    %v6915 = vmul.f32 %v6883, %v6902
    %v6916 = vmul.f32 %v6884, %v6902
    %v6917 = vmul.f32 %v6885, %v6902
    %v6918 = vmul.f32 %v6886, %v6902
    %v6919 = vmul.f32 %v6887, %v6902
    %v6920 = vmul.f32 %v6888, %v6902
    %v6921 = vmul.f32 %v6889, %v6902
    %v6922 = vmul.f32 %v6890, %v6902
    %v6923 = vmul.f32 %v6891, %v6902
    %v6924 = vmul.f32 %v6892, %v6902
    %v6925 = vmul.f32 %v6893, %v6902
    %v6926 = vmul.f32 %v6894, %v6902
    %v6927 = vmul.f32 %v6895, %v6902
    %s6928 = scalar_lea.vmem %s10, 1
    %v6929 = vld [vmem:[%s6928] sm:$0x1]
    %v6931 = vlaneseq
    %v6932 = vshrl.u32 %v6931, 7
    %v6933 = vsub.s32 0, %v6932
    %v6934 = vrot.slane %v6929, %v6933
    %v6936 = vadd.f32 %v6904, %v6934
    %v6937 = vadd.f32 %v6905, %v6934
    %v6938 = vadd.f32 %v6906, %v6934
    %v6939 = vadd.f32 %v6907, %v6934
    %v6940 = vadd.f32 %v6908, %v6934
    %v6941 = vadd.f32 %v6909, %v6934
    %v6942 = vadd.f32 %v6910, %v6934
    %v6943 = vadd.f32 %v6911, %v6934
    %v6944 = vadd.f32 %v6912, %v6934
    %v6945 = vadd.f32 %v6913, %v6934
    %v6946 = vadd.f32 %v6914, %v6934
    %v6947 = vadd.f32 %v6915, %v6934
    %v6948 = vadd.f32 %v6916, %v6934
    %v6949 = vadd.f32 %v6917, %v6934
    %v6950 = vadd.f32 %v6918, %v6934
    %v6951 = vadd.f32 %v6919, %v6934
    %v6952 = vadd.f32 %v6920, %v6934
    %v6953 = vadd.f32 %v6921, %v6934
    %v6954 = vadd.f32 %v6922, %v6934
    %v6955 = vadd.f32 %v6923, %v6934
    %v6956 = vadd.f32 %v6924, %v6934
    %v6957 = vadd.f32 %v6925, %v6934
    %v6958 = vadd.f32 %v6926, %v6934
    %v6959 = vadd.f32 %v6927, %v6934
    %v6960 = vpack.c.bf16 %v6937, %v6936
    %v6961 = vpack.c.bf16 %v6939, %v6938
    %v6962 = vpack.c.bf16 %v6941, %v6940
    %v6963 = vpack.c.bf16 %v6943, %v6942
    %v6964 = vpack.c.bf16 %v6945, %v6944
    %v6965 = vpack.c.bf16 %v6947, %v6946
    %v6966 = vpack.c.bf16 %v6949, %v6948
    %v6967 = vpack.c.bf16 %v6951, %v6950
    %v6968 = vpack.c.bf16 %v6953, %v6952
    %v6969 = vpack.c.bf16 %v6955, %v6954
    %v6970 = vpack.c.bf16 %v6957, %v6956
    %v6971 = vpack.c.bf16 %v6959, %v6958
    %s6972 = scalar_lea.vmem %s11, 16
    %v6973 = vld [vmem:[%s6972] sm:$0xf]
    %v6974 = vld [vmem:[%s6972 + $0x4] sm:$0xf]
    %v6975 = vld [vmem:[%s6972 + $0x8] sm:$0xf]
    %v6976 = vld [vmem:[%s6972 + $0xc] sm:$0xf]
    %s6977 = scalar_lea.vmem %s12, 1
    %v6978 = vld [vmem:[%s6977] sm:$0x1]
    %v6980 = vlaneseq
    %v6981 = vshrl.u32 %v6980, 7
    %v6982 = vsub.s32 0, %v6981
    %v6983 = vrot.slane %v6978, %v6982
    %v6989 = vunpack.c.l.b16 %v6973
    %v6990 = vunpack.c.l.b16 %v6974
    %v6991 = vunpack.c.l.b16 %v6975
    %v6992 = vunpack.c.l.b16 %v6976
    %v6993 = vpack.c.b16 %v6990, %v6989
    %v6994 = vpack.c.b16 %v6992, %v6991
    %v6998 = vsel %vm718, %v6960, 0
    %v7001 = vsel %vm718, %v6961, 0
    %v7004 = vsel %vm718, %v6962, 0
    %v7007 = vsel %vm718, %v6963, 0
    %v7010 = vsel %vm718, %v6964, 0
    %v7013 = vsel %vm718, %v6965, 0
    %v7016 = vsel %vm718, %v6966, 0
    %v7019 = vsel %vm718, %v6967, 0
    %v7022 = vsel %vm718, %v6968, 0
    %v7025 = vsel %vm718, %v6969, 0
    %v7028 = vsel %vm718, %v6970, 0
    %v7031 = vsel %vm718, %v6971, 0
    %7033 = vmatprep.subr.bf16.mxu0 0
    %7034 = vmatpush1.bf16.msra.mxu0 %v6993
    %7035 = vmatprep.subr.bf16.mxu0 0
    %7036 = vmatpush1.bf16.msra.mxu0 %v6994
    %7037 = vmatprep.subr.bf16.mxu0 0
    %7038 = vmatpush1.bf16.msra.mxu0 0
    %7039 = vmatprep.subr.bf16.mxu0 0
    %7040 = vmatpush1.bf16.msra.mxu0 0
    %7041 = vmatprep.subr.bf16.mxu0 0
    %7042 = vmatpush1.bf16.msra.mxu0 0
    %7043 = vmatprep.subr.bf16.mxu0 0
    %7044 = vmatpush1.bf16.msra.mxu0 0
    %7045 = vmatprep.subr.bf16.mxu0 0
    %7046 = vmatpush1.bf16.msra.mxu0 0
    %7047 = vmatprep.subr.bf16.mxu0 0
    %7048 = vmatpush1.bf16.msra.mxu0 0
    %7049 = vmatprep.subr.bf16.mxu0 0
    %7050 = vmatpush1.bf16.msra.mxu0 0
    %7051 = vmatprep.subr.bf16.mxu0 0
    %7052 = vmatpush1.bf16.msra.mxu0 0
    %7053 = vmatprep.subr.bf16.mxu0 0
    %7054 = vmatpush1.bf16.msra.mxu0 0
    %7055 = vmatprep.subr.bf16.mxu0 0
    %7056 = vmatpush1.bf16.msra.mxu0 0
    %7057 = vmatprep.subr.bf16.mxu0 0
    %7058 = vmatpush1.bf16.msra.mxu0 0
    %7059 = vmatprep.subr.bf16.mxu0 0
    %7060 = vmatpush1.bf16.msra.mxu0 0
    %7061 = vmatprep.subr.bf16.mxu0 0
    %7062 = vmatpush1.bf16.msra.mxu0 0
    %7063 = vmatprep.subr.bf16.mxu0 0
    %7064 = vmatpush1.bf16.msra.mxu0 0
    %7065 = vmatprep.mubr.bf16.mxu0 0
    %7066 = vmatmul.mubr.bf16.gmra.mrb[0].mxu0 %v6998
    %v7067 = vpop.f32.mrb[0].mxu0
    %v7068 = vadd.f32 %v6983, %v7067
    %v7069 = vpop.f32.mrb[0].mxu0
    %v7070 = vpop.f32.mrb[0].mxu0
    %v7071 = vadd.f32 %v6983, %v7070
    %v7072 = vpop.f32.mrb[0].mxu0
    %7073 = vmatprep.mubr.bf16.mxu0 0
    %7074 = vmatmul.mubr.bf16.gmra.mrb[0].mxu0 %v7001
    %v7075 = vpop.f32.mrb[0].mxu0
    %v7076 = vadd.f32 %v6983, %v7075
    %v7077 = vpop.f32.mrb[0].mxu0
    %v7078 = vpop.f32.mrb[0].mxu0
    %v7079 = vadd.f32 %v6983, %v7078
    %v7080 = vpop.f32.mrb[0].mxu0
    %7081 = vmatprep.mubr.bf16.mxu0 0
    %7082 = vmatmul.mubr.bf16.gmra.mrb[0].mxu0 %v7004
    %v7083 = vpop.f32.mrb[0].mxu0
    %v7084 = vadd.f32 %v6983, %v7083
    %v7085 = vpop.f32.mrb[0].mxu0
    %v7086 = vpop.f32.mrb[0].mxu0
    %v7087 = vadd.f32 %v6983, %v7086
    %v7088 = vpop.f32.mrb[0].mxu0
    %7089 = vmatprep.mubr.bf16.mxu0 0
    %7090 = vmatmul.mubr.bf16.gmra.mrb[0].mxu0 %v7007
    %v7091 = vpop.f32.mrb[0].mxu0
    %v7092 = vadd.f32 %v6983, %v7091
    %v7093 = vpop.f32.mrb[0].mxu0
    %v7094 = vpop.f32.mrb[0].mxu0
    %v7095 = vadd.f32 %v6983, %v7094
    %v7096 = vpop.f32.mrb[0].mxu0
    %7097 = vmatprep.mubr.bf16.mxu0 0
    %7098 = vmatmul.mubr.bf16.gmra.mrb[0].mxu0 %v7010
    %v7099 = vpop.f32.mrb[0].mxu0
    %v7100 = vadd.f32 %v6983, %v7099
    %v7101 = vpop.f32.mrb[0].mxu0
    %v7102 = vpop.f32.mrb[0].mxu0
    %v7103 = vadd.f32 %v6983, %v7102
    %v7104 = vpop.f32.mrb[0].mxu0
    %7105 = vmatprep.mubr.bf16.mxu0 0
    %7106 = vmatmul.mubr.bf16.gmra.mrb[0].mxu0 %v7013
    %v7107 = vpop.f32.mrb[0].mxu0
    %v7108 = vadd.f32 %v6983, %v7107
    %v7109 = vpop.f32.mrb[0].mxu0
    %v7110 = vpop.f32.mrb[0].mxu0
    %v7111 = vadd.f32 %v6983, %v7110
    %v7112 = vpop.f32.mrb[0].mxu0
    %7113 = vmatprep.mubr.bf16.mxu0 0
    %7114 = vmatmul.mubr.bf16.gmra.mrb[0].mxu0 %v7016
    %v7115 = vpop.f32.mrb[0].mxu0
    %v7116 = vadd.f32 %v6983, %v7115
    %v7117 = vpop.f32.mrb[0].mxu0
    %v7118 = vpop.f32.mrb[0].mxu0
    %v7119 = vadd.f32 %v6983, %v7118
    %v7120 = vpop.f32.mrb[0].mxu0
    %7121 = vmatprep.mubr.bf16.mxu0 0
    %7122 = vmatmul.mubr.bf16.gmra.mrb[0].mxu0 %v7019
    %v7123 = vpop.f32.mrb[0].mxu0
    %v7124 = vadd.f32 %v6983, %v7123
    %v7125 = vpop.f32.mrb[0].mxu0
    %v7126 = vpop.f32.mrb[0].mxu0
    %v7127 = vadd.f32 %v6983, %v7126
    %v7128 = vpop.f32.mrb[0].mxu0
    %7129 = vmatprep.mubr.bf16.mxu0 0
    %7130 = vmatmul.mubr.bf16.gmra.mrb[0].mxu0 %v7022
    %v7131 = vpop.f32.mrb[0].mxu0
    %v7132 = vadd.f32 %v6983, %v7131
    %v7133 = vpop.f32.mrb[0].mxu0
    %v7134 = vpop.f32.mrb[0].mxu0
    %v7135 = vadd.f32 %v6983, %v7134
    %v7136 = vpop.f32.mrb[0].mxu0
    %7137 = vmatprep.mubr.bf16.mxu0 0
    %7138 = vmatmul.mubr.bf16.gmra.mrb[0].mxu0 %v7025
    %v7139 = vpop.f32.mrb[0].mxu0
    %v7140 = vadd.f32 %v6983, %v7139
    %v7141 = vpop.f32.mrb[0].mxu0
    %v7142 = vpop.f32.mrb[0].mxu0
    %v7143 = vadd.f32 %v6983, %v7142
    %v7144 = vpop.f32.mrb[0].mxu0
    %7145 = vmatprep.mubr.bf16.mxu0 0
    %7146 = vmatmul.mubr.bf16.gmra.mrb[0].mxu0 %v7028
    %v7147 = vpop.f32.mrb[0].mxu0
    %v7148 = vadd.f32 %v6983, %v7147
    %v7149 = vpop.f32.mrb[0].mxu0
    %v7150 = vpop.f32.mrb[0].mxu0
    %v7151 = vadd.f32 %v6983, %v7150
    %v7152 = vpop.f32.mrb[0].mxu0
    %7153 = vmatprep.mubr.bf16.mxu0 0
    %7154 = vmatmul.mubr.bf16.gmra.mrb[0].mxu0 %v7031
    %v7155 = vpop.f32.mrb[0].mxu0
    %v7156 = vadd.f32 %v6983, %v7155
    %v7157 = vpop.f32.mrb[0].mxu0
    %v7158 = vpop.f32.mrb[0].mxu0
    %v7159 = vadd.f32 %v6983, %v7158
    %v7160 = vpop.f32.mrb[0].mxu0
    %7161 = vdwg.mxu0
    %v7162 = vmax.f32 %v7068, 0.0
    %v7163 = vmax.f32 %v7071, 0.0
    %v7164 = vmax.f32 %v7076, 0.0
    %v7165 = vmax.f32 %v7079, 0.0
    %v7166 = vmax.f32 %v7084, 0.0
    %v7167 = vmax.f32 %v7087, 0.0
    %v7168 = vmax.f32 %v7092, 0.0
    %v7169 = vmax.f32 %v7095, 0.0
    %v7170 = vmax.f32 %v7100, 0.0
    %v7171 = vmax.f32 %v7103, 0.0
    %v7172 = vmax.f32 %v7108, 0.0
    %v7173 = vmax.f32 %v7111, 0.0
    %v7174 = vmax.f32 %v7116, 0.0
    %v7175 = vmax.f32 %v7119, 0.0
    %v7176 = vmax.f32 %v7124, 0.0
    %v7177 = vmax.f32 %v7127, 0.0
    %v7178 = vmax.f32 %v7132, 0.0
    %v7179 = vmax.f32 %v7135, 0.0
    %v7180 = vmax.f32 %v7140, 0.0
    %v7181 = vmax.f32 %v7143, 0.0
    %v7182 = vmax.f32 %v7148, 0.0
    %v7183 = vmax.f32 %v7151, 0.0
    %v7184 = vmax.f32 %v7156, 0.0
    %v7185 = vmax.f32 %v7159, 0.0
    %v7186 = vpack.c.bf16 %v7163, %v7162
    %v7187 = vpack.c.bf16 %v7165, %v7164
    %v7188 = vpack.c.bf16 %v7167, %v7166
    %v7189 = vpack.c.bf16 %v7169, %v7168
    %v7190 = vpack.c.bf16 %v7171, %v7170
    %v7191 = vpack.c.bf16 %v7173, %v7172
    %v7192 = vpack.c.bf16 %v7175, %v7174
    %v7193 = vpack.c.bf16 %v7177, %v7176
    %v7194 = vpack.c.bf16 %v7179, %v7178
    %v7195 = vpack.c.bf16 %v7181, %v7180
    %v7196 = vpack.c.bf16 %v7183, %v7182
    %v7197 = vpack.c.bf16 %v7185, %v7184
    %s7198 = scalar_lea.vmem %s13, 32
    %v7199 = vld [vmem:[%s7198] sm:$0xf]
    %v7200 = vld [vmem:[%s7198 + $0x4] sm:$0xf]
    %v7201 = vld [vmem:[%s7198 + $0x8] sm:$0xf]
    %v7202 = vld [vmem:[%s7198 + $0xc] sm:$0xf]
    %v7203 = vld [vmem:[%s7198 + $0x10] sm:$0xf]
    %v7204 = vld [vmem:[%s7198 + $0x14] sm:$0xf]
    %v7205 = vld [vmem:[%s7198 + $0x18] sm:$0xf]
    %v7206 = vld [vmem:[%s7198 + $0x1c] sm:$0xf]
    %s7207 = scalar_lea.vmem %s14, 1
    %v7208 = vld [vmem:[%s7207] sm:$0x1]
    %v7210 = vlaneseq
    %v7211 = vshrl.u32 %v7210, 7
    %v7212 = vsub.s32 0, %v7211
    %v7213 = vrot.slane %v7208, %v7212
    %v7223 = vunpack.c.l.b16 %v7199
    %v7224 = vunpack.c.l.b16 %v7200
    %v7225 = vunpack.c.l.b16 %v7201
    %v7226 = vunpack.c.l.b16 %v7202
    %v7227 = vunpack.c.l.b16 %v7203
    %v7228 = vunpack.c.l.b16 %v7204
    %v7229 = vunpack.c.l.b16 %v7205
    %v7230 = vunpack.c.l.b16 %v7206
    %v7231 = vpack.c.b16 %v7224, %v7223
    %v7232 = vpack.c.b16 %v7226, %v7225
    %v7233 = vpack.c.b16 %v7228, %v7227
    %v7234 = vpack.c.b16 %v7230, %v7229
    %v7240 = vsel %vm3704, %v7186, 0
    %v7243 = vsel %vm3704, %v7187, 0
    %v7246 = vsel %vm3704, %v7188, 0
    %v7249 = vsel %vm3704, %v7189, 0
    %v7252 = vsel %vm3704, %v7190, 0
    %v7255 = vsel %vm3704, %v7191, 0
    %v7258 = vsel %vm3704, %v7192, 0
    %v7261 = vsel %vm3704, %v7193, 0
    %v7264 = vsel %vm3704, %v7194, 0
    %v7267 = vsel %vm3704, %v7195, 0
    %v7270 = vsel %vm3704, %v7196, 0
    %v7273 = vsel %vm3704, %v7197, 0
    %7275 = vmatprep.subr.bf16.mxu0 0
    %7276 = vmatpush1.bf16.msra.mxu0 %v7231
    %7277 = vmatprep.subr.bf16.mxu0 0
    %7278 = vmatpush1.bf16.msra.mxu0 %v7232
    %7279 = vmatprep.subr.bf16.mxu0 0
    %7280 = vmatpush1.bf16.msra.mxu0 %v7233
    %7281 = vmatprep.subr.bf16.mxu0 0
    %7282 = vmatpush1.bf16.msra.mxu0 %v7234
    %7283 = vmatprep.subr.bf16.mxu0 0
    %7284 = vmatpush1.bf16.msra.mxu0 0
    %7285 = vmatprep.subr.bf16.mxu0 0
    %7286 = vmatpush1.bf16.msra.mxu0 0
    %7287 = vmatprep.subr.bf16.mxu0 0
    %7288 = vmatpush1.bf16.msra.mxu0 0
    %7289 = vmatprep.subr.bf16.mxu0 0
    %7290 = vmatpush1.bf16.msra.mxu0 0
    %7291 = vmatprep.subr.bf16.mxu0 0
    %7292 = vmatpush1.bf16.msra.mxu0 0
    %7293 = vmatprep.subr.bf16.mxu0 0
    %7294 = vmatpush1.bf16.msra.mxu0 0
    %7295 = vmatprep.subr.bf16.mxu0 0
    %7296 = vmatpush1.bf16.msra.mxu0 0
    %7297 = vmatprep.subr.bf16.mxu0 0
    %7298 = vmatpush1.bf16.msra.mxu0 0
    %7299 = vmatprep.subr.bf16.mxu0 0
    %7300 = vmatpush1.bf16.msra.mxu0 0
    %7301 = vmatprep.subr.bf16.mxu0 0
    %7302 = vmatpush1.bf16.msra.mxu0 0
    %7303 = vmatprep.subr.bf16.mxu0 0
    %7304 = vmatpush1.bf16.msra.mxu0 0
    %7305 = vmatprep.subr.bf16.mxu0 0
    %7306 = vmatpush1.bf16.msra.mxu0 0
    %7307 = vmatprep.mubr.bf16.mxu0 0
    %7308 = vmatmul.mubr.bf16.gmra.mrb[0].mxu0 %v7240
    %v7309 = vpop.f32.mrb[0].mxu0
    %v7310 = vadd.f32 %v7213, %v7309
    %v7311 = vpop.f32.mrb[0].mxu0
    %v7312 = vpop.f32.mrb[0].mxu0
    %v7313 = vadd.f32 %v7213, %v7312
    %v7314 = vpop.f32.mrb[0].mxu0
    %7315 = vmatprep.mubr.bf16.mxu0 0
    %7316 = vmatmul.mubr.bf16.gmra.mrb[0].mxu0 %v7243
    %v7317 = vpop.f32.mrb[0].mxu0
    %v7318 = vadd.f32 %v7213, %v7317
    %v7319 = vpop.f32.mrb[0].mxu0
    %v7320 = vpop.f32.mrb[0].mxu0
    %v7321 = vadd.f32 %v7213, %v7320
    %v7322 = vpop.f32.mrb[0].mxu0
    %7323 = vmatprep.mubr.bf16.mxu0 0
    %7324 = vmatmul.mubr.bf16.gmra.mrb[0].mxu0 %v7246
    %v7325 = vpop.f32.mrb[0].mxu0
    %v7326 = vadd.f32 %v7213, %v7325
    %v7327 = vpop.f32.mrb[0].mxu0
    %v7328 = vpop.f32.mrb[0].mxu0
    %v7329 = vadd.f32 %v7213, %v7328
    %v7330 = vpop.f32.mrb[0].mxu0
    %7331 = vmatprep.mubr.bf16.mxu0 0
    %7332 = vmatmul.mubr.bf16.gmra.mrb[0].mxu0 %v7249
    %v7333 = vpop.f32.mrb[0].mxu0
    %v7334 = vadd.f32 %v7213, %v7333
    %v7335 = vpop.f32.mrb[0].mxu0
    %v7336 = vpop.f32.mrb[0].mxu0
    %v7337 = vadd.f32 %v7213, %v7336
    %v7338 = vpop.f32.mrb[0].mxu0
    %7339 = vmatprep.mubr.bf16.mxu0 0
    %7340 = vmatmul.mubr.bf16.gmra.mrb[0].mxu0 %v7252
    %v7341 = vpop.f32.mrb[0].mxu0
    %v7342 = vadd.f32 %v7213, %v7341
    %v7343 = vpop.f32.mrb[0].mxu0
    %v7344 = vpop.f32.mrb[0].mxu0
    %v7345 = vadd.f32 %v7213, %v7344
    %v7346 = vpop.f32.mrb[0].mxu0
    %7347 = vmatprep.mubr.bf16.mxu0 0
    %7348 = vmatmul.mubr.bf16.gmra.mrb[0].mxu0 %v7255
    %v7349 = vpop.f32.mrb[0].mxu0
    %v7350 = vadd.f32 %v7213, %v7349
    %v7351 = vpop.f32.mrb[0].mxu0
    %v7352 = vpop.f32.mrb[0].mxu0
    %v7353 = vadd.f32 %v7213, %v7352
    %v7354 = vpop.f32.mrb[0].mxu0
    %7355 = vmatprep.mubr.bf16.mxu0 0
    %7356 = vmatmul.mubr.bf16.gmra.mrb[0].mxu0 %v7258
    %v7357 = vpop.f32.mrb[0].mxu0
    %v7358 = vadd.f32 %v7213, %v7357
    %v7359 = vpop.f32.mrb[0].mxu0
    %v7360 = vpop.f32.mrb[0].mxu0
    %v7361 = vadd.f32 %v7213, %v7360
    %v7362 = vpop.f32.mrb[0].mxu0
    %7363 = vmatprep.mubr.bf16.mxu0 0
    %7364 = vmatmul.mubr.bf16.gmra.mrb[0].mxu0 %v7261
    %v7365 = vpop.f32.mrb[0].mxu0
    %v7366 = vadd.f32 %v7213, %v7365
    %v7367 = vpop.f32.mrb[0].mxu0
    %v7368 = vpop.f32.mrb[0].mxu0
    %v7369 = vadd.f32 %v7213, %v7368
    %v7370 = vpop.f32.mrb[0].mxu0
    %7371 = vmatprep.mubr.bf16.mxu0 0
    %7372 = vmatmul.mubr.bf16.gmra.mrb[0].mxu0 %v7264
    %v7373 = vpop.f32.mrb[0].mxu0
    %v7374 = vadd.f32 %v7213, %v7373
    %v7375 = vpop.f32.mrb[0].mxu0
    %v7376 = vpop.f32.mrb[0].mxu0
    %v7377 = vadd.f32 %v7213, %v7376
    %v7378 = vpop.f32.mrb[0].mxu0
    %7379 = vmatprep.mubr.bf16.mxu0 0
    %7380 = vmatmul.mubr.bf16.gmra.mrb[0].mxu0 %v7267
    %v7381 = vpop.f32.mrb[0].mxu0
    %v7382 = vadd.f32 %v7213, %v7381
    %v7383 = vpop.f32.mrb[0].mxu0
    %v7384 = vpop.f32.mrb[0].mxu0
    %v7385 = vadd.f32 %v7213, %v7384
    %v7386 = vpop.f32.mrb[0].mxu0
    %7387 = vmatprep.mubr.bf16.mxu0 0
    %7388 = vmatmul.mubr.bf16.gmra.mrb[0].mxu0 %v7270
    %v7389 = vpop.f32.mrb[0].mxu0
    %v7390 = vadd.f32 %v7213, %v7389
    %v7391 = vpop.f32.mrb[0].mxu0
    %v7392 = vpop.f32.mrb[0].mxu0
    %v7393 = vadd.f32 %v7213, %v7392
    %v7394 = vpop.f32.mrb[0].mxu0
    %7395 = vmatprep.mubr.bf16.mxu0 0
    %7396 = vmatmul.mubr.bf16.gmra.mrb[0].mxu0 %v7273
    %v7397 = vpop.f32.mrb[0].mxu0
    %v7398 = vadd.f32 %v7213, %v7397
    %v7399 = vpop.f32.mrb[0].mxu0
    %v7400 = vpop.f32.mrb[0].mxu0
    %v7401 = vadd.f32 %v7213, %v7400
    %v7402 = vpop.f32.mrb[0].mxu0
    %7403 = vdwg.mxu0
    %v7404 = vadd.f32 %v6936, %v7310
    %v7405 = vadd.f32 %v6937, %v7313
    %v7406 = vadd.f32 %v6938, %v7318
    %v7407 = vadd.f32 %v6939, %v7321
    %v7408 = vadd.f32 %v6940, %v7326
    %v7409 = vadd.f32 %v6941, %v7329
    %v7410 = vadd.f32 %v6942, %v7334
    %v7411 = vadd.f32 %v6943, %v7337
    %v7412 = vadd.f32 %v6944, %v7342
    %v7413 = vadd.f32 %v6945, %v7345
    %v7414 = vadd.f32 %v6946, %v7350
    %v7415 = vadd.f32 %v6947, %v7353
    %v7416 = vadd.f32 %v6948, %v7358
    %v7417 = vadd.f32 %v6949, %v7361
    %v7418 = vadd.f32 %v6950, %v7366
    %v7419 = vadd.f32 %v6951, %v7369
    %v7420 = vadd.f32 %v6952, %v7374
    %v7421 = vadd.f32 %v6953, %v7377
    %v7422 = vadd.f32 %v6954, %v7382
    %v7423 = vadd.f32 %v6955, %v7385
    %v7424 = vadd.f32 %v6956, %v7390
    %v7425 = vadd.f32 %v6957, %v7393
    %v7426 = vadd.f32 %v6958, %v7398
    %v7427 = vadd.f32 %v6959, %v7401
    %v7428 = vsel %vm718, %v7404, 0.0
    %7429 = vadd.xlane.f32.xlu0 %v7428
    %v7430 = vpop.xlane.xlu0 %7429
    %v7431 = vsel %vm718, %v7405, 0.0
    %7432 = vadd.xlane.f32.xlu0 %v7431
    %v7433 = vpop.xlane.xlu0 %7432
    %v7434 = vsel %vm718, %v7406, 0.0
    %7435 = vadd.xlane.f32.xlu0 %v7434
    %v7436 = vpop.xlane.xlu0 %7435
    %v7437 = vsel %vm718, %v7407, 0.0
    %7438 = vadd.xlane.f32.xlu0 %v7437
    %v7439 = vpop.xlane.xlu0 %7438
    %v7440 = vsel %vm718, %v7408, 0.0
    %7441 = vadd.xlane.f32.xlu0 %v7440
    %v7442 = vpop.xlane.xlu0 %7441
    %v7443 = vsel %vm718, %v7409, 0.0
    %7444 = vadd.xlane.f32.xlu0 %v7443
    %v7445 = vpop.xlane.xlu0 %7444
    %v7446 = vsel %vm718, %v7410, 0.0
    %7447 = vadd.xlane.f32.xlu0 %v7446
    %v7448 = vpop.xlane.xlu0 %7447
    %v7449 = vsel %vm718, %v7411, 0.0
    %7450 = vadd.xlane.f32.xlu0 %v7449
    %v7451 = vpop.xlane.xlu0 %7450
    %v7452 = vsel %vm718, %v7412, 0.0
    %7453 = vadd.xlane.f32.xlu0 %v7452
    %v7454 = vpop.xlane.xlu0 %7453
    %v7455 = vsel %vm718, %v7413, 0.0
    %7456 = vadd.xlane.f32.xlu0 %v7455
    %v7457 = vpop.xlane.xlu0 %7456
    %v7458 = vsel %vm718, %v7414, 0.0
    %7459 = vadd.xlane.f32.xlu0 %v7458
    %v7460 = vpop.xlane.xlu0 %7459
    %v7461 = vsel %vm718, %v7415, 0.0
    %7462 = vadd.xlane.f32.xlu0 %v7461
    %v7463 = vpop.xlane.xlu0 %7462
    %v7464 = vsel %vm718, %v7416, 0.0
    %7465 = vadd.xlane.f32.xlu0 %v7464
    %v7466 = vpop.xlane.xlu0 %7465
    %v7467 = vsel %vm718, %v7417, 0.0
    %7468 = vadd.xlane.f32.xlu0 %v7467
    %v7469 = vpop.xlane.xlu0 %7468
    %v7470 = vsel %vm718, %v7418, 0.0
    %7471 = vadd.xlane.f32.xlu0 %v7470
    %v7472 = vpop.xlane.xlu0 %7471
    %v7473 = vsel %vm718, %v7419, 0.0
    %7474 = vadd.xlane.f32.xlu0 %v7473
    %v7475 = vpop.xlane.xlu0 %7474
    %v7476 = vsel %vm718, %v7420, 0.0
    %7477 = vadd.xlane.f32.xlu0 %v7476
    %v7478 = vpop.xlane.xlu0 %7477
    %v7479 = vsel %vm718, %v7421, 0.0
    %7480 = vadd.xlane.f32.xlu0 %v7479
    %v7481 = vpop.xlane.xlu0 %7480
    %v7482 = vsel %vm718, %v7422, 0.0
    %7483 = vadd.xlane.f32.xlu0 %v7482
    %v7484 = vpop.xlane.xlu0 %7483
    %v7485 = vsel %vm718, %v7423, 0.0
    %7486 = vadd.xlane.f32.xlu0 %v7485
    %v7487 = vpop.xlane.xlu0 %7486
    %v7488 = vsel %vm718, %v7424, 0.0
    %7489 = vadd.xlane.f32.xlu0 %v7488
    %v7490 = vpop.xlane.xlu0 %7489
    %v7491 = vsel %vm718, %v7425, 0.0
    %7492 = vadd.xlane.f32.xlu0 %v7491
    %v7493 = vpop.xlane.xlu0 %7492
    %v7494 = vsel %vm718, %v7426, 0.0
    %7495 = vadd.xlane.f32.xlu0 %v7494
    %v7496 = vpop.xlane.xlu0 %7495
    %v7497 = vsel %vm718, %v7427, 0.0
    %7498 = vadd.xlane.f32.xlu0 %v7497
    %v7499 = vpop.xlane.xlu0 %7498
    %v7500 = vmul.f32 %v7430, %v3126
    %v7501 = vmul.f32 %v7433, %v3126
    %v7502 = vmul.f32 %v7436, %v3126
    %v7503 = vmul.f32 %v7439, %v3126
    %v7504 = vmul.f32 %v7442, %v3126
    %v7505 = vmul.f32 %v7445, %v3126
    %v7506 = vmul.f32 %v7448, %v3126
    %v7507 = vmul.f32 %v7451, %v3126
    %v7508 = vmul.f32 %v7454, %v3126
    %v7509 = vmul.f32 %v7457, %v3126
    %v7510 = vmul.f32 %v7460, %v3126
    %v7511 = vmul.f32 %v7463, %v3126
    %v7512 = vmul.f32 %v7466, %v3126
    %v7513 = vmul.f32 %v7469, %v3126
    %v7514 = vmul.f32 %v7472, %v3126
    %v7515 = vmul.f32 %v7475, %v3126
    %v7516 = vmul.f32 %v7478, %v3126
    %v7517 = vmul.f32 %v7481, %v3126
    %v7518 = vmul.f32 %v7484, %v3126
    %v7519 = vmul.f32 %v7487, %v3126
    %v7520 = vmul.f32 %v7490, %v3126
    %v7521 = vmul.f32 %v7493, %v3126
    %v7522 = vmul.f32 %v7496, %v3126
    %v7523 = vmul.f32 %v7499, %v3126
    %v7524 = vsub.f32 %v7404, %v7500
    %v7525 = vsub.f32 %v7405, %v7501
    %v7526 = vsub.f32 %v7406, %v7502
    %v7527 = vsub.f32 %v7407, %v7503
    %v7528 = vsub.f32 %v7408, %v7504
    %v7529 = vsub.f32 %v7409, %v7505
    %v7530 = vsub.f32 %v7410, %v7506
    %v7531 = vsub.f32 %v7411, %v7507
    %v7532 = vsub.f32 %v7412, %v7508
    %v7533 = vsub.f32 %v7413, %v7509
    %v7534 = vsub.f32 %v7414, %v7510
    %v7535 = vsub.f32 %v7415, %v7511
    %v7536 = vsub.f32 %v7416, %v7512
    %v7537 = vsub.f32 %v7417, %v7513
    %v7538 = vsub.f32 %v7418, %v7514
    %v7539 = vsub.f32 %v7419, %v7515
    %v7540 = vsub.f32 %v7420, %v7516
    %v7541 = vsub.f32 %v7421, %v7517
    %v7542 = vsub.f32 %v7422, %v7518
    %v7543 = vsub.f32 %v7423, %v7519
    %v7544 = vsub.f32 %v7424, %v7520
    %v7545 = vsub.f32 %v7425, %v7521
    %v7546 = vsub.f32 %v7426, %v7522
    %v7547 = vsub.f32 %v7427, %v7523
    %v7548 = vmul.f32 %v7524, %v7524
    %v7549 = vmul.f32 %v7525, %v7525
    %v7550 = vmul.f32 %v7526, %v7526
    %v7551 = vmul.f32 %v7527, %v7527
    %v7552 = vmul.f32 %v7528, %v7528
    %v7553 = vmul.f32 %v7529, %v7529
    %v7554 = vmul.f32 %v7530, %v7530
    %v7555 = vmul.f32 %v7531, %v7531
    %v7556 = vmul.f32 %v7532, %v7532
    %v7557 = vmul.f32 %v7533, %v7533
    %v7558 = vmul.f32 %v7534, %v7534
    %v7559 = vmul.f32 %v7535, %v7535
    %v7560 = vmul.f32 %v7536, %v7536
    %v7561 = vmul.f32 %v7537, %v7537
    %v7562 = vmul.f32 %v7538, %v7538
    %v7563 = vmul.f32 %v7539, %v7539
    %v7564 = vmul.f32 %v7540, %v7540
    %v7565 = vmul.f32 %v7541, %v7541
    %v7566 = vmul.f32 %v7542, %v7542
    %v7567 = vmul.f32 %v7543, %v7543
    %v7568 = vmul.f32 %v7544, %v7544
    %v7569 = vmul.f32 %v7545, %v7545
    %v7570 = vmul.f32 %v7546, %v7546
    %v7571 = vmul.f32 %v7547, %v7547
    %v7572 = vsel %vm718, %v7548, 0.0
    %7573 = vadd.xlane.f32.xlu0 %v7572
    %v7574 = vpop.xlane.xlu0 %7573
    %v7575 = vsel %vm718, %v7549, 0.0
    %7576 = vadd.xlane.f32.xlu0 %v7575
    %v7577 = vpop.xlane.xlu0 %7576
    %v7578 = vsel %vm718, %v7550, 0.0
    %7579 = vadd.xlane.f32.xlu0 %v7578
    %v7580 = vpop.xlane.xlu0 %7579
    %v7581 = vsel %vm718, %v7551, 0.0
    %7582 = vadd.xlane.f32.xlu0 %v7581
    %v7583 = vpop.xlane.xlu0 %7582
    %v7584 = vsel %vm718, %v7552, 0.0
    %7585 = vadd.xlane.f32.xlu0 %v7584
    %v7586 = vpop.xlane.xlu0 %7585
    %v7587 = vsel %vm718, %v7553, 0.0
    %7588 = vadd.xlane.f32.xlu0 %v7587
    %v7589 = vpop.xlane.xlu0 %7588
    %v7590 = vsel %vm718, %v7554, 0.0
    %7591 = vadd.xlane.f32.xlu0 %v7590
    %v7592 = vpop.xlane.xlu0 %7591
    %v7593 = vsel %vm718, %v7555, 0.0
    %7594 = vadd.xlane.f32.xlu0 %v7593
    %v7595 = vpop.xlane.xlu0 %7594
    %v7596 = vsel %vm718, %v7556, 0.0
    %7597 = vadd.xlane.f32.xlu0 %v7596
    %v7598 = vpop.xlane.xlu0 %7597
    %v7599 = vsel %vm718, %v7557, 0.0
    %7600 = vadd.xlane.f32.xlu0 %v7599
    %v7601 = vpop.xlane.xlu0 %7600
    %v7602 = vsel %vm718, %v7558, 0.0
    %7603 = vadd.xlane.f32.xlu0 %v7602
    %v7604 = vpop.xlane.xlu0 %7603
    %v7605 = vsel %vm718, %v7559, 0.0
    %7606 = vadd.xlane.f32.xlu0 %v7605
    %v7607 = vpop.xlane.xlu0 %7606
    %v7608 = vsel %vm718, %v7560, 0.0
    %7609 = vadd.xlane.f32.xlu0 %v7608
    %v7610 = vpop.xlane.xlu0 %7609
    %v7611 = vsel %vm718, %v7561, 0.0
    %7612 = vadd.xlane.f32.xlu0 %v7611
    %v7613 = vpop.xlane.xlu0 %7612
    %v7614 = vsel %vm718, %v7562, 0.0
    %7615 = vadd.xlane.f32.xlu0 %v7614
    %v7616 = vpop.xlane.xlu0 %7615
    %v7617 = vsel %vm718, %v7563, 0.0
    %7618 = vadd.xlane.f32.xlu0 %v7617
    %v7619 = vpop.xlane.xlu0 %7618
    %v7620 = vsel %vm718, %v7564, 0.0
    %7621 = vadd.xlane.f32.xlu0 %v7620
    %v7622 = vpop.xlane.xlu0 %7621
    %v7623 = vsel %vm718, %v7565, 0.0
    %7624 = vadd.xlane.f32.xlu0 %v7623
    %v7625 = vpop.xlane.xlu0 %7624
    %v7626 = vsel %vm718, %v7566, 0.0
    %7627 = vadd.xlane.f32.xlu0 %v7626
    %v7628 = vpop.xlane.xlu0 %7627
    %v7629 = vsel %vm718, %v7567, 0.0
    %7630 = vadd.xlane.f32.xlu0 %v7629
    %v7631 = vpop.xlane.xlu0 %7630
    %v7632 = vsel %vm718, %v7568, 0.0
    %7633 = vadd.xlane.f32.xlu0 %v7632
    %v7634 = vpop.xlane.xlu0 %7633
    %v7635 = vsel %vm718, %v7569, 0.0
    %7636 = vadd.xlane.f32.xlu0 %v7635
    %v7637 = vpop.xlane.xlu0 %7636
    %v7638 = vsel %vm718, %v7570, 0.0
    %7639 = vadd.xlane.f32.xlu0 %v7638
    %v7640 = vpop.xlane.xlu0 %7639
    %v7641 = vsel %vm718, %v7571, 0.0
    %7642 = vadd.xlane.f32.xlu0 %v7641
    %v7643 = vpop.xlane.xlu0 %7642
    %v7644 = vmul.f32 %v7574, %v3126
    %v7645 = vmul.f32 %v7577, %v3126
    %v7646 = vmul.f32 %v7580, %v3126
    %v7647 = vmul.f32 %v7583, %v3126
    %v7648 = vmul.f32 %v7586, %v3126
    %v7649 = vmul.f32 %v7589, %v3126
    %v7650 = vmul.f32 %v7592, %v3126
    %v7651 = vmul.f32 %v7595, %v3126
    %v7652 = vmul.f32 %v7598, %v3126
    %v7653 = vmul.f32 %v7601, %v3126
    %v7654 = vmul.f32 %v7604, %v3126
    %v7655 = vmul.f32 %v7607, %v3126
    %v7656 = vmul.f32 %v7610, %v3126
    %v7657 = vmul.f32 %v7613, %v3126
    %v7658 = vmul.f32 %v7616, %v3126
    %v7659 = vmul.f32 %v7619, %v3126
    %v7660 = vmul.f32 %v7622, %v3126
    %v7661 = vmul.f32 %v7625, %v3126
    %v7662 = vmul.f32 %v7628, %v3126
    %v7663 = vmul.f32 %v7631, %v3126
    %v7664 = vmul.f32 %v7634, %v3126
    %v7665 = vmul.f32 %v7637, %v3126
    %v7666 = vmul.f32 %v7640, %v3126
    %v7667 = vmul.f32 %v7643, %v3126
    %v7668 = vadd.f32 %v7644, 1e-05
    %v7669 = vadd.f32 %v7645, 1e-05
    %v7670 = vadd.f32 %v7646, 1e-05
    %v7671 = vadd.f32 %v7647, 1e-05
    %v7672 = vadd.f32 %v7648, 1e-05
    %v7673 = vadd.f32 %v7649, 1e-05
    %v7674 = vadd.f32 %v7650, 1e-05
    %v7675 = vadd.f32 %v7651, 1e-05
    %v7676 = vadd.f32 %v7652, 1e-05
    %v7677 = vadd.f32 %v7653, 1e-05
    %v7678 = vadd.f32 %v7654, 1e-05
    %v7679 = vadd.f32 %v7655, 1e-05
    %v7680 = vadd.f32 %v7656, 1e-05
    %v7681 = vadd.f32 %v7657, 1e-05
    %v7682 = vadd.f32 %v7658, 1e-05
    %v7683 = vadd.f32 %v7659, 1e-05
    %v7684 = vadd.f32 %v7660, 1e-05
    %v7685 = vadd.f32 %v7661, 1e-05
    %v7686 = vadd.f32 %v7662, 1e-05
    %v7687 = vadd.f32 %v7663, 1e-05
    %v7688 = vadd.f32 %v7664, 1e-05
    %v7689 = vadd.f32 %v7665, 1e-05
    %v7690 = vadd.f32 %v7666, 1e-05
    %v7691 = vadd.f32 %v7667, 1e-05
    %v7692 = vrsqrt.pop %v7668
    %v7693 = vrsqrt.pop %v7669
    %v7694 = vrsqrt.pop %v7670
    %v7695 = vrsqrt.pop %v7671
    %v7696 = vrsqrt.pop %v7672
    %v7697 = vrsqrt.pop %v7673
    %v7698 = vrsqrt.pop %v7674
    %v7699 = vrsqrt.pop %v7675
    %v7700 = vrsqrt.pop %v7676
    %v7701 = vrsqrt.pop %v7677
    %v7702 = vrsqrt.pop %v7678
    %v7703 = vrsqrt.pop %v7679
    %v7704 = vrsqrt.pop %v7680
    %v7705 = vrsqrt.pop %v7681
    %v7706 = vrsqrt.pop %v7682
    %v7707 = vrsqrt.pop %v7683
    %v7708 = vrsqrt.pop %v7684
    %v7709 = vrsqrt.pop %v7685
    %v7710 = vrsqrt.pop %v7686
    %v7711 = vrsqrt.pop %v7687
    %v7712 = vrsqrt.pop %v7688
    %v7713 = vrsqrt.pop %v7689
    %v7714 = vrsqrt.pop %v7690
    %v7715 = vrsqrt.pop %v7691
    %v7716 = vmul.f32 %v7524, %v7692
    %v7717 = vmul.f32 %v7525, %v7693
    %v7718 = vmul.f32 %v7526, %v7694
    %v7719 = vmul.f32 %v7527, %v7695
    %v7720 = vmul.f32 %v7528, %v7696
    %v7721 = vmul.f32 %v7529, %v7697
    %v7722 = vmul.f32 %v7530, %v7698
    %v7723 = vmul.f32 %v7531, %v7699
    %v7724 = vmul.f32 %v7532, %v7700
    %v7725 = vmul.f32 %v7533, %v7701
    %v7726 = vmul.f32 %v7534, %v7702
    %v7727 = vmul.f32 %v7535, %v7703
    %v7728 = vmul.f32 %v7536, %v7704
    %v7729 = vmul.f32 %v7537, %v7705
    %v7730 = vmul.f32 %v7538, %v7706
    %v7731 = vmul.f32 %v7539, %v7707
    %v7732 = vmul.f32 %v7540, %v7708
    %v7733 = vmul.f32 %v7541, %v7709
    %v7734 = vmul.f32 %v7542, %v7710
    %v7735 = vmul.f32 %v7543, %v7711
    %v7736 = vmul.f32 %v7544, %v7712
    %v7737 = vmul.f32 %v7545, %v7713
    %v7738 = vmul.f32 %v7546, %v7714
    %v7739 = vmul.f32 %v7547, %v7715
    %s7740 = scalar_lea.vmem %s15, 1
    %v7741 = vld [vmem:[%s7740] sm:$0x1]
    %v7743 = vlaneseq
    %v7744 = vshrl.u32 %v7743, 7
    %v7745 = vsub.s32 0, %v7744
    %v7746 = vrot.slane %v7741, %v7745
    %v7748 = vmul.f32 %v7716, %v7746
    %v7749 = vmul.f32 %v7717, %v7746
    %v7750 = vmul.f32 %v7718, %v7746
    %v7751 = vmul.f32 %v7719, %v7746
    %v7752 = vmul.f32 %v7720, %v7746
    %v7753 = vmul.f32 %v7721, %v7746
    %v7754 = vmul.f32 %v7722, %v7746
    %v7755 = vmul.f32 %v7723, %v7746
    %v7756 = vmul.f32 %v7724, %v7746
    %v7757 = vmul.f32 %v7725, %v7746
    %v7758 = vmul.f32 %v7726, %v7746
    %v7759 = vmul.f32 %v7727, %v7746
    %v7760 = vmul.f32 %v7728, %v7746
    %v7761 = vmul.f32 %v7729, %v7746
    %v7762 = vmul.f32 %v7730, %v7746
    %v7763 = vmul.f32 %v7731, %v7746
    %v7764 = vmul.f32 %v7732, %v7746
    %v7765 = vmul.f32 %v7733, %v7746
    %v7766 = vmul.f32 %v7734, %v7746
    %v7767 = vmul.f32 %v7735, %v7746
    %v7768 = vmul.f32 %v7736, %v7746
    %v7769 = vmul.f32 %v7737, %v7746
    %v7770 = vmul.f32 %v7738, %v7746
    %v7771 = vmul.f32 %v7739, %v7746
    %s7772 = scalar_lea.vmem %s16, 1
    %v7773 = vld [vmem:[%s7772] sm:$0x1]
    %v7775 = vlaneseq
    %v7776 = vshrl.u32 %v7775, 7
    %v7777 = vsub.s32 0, %v7776
    %v7778 = vrot.slane %v7773, %v7777
    %v7780 = vadd.f32 %v7748, %v7778
    %v7781 = vadd.f32 %v7749, %v7778
    %v7782 = vadd.f32 %v7750, %v7778
    %v7783 = vadd.f32 %v7751, %v7778
    %v7784 = vadd.f32 %v7752, %v7778
    %v7785 = vadd.f32 %v7753, %v7778
    %v7786 = vadd.f32 %v7754, %v7778
    %v7787 = vadd.f32 %v7755, %v7778
    %v7788 = vadd.f32 %v7756, %v7778
    %v7789 = vadd.f32 %v7757, %v7778
    %v7790 = vadd.f32 %v7758, %v7778
    %v7791 = vadd.f32 %v7759, %v7778
    %v7792 = vadd.f32 %v7760, %v7778
    %v7793 = vadd.f32 %v7761, %v7778
    %v7794 = vadd.f32 %v7762, %v7778
    %v7795 = vadd.f32 %v7763, %v7778
    %v7796 = vadd.f32 %v7764, %v7778
    %v7797 = vadd.f32 %v7765, %v7778
    %v7798 = vadd.f32 %v7766, %v7778
    %v7799 = vadd.f32 %v7767, %v7778
    %v7800 = vadd.f32 %v7768, %v7778
    %v7801 = vadd.f32 %v7769, %v7778
    %v7802 = vadd.f32 %v7770, %v7778
    %v7803 = vadd.f32 %v7771, %v7778
    %7805 = vset.pattern.permute.xlu0 8
    %7806 = vperm.xlu0 %7805, %v67
    %v7807 = vpop.permute.xlu0 %7806
    %7810 = vset.pattern.permute.xlu0 8
    %7811 = vperm.xlu0 %7810, %v68
    %v7812 = vpop.permute.xlu0 %7811
    %7815 = vset.pattern.permute.xlu0 8
    %7816 = vperm.xlu0 %7815, %v69
    %v7817 = vpop.permute.xlu0 %7816
    %7820 = vset.pattern.permute.xlu0 8
    %7821 = vperm.xlu0 %7820, %v70
    %v7822 = vpop.permute.xlu0 %7821
    %7825 = vset.pattern.permute.xlu0 8
    %7826 = vperm.xlu0 %7825, %v71
    %v7827 = vpop.permute.xlu0 %7826
    %7830 = vset.pattern.permute.xlu0 8
    %7831 = vperm.xlu0 %7830, %v72
    %v7832 = vpop.permute.xlu0 %7831
    %7835 = vset.pattern.permute.xlu0 8
    %7836 = vperm.xlu0 %7835, %v73
    %v7837 = vpop.permute.xlu0 %7836
    %7840 = vset.pattern.permute.xlu0 8
    %7841 = vperm.xlu0 %7840, %v74
    %v7842 = vpop.permute.xlu0 %7841
    %7845 = vset.pattern.permute.xlu0 8
    %7846 = vperm.xlu0 %7845, %v75
    %v7847 = vpop.permute.xlu0 %7846
    %7850 = vset.pattern.permute.xlu0 8
    %7851 = vperm.xlu0 %7850, %v76
    %v7852 = vpop.permute.xlu0 %7851
    %7855 = vset.pattern.permute.xlu0 8
    %7856 = vperm.xlu0 %7855, %v77
    %v7857 = vpop.permute.xlu0 %7856
    %7860 = vset.pattern.permute.xlu0 8
    %7861 = vperm.xlu0 %7860, %v78
    %v7862 = vpop.permute.xlu0 %7861
    %7865 = vset.pattern.permute.xlu0 8
    %7866 = vperm.xlu0 %7865, %v79
    %v7867 = vpop.permute.xlu0 %7866
    %7870 = vset.pattern.permute.xlu0 8
    %7871 = vperm.xlu0 %7870, %v80
    %v7872 = vpop.permute.xlu0 %7871
    %7875 = vset.pattern.permute.xlu0 8
    %7876 = vperm.xlu0 %7875, %v81
    %v7877 = vpop.permute.xlu0 %7876
    %7880 = vset.pattern.permute.xlu0 8
    %7881 = vperm.xlu0 %7880, %v82
    %v7882 = vpop.permute.xlu0 %7881
    %7885 = vset.pattern.permute.xlu0 8
    %7886 = vperm.xlu0 %7885, %v83
    %v7887 = vpop.permute.xlu0 %7886
    %7890 = vset.pattern.permute.xlu0 8
    %7891 = vperm.xlu0 %7890, %v84
    %v7892 = vpop.permute.xlu0 %7891
    %7895 = vset.pattern.permute.xlu0 8
    %7896 = vperm.xlu0 %7895, %v85
    %v7897 = vpop.permute.xlu0 %7896
    %7900 = vset.pattern.permute.xlu0 8
    %7901 = vperm.xlu0 %7900, %v86
    %v7902 = vpop.permute.xlu0 %7901
    %7905 = vset.pattern.permute.xlu0 8
    %7906 = vperm.xlu0 %7905, %v87
    %v7907 = vpop.permute.xlu0 %7906
    %7910 = vset.pattern.permute.xlu0 8
    %7911 = vperm.xlu0 %7910, %v88
    %v7912 = vpop.permute.xlu0 %7911
    %7915 = vset.pattern.permute.xlu0 8
    %7916 = vperm.xlu0 %7915, %v89
    %v7917 = vpop.permute.xlu0 %7916
    %7920 = vset.pattern.permute.xlu0 8
    %7921 = vperm.xlu0 %7920, %v90
    %v7922 = vpop.permute.xlu0 %7921
    %v7924 = vmul.f32 %v7780, %v7807
    %v7925 = vmul.f32 %v7781, %v7812
    %v7926 = vmul.f32 %v7782, %v7817
    %v7927 = vmul.f32 %v7783, %v7822
    %v7928 = vmul.f32 %v7784, %v7827
    %v7929 = vmul.f32 %v7785, %v7832
    %v7930 = vmul.f32 %v7786, %v7837
    %v7931 = vmul.f32 %v7787, %v7842
    %v7932 = vmul.f32 %v7788, %v7847
    %v7933 = vmul.f32 %v7789, %v7852
    %v7934 = vmul.f32 %v7790, %v7857
    %v7935 = vmul.f32 %v7791, %v7862
    %v7936 = vmul.f32 %v7792, %v7867
    %v7937 = vmul.f32 %v7793, %v7872
    %v7938 = vmul.f32 %v7794, %v7877
    %v7939 = vmul.f32 %v7795, %v7882
    %v7940 = vmul.f32 %v7796, %v7887
    %v7941 = vmul.f32 %v7797, %v7892
    %v7942 = vmul.f32 %v7798, %v7897
    %v7943 = vmul.f32 %v7799, %v7902
    %v7944 = vmul.f32 %v7800, %v7907
    %v7945 = vmul.f32 %v7801, %v7912
    %v7946 = vmul.f32 %v7802, %v7917
    %v7947 = vmul.f32 %v7803, %v7922
    %v7956 = vcombine.low %v91, %v92
    %v7957 = vcombine.low %v93, %v94
    %v7958 = vcombine.low %v95, %v96
    %v7959 = vcombine.low %v97, %v98
    %v7961 = vunpack.c.l.s4 1966171168
    %v7962 = vunpack.c.0.s8 %v7961
    %v7963 = vlaneseq
    %v7964 = vshrl.u32 %v7963, 7
    %v7965 = vsub.s32 %v7962, %v7964
    %v7966 = vrot.slane %v7956, %v7965
    %v7968 = vunpack.c.l.s4 1966171168
    %v7969 = vunpack.c.0.s8 %v7968
    %v7970 = vlaneseq
    %v7971 = vshrl.u32 %v7970, 7
    %v7972 = vsub.s32 %v7969, %v7971
    %v7973 = vrot.slane %v7957, %v7972
    %v7975 = vunpack.c.l.s4 1966171168
    %v7976 = vunpack.c.0.s8 %v7975
    %v7977 = vlaneseq
    %v7978 = vshrl.u32 %v7977, 7
    %v7979 = vsub.s32 %v7976, %v7978
    %v7980 = vrot.slane %v7958, %v7979
    %v7982 = vunpack.c.l.s4 1966171168
    %v7983 = vunpack.c.0.s8 %v7982
    %v7984 = vlaneseq
    %v7985 = vshrl.u32 %v7984, 7
    %v7986 = vsub.s32 %v7983, %v7985
    %v7987 = vrot.slane %v7959, %v7986
    %v7988 = vcombine.low %v7966, %v7973
    %v7989 = vcombine.low %v7980, %v7987
    %v7991 = vunpack.c.l.s4 1966171168
    %v7992 = vunpack.c.0.s8 %v7991
    %v7993 = vlaneseq
    %v7994 = vshrl.u32 %v7993, 7
    %v7995 = vsub.s32 %v7992, %v7994
    %v7996 = vrot.slane %v7988, %v7995
    %v7998 = vunpack.c.l.s4 1966171168
    %v7999 = vunpack.c.0.s8 %v7998
    %v8000 = vlaneseq
    %v8001 = vshrl.u32 %v8000, 7
    %v8002 = vsub.s32 %v7999, %v8001
    %v8003 = vrot.slane %v7989, %v8002
    %v8004 = vcombine.low %v7996, %v8003
    %v8006 = vsel %vm1788, %v8004, 0.0
    %8007 = vadd.xlane.f32.xlu0 %v8006
    %v8008 = vpop.xlane.xlu0 %8007
    %v8009 = vsel %vm718, %v7924, 0.0
    %v8010 = vsel %vm718, %v7925, 0.0
    %v8011 = vadd.f32 %v8009, %v8010
    %v8012 = vsel %vm718, %v7926, 0.0
    %v8013 = vadd.f32 %v8011, %v8012
    %v8014 = vrot.slane %v8013, 4
    %v8015 = vadd.f32 %v8013, %v8014
    %v8016 = vrot.slane %v8015, 2
    %v8017 = vadd.f32 %v8015, %v8016
    %v8018 = vrot.slane %v8017, 1
    %v8019 = vadd.f32 %v8017, %v8018
    %v8020 = vsel %vm718, %v7927, 0.0
    %v8021 = vsel %vm718, %v7928, 0.0
    %v8022 = vadd.f32 %v8020, %v8021
    %v8023 = vsel %vm718, %v7929, 0.0
    %v8024 = vadd.f32 %v8022, %v8023
    %v8025 = vrot.slane %v8024, 4
    %v8026 = vadd.f32 %v8024, %v8025
    %v8027 = vrot.slane %v8026, 2
    %v8028 = vadd.f32 %v8026, %v8027
    %v8029 = vrot.slane %v8028, 1
    %v8030 = vadd.f32 %v8028, %v8029
    %v8031 = vsel %vm718, %v7930, 0.0
    %v8032 = vsel %vm718, %v7931, 0.0
    %v8033 = vadd.f32 %v8031, %v8032
    %v8034 = vsel %vm718, %v7932, 0.0
    %v8035 = vadd.f32 %v8033, %v8034
    %v8036 = vrot.slane %v8035, 4
    %v8037 = vadd.f32 %v8035, %v8036
    %v8038 = vrot.slane %v8037, 2
    %v8039 = vadd.f32 %v8037, %v8038
    %v8040 = vrot.slane %v8039, 1
    %v8041 = vadd.f32 %v8039, %v8040
    %v8042 = vsel %vm718, %v7933, 0.0
    %v8043 = vsel %vm718, %v7934, 0.0
    %v8044 = vadd.f32 %v8042, %v8043
    %v8045 = vsel %vm718, %v7935, 0.0
    %v8046 = vadd.f32 %v8044, %v8045
    %v8047 = vrot.slane %v8046, 4
    %v8048 = vadd.f32 %v8046, %v8047
    %v8049 = vrot.slane %v8048, 2
    %v8050 = vadd.f32 %v8048, %v8049
    %v8051 = vrot.slane %v8050, 1
    %v8052 = vadd.f32 %v8050, %v8051
    %v8053 = vsel %vm718, %v7936, 0.0
    %v8054 = vsel %vm718, %v7937, 0.0
    %v8055 = vadd.f32 %v8053, %v8054
    %v8056 = vsel %vm718, %v7938, 0.0
    %v8057 = vadd.f32 %v8055, %v8056
    %v8058 = vrot.slane %v8057, 4
    %v8059 = vadd.f32 %v8057, %v8058
    %v8060 = vrot.slane %v8059, 2
    %v8061 = vadd.f32 %v8059, %v8060
    %v8062 = vrot.slane %v8061, 1
    %v8063 = vadd.f32 %v8061, %v8062
    %v8064 = vsel %vm718, %v7939, 0.0
    %v8065 = vsel %vm718, %v7940, 0.0
    %v8066 = vadd.f32 %v8064, %v8065
    %v8067 = vsel %vm718, %v7941, 0.0
    %v8068 = vadd.f32 %v8066, %v8067
    %v8069 = vrot.slane %v8068, 4
    %v8070 = vadd.f32 %v8068, %v8069
    %v8071 = vrot.slane %v8070, 2
    %v8072 = vadd.f32 %v8070, %v8071
    %v8073 = vrot.slane %v8072, 1
    %v8074 = vadd.f32 %v8072, %v8073
    %v8075 = vsel %vm718, %v7942, 0.0
    %v8076 = vsel %vm718, %v7943, 0.0
    %v8077 = vadd.f32 %v8075, %v8076
    %v8078 = vsel %vm718, %v7944, 0.0
    %v8079 = vadd.f32 %v8077, %v8078
    %v8080 = vrot.slane %v8079, 4
    %v8081 = vadd.f32 %v8079, %v8080
    %v8082 = vrot.slane %v8081, 2
    %v8083 = vadd.f32 %v8081, %v8082
    %v8084 = vrot.slane %v8083, 1
    %v8085 = vadd.f32 %v8083, %v8084
    %v8086 = vsel %vm718, %v7945, 0.0
    %v8087 = vsel %vm718, %v7946, 0.0
    %v8088 = vadd.f32 %v8086, %v8087
    %v8089 = vsel %vm718, %v7947, 0.0
    %v8090 = vadd.f32 %v8088, %v8089
    %v8091 = vrot.slane %v8090, 4
    %v8092 = vadd.f32 %v8090, %v8091
    %v8093 = vrot.slane %v8092, 2
    %v8094 = vadd.f32 %v8092, %v8093
    %v8095 = vrot.slane %v8094, 1
    %v8096 = vadd.f32 %v8094, %v8095
    %v8098 = vrot.slane %v8008, 1
    %v8099 = vrot.slane %v8008, 2
    %v8100 = vrot.slane %v8008, 3
    %v8101 = vrot.slane %v8008, 4
    %v8102 = vrot.slane %v8008, 5
    %v8103 = vrot.slane %v8008, 6
    %v8104 = vrot.slane %v8008, 7
    %v8113 = vrcp.pop %v8008
    %v8114 = vmul.f32 %v8019, %v8113
    %v8115 = vrcp.pop %v8098
    %v8116 = vmul.f32 %v8030, %v8115
    %v8117 = vrcp.pop %v8099
    %v8118 = vmul.f32 %v8041, %v8117
    %v8119 = vrcp.pop %v8100
    %v8120 = vmul.f32 %v8052, %v8119
    %v8121 = vrcp.pop %v8101
    %v8122 = vmul.f32 %v8063, %v8121
    %v8123 = vrcp.pop %v8102
    %v8124 = vmul.f32 %v8074, %v8123
    %v8125 = vrcp.pop %v8103
    %v8126 = vmul.f32 %v8085, %v8125
    %v8127 = vrcp.pop %v8104
    %v8128 = vmul.f32 %v8096, %v8127
    %v8129 = vpack.c.bf16 %v8114, %v8114
    %v8130 = vpack.c.bf16 %v8116, %v8116
    %v8131 = vpack.c.bf16 %v8118, %v8118
    %v8132 = vpack.c.bf16 %v8120, %v8120
    %v8133 = vpack.c.bf16 %v8122, %v8122
    %v8134 = vpack.c.bf16 %v8124, %v8124
    %v8135 = vpack.c.bf16 %v8126, %v8126
    %v8136 = vpack.c.bf16 %v8128, %v8128
    %v8137 = vld [vmem:[%s17] sm:$0xf]
    %v8138 = vld [vmem:[%s17 + $0x4] sm:$0xf]
    %v8139 = vld [vmem:[%s17 + $0x8] sm:$0xf]
    %v8140 = vld [vmem:[%s17 + $0xc] sm:$0xf]
    %v8149 = vunpack.c.l.b16 %v8129
    %v8150 = vunpack.c.l.b16 %v8130
    %v8151 = vunpack.c.l.b16 %v8131
    %v8152 = vunpack.c.l.b16 %v8132
    %v8153 = vunpack.c.l.b16 %v8133
    %v8154 = vunpack.c.l.b16 %v8134
    %v8155 = vunpack.c.l.b16 %v8135
    %v8156 = vunpack.c.l.b16 %v8136
    %v8157 = vrot.slane %v8150, 7
    %vm8158 = vcmask 1041409
    %v8159 = vsel %vm8158, %v8157, %v8149
    %v8160 = vrot.slane %v8151, 6
    %vm8161 = vcmask 1042434
    %v8162 = vsel %vm8161, %v8160, %v8159
    %v8163 = vrot.slane %v8152, 5
    %vm8164 = vcmask 1043459
    %v8165 = vsel %vm8164, %v8163, %v8162
    %v8166 = vrot.slane %v8153, 4
    %vm8167 = vcmask 1044484
    %v8168 = vsel %vm8167, %v8166, %v8165
    %v8169 = vrot.slane %v8154, 3
    %vm8170 = vcmask 1045509
    %v8171 = vsel %vm8170, %v8169, %v8168
    %v8172 = vrot.slane %v8155, 2
    %vm8173 = vcmask 1046534
    %v8174 = vsel %vm8173, %v8172, %v8171
    %v8175 = vrot.slane %v8156, 1
    %vm8176 = vcmask 1047559
    %v8177 = vsel %vm8176, %v8175, %v8174
    %v8178 = vpack.c.b16 %v8177, %v8177
    %v8183 = vunpack.c.l.b16 %v8137
    %v8184 = vunpack.c.l.b16 %v8138
    %v8185 = vunpack.c.l.b16 %v8139
    %v8186 = vunpack.c.l.b16 %v8140
    %v8187 = vpack.c.b16 %v8184, %v8183
    %v8188 = vpack.c.b16 %v8186, %v8185
    %v8192 = vsel %vm718, %v8178, 0
    %8194 = vmatprep.subr.bf16.mxu0 0
    %8195 = vmatpush1.bf16.msra.mxu0 %v8187
    %8196 = vmatprep.subr.bf16.mxu0 0
    %8197 = vmatpush1.bf16.msra.mxu0 %v8188
    %8198 = vmatprep.subr.bf16.mxu0 0
    %8199 = vmatpush1.bf16.msra.mxu0 0
    %8200 = vmatprep.subr.bf16.mxu0 0
    %8201 = vmatpush1.bf16.msra.mxu0 0
    %8202 = vmatprep.subr.bf16.mxu0 0
    %8203 = vmatpush1.bf16.msra.mxu0 0
    %8204 = vmatprep.subr.bf16.mxu0 0
    %8205 = vmatpush1.bf16.msra.mxu0 0
    %8206 = vmatprep.subr.bf16.mxu0 0
    %8207 = vmatpush1.bf16.msra.mxu0 0
    %8208 = vmatprep.subr.bf16.mxu0 0
    %8209 = vmatpush1.bf16.msra.mxu0 0
    %8210 = vmatprep.subr.bf16.mxu0 0
    %8211 = vmatpush1.bf16.msra.mxu0 0
    %8212 = vmatprep.subr.bf16.mxu0 0
    %8213 = vmatpush1.bf16.msra.mxu0 0
    %8214 = vmatprep.subr.bf16.mxu0 0
    %8215 = vmatpush1.bf16.msra.mxu0 0
    %8216 = vmatprep.subr.bf16.mxu0 0
    %8217 = vmatpush1.bf16.msra.mxu0 0
    %8218 = vmatprep.subr.bf16.mxu0 0
    %8219 = vmatpush1.bf16.msra.mxu0 0
    %8220 = vmatprep.subr.bf16.mxu0 0
    %8221 = vmatpush1.bf16.msra.mxu0 0
    %8222 = vmatprep.subr.bf16.mxu0 0
    %8223 = vmatpush1.bf16.msra.mxu0 0
    %8224 = vmatprep.subr.bf16.mxu0 0
    %8225 = vmatpush1.bf16.msra.mxu0 0
    %8226 = vmatprep.mubr.bf16.mxu0 0
    %8227 = vmatmul.mubr.bf16.gmra.mrb[0].mxu0 %v8192
    %v8228 = vpop.f32.mrb[0].mxu0
    %v8229 = vadd.f32 0.0, %v8228
    %v8230 = vpop.f32.mrb[0].mxu0
    %v8231 = vpop.f32.mrb[0].mxu0
    %v8232 = vpop.f32.mrb[0].mxu0
    %8233 = vdwg.mxu0
    %v8234 = vpack.c.bf16 %v7925, %v7924
    %v8235 = vpack.c.bf16 %v7927, %v7926
    %v8236 = vpack.c.bf16 %v7929, %v7928
    %v8237 = vpack.c.bf16 %v7931, %v7930
    %v8238 = vpack.c.bf16 %v7933, %v7932
    %v8239 = vpack.c.bf16 %v7935, %v7934
    %v8240 = vpack.c.bf16 %v7937, %v7936
    %v8241 = vpack.c.bf16 %v7939, %v7938
    %v8242 = vpack.c.bf16 %v7941, %v7940
    %v8243 = vpack.c.bf16 %v7943, %v7942
    %v8244 = vpack.c.bf16 %v7945, %v7944
    %v8245 = vpack.c.bf16 %v7947, %v7946
    %v8246 = vld [vmem:[%s18] sm:$0xf]
    %v8247 = vld [vmem:[%s18 + $0x4] sm:$0xf]
    %v8248 = vld [vmem:[%s18 + $0x8] sm:$0xf]
    %v8249 = vld [vmem:[%s18 + $0xc] sm:$0xf]
    %v8254 = vunpack.c.l.b16 %v8246
    %v8255 = vunpack.c.l.b16 %v8247
    %v8256 = vunpack.c.l.b16 %v8248
    %v8257 = vunpack.c.l.b16 %v8249
    %v8258 = vpack.c.b16 %v8255, %v8254
    %v8259 = vpack.c.b16 %v8257, %v8256
    %v8263 = vsel %vm718, %v8234, 0
    %v8266 = vsel %vm718, %v8235, 0
    %v8269 = vsel %vm718, %v8236, 0
    %v8272 = vsel %vm718, %v8237, 0
    %v8275 = vsel %vm718, %v8238, 0
    %v8278 = vsel %vm718, %v8239, 0
    %v8281 = vsel %vm718, %v8240, 0
    %v8284 = vsel %vm718, %v8241, 0
    %v8287 = vsel %vm718, %v8242, 0
    %v8290 = vsel %vm718, %v8243, 0
    %v8293 = vsel %vm718, %v8244, 0
    %v8296 = vsel %vm718, %v8245, 0
    %8298 = vmatprep.subr.bf16.mxu0 0
    %8299 = vmatpush1.bf16.msra.mxu0 %v8258
    %8300 = vmatprep.subr.bf16.mxu0 0
    %8301 = vmatpush1.bf16.msra.mxu0 %v8259
    %8302 = vmatprep.subr.bf16.mxu0 0
    %8303 = vmatpush1.bf16.msra.mxu0 0
    %8304 = vmatprep.subr.bf16.mxu0 0
    %8305 = vmatpush1.bf16.msra.mxu0 0
    %8306 = vmatprep.subr.bf16.mxu0 0
    %8307 = vmatpush1.bf16.msra.mxu0 0
    %8308 = vmatprep.subr.bf16.mxu0 0
    %8309 = vmatpush1.bf16.msra.mxu0 0
    %8310 = vmatprep.subr.bf16.mxu0 0
    %8311 = vmatpush1.bf16.msra.mxu0 0
    %8312 = vmatprep.subr.bf16.mxu0 0
    %8313 = vmatpush1.bf16.msra.mxu0 0
    %8314 = vmatprep.subr.bf16.mxu0 0
    %8315 = vmatpush1.bf16.msra.mxu0 0
    %8316 = vmatprep.subr.bf16.mxu0 0
    %8317 = vmatpush1.bf16.msra.mxu0 0
    %8318 = vmatprep.subr.bf16.mxu0 0
    %8319 = vmatpush1.bf16.msra.mxu0 0
    %8320 = vmatprep.subr.bf16.mxu0 0
    %8321 = vmatpush1.bf16.msra.mxu0 0
    %8322 = vmatprep.subr.bf16.mxu0 0
    %8323 = vmatpush1.bf16.msra.mxu0 0
    %8324 = vmatprep.subr.bf16.mxu0 0
    %8325 = vmatpush1.bf16.msra.mxu0 0
    %8326 = vmatprep.subr.bf16.mxu0 0
    %8327 = vmatpush1.bf16.msra.mxu0 0
    %8328 = vmatprep.subr.bf16.mxu0 0
    %8329 = vmatpush1.bf16.msra.mxu0 0
    %8330 = vmatprep.mubr.bf16.mxu0 0
    %8331 = vmatmul.mubr.bf16.gmra.mrb[0].mxu0 %v8263
    %v8332 = vpop.f32.mrb[0].mxu0
    %v8333 = vadd.f32 0.0, %v8332
    %v8334 = vpop.f32.mrb[0].mxu0
    %v8335 = vpop.f32.mrb[0].mxu0
    %v8336 = vadd.f32 0.0, %v8335
    %v8337 = vpop.f32.mrb[0].mxu0
    %8338 = vmatprep.mubr.bf16.mxu0 0
    %8339 = vmatmul.mubr.bf16.gmra.mrb[0].mxu0 %v8266
    %v8340 = vpop.f32.mrb[0].mxu0
    %v8341 = vadd.f32 0.0, %v8340
    %v8342 = vpop.f32.mrb[0].mxu0
    %v8343 = vpop.f32.mrb[0].mxu0
    %v8344 = vadd.f32 0.0, %v8343
    %v8345 = vpop.f32.mrb[0].mxu0
    %8346 = vmatprep.mubr.bf16.mxu0 0
    %8347 = vmatmul.mubr.bf16.gmra.mrb[0].mxu0 %v8269
    %v8348 = vpop.f32.mrb[0].mxu0
    %v8349 = vadd.f32 0.0, %v8348
    %v8350 = vpop.f32.mrb[0].mxu0
    %v8351 = vpop.f32.mrb[0].mxu0
    %v8352 = vadd.f32 0.0, %v8351
    %v8353 = vpop.f32.mrb[0].mxu0
    %8354 = vmatprep.mubr.bf16.mxu0 0
    %8355 = vmatmul.mubr.bf16.gmra.mrb[0].mxu0 %v8272
    %v8356 = vpop.f32.mrb[0].mxu0
    %v8357 = vadd.f32 0.0, %v8356
    %v8358 = vpop.f32.mrb[0].mxu0
    %v8359 = vpop.f32.mrb[0].mxu0
    %v8360 = vadd.f32 0.0, %v8359
    %v8361 = vpop.f32.mrb[0].mxu0
    %8362 = vmatprep.mubr.bf16.mxu0 0
    %8363 = vmatmul.mubr.bf16.gmra.mrb[0].mxu0 %v8275
    %v8364 = vpop.f32.mrb[0].mxu0
    %v8365 = vadd.f32 0.0, %v8364
    %v8366 = vpop.f32.mrb[0].mxu0
    %v8367 = vpop.f32.mrb[0].mxu0
    %v8368 = vadd.f32 0.0, %v8367
    %v8369 = vpop.f32.mrb[0].mxu0
    %8370 = vmatprep.mubr.bf16.mxu0 0
    %8371 = vmatmul.mubr.bf16.gmra.mrb[0].mxu0 %v8278
    %v8372 = vpop.f32.mrb[0].mxu0
    %v8373 = vadd.f32 0.0, %v8372
    %v8374 = vpop.f32.mrb[0].mxu0
    %v8375 = vpop.f32.mrb[0].mxu0
    %v8376 = vadd.f32 0.0, %v8375
    %v8377 = vpop.f32.mrb[0].mxu0
    %8378 = vmatprep.mubr.bf16.mxu0 0
    %8379 = vmatmul.mubr.bf16.gmra.mrb[0].mxu0 %v8281
    %v8380 = vpop.f32.mrb[0].mxu0
    %v8381 = vadd.f32 0.0, %v8380
    %v8382 = vpop.f32.mrb[0].mxu0
    %v8383 = vpop.f32.mrb[0].mxu0
    %v8384 = vadd.f32 0.0, %v8383
    %v8385 = vpop.f32.mrb[0].mxu0
    %8386 = vmatprep.mubr.bf16.mxu0 0
    %8387 = vmatmul.mubr.bf16.gmra.mrb[0].mxu0 %v8284
    %v8388 = vpop.f32.mrb[0].mxu0
    %v8389 = vadd.f32 0.0, %v8388
    %v8390 = vpop.f32.mrb[0].mxu0
    %v8391 = vpop.f32.mrb[0].mxu0
    %v8392 = vadd.f32 0.0, %v8391
    %v8393 = vpop.f32.mrb[0].mxu0
    %8394 = vmatprep.mubr.bf16.mxu0 0
    %8395 = vmatmul.mubr.bf16.gmra.mrb[0].mxu0 %v8287
    %v8396 = vpop.f32.mrb[0].mxu0
    %v8397 = vadd.f32 0.0, %v8396
    %v8398 = vpop.f32.mrb[0].mxu0
    %v8399 = vpop.f32.mrb[0].mxu0
    %v8400 = vadd.f32 0.0, %v8399
    %v8401 = vpop.f32.mrb[0].mxu0
    %8402 = vmatprep.mubr.bf16.mxu0 0
    %8403 = vmatmul.mubr.bf16.gmra.mrb[0].mxu0 %v8290
    %v8404 = vpop.f32.mrb[0].mxu0
    %v8405 = vadd.f32 0.0, %v8404
    %v8406 = vpop.f32.mrb[0].mxu0
    %v8407 = vpop.f32.mrb[0].mxu0
    %v8408 = vadd.f32 0.0, %v8407
    %v8409 = vpop.f32.mrb[0].mxu0
    %8410 = vmatprep.mubr.bf16.mxu0 0
    %8411 = vmatmul.mubr.bf16.gmra.mrb[0].mxu0 %v8293
    %v8412 = vpop.f32.mrb[0].mxu0
    %v8413 = vadd.f32 0.0, %v8412
    %v8414 = vpop.f32.mrb[0].mxu0
    %v8415 = vpop.f32.mrb[0].mxu0
    %v8416 = vadd.f32 0.0, %v8415
    %v8417 = vpop.f32.mrb[0].mxu0
    %8418 = vmatprep.mubr.bf16.mxu0 0
    %8419 = vmatmul.mubr.bf16.gmra.mrb[0].mxu0 %v8296
    %v8420 = vpop.f32.mrb[0].mxu0
    %v8421 = vadd.f32 0.0, %v8420
    %v8422 = vpop.f32.mrb[0].mxu0
    %v8423 = vpop.f32.mrb[0].mxu0
    %v8424 = vadd.f32 0.0, %v8423
    %v8425 = vpop.f32.mrb[0].mxu0
    %8426 = vdwg.mxu0
    %v8428 = vcombine.high %v8229, %v8229
    %v8430 = vunpack.c.l.s4 1966171168
    %v8431 = vunpack.c.0.s8 %v8430
    %v8432 = vlaneseq
    %v8433 = vshrl.u32 %v8432, 7
    %v8434 = vsub.s32 %v8431, %v8433
    %v8435 = vrot.slane %v8229, %v8434
    %v8437 = vunpack.c.l.s4 1966171168
    %v8438 = vunpack.c.0.s8 %v8437
    %v8439 = vlaneseq
    %v8440 = vshrl.u32 %v8439, 7
    %v8441 = vsub.s32 %v8438, %v8440
    %v8442 = vrot.slane %v8428, %v8441
    %v8443 = vcombine.high %v8435, %v8435
    %v8444 = vcombine.high %v8442, %v8442
    %v8446 = vunpack.c.l.s4 1966171168
    %v8447 = vunpack.c.0.s8 %v8446
    %v8448 = vlaneseq
    %v8449 = vshrl.u32 %v8448, 7
    %v8450 = vsub.s32 %v8447, %v8449
    %v8451 = vrot.slane %v8435, %v8450
    %v8453 = vunpack.c.l.s4 1966171168
    %v8454 = vunpack.c.0.s8 %v8453
    %v8455 = vlaneseq
    %v8456 = vshrl.u32 %v8455, 7
    %v8457 = vsub.s32 %v8454, %v8456
    %v8458 = vrot.slane %v8442, %v8457
    %v8460 = vunpack.c.l.s4 1966171168
    %v8461 = vunpack.c.0.s8 %v8460
    %v8462 = vlaneseq
    %v8463 = vshrl.u32 %v8462, 7
    %v8464 = vsub.s32 %v8461, %v8463
    %v8465 = vrot.slane %v8443, %v8464
    %v8467 = vunpack.c.l.s4 1966171168
    %v8468 = vunpack.c.0.s8 %v8467
    %v8469 = vlaneseq
    %v8470 = vshrl.u32 %v8469, 7
    %v8471 = vsub.s32 %v8468, %v8470
    %v8472 = vrot.slane %v8444, %v8471
    %v8473 = vcombine.high %v8451, %v8451
    %v8474 = vcombine.high %v8458, %v8458
    %v8475 = vcombine.high %v8465, %v8465
    %v8476 = vcombine.high %v8472, %v8472
    %v8477 = vsel %vm718, %v8451, 0
    %v8480 = vsel %vm718, %v8333, 0
    %v8483 = vsel %vm718, %v8336, 0
    %v8486 = vsel %vm718, %v8341, 0
    %8488 = vmatprep.subr.mxu0 0.0
    %8489 = vmatpush1.xpose.msra.mxu0 %v8480
    %8490 = vmatprep.subr.mxu0 0.0
    %8491 = vmatpush1.xpose.msra.mxu0 %v8483
    %8492 = vmatprep.subr.mxu0 0.0
    %8493 = vmatpush1.xpose.msra.mxu0 %v8486
    %8494 = vmatprep.subr.mxu0 0.0
    %8495 = vmatpush1.xpose.msra.mxu0 0.0
    %8496 = vmatprep.subr.mxu0 0.0
    %8497 = vmatpush1.xpose.msra.mxu0 0.0
    %8498 = vmatprep.subr.mxu0 0.0
    %8499 = vmatpush1.xpose.msra.mxu0 0.0
    %8500 = vmatprep.subr.mxu0 0.0
    %8501 = vmatpush1.xpose.msra.mxu0 0.0
    %8502 = vmatprep.subr.mxu0 0.0
    %8503 = vmatpush1.xpose.msra.mxu0 0.0
    %8504 = vmatprep.subr.mxu0 0.0
    %8505 = vmatpush1.xpose.msra.mxu0 0.0
    %8506 = vmatprep.subr.mxu0 0.0
    %8507 = vmatpush1.xpose.msra.mxu0 0.0
    %8508 = vmatprep.subr.mxu0 0.0
    %8509 = vmatpush1.xpose.msra.mxu0 0.0
    %8510 = vmatprep.subr.mxu0 0.0
    %8511 = vmatpush1.xpose.msra.mxu0 0.0
    %8512 = vmatprep.subr.mxu0 0.0
    %8513 = vmatpush1.xpose.msra.mxu0 0.0
    %8514 = vmatprep.subr.mxu0 0.0
    %8515 = vmatpush1.xpose.msra.mxu0 0.0
    %8516 = vmatprep.subr.mxu0 0.0
    %8517 = vmatpush1.xpose.msra.mxu0 0.0
    %8518 = vmatprep.subr.mxu0 0.0
    %8519 = vmatpush1.xpose.msra.mxu0 0.0
    %8520 = vmatprep.subr.mxu0 0.0
    %8521 = vmatpush1.xpose.msra.mxu0 0.0
    %8522 = vmatprep.subr.mxu0 0.0
    %8523 = vmatpush1.xpose.msra.mxu0 0.0
    %8524 = vmatprep.subr.mxu0 0.0
    %8525 = vmatpush1.xpose.msra.mxu0 0.0
    %8526 = vmatprep.subr.mxu0 0.0
    %8527 = vmatpush1.xpose.msra.mxu0 0.0
    %8528 = vmatprep.subr.mxu0 0.0
    %8529 = vmatpush1.xpose.msra.mxu0 0.0
    %8530 = vmatprep.subr.mxu0 0.0
    %8531 = vmatpush1.xpose.msra.mxu0 0.0
    %8532 = vmatprep.subr.mxu0 0.0
    %8533 = vmatpush1.xpose.msra.mxu0 0.0
    %8534 = vmatprep.subr.mxu0 0.0
    %8535 = vmatpush1.xpose.msra.mxu0 0.0
    %8536 = vmatprep.subr.mxu0 0.0
    %8537 = vmatpush1.xpose.msra.mxu0 0.0
    %8538 = vmatprep.subr.mxu0 0.0
    %8539 = vmatpush1.xpose.msra.mxu0 0.0
    %8540 = vmatprep.subr.mxu0 0.0
    %8541 = vmatpush1.xpose.msra.mxu0 0.0
    %8542 = vmatprep.subr.mxu0 0.0
    %8543 = vmatpush1.xpose.msra.mxu0 0.0
    %8544 = vmatprep.subr.mxu0 0.0
    %8545 = vmatpush1.xpose.msra.mxu0 0.0
    %8546 = vmatprep.subr.mxu0 0.0
    %8547 = vmatpush1.xpose.msra.mxu0 0.0
    %8548 = vmatprep.subr.mxu0 0.0
    %8549 = vmatpush1.xpose.msra.mxu0 0.0
    %8550 = vmatprep.subr.mxu0 0.0
    %8551 = vmatpush1.xpose.msra.mxu0 0.0
    %8552 = vmatprep.mubr.f32.mxu0 0.0
    %8553 = vmatmul.mubr.f32.gmra.mrb[0].mxu0 %v8477
    %v8554 = vpop.f32.mrb[0].mxu0
    %v8555 = vadd.f32 0.0, %v8554
    %v8556 = vpop.f32.mrb[0].mxu0
    %8557 = vdwg.mxu0
    %v8558 = vsel %vm718, %v8465, 0
    %v8561 = vsel %vm718, %v8344, 0
    %v8564 = vsel %vm718, %v8349, 0
    %v8567 = vsel %vm718, %v8352, 0
    %8569 = vmatprep.subr.mxu0 0.0
    %8570 = vmatpush1.xpose.msra.mxu0 %v8561
    %8571 = vmatprep.subr.mxu0 0.0
    %8572 = vmatpush1.xpose.msra.mxu0 %v8564
    %8573 = vmatprep.subr.mxu0 0.0
    %8574 = vmatpush1.xpose.msra.mxu0 %v8567
    %8575 = vmatprep.subr.mxu0 0.0
    %8576 = vmatpush1.xpose.msra.mxu0 0.0
    %8577 = vmatprep.subr.mxu0 0.0
    %8578 = vmatpush1.xpose.msra.mxu0 0.0
    %8579 = vmatprep.subr.mxu0 0.0
    %8580 = vmatpush1.xpose.msra.mxu0 0.0
    %8581 = vmatprep.subr.mxu0 0.0
    %8582 = vmatpush1.xpose.msra.mxu0 0.0
    %8583 = vmatprep.subr.mxu0 0.0
    %8584 = vmatpush1.xpose.msra.mxu0 0.0
    %8585 = vmatprep.subr.mxu0 0.0
    %8586 = vmatpush1.xpose.msra.mxu0 0.0
    %8587 = vmatprep.subr.mxu0 0.0
    %8588 = vmatpush1.xpose.msra.mxu0 0.0
    %8589 = vmatprep.subr.mxu0 0.0
    %8590 = vmatpush1.xpose.msra.mxu0 0.0
    %8591 = vmatprep.subr.mxu0 0.0
    %8592 = vmatpush1.xpose.msra.mxu0 0.0
    %8593 = vmatprep.subr.mxu0 0.0
    %8594 = vmatpush1.xpose.msra.mxu0 0.0
    %8595 = vmatprep.subr.mxu0 0.0
    %8596 = vmatpush1.xpose.msra.mxu0 0.0
    %8597 = vmatprep.subr.mxu0 0.0
    %8598 = vmatpush1.xpose.msra.mxu0 0.0
    %8599 = vmatprep.subr.mxu0 0.0
    %8600 = vmatpush1.xpose.msra.mxu0 0.0
    %8601 = vmatprep.subr.mxu0 0.0
    %8602 = vmatpush1.xpose.msra.mxu0 0.0
    %8603 = vmatprep.subr.mxu0 0.0
    %8604 = vmatpush1.xpose.msra.mxu0 0.0
    %8605 = vmatprep.subr.mxu0 0.0
    %8606 = vmatpush1.xpose.msra.mxu0 0.0
    %8607 = vmatprep.subr.mxu0 0.0
    %8608 = vmatpush1.xpose.msra.mxu0 0.0
    %8609 = vmatprep.subr.mxu0 0.0
    %8610 = vmatpush1.xpose.msra.mxu0 0.0
    %8611 = vmatprep.subr.mxu0 0.0
    %8612 = vmatpush1.xpose.msra.mxu0 0.0
    %8613 = vmatprep.subr.mxu0 0.0
    %8614 = vmatpush1.xpose.msra.mxu0 0.0
    %8615 = vmatprep.subr.mxu0 0.0
    %8616 = vmatpush1.xpose.msra.mxu0 0.0
    %8617 = vmatprep.subr.mxu0 0.0
    %8618 = vmatpush1.xpose.msra.mxu0 0.0
    %8619 = vmatprep.subr.mxu0 0.0
    %8620 = vmatpush1.xpose.msra.mxu0 0.0
    %8621 = vmatprep.subr.mxu0 0.0
    %8622 = vmatpush1.xpose.msra.mxu0 0.0
    %8623 = vmatprep.subr.mxu0 0.0
    %8624 = vmatpush1.xpose.msra.mxu0 0.0
    %8625 = vmatprep.subr.mxu0 0.0
    %8626 = vmatpush1.xpose.msra.mxu0 0.0
    %8627 = vmatprep.subr.mxu0 0.0
    %8628 = vmatpush1.xpose.msra.mxu0 0.0
    %8629 = vmatprep.subr.mxu0 0.0
    %8630 = vmatpush1.xpose.msra.mxu0 0.0
    %8631 = vmatprep.subr.mxu0 0.0
    %8632 = vmatpush1.xpose.msra.mxu0 0.0
    %8633 = vmatprep.mubr.f32.mxu0 0.0
    %8634 = vmatmul.mubr.f32.gmra.mrb[0].mxu0 %v8558
    %v8635 = vpop.f32.mrb[0].mxu0
    %v8636 = vadd.f32 0.0, %v8635
    %v8637 = vpop.f32.mrb[0].mxu0
    %8638 = vdwg.mxu0
    %v8639 = vsel %vm718, %v8473, 0
    %v8642 = vsel %vm718, %v8357, 0
    %v8645 = vsel %vm718, %v8360, 0
    %v8648 = vsel %vm718, %v8365, 0
    %8650 = vmatprep.subr.mxu0 0.0
    %8651 = vmatpush1.xpose.msra.mxu0 %v8642
    %8652 = vmatprep.subr.mxu0 0.0
    %8653 = vmatpush1.xpose.msra.mxu0 %v8645
    %8654 = vmatprep.subr.mxu0 0.0
    %8655 = vmatpush1.xpose.msra.mxu0 %v8648
    %8656 = vmatprep.subr.mxu0 0.0
    %8657 = vmatpush1.xpose.msra.mxu0 0.0
    %8658 = vmatprep.subr.mxu0 0.0
    %8659 = vmatpush1.xpose.msra.mxu0 0.0
    %8660 = vmatprep.subr.mxu0 0.0
    %8661 = vmatpush1.xpose.msra.mxu0 0.0
    %8662 = vmatprep.subr.mxu0 0.0
    %8663 = vmatpush1.xpose.msra.mxu0 0.0
    %8664 = vmatprep.subr.mxu0 0.0
    %8665 = vmatpush1.xpose.msra.mxu0 0.0
    %8666 = vmatprep.subr.mxu0 0.0
    %8667 = vmatpush1.xpose.msra.mxu0 0.0
    %8668 = vmatprep.subr.mxu0 0.0
    %8669 = vmatpush1.xpose.msra.mxu0 0.0
    %8670 = vmatprep.subr.mxu0 0.0
    %8671 = vmatpush1.xpose.msra.mxu0 0.0
    %8672 = vmatprep.subr.mxu0 0.0
    %8673 = vmatpush1.xpose.msra.mxu0 0.0
    %8674 = vmatprep.subr.mxu0 0.0
    %8675 = vmatpush1.xpose.msra.mxu0 0.0
    %8676 = vmatprep.subr.mxu0 0.0
    %8677 = vmatpush1.xpose.msra.mxu0 0.0
    %8678 = vmatprep.subr.mxu0 0.0
    %8679 = vmatpush1.xpose.msra.mxu0 0.0
    %8680 = vmatprep.subr.mxu0 0.0
    %8681 = vmatpush1.xpose.msra.mxu0 0.0
    %8682 = vmatprep.subr.mxu0 0.0
    %8683 = vmatpush1.xpose.msra.mxu0 0.0
    %8684 = vmatprep.subr.mxu0 0.0
    %8685 = vmatpush1.xpose.msra.mxu0 0.0
    %8686 = vmatprep.subr.mxu0 0.0
    %8687 = vmatpush1.xpose.msra.mxu0 0.0
    %8688 = vmatprep.subr.mxu0 0.0
    %8689 = vmatpush1.xpose.msra.mxu0 0.0
    %8690 = vmatprep.subr.mxu0 0.0
    %8691 = vmatpush1.xpose.msra.mxu0 0.0
    %8692 = vmatprep.subr.mxu0 0.0
    %8693 = vmatpush1.xpose.msra.mxu0 0.0
    %8694 = vmatprep.subr.mxu0 0.0
    %8695 = vmatpush1.xpose.msra.mxu0 0.0
    %8696 = vmatprep.subr.mxu0 0.0
    %8697 = vmatpush1.xpose.msra.mxu0 0.0
    %8698 = vmatprep.subr.mxu0 0.0
    %8699 = vmatpush1.xpose.msra.mxu0 0.0
    %8700 = vmatprep.subr.mxu0 0.0
    %8701 = vmatpush1.xpose.msra.mxu0 0.0
    %8702 = vmatprep.subr.mxu0 0.0
    %8703 = vmatpush1.xpose.msra.mxu0 0.0
    %8704 = vmatprep.subr.mxu0 0.0
    %8705 = vmatpush1.xpose.msra.mxu0 0.0
    %8706 = vmatprep.subr.mxu0 0.0
    %8707 = vmatpush1.xpose.msra.mxu0 0.0
    %8708 = vmatprep.subr.mxu0 0.0
    %8709 = vmatpush1.xpose.msra.mxu0 0.0
    %8710 = vmatprep.subr.mxu0 0.0
    %8711 = vmatpush1.xpose.msra.mxu0 0.0
    %8712 = vmatprep.subr.mxu0 0.0
    %8713 = vmatpush1.xpose.msra.mxu0 0.0
    %8714 = vmatprep.mubr.f32.mxu0 0.0
    %8715 = vmatmul.mubr.f32.gmra.mrb[0].mxu0 %v8639
    %v8716 = vpop.f32.mrb[0].mxu0
    %v8717 = vadd.f32 0.0, %v8716
    %v8718 = vpop.f32.mrb[0].mxu0
    %8719 = vdwg.mxu0
    %v8720 = vsel %vm718, %v8475, 0
    %v8723 = vsel %vm718, %v8368, 0
    %v8726 = vsel %vm718, %v8373, 0
    %v8729 = vsel %vm718, %v8376, 0
    %8731 = vmatprep.subr.mxu0 0.0
    %8732 = vmatpush1.xpose.msra.mxu0 %v8723
    %8733 = vmatprep.subr.mxu0 0.0
    %8734 = vmatpush1.xpose.msra.mxu0 %v8726
    %8735 = vmatprep.subr.mxu0 0.0
    %8736 = vmatpush1.xpose.msra.mxu0 %v8729
    %8737 = vmatprep.subr.mxu0 0.0
    %8738 = vmatpush1.xpose.msra.mxu0 0.0
    %8739 = vmatprep.subr.mxu0 0.0
    %8740 = vmatpush1.xpose.msra.mxu0 0.0
    %8741 = vmatprep.subr.mxu0 0.0
    %8742 = vmatpush1.xpose.msra.mxu0 0.0
    %8743 = vmatprep.subr.mxu0 0.0
    %8744 = vmatpush1.xpose.msra.mxu0 0.0
    %8745 = vmatprep.subr.mxu0 0.0
    %8746 = vmatpush1.xpose.msra.mxu0 0.0
    %8747 = vmatprep.subr.mxu0 0.0
    %8748 = vmatpush1.xpose.msra.mxu0 0.0
    %8749 = vmatprep.subr.mxu0 0.0
    %8750 = vmatpush1.xpose.msra.mxu0 0.0
    %8751 = vmatprep.subr.mxu0 0.0
    %8752 = vmatpush1.xpose.msra.mxu0 0.0
    %8753 = vmatprep.subr.mxu0 0.0
    %8754 = vmatpush1.xpose.msra.mxu0 0.0
    %8755 = vmatprep.subr.mxu0 0.0
    %8756 = vmatpush1.xpose.msra.mxu0 0.0
    %8757 = vmatprep.subr.mxu0 0.0
    %8758 = vmatpush1.xpose.msra.mxu0 0.0
    %8759 = vmatprep.subr.mxu0 0.0
    %8760 = vmatpush1.xpose.msra.mxu0 0.0
    %8761 = vmatprep.subr.mxu0 0.0
    %8762 = vmatpush1.xpose.msra.mxu0 0.0
    %8763 = vmatprep.subr.mxu0 0.0
    %8764 = vmatpush1.xpose.msra.mxu0 0.0
    %8765 = vmatprep.subr.mxu0 0.0
    %8766 = vmatpush1.xpose.msra.mxu0 0.0
    %8767 = vmatprep.subr.mxu0 0.0
    %8768 = vmatpush1.xpose.msra.mxu0 0.0
    %8769 = vmatprep.subr.mxu0 0.0
    %8770 = vmatpush1.xpose.msra.mxu0 0.0
    %8771 = vmatprep.subr.mxu0 0.0
    %8772 = vmatpush1.xpose.msra.mxu0 0.0
    %8773 = vmatprep.subr.mxu0 0.0
    %8774 = vmatpush1.xpose.msra.mxu0 0.0
    %8775 = vmatprep.subr.mxu0 0.0
    %8776 = vmatpush1.xpose.msra.mxu0 0.0
    %8777 = vmatprep.subr.mxu0 0.0
    %8778 = vmatpush1.xpose.msra.mxu0 0.0
    %8779 = vmatprep.subr.mxu0 0.0
    %8780 = vmatpush1.xpose.msra.mxu0 0.0
    %8781 = vmatprep.subr.mxu0 0.0
    %8782 = vmatpush1.xpose.msra.mxu0 0.0
    %8783 = vmatprep.subr.mxu0 0.0
    %8784 = vmatpush1.xpose.msra.mxu0 0.0
    %8785 = vmatprep.subr.mxu0 0.0
    %8786 = vmatpush1.xpose.msra.mxu0 0.0
    %8787 = vmatprep.subr.mxu0 0.0
    %8788 = vmatpush1.xpose.msra.mxu0 0.0
    %8789 = vmatprep.subr.mxu0 0.0
    %8790 = vmatpush1.xpose.msra.mxu0 0.0
    %8791 = vmatprep.subr.mxu0 0.0
    %8792 = vmatpush1.xpose.msra.mxu0 0.0
    %8793 = vmatprep.subr.mxu0 0.0
    %8794 = vmatpush1.xpose.msra.mxu0 0.0
    %8795 = vmatprep.mubr.f32.mxu0 0.0
    %8796 = vmatmul.mubr.f32.gmra.mrb[0].mxu0 %v8720
    %v8797 = vpop.f32.mrb[0].mxu0
    %v8798 = vadd.f32 0.0, %v8797
    %v8799 = vpop.f32.mrb[0].mxu0
    %8800 = vdwg.mxu0
    %v8801 = vsel %vm718, %v8458, 0
    %v8804 = vsel %vm718, %v8381, 0
    %v8807 = vsel %vm718, %v8384, 0
    %v8810 = vsel %vm718, %v8389, 0
    %8812 = vmatprep.subr.mxu0 0.0
    %8813 = vmatpush1.xpose.msra.mxu0 %v8804
    %8814 = vmatprep.subr.mxu0 0.0
    %8815 = vmatpush1.xpose.msra.mxu0 %v8807
    %8816 = vmatprep.subr.mxu0 0.0
    %8817 = vmatpush1.xpose.msra.mxu0 %v8810
    %8818 = vmatprep.subr.mxu0 0.0
    %8819 = vmatpush1.xpose.msra.mxu0 0.0
    %8820 = vmatprep.subr.mxu0 0.0
    %8821 = vmatpush1.xpose.msra.mxu0 0.0
    %8822 = vmatprep.subr.mxu0 0.0
    %8823 = vmatpush1.xpose.msra.mxu0 0.0
    %8824 = vmatprep.subr.mxu0 0.0
    %8825 = vmatpush1.xpose.msra.mxu0 0.0
    %8826 = vmatprep.subr.mxu0 0.0
    %8827 = vmatpush1.xpose.msra.mxu0 0.0
    %8828 = vmatprep.subr.mxu0 0.0
    %8829 = vmatpush1.xpose.msra.mxu0 0.0
    %8830 = vmatprep.subr.mxu0 0.0
    %8831 = vmatpush1.xpose.msra.mxu0 0.0
    %8832 = vmatprep.subr.mxu0 0.0
    %8833 = vmatpush1.xpose.msra.mxu0 0.0
    %8834 = vmatprep.subr.mxu0 0.0
    %8835 = vmatpush1.xpose.msra.mxu0 0.0
    %8836 = vmatprep.subr.mxu0 0.0
    %8837 = vmatpush1.xpose.msra.mxu0 0.0
    %8838 = vmatprep.subr.mxu0 0.0
    %8839 = vmatpush1.xpose.msra.mxu0 0.0
    %8840 = vmatprep.subr.mxu0 0.0
    %8841 = vmatpush1.xpose.msra.mxu0 0.0
    %8842 = vmatprep.subr.mxu0 0.0
    %8843 = vmatpush1.xpose.msra.mxu0 0.0
    %8844 = vmatprep.subr.mxu0 0.0
    %8845 = vmatpush1.xpose.msra.mxu0 0.0
    %8846 = vmatprep.subr.mxu0 0.0
    %8847 = vmatpush1.xpose.msra.mxu0 0.0
    %8848 = vmatprep.subr.mxu0 0.0
    %8849 = vmatpush1.xpose.msra.mxu0 0.0
    %8850 = vmatprep.subr.mxu0 0.0
    %8851 = vmatpush1.xpose.msra.mxu0 0.0
    %8852 = vmatprep.subr.mxu0 0.0
    %8853 = vmatpush1.xpose.msra.mxu0 0.0
    %8854 = vmatprep.subr.mxu0 0.0
    %8855 = vmatpush1.xpose.msra.mxu0 0.0
    %8856 = vmatprep.subr.mxu0 0.0
    %8857 = vmatpush1.xpose.msra.mxu0 0.0
    %8858 = vmatprep.subr.mxu0 0.0
    %8859 = vmatpush1.xpose.msra.mxu0 0.0
    %8860 = vmatprep.subr.mxu0 0.0
    %8861 = vmatpush1.xpose.msra.mxu0 0.0
    %8862 = vmatprep.subr.mxu0 0.0
    %8863 = vmatpush1.xpose.msra.mxu0 0.0
    %8864 = vmatprep.subr.mxu0 0.0
    %8865 = vmatpush1.xpose.msra.mxu0 0.0
    %8866 = vmatprep.subr.mxu0 0.0
    %8867 = vmatpush1.xpose.msra.mxu0 0.0
    %8868 = vmatprep.subr.mxu0 0.0
    %8869 = vmatpush1.xpose.msra.mxu0 0.0
    %8870 = vmatprep.subr.mxu0 0.0
    %8871 = vmatpush1.xpose.msra.mxu0 0.0
    %8872 = vmatprep.subr.mxu0 0.0
    %8873 = vmatpush1.xpose.msra.mxu0 0.0
    %8874 = vmatprep.subr.mxu0 0.0
    %8875 = vmatpush1.xpose.msra.mxu0 0.0
    %8876 = vmatprep.mubr.f32.mxu0 0.0
    %8877 = vmatmul.mubr.f32.gmra.mrb[0].mxu0 %v8801
    %v8878 = vpop.f32.mrb[0].mxu0
    %v8879 = vadd.f32 0.0, %v8878
    %v8880 = vpop.f32.mrb[0].mxu0
    %8881 = vdwg.mxu0
    %v8882 = vsel %vm718, %v8472, 0
    %v8885 = vsel %vm718, %v8392, 0
    %v8888 = vsel %vm718, %v8397, 0
    %v8891 = vsel %vm718, %v8400, 0
    %8893 = vmatprep.subr.mxu0 0.0
    %8894 = vmatpush1.xpose.msra.mxu0 %v8885
    %8895 = vmatprep.subr.mxu0 0.0
    %8896 = vmatpush1.xpose.msra.mxu0 %v8888
    %8897 = vmatprep.subr.mxu0 0.0
    %8898 = vmatpush1.xpose.msra.mxu0 %v8891
    %8899 = vmatprep.subr.mxu0 0.0
    %8900 = vmatpush1.xpose.msra.mxu0 0.0
    %8901 = vmatprep.subr.mxu0 0.0
    %8902 = vmatpush1.xpose.msra.mxu0 0.0
    %8903 = vmatprep.subr.mxu0 0.0
    %8904 = vmatpush1.xpose.msra.mxu0 0.0
    %8905 = vmatprep.subr.mxu0 0.0
    %8906 = vmatpush1.xpose.msra.mxu0 0.0
    %8907 = vmatprep.subr.mxu0 0.0
    %8908 = vmatpush1.xpose.msra.mxu0 0.0
    %8909 = vmatprep.subr.mxu0 0.0
    %8910 = vmatpush1.xpose.msra.mxu0 0.0
    %8911 = vmatprep.subr.mxu0 0.0
    %8912 = vmatpush1.xpose.msra.mxu0 0.0
    %8913 = vmatprep.subr.mxu0 0.0
    %8914 = vmatpush1.xpose.msra.mxu0 0.0
    %8915 = vmatprep.subr.mxu0 0.0
    %8916 = vmatpush1.xpose.msra.mxu0 0.0
    %8917 = vmatprep.subr.mxu0 0.0
    %8918 = vmatpush1.xpose.msra.mxu0 0.0
    %8919 = vmatprep.subr.mxu0 0.0
    %8920 = vmatpush1.xpose.msra.mxu0 0.0
    %8921 = vmatprep.subr.mxu0 0.0
    %8922 = vmatpush1.xpose.msra.mxu0 0.0
    %8923 = vmatprep.subr.mxu0 0.0
    %8924 = vmatpush1.xpose.msra.mxu0 0.0
    %8925 = vmatprep.subr.mxu0 0.0
    %8926 = vmatpush1.xpose.msra.mxu0 0.0
    %8927 = vmatprep.subr.mxu0 0.0
    %8928 = vmatpush1.xpose.msra.mxu0 0.0
    %8929 = vmatprep.subr.mxu0 0.0
    %8930 = vmatpush1.xpose.msra.mxu0 0.0
    %8931 = vmatprep.subr.mxu0 0.0
    %8932 = vmatpush1.xpose.msra.mxu0 0.0
    %8933 = vmatprep.subr.mxu0 0.0
    %8934 = vmatpush1.xpose.msra.mxu0 0.0
    %8935 = vmatprep.subr.mxu0 0.0
    %8936 = vmatpush1.xpose.msra.mxu0 0.0
    %8937 = vmatprep.subr.mxu0 0.0
    %8938 = vmatpush1.xpose.msra.mxu0 0.0
    %8939 = vmatprep.subr.mxu0 0.0
    %8940 = vmatpush1.xpose.msra.mxu0 0.0
    %8941 = vmatprep.subr.mxu0 0.0
    %8942 = vmatpush1.xpose.msra.mxu0 0.0
    %8943 = vmatprep.subr.mxu0 0.0
    %8944 = vmatpush1.xpose.msra.mxu0 0.0
    %8945 = vmatprep.subr.mxu0 0.0
    %8946 = vmatpush1.xpose.msra.mxu0 0.0
    %8947 = vmatprep.subr.mxu0 0.0
    %8948 = vmatpush1.xpose.msra.mxu0 0.0
    %8949 = vmatprep.subr.mxu0 0.0
    %8950 = vmatpush1.xpose.msra.mxu0 0.0
    %8951 = vmatprep.subr.mxu0 0.0
    %8952 = vmatpush1.xpose.msra.mxu0 0.0
    %8953 = vmatprep.subr.mxu0 0.0
    %8954 = vmatpush1.xpose.msra.mxu0 0.0
    %8955 = vmatprep.subr.mxu0 0.0
    %8956 = vmatpush1.xpose.msra.mxu0 0.0
    %8957 = vmatprep.mubr.f32.mxu0 0.0
    %8958 = vmatmul.mubr.f32.gmra.mrb[0].mxu0 %v8882
    %v8959 = vpop.f32.mrb[0].mxu0
    %v8960 = vadd.f32 0.0, %v8959
    %v8961 = vpop.f32.mrb[0].mxu0
    %8962 = vdwg.mxu0
    %v8963 = vsel %vm718, %v8474, 0
    %v8966 = vsel %vm718, %v8405, 0
    %v8969 = vsel %vm718, %v8408, 0
    %v8972 = vsel %vm718, %v8413, 0
    %8974 = vmatprep.subr.mxu0 0.0
    %8975 = vmatpush1.xpose.msra.mxu0 %v8966
    %8976 = vmatprep.subr.mxu0 0.0
    %8977 = vmatpush1.xpose.msra.mxu0 %v8969
    %8978 = vmatprep.subr.mxu0 0.0
    %8979 = vmatpush1.xpose.msra.mxu0 %v8972
    %8980 = vmatprep.subr.mxu0 0.0
    %8981 = vmatpush1.xpose.msra.mxu0 0.0
    %8982 = vmatprep.subr.mxu0 0.0
    %8983 = vmatpush1.xpose.msra.mxu0 0.0
    %8984 = vmatprep.subr.mxu0 0.0
    %8985 = vmatpush1.xpose.msra.mxu0 0.0
    %8986 = vmatprep.subr.mxu0 0.0
    %8987 = vmatpush1.xpose.msra.mxu0 0.0
    %8988 = vmatprep.subr.mxu0 0.0
    %8989 = vmatpush1.xpose.msra.mxu0 0.0
    %8990 = vmatprep.subr.mxu0 0.0
    %8991 = vmatpush1.xpose.msra.mxu0 0.0
    %8992 = vmatprep.subr.mxu0 0.0
    %8993 = vmatpush1.xpose.msra.mxu0 0.0
    %8994 = vmatprep.subr.mxu0 0.0
    %8995 = vmatpush1.xpose.msra.mxu0 0.0
    %8996 = vmatprep.subr.mxu0 0.0
    %8997 = vmatpush1.xpose.msra.mxu0 0.0
    %8998 = vmatprep.subr.mxu0 0.0
    %8999 = vmatpush1.xpose.msra.mxu0 0.0
    %9000 = vmatprep.subr.mxu0 0.0
    %9001 = vmatpush1.xpose.msra.mxu0 0.0
    %9002 = vmatprep.subr.mxu0 0.0
    %9003 = vmatpush1.xpose.msra.mxu0 0.0
    %9004 = vmatprep.subr.mxu0 0.0
    %9005 = vmatpush1.xpose.msra.mxu0 0.0
    %9006 = vmatprep.subr.mxu0 0.0
    %9007 = vmatpush1.xpose.msra.mxu0 0.0
    %9008 = vmatprep.subr.mxu0 0.0
    %9009 = vmatpush1.xpose.msra.mxu0 0.0
    %9010 = vmatprep.subr.mxu0 0.0
    %9011 = vmatpush1.xpose.msra.mxu0 0.0
    %9012 = vmatprep.subr.mxu0 0.0
    %9013 = vmatpush1.xpose.msra.mxu0 0.0
    %9014 = vmatprep.subr.mxu0 0.0
    %9015 = vmatpush1.xpose.msra.mxu0 0.0
    %9016 = vmatprep.subr.mxu0 0.0
    %9017 = vmatpush1.xpose.msra.mxu0 0.0
    %9018 = vmatprep.subr.mxu0 0.0
    %9019 = vmatpush1.xpose.msra.mxu0 0.0
    %9020 = vmatprep.subr.mxu0 0.0
    %9021 = vmatpush1.xpose.msra.mxu0 0.0
    %9022 = vmatprep.subr.mxu0 0.0
    %9023 = vmatpush1.xpose.msra.mxu0 0.0
    %9024 = vmatprep.subr.mxu0 0.0
    %9025 = vmatpush1.xpose.msra.mxu0 0.0
    %9026 = vmatprep.subr.mxu0 0.0
    %9027 = vmatpush1.xpose.msra.mxu0 0.0
    %9028 = vmatprep.subr.mxu0 0.0
    %9029 = vmatpush1.xpose.msra.mxu0 0.0
    %9030 = vmatprep.subr.mxu0 0.0
    %9031 = vmatpush1.xpose.msra.mxu0 0.0
    %9032 = vmatprep.subr.mxu0 0.0
    %9033 = vmatpush1.xpose.msra.mxu0 0.0
    %9034 = vmatprep.subr.mxu0 0.0
    %9035 = vmatpush1.xpose.msra.mxu0 0.0
    %9036 = vmatprep.subr.mxu0 0.0
    %9037 = vmatpush1.xpose.msra.mxu0 0.0
    %9038 = vmatprep.mubr.f32.mxu0 0.0
    %9039 = vmatmul.mubr.f32.gmra.mrb[0].mxu0 %v8963
    %v9040 = vpop.f32.mrb[0].mxu0
    %v9041 = vadd.f32 0.0, %v9040
    %v9042 = vpop.f32.mrb[0].mxu0
    %9043 = vdwg.mxu0
    %v9044 = vsel %vm718, %v8476, 0
    %v9047 = vsel %vm718, %v8416, 0
    %v9050 = vsel %vm718, %v8421, 0
    %v9053 = vsel %vm718, %v8424, 0
    %9055 = vmatprep.subr.mxu0 0.0
    %9056 = vmatpush1.xpose.msra.mxu0 %v9047
    %9057 = vmatprep.subr.mxu0 0.0
    %9058 = vmatpush1.xpose.msra.mxu0 %v9050
    %9059 = vmatprep.subr.mxu0 0.0
    %9060 = vmatpush1.xpose.msra.mxu0 %v9053
    %9061 = vmatprep.subr.mxu0 0.0
    %9062 = vmatpush1.xpose.msra.mxu0 0.0
    %9063 = vmatprep.subr.mxu0 0.0
    %9064 = vmatpush1.xpose.msra.mxu0 0.0
    %9065 = vmatprep.subr.mxu0 0.0
    %9066 = vmatpush1.xpose.msra.mxu0 0.0
    %9067 = vmatprep.subr.mxu0 0.0
    %9068 = vmatpush1.xpose.msra.mxu0 0.0
    %9069 = vmatprep.subr.mxu0 0.0
    %9070 = vmatpush1.xpose.msra.mxu0 0.0
    %9071 = vmatprep.subr.mxu0 0.0
    %9072 = vmatpush1.xpose.msra.mxu0 0.0
    %9073 = vmatprep.subr.mxu0 0.0
    %9074 = vmatpush1.xpose.msra.mxu0 0.0
    %9075 = vmatprep.subr.mxu0 0.0
    %9076 = vmatpush1.xpose.msra.mxu0 0.0
    %9077 = vmatprep.subr.mxu0 0.0
    %9078 = vmatpush1.xpose.msra.mxu0 0.0
    %9079 = vmatprep.subr.mxu0 0.0
    %9080 = vmatpush1.xpose.msra.mxu0 0.0
    %9081 = vmatprep.subr.mxu0 0.0
    %9082 = vmatpush1.xpose.msra.mxu0 0.0
    %9083 = vmatprep.subr.mxu0 0.0
    %9084 = vmatpush1.xpose.msra.mxu0 0.0
    %9085 = vmatprep.subr.mxu0 0.0
    %9086 = vmatpush1.xpose.msra.mxu0 0.0
    %9087 = vmatprep.subr.mxu0 0.0
    %9088 = vmatpush1.xpose.msra.mxu0 0.0
    %9089 = vmatprep.subr.mxu0 0.0
    %9090 = vmatpush1.xpose.msra.mxu0 0.0
    %9091 = vmatprep.subr.mxu0 0.0
    %9092 = vmatpush1.xpose.msra.mxu0 0.0
    %9093 = vmatprep.subr.mxu0 0.0
    %9094 = vmatpush1.xpose.msra.mxu0 0.0
    %9095 = vmatprep.subr.mxu0 0.0
    %9096 = vmatpush1.xpose.msra.mxu0 0.0
    %9097 = vmatprep.subr.mxu0 0.0
    %9098 = vmatpush1.xpose.msra.mxu0 0.0
    %9099 = vmatprep.subr.mxu0 0.0
    %9100 = vmatpush1.xpose.msra.mxu0 0.0
    %9101 = vmatprep.subr.mxu0 0.0
    %9102 = vmatpush1.xpose.msra.mxu0 0.0
    %9103 = vmatprep.subr.mxu0 0.0
    %9104 = vmatpush1.xpose.msra.mxu0 0.0
    %9105 = vmatprep.subr.mxu0 0.0
    %9106 = vmatpush1.xpose.msra.mxu0 0.0
    %9107 = vmatprep.subr.mxu0 0.0
    %9108 = vmatpush1.xpose.msra.mxu0 0.0
    %9109 = vmatprep.subr.mxu0 0.0
    %9110 = vmatpush1.xpose.msra.mxu0 0.0
    %9111 = vmatprep.subr.mxu0 0.0
    %9112 = vmatpush1.xpose.msra.mxu0 0.0
    %9113 = vmatprep.subr.mxu0 0.0
    %9114 = vmatpush1.xpose.msra.mxu0 0.0
    %9115 = vmatprep.subr.mxu0 0.0
    %9116 = vmatpush1.xpose.msra.mxu0 0.0
    %9117 = vmatprep.subr.mxu0 0.0
    %9118 = vmatpush1.xpose.msra.mxu0 0.0
    %9119 = vmatprep.mubr.f32.mxu0 0.0
    %9120 = vmatmul.mubr.f32.gmra.mrb[0].mxu0 %v9044
    %v9121 = vpop.f32.mrb[0].mxu0
    %v9122 = vadd.f32 0.0, %v9121
    %v9123 = vpop.f32.mrb[0].mxu0
    %9124 = vdwg.mxu0
    %v9125 = vmul.f32 %v8555, 0.17677669
    %v9126 = vmul.f32 %v8636, 0.17677669
    %v9127 = vmul.f32 %v8717, 0.17677669
    %v9128 = vmul.f32 %v8798, 0.17677669
    %v9129 = vmul.f32 %v8879, 0.17677669
    %v9130 = vmul.f32 %v8960, 0.17677669
    %v9131 = vmul.f32 %v9041, 0.17677669
    %v9132 = vmul.f32 %v9122, 0.17677669
    %v9133 = vtanh.pop %v9125
    %v9134 = vtanh.pop %v9126
    %v9135 = vtanh.pop %v9127
    %v9136 = vtanh.pop %v9128
    %v9137 = vtanh.pop %v9129
    %v9138 = vtanh.pop %v9130
    %v9139 = vtanh.pop %v9131
    %v9140 = vtanh.pop %v9132
    %v9141 = vmul.f32 %v9133, 10.0
    %v9142 = vmul.f32 %v9134, 10.0
    %v9143 = vmul.f32 %v9135, 10.0
    %v9144 = vmul.f32 %v9136, 10.0
    %v9145 = vmul.f32 %v9137, 10.0
    %v9146 = vmul.f32 %v9138, 10.0
    %v9147 = vmul.f32 %v9139, 10.0
    %v9148 = vmul.f32 %v9140, 10.0
    %vm9149 = vcmask 122944
    %v9150 = vsel %vm9149, %v9141, -inf
    %9151 = vmax.xlane.f32.xlu0 %v9150
    %v9152 = vpop.xlane.xlu0 %9151
    %v9153 = vsel %vm9149, %v9142, -inf
    %9154 = vmax.xlane.f32.xlu0 %v9153
    %v9155 = vpop.xlane.xlu0 %9154
    %v9156 = vsel %vm9149, %v9143, -inf
    %9157 = vmax.xlane.f32.xlu0 %v9156
    %v9158 = vpop.xlane.xlu0 %9157
    %v9159 = vsel %vm9149, %v9144, -inf
    %9160 = vmax.xlane.f32.xlu0 %v9159
    %v9161 = vpop.xlane.xlu0 %9160
    %v9162 = vsel %vm9149, %v9145, -inf
    %9163 = vmax.xlane.f32.xlu0 %v9162
    %v9164 = vpop.xlane.xlu0 %9163
    %v9165 = vsel %vm9149, %v9146, -inf
    %9166 = vmax.xlane.f32.xlu0 %v9165
    %v9167 = vpop.xlane.xlu0 %9166
    %v9168 = vsel %vm9149, %v9147, -inf
    %9169 = vmax.xlane.f32.xlu0 %v9168
    %v9170 = vpop.xlane.xlu0 %9169
    %v9171 = vsel %vm9149, %v9148, -inf
    %9172 = vmax.xlane.f32.xlu0 %v9171
    %v9173 = vpop.xlane.xlu0 %9172
    %v9174 = vsub.f32 %v9141, %v9152
    %v9175 = vsub.f32 %v9142, %v9155
    %v9176 = vsub.f32 %v9143, %v9158
    %v9177 = vsub.f32 %v9144, %v9161
    %v9178 = vsub.f32 %v9145, %v9164
    %v9179 = vsub.f32 %v9146, %v9167
    %v9180 = vsub.f32 %v9147, %v9170
    %v9181 = vsub.f32 %v9148, %v9173
    %v9182 = vmul.f32 %v9174, 1.442695
    %v9183 = vpow.pop %v9182
    %v9184 = vmul.f32 %v9175, 1.442695
    %v9185 = vpow.pop %v9184
    %v9186 = vmul.f32 %v9176, 1.442695
    %v9187 = vpow.pop %v9186
    %v9188 = vmul.f32 %v9177, 1.442695
    %v9189 = vpow.pop %v9188
    %v9190 = vmul.f32 %v9178, 1.442695
    %v9191 = vpow.pop %v9190
    %v9192 = vmul.f32 %v9179, 1.442695
    %v9193 = vpow.pop %v9192
    %v9194 = vmul.f32 %v9180, 1.442695
    %v9195 = vpow.pop %v9194
    %v9196 = vmul.f32 %v9181, 1.442695
    %v9197 = vpow.pop %v9196
    %9206 = vrot.lane.b32.xlu0 %v9183, 120
    %v9207 = vpop.permute.xlu0 %9206
    %9208 = vrot.lane.b32.xlu0 %v9185, 120
    %v9209 = vpop.permute.xlu0 %9208
    %9210 = vrot.lane.b32.xlu0 %v9187, 120
    %v9211 = vpop.permute.xlu0 %9210
    %9212 = vrot.lane.b32.xlu0 %v9189, 120
    %v9213 = vpop.permute.xlu0 %9212
    %9214 = vrot.lane.b32.xlu0 %v9191, 120
    %v9215 = vpop.permute.xlu0 %9214
    %9216 = vrot.lane.b32.xlu0 %v9193, 120
    %v9217 = vpop.permute.xlu0 %9216
    %9218 = vrot.lane.b32.xlu0 %v9195, 120
    %v9219 = vpop.permute.xlu0 %9218
    %9220 = vrot.lane.b32.xlu0 %v9197, 120
    %v9221 = vpop.permute.xlu0 %9220
    %vm9230 = vcmask 57344
    %v9231 = vsel %vm9230, %v9207, 0.0
    %9232 = vadd.xlane.f32.xlu0 %v9231
    %v9233 = vpop.xlane.xlu0 %9232
    %v9234 = vsel %vm9230, %v9209, 0.0
    %9235 = vadd.xlane.f32.xlu0 %v9234
    %v9236 = vpop.xlane.xlu0 %9235
    %v9237 = vsel %vm9230, %v9211, 0.0
    %9238 = vadd.xlane.f32.xlu0 %v9237
    %v9239 = vpop.xlane.xlu0 %9238
    %v9240 = vsel %vm9230, %v9213, 0.0
    %9241 = vadd.xlane.f32.xlu0 %v9240
    %v9242 = vpop.xlane.xlu0 %9241
    %v9243 = vsel %vm9230, %v9215, 0.0
    %9244 = vadd.xlane.f32.xlu0 %v9243
    %v9245 = vpop.xlane.xlu0 %9244
    %v9246 = vsel %vm9230, %v9217, 0.0
    %9247 = vadd.xlane.f32.xlu0 %v9246
    %v9248 = vpop.xlane.xlu0 %9247
    %v9249 = vsel %vm9230, %v9219, 0.0
    %9250 = vadd.xlane.f32.xlu0 %v9249
    %v9251 = vpop.xlane.xlu0 %9250
    %v9252 = vsel %vm9230, %v9221, 0.0
    %9253 = vadd.xlane.f32.xlu0 %v9252
    %v9254 = vpop.xlane.xlu0 %9253
    %v9255 = vrcp.pop %v9233
    %v9256 = vmul.f32 %v9183, %v9255
    %v9257 = vrcp.pop %v9236
    %v9258 = vmul.f32 %v9185, %v9257
    %v9259 = vrcp.pop %v9239
    %v9260 = vmul.f32 %v9187, %v9259
    %v9261 = vrcp.pop %v9242
    %v9262 = vmul.f32 %v9189, %v9261
    %v9263 = vrcp.pop %v9245
    %v9264 = vmul.f32 %v9191, %v9263
    %v9265 = vrcp.pop %v9248
    %v9266 = vmul.f32 %v9193, %v9265
    %v9267 = vrcp.pop %v9251
    %v9268 = vmul.f32 %v9195, %v9267
    %v9269 = vrcp.pop %v9254
    %v9270 = vmul.f32 %v9197, %v9269
    %v9271 = vmul.f32 %v9256, %v91
    %v9272 = vmul.f32 %v9258, %v92
    %v9273 = vmul.f32 %v9260, %v93
    %v9274 = vmul.f32 %v9262, %v94
    %v9275 = vmul.f32 %v9264, %v95
    %v9276 = vmul.f32 %v9266, %v96
    %v9277 = vmul.f32 %v9268, %v97
    %v9278 = vmul.f32 %v9270, %v98
    %9279 = vst.msk [vmem:[#allocation2] sm:$0xff] %vm718, %v8229
    %v9288 = vrot.slane %v9272, 7
    %v9289 = vsel %vm8158, %v9288, %v9271
    %v9290 = vrot.slane %v9273, 6
    %v9291 = vsel %vm8161, %v9290, %v9289
    %v9292 = vrot.slane %v9274, 5
    %v9293 = vsel %vm8164, %v9292, %v9291
    %v9294 = vrot.slane %v9275, 4
    %v9295 = vsel %vm8167, %v9294, %v9293
    %v9296 = vrot.slane %v9276, 3
    %v9297 = vsel %vm8170, %v9296, %v9295
    %v9298 = vrot.slane %v9277, 2
    %v9299 = vsel %vm8173, %v9298, %v9297
    %v9300 = vrot.slane %v9278, 1
    %v9301 = vsel %vm8176, %v9300, %v9299
    %9302 = vrot.lane.b32.xlu0 %v9301, 120
    %v9303 = vpop.permute.xlu0 %9302
    %vm9305 = vcmask 64512
    %9306 = vst.msk [vmem:[#allocation4] sm:$0xff] %vm9305, %v9303
    // Predicated region
    $region78: #{tpu_custom_call.1} parent=1 // pred_check
      _
    $region79: #{tpu_custom_call.1} parent=1 // pred_check_branch
      %9308 = sbr.rel (0) target = $region81
    $region80: #{tpu_custom_call.1} parent=1 // pred_region
      %s9310 = ssub.s32 128, 128
      %9311 = vsyncadd [#allocation3], %s9310
      %s9313 = sshll.u32 [#allocation2], 4
      %s9314 = int_to_ptr.vmem [resolvable:$true] %s9313
      %9316 = dma.vmem_to_hbm [thread:$0]  %s9314, 128, %s19, [#allocation3]
    $region81: #{tpu_custom_call.1} parent=1 // pred_fallthru
      _
    // Predicated region
    $region82: #{tpu_custom_call.1} parent=1 // pred_check
      _
    $region83: #{tpu_custom_call.1} parent=1 // pred_check_branch
      %9318 = sbr.rel (0) target = $region85
    $region84: #{tpu_custom_call.1} parent=1 // pred_region
      %s9320 = ssub.s32 128, 128
      %9321 = vsyncadd [#allocation5], %s9320
      %s9323 = sshll.u32 [#allocation4], 4
      %s9324 = int_to_ptr.vmem [resolvable:$true] %s9323
      %9326 = dma.vmem_to_hbm [thread:$0]  %s9324, 128, %s20, [#allocation5]
    $region85: #{tpu_custom_call.1} parent=1 // pred_fallthru
      _
    // Predicated region
    $region86: #{tpu_custom_call.1} parent=1 // pred_check
      _
    $region87: #{tpu_custom_call.1} parent=1 // pred_check_branch
      %9328 = sbr.rel (0) target = $region89
    $region88: #{tpu_custom_call.1} parent=1 // pred_region
      %9329 = dma.done [#allocation3], 128
    $region89: #{tpu_custom_call.1} parent=1 // pred_fallthru
      _
    // Predicated region
    $region90: #{tpu_custom_call.1} parent=1 // pred_check
      _
    $region91: #{tpu_custom_call.1} parent=1 // pred_check_branch
      %9331 = sbr.rel (0) target = $region93
    $region92: #{tpu_custom_call.1} parent=1 // pred_region
      %9332 = dma.done [#allocation5], 128
    $region93: #{tpu_custom_call.1} parent=1 // pred_fallthru
      _
    %9333 = vsyncpa [#allocation3], 1
    %9334 = vsyncpa [#allocation5], 1

</llo_original>
